<compile_context>
chip_gen: v7x
topology: tpu7x:2x2x1
jax: 0.10.0
libtpu: 0.0.40
codegen_flags: <defaults>
</compile_context>

<pallas_src>
import jax
import jax.numpy as jnp
from jax.experimental import pallas as pl
from jax.experimental.pallas import tpu as pltpu


# ---------------------------- in-kernel building blocks ----------------------------

def _conv3x3_bn_prelu(x3d, w_ref, s_ref, t_ref, a_ref, Ho, Wo):
    """Valid 3x3 conv (stride 1) + folded eval-mode BatchNorm + PReLU.

    x3d:   (H, W, Cin) f32 value (VMEM resident).
    w_ref: (9, Cin, Cout) bf16 ref, k = dy*3 + dx.
    s/t/a: (1, Cout) f32 refs (BN scale, BN shift, PReLU alpha).
    Returns (Ho*Wo, Cout) f32, rows ordered (h, w) with w fastest.
    """
    cin = x3d.shape[-1]
    cout = w_ref.shape[-1]
    acc = jnp.zeros((Ho * Wo, cout), jnp.float32)
    for dy in range(3):
        for dx in range(3):
            # in-kernel im2col: shifted window flattened to a row-matrix slab
            patch = x3d[dy:dy + Ho, dx:dx + Wo, :].reshape(Ho * Wo, cin)
            acc = acc + jnp.dot(patch.astype(jnp.bfloat16),
                                w_ref[dy * 3 + dx],
                                preferred_element_type=jnp.float32)
    y = acc * s_ref[...] + t_ref[...]                   # folded BatchNorm (eval stats)
    return jnp.where(y > 0.0, y, a_ref[...] * y)        # PReLU (per-channel alpha)


def _maxpool2x2(y2d, Ho, Wo):
    """2x2 stride-2 max pool of a (Ho*Wo, C) conv output (rows (h, w), w fastest).

    Ho, Wo must be even; the wrapper crops the input so they are, which is
    numerically identical to PyTorch's floor-mode MaxPool2d(2, 2).
    Returns (Ho//2, Wo//2, C) f32.
    """
    c = y2d.shape[-1]
    Hp, Wp = Ho // 2, Wo // 2
    pairs = y2d.reshape(Ho * Wp, 2, c)                   # adjacent w-pairs are adjacent rows
    colmax = jnp.maximum(pairs[:, 0, :], pairs[:, 1, :])  # (Ho*Wp, c)
    rows = colmax.reshape(Hp, 2, Wp, c)                  # group adjacent h-pairs
    return jnp.maximum(rows[:, 0], rows[:, 1])           # (Hp, Wp, c)


# ---------------------------- fused kernel ----------------------------

def _pnet_fused_kernel(x_ref, w1_ref, s1_ref, t1_ref, a1_ref,
                       w2_ref, s2_ref, t2_ref, a2_ref,
                       w3_ref, s3_ref, t3_ref, a3_ref,
                       wh_ref, bh_ref, o_ref):
    _, H, W, _ = x_ref.shape
    Ho1, Wo1 = H - 2, W - 2
    Hp, Wp = Ho1 // 2, Wo1 // 2
    Ho2, Wo2 = Hp - 2, Wp - 2
    Ho3, Wo3 = Ho2 - 2, Wo2 - 2

    x = x_ref[0]                                                  # (H, W, 3) f32

    # conv1 (3->10) + BN + PReLU, then fused MaxPool2d(2, 2)
    y1 = _conv3x3_bn_prelu(x, w1_ref, s1_ref, t1_ref, a1_ref, Ho1, Wo1)
    p1 = _maxpool2x2(y1, Ho1, Wo1)                                # (Hp, Wp, 10)

    # conv2 (10->16) + BN + PReLU
    y2 = _conv3x3_bn_prelu(p1, w2_ref, s2_ref, t2_ref, a2_ref, Ho2, Wo2)
    y2 = y2.reshape(Ho2, Wo2, y2.shape[1])                        # (Ho2, Wo2, 16)

    # conv3 (16->32) + BN + PReLU
    feat = _conv3x3_bn_prelu(y2, w3_ref, s3_ref, t3_ref, a3_ref, Ho3, Wo3)  # (M3, 32)

    # merged lane-dense 1x1 heads: col 0 = classifier, cols 1..4 = offsets
    z = jnp.dot(feat.astype(jnp.bfloat16), wh_ref[...],
                preferred_element_type=jnp.float32) + bh_ref[...]  # (M3, 5)
    sig = pl.reciprocal(1.0 + jnp.exp(-z), approx=True)            # sigmoid via EUP slot
    col = jax.lax.broadcasted_iota(jnp.int32, z.shape, 1)
    o_ref[0] = jnp.where(col == 0, sig, z)


# ---------------------------- wrapper ----------------------------

def pnet_forward(x_nchw, params):
    """PNet forward.  x_nchw: (N, 3, H, W) float32.  Returns (cls, offset) in NCHW."""
    x = jnp.transpose(x_nchw, (0, 2, 3, 1)).astype(jnp.float32)    # NHWC
    N, H, W, _ = x.shape

    # Crop H, W to even.  When H-2 (W-2) is odd, PyTorch's floor-mode
    # MaxPool2d(2,2) drops the last conv1 row (col); cropping the single input
    # row (col) that only feeds that dropped conv output is numerically identical.
    He, We = H - (H % 2), W - (W % 2)
    x = x[:, :He, :We, :]

    Ho1, Wo1 = He - 2, We - 2
    Hp, Wp = Ho1 // 2, Wo1 // 2
    Ho3, Wo3 = Hp - 4, Wp - 4
    if Ho3 < 1 or Wo3 < 1:
        raise ValueError("input spatial dims too small for PNet")
    M3 = Ho3 * Wo3

    def whole(shape):
        zeros = (0,) * len(shape)
        return pl.BlockSpec(shape, lambda n: zeros)

    weight_order = ['w1', 's1', 't1', 'a1',
                    'w2', 's2', 't2', 'a2',
                    'w3', 's3', 't3', 'a3',
                    'wh', 'bh']
    weight_args = [params[k] for k in weight_order]

    in_specs = [pl.BlockSpec((1, He, We, 3), lambda n: (n, 0, 0, 0))]
    in_specs += [whole(w.shape) for w in weight_args]

    out = pl.pallas_call(
        _pnet_fused_kernel,
        out_shape=jax.ShapeDtypeStruct((N, M3, 5), jnp.float32),
        grid=(N,),
        in_specs=in_specs,
        out_specs=pl.BlockSpec((1, M3, 5), lambda n: (n, 0, 0)),
        compiler_params=pltpu.CompilerParams(
            dimension_semantics=("parallel",),       # shard batch across TCs (v7x megacore)
            vmem_limit_bytes=32 * 1024 * 1024),      # fits v5e/v6e/v7x scoped VMEM
    )(x, *weight_args)

    out = out.reshape(N, Ho3, Wo3, 5)
    cls = jnp.transpose(out[..., 0:1], (0, 3, 1, 2))   # (N, 1, Ho3, Wo3)
    off = jnp.transpose(out[..., 1:5], (0, 3, 1, 2))   # (N, 4, Ho3, Wo3)
    return cls, off


# ---------------------------- parameters ----------------------------

def _fold_bn(conv_bias, gamma, beta, mean, var, eps=1e-5):
    # eval-mode BatchNorm folded into scale/shift applied after the conv matmul.
    scale = gamma / jnp.sqrt(var + eps)
    shift = (conv_bias - mean) * scale + beta
    return (scale.reshape(1, -1).astype(jnp.float32),
            shift.reshape(1, -1).astype(jnp.float32))


def init_params(key):
    ks = jax.random.split(key, 4)

    def conv_block(k, cin, cout):
        kw, kb, kg, kbt, km = jax.random.split(k, 5)
        w = 0.1 * jax.random.normal(kw, (3, 3, cin, cout), jnp.float32)
        b = 0.1 * jax.random.normal(kb, (cout,), jnp.float32)
        gamma = 1.0 + 0.05 * jax.random.normal(kg, (cout,), jnp.float32)
        beta = 0.05 * jax.random.normal(kbt, (cout,), jnp.float32)
        mean = 0.05 * jax.random.normal(km, (cout,), jnp.float32)
        var = jnp.ones((cout,), jnp.float32)
        scale, shift = _fold_bn(b, gamma, beta, mean, var)
        alpha = jnp.full((1, cout), 0.25, jnp.float32)       # PReLU default init
        # (3,3,cin,cout) -> (9, cin, cout); bf16 MXU operands, f32 accumulate in-kernel.
        return w.reshape(9, cin, cout).astype(jnp.bfloat16), scale, shift, alpha

    p = {}
    p['w1'], p['s1'], p['t1'], p['a1'] = conv_block(ks[0], 3, 10)
    p['w2'], p['s2'], p['t2'], p['a2'] = conv_block(ks[1], 10, 16)
    p['w3'], p['s3'], p['t3'], p['a3'] = conv_block(ks[2], 16, 32)

    kh = jax.random.split(ks[3], 4)
    w41 = 0.1 * jax.random.normal(kh[0], (32, 1), jnp.float32)   # conv4_1 (cls)
    b41 = 0.1 * jax.random.normal(kh[1], (1,), jnp.float32)
    w42 = 0.1 * jax.random.normal(kh[2], (32, 4), jnp.float32)   # conv4_2 (offsets)
    b42 = 0.1 * jax.random.normal(kh[3], (4,), jnp.float32)
    # merged lane-dense head: column 0 = classifier, columns 1..4 = offsets
    p['wh'] = jnp.concatenate([w41, w42], axis=1).astype(jnp.bfloat16)   # (32, 5)
    p['bh'] = jnp.concatenate([b41, b42]).reshape(1, 5).astype(jnp.float32)
    return p


if __name__ == "__main__":
    key = jax.random.PRNGKey(0)
    kx, kp = jax.random.split(key)
    x = jax.random.normal(kx, (2, 3, 16, 16), jnp.float32)   # NCHW, like PyTorch
    params = init_params(kp)

    cls, off = jax.jit(pnet_forward)(x, params)
    jax.block_until_ready((cls, off))

    assert cls.shape == (2, 1, 3, 3), cls.shape
    assert off.shape == (2, 4, 3, 3), off.shape
    assert bool(jnp.all(jnp.isfinite(cls))) and bool(jnp.all(jnp.isfinite(off)))
    print("KERNEL_OK")
</pallas_src>

<mosaic_0001>
module attributes {stable_mosaic.version = 11 : i64} {
  func.func @_pnet_fused_kernel(%arg0: i32, %arg1: memref<1x16x16x3xf32, #tpu.memory_space<vmem>>, %arg2: memref<9x3x10xbf16, #tpu.memory_space<vmem>>, %arg3: memref<1x10xf32, #tpu.memory_space<vmem>>, %arg4: memref<1x10xf32, #tpu.memory_space<vmem>>, %arg5: memref<1x10xf32, #tpu.memory_space<vmem>>, %arg6: memref<9x10x16xbf16, #tpu.memory_space<vmem>>, %arg7: memref<1x16xf32, #tpu.memory_space<vmem>>, %arg8: memref<1x16xf32, #tpu.memory_space<vmem>>, %arg9: memref<1x16xf32, #tpu.memory_space<vmem>>, %arg10: memref<9x16x32xbf16, #tpu.memory_space<vmem>>, %arg11: memref<1x32xf32, #tpu.memory_space<vmem>>, %arg12: memref<1x32xf32, #tpu.memory_space<vmem>>, %arg13: memref<1x32xf32, #tpu.memory_space<vmem>>, %arg14: memref<32x5xbf16, #tpu.memory_space<vmem>>, %arg15: memref<1x5xf32, #tpu.memory_space<vmem>>, %arg16: memref<1x9x5xf32, #tpu.memory_space<vmem>>) attributes {dimension_semantics = [#tpu.dimension_semantics<parallel>], iteration_bounds = array<i64: 2>, scalar_prefetch = 0 : i64, scratch_operands = 0 : i64, tpu.core_type = #tpu.core_type<tc>, window_params = [{transform_indices = @transform_0, window_bounds = array<i64: 1, 16, 16, 3>}, {pipeline_mode = #tpu.pipeline_mode<synchronous>, transform_indices = @transform_1, window_bounds = array<i64: 9, 3, 10>}, {pipeline_mode = #tpu.pipeline_mode<synchronous>, transform_indices = @transform_2, window_bounds = array<i64: 1, 10>}, {pipeline_mode = #tpu.pipeline_mode<synchronous>, transform_indices = @transform_3, window_bounds = array<i64: 1, 10>}, {pipeline_mode = #tpu.pipeline_mode<synchronous>, transform_indices = @transform_4, window_bounds = array<i64: 1, 10>}, {pipeline_mode = #tpu.pipeline_mode<synchronous>, transform_indices = @transform_5, window_bounds = array<i64: 9, 10, 16>}, {pipeline_mode = #tpu.pipeline_mode<synchronous>, transform_indices = @transform_6, window_bounds = array<i64: 1, 16>}, {pipeline_mode = #tpu.pipeline_mode<synchronous>, transform_indices = @transform_7, window_bounds = array<i64: 1, 16>}, {pipeline_mode = #tpu.pipeline_mode<synchronous>, transform_indices = @transform_8, window_bounds = array<i64: 1, 16>}, {pipeline_mode = #tpu.pipeline_mode<synchronous>, transform_indices = @transform_9, window_bounds = array<i64: 9, 16, 32>}, {pipeline_mode = #tpu.pipeline_mode<synchronous>, transform_indices = @transform_10, window_bounds = array<i64: 1, 32>}, {pipeline_mode = #tpu.pipeline_mode<synchronous>, transform_indices = @transform_11, window_bounds = array<i64: 1, 32>}, {pipeline_mode = #tpu.pipeline_mode<synchronous>, transform_indices = @transform_12, window_bounds = array<i64: 1, 32>}, {pipeline_mode = #tpu.pipeline_mode<synchronous>, transform_indices = @transform_13, window_bounds = array<i64: 32, 5>}, {pipeline_mode = #tpu.pipeline_mode<synchronous>, transform_indices = @transform_14, window_bounds = array<i64: 1, 5>}, {transform_indices = @transform_15, window_bounds = array<i64: 1, 9, 5>}]} {
    %c0 = arith.constant 0 : index
    %c0_0 = arith.constant 0 : index
    %c0_1 = arith.constant 0 : index
    %c0_2 = arith.constant 0 : index
    %0 = vector.load %arg1[%c0, %c0_0, %c0_1, %c0_2] : memref<1x16x16x3xf32, #tpu.memory_space<vmem>>, vector<1x16x16x3xf32>
    %1 = vector.shape_cast %0 : vector<1x16x16x3xf32> to vector<16x16x3xf32>
    %cst = arith.constant 0.000000e+00 : f32
    %2 = vector.broadcast %cst : f32 to vector<196x10xf32>
    %3 = vector.extract_strided_slice %1 {offsets = [0, 0, 0], sizes = [14, 14, 3], strides = [1, 1, 1]} : vector<16x16x3xf32> to vector<14x14x3xf32>
    %4 = vector.shape_cast %3 : vector<14x14x3xf32> to vector<196x3xf32>
    %5 = arith.truncf %4 : vector<196x3xf32> to vector<196x3xbf16>
    %c0_3 = arith.constant 0 : index
    %c0_4 = arith.constant 0 : index
    %c0_5 = arith.constant 0 : index
    %6 = vector.load %arg2[%c0_3, %c0_4, %c0_5] : memref<9x3x10xbf16, #tpu.memory_space<vmem>>, vector<1x3x10xbf16>
    %7 = vector.shape_cast %6 : vector<1x3x10xbf16> to vector<3x10xbf16>
    %cst_6 = arith.constant dense<0.000000e+00> : vector<196x10xf32>
    %8 = tpu.matmul %5, %7, %cst_6 {dimension_numbers = #tpu.dot_dimension_numbers<[1], [0], [0], [1], [0, 0, 1, 1], [], []>} : vector<196x3xbf16>, vector<3x10xbf16>, vector<196x10xf32> -> vector<196x10xf32>
    %9 = arith.addf %2, %8 : vector<196x10xf32>
    %10 = vector.extract_strided_slice %1 {offsets = [0, 1, 0], sizes = [14, 14, 3], strides = [1, 1, 1]} : vector<16x16x3xf32> to vector<14x14x3xf32>
    %11 = vector.shape_cast %10 : vector<14x14x3xf32> to vector<196x3xf32>
    %12 = arith.truncf %11 : vector<196x3xf32> to vector<196x3xbf16>
    %c1 = arith.constant 1 : index
    %c0_7 = arith.constant 0 : index
    %c0_8 = arith.constant 0 : index
    %13 = vector.load %arg2[%c1, %c0_7, %c0_8] : memref<9x3x10xbf16, #tpu.memory_space<vmem>>, vector<1x3x10xbf16>
    %14 = vector.shape_cast %13 : vector<1x3x10xbf16> to vector<3x10xbf16>
    %cst_9 = arith.constant dense<0.000000e+00> : vector<196x10xf32>
    %15 = tpu.matmul %12, %14, %cst_9 {dimension_numbers = #tpu.dot_dimension_numbers<[1], [0], [0], [1], [0, 0, 1, 1], [], []>} : vector<196x3xbf16>, vector<3x10xbf16>, vector<196x10xf32> -> vector<196x10xf32>
    %16 = arith.addf %9, %15 : vector<196x10xf32>
    %17 = vector.extract_strided_slice %1 {offsets = [0, 2, 0], sizes = [14, 14, 3], strides = [1, 1, 1]} : vector<16x16x3xf32> to vector<14x14x3xf32>
    %18 = vector.shape_cast %17 : vector<14x14x3xf32> to vector<196x3xf32>
    %19 = arith.truncf %18 : vector<196x3xf32> to vector<196x3xbf16>
    %c2 = arith.constant 2 : index
    %c0_10 = arith.constant 0 : index
    %c0_11 = arith.constant 0 : index
    %20 = vector.load %arg2[%c2, %c0_10, %c0_11] : memref<9x3x10xbf16, #tpu.memory_space<vmem>>, vector<1x3x10xbf16>
    %21 = vector.shape_cast %20 : vector<1x3x10xbf16> to vector<3x10xbf16>
    %cst_12 = arith.constant dense<0.000000e+00> : vector<196x10xf32>
    %22 = tpu.matmul %19, %21, %cst_12 {dimension_numbers = #tpu.dot_dimension_numbers<[1], [0], [0], [1], [0, 0, 1, 1], [], []>} : vector<196x3xbf16>, vector<3x10xbf16>, vector<196x10xf32> -> vector<196x10xf32>
    %23 = arith.addf %16, %22 : vector<196x10xf32>
    %24 = vector.extract_strided_slice %1 {offsets = [1, 0, 0], sizes = [14, 14, 3], strides = [1, 1, 1]} : vector<16x16x3xf32> to vector<14x14x3xf32>
    %25 = vector.shape_cast %24 : vector<14x14x3xf32> to vector<196x3xf32>
    %26 = arith.truncf %25 : vector<196x3xf32> to vector<196x3xbf16>
    %c3 = arith.constant 3 : index
    %c0_13 = arith.constant 0 : index
    %c0_14 = arith.constant 0 : index
    %27 = vector.load %arg2[%c3, %c0_13, %c0_14] : memref<9x3x10xbf16, #tpu.memory_space<vmem>>, vector<1x3x10xbf16>
    %28 = vector.shape_cast %27 : vector<1x3x10xbf16> to vector<3x10xbf16>
    %cst_15 = arith.constant dense<0.000000e+00> : vector<196x10xf32>
    %29 = tpu.matmul %26, %28, %cst_15 {dimension_numbers = #tpu.dot_dimension_numbers<[1], [0], [0], [1], [0, 0, 1, 1], [], []>} : vector<196x3xbf16>, vector<3x10xbf16>, vector<196x10xf32> -> vector<196x10xf32>
    %30 = arith.addf %23, %29 : vector<196x10xf32>
    %31 = vector.extract_strided_slice %1 {offsets = [1, 1, 0], sizes = [14, 14, 3], strides = [1, 1, 1]} : vector<16x16x3xf32> to vector<14x14x3xf32>
    %32 = vector.shape_cast %31 : vector<14x14x3xf32> to vector<196x3xf32>
    %33 = arith.truncf %32 : vector<196x3xf32> to vector<196x3xbf16>
    %c4 = arith.constant 4 : index
    %c0_16 = arith.constant 0 : index
    %c0_17 = arith.constant 0 : index
    %34 = vector.load %arg2[%c4, %c0_16, %c0_17] : memref<9x3x10xbf16, #tpu.memory_space<vmem>>, vector<1x3x10xbf16>
    %35 = vector.shape_cast %34 : vector<1x3x10xbf16> to vector<3x10xbf16>
    %cst_18 = arith.constant dense<0.000000e+00> : vector<196x10xf32>
    %36 = tpu.matmul %33, %35, %cst_18 {dimension_numbers = #tpu.dot_dimension_numbers<[1], [0], [0], [1], [0, 0, 1, 1], [], []>} : vector<196x3xbf16>, vector<3x10xbf16>, vector<196x10xf32> -> vector<196x10xf32>
    %37 = arith.addf %30, %36 : vector<196x10xf32>
    %38 = vector.extract_strided_slice %1 {offsets = [1, 2, 0], sizes = [14, 14, 3], strides = [1, 1, 1]} : vector<16x16x3xf32> to vector<14x14x3xf32>
    %39 = vector.shape_cast %38 : vector<14x14x3xf32> to vector<196x3xf32>
    %40 = arith.truncf %39 : vector<196x3xf32> to vector<196x3xbf16>
    %c5 = arith.constant 5 : index
    %c0_19 = arith.constant 0 : index
    %c0_20 = arith.constant 0 : index
    %41 = vector.load %arg2[%c5, %c0_19, %c0_20] : memref<9x3x10xbf16, #tpu.memory_space<vmem>>, vector<1x3x10xbf16>
    %42 = vector.shape_cast %41 : vector<1x3x10xbf16> to vector<3x10xbf16>
    %cst_21 = arith.constant dense<0.000000e+00> : vector<196x10xf32>
    %43 = tpu.matmul %40, %42, %cst_21 {dimension_numbers = #tpu.dot_dimension_numbers<[1], [0], [0], [1], [0, 0, 1, 1], [], []>} : vector<196x3xbf16>, vector<3x10xbf16>, vector<196x10xf32> -> vector<196x10xf32>
    %44 = arith.addf %37, %43 : vector<196x10xf32>
    %45 = vector.extract_strided_slice %1 {offsets = [2, 0, 0], sizes = [14, 14, 3], strides = [1, 1, 1]} : vector<16x16x3xf32> to vector<14x14x3xf32>
    %46 = vector.shape_cast %45 : vector<14x14x3xf32> to vector<196x3xf32>
    %47 = arith.truncf %46 : vector<196x3xf32> to vector<196x3xbf16>
    %c6 = arith.constant 6 : index
    %c0_22 = arith.constant 0 : index
    %c0_23 = arith.constant 0 : index
    %48 = vector.load %arg2[%c6, %c0_22, %c0_23] : memref<9x3x10xbf16, #tpu.memory_space<vmem>>, vector<1x3x10xbf16>
    %49 = vector.shape_cast %48 : vector<1x3x10xbf16> to vector<3x10xbf16>
    %cst_24 = arith.constant dense<0.000000e+00> : vector<196x10xf32>
    %50 = tpu.matmul %47, %49, %cst_24 {dimension_numbers = #tpu.dot_dimension_numbers<[1], [0], [0], [1], [0, 0, 1, 1], [], []>} : vector<196x3xbf16>, vector<3x10xbf16>, vector<196x10xf32> -> vector<196x10xf32>
    %51 = arith.addf %44, %50 : vector<196x10xf32>
    %52 = vector.extract_strided_slice %1 {offsets = [2, 1, 0], sizes = [14, 14, 3], strides = [1, 1, 1]} : vector<16x16x3xf32> to vector<14x14x3xf32>
    %53 = vector.shape_cast %52 : vector<14x14x3xf32> to vector<196x3xf32>
    %54 = arith.truncf %53 : vector<196x3xf32> to vector<196x3xbf16>
    %c7 = arith.constant 7 : index
    %c0_25 = arith.constant 0 : index
    %c0_26 = arith.constant 0 : index
    %55 = vector.load %arg2[%c7, %c0_25, %c0_26] : memref<9x3x10xbf16, #tpu.memory_space<vmem>>, vector<1x3x10xbf16>
    %56 = vector.shape_cast %55 : vector<1x3x10xbf16> to vector<3x10xbf16>
    %cst_27 = arith.constant dense<0.000000e+00> : vector<196x10xf32>
    %57 = tpu.matmul %54, %56, %cst_27 {dimension_numbers = #tpu.dot_dimension_numbers<[1], [0], [0], [1], [0, 0, 1, 1], [], []>} : vector<196x3xbf16>, vector<3x10xbf16>, vector<196x10xf32> -> vector<196x10xf32>
    %58 = arith.addf %51, %57 : vector<196x10xf32>
    %59 = vector.extract_strided_slice %1 {offsets = [2, 2, 0], sizes = [14, 14, 3], strides = [1, 1, 1]} : vector<16x16x3xf32> to vector<14x14x3xf32>
    %60 = vector.shape_cast %59 : vector<14x14x3xf32> to vector<196x3xf32>
    %61 = arith.truncf %60 : vector<196x3xf32> to vector<196x3xbf16>
    %c8 = arith.constant 8 : index
    %c0_28 = arith.constant 0 : index
    %c0_29 = arith.constant 0 : index
    %62 = vector.load %arg2[%c8, %c0_28, %c0_29] : memref<9x3x10xbf16, #tpu.memory_space<vmem>>, vector<1x3x10xbf16>
    %63 = vector.shape_cast %62 : vector<1x3x10xbf16> to vector<3x10xbf16>
    %cst_30 = arith.constant dense<0.000000e+00> : vector<196x10xf32>
    %64 = tpu.matmul %61, %63, %cst_30 {dimension_numbers = #tpu.dot_dimension_numbers<[1], [0], [0], [1], [0, 0, 1, 1], [], []>} : vector<196x3xbf16>, vector<3x10xbf16>, vector<196x10xf32> -> vector<196x10xf32>
    %65 = arith.addf %58, %64 : vector<196x10xf32>
    %c0_31 = arith.constant 0 : index
    %c0_32 = arith.constant 0 : index
    %66 = vector.load %arg3[%c0_31, %c0_32] : memref<1x10xf32, #tpu.memory_space<vmem>>, vector<1x10xf32>
    %67 = vector.broadcast %66 : vector<1x10xf32> to vector<196x10xf32>
    %68 = arith.mulf %65, %67 : vector<196x10xf32>
    %c0_33 = arith.constant 0 : index
    %c0_34 = arith.constant 0 : index
    %69 = vector.load %arg4[%c0_33, %c0_34] : memref<1x10xf32, #tpu.memory_space<vmem>>, vector<1x10xf32>
    %70 = vector.broadcast %69 : vector<1x10xf32> to vector<196x10xf32>
    %71 = arith.addf %68, %70 : vector<196x10xf32>
    %cst_35 = arith.constant 0.000000e+00 : f32
    %72 = vector.broadcast %cst_35 : f32 to vector<196x10xf32>
    %73 = arith.cmpf ogt, %71, %72 : vector<196x10xf32>
    %c0_36 = arith.constant 0 : index
    %c0_37 = arith.constant 0 : index
    %74 = vector.load %arg5[%c0_36, %c0_37] : memref<1x10xf32, #tpu.memory_space<vmem>>, vector<1x10xf32>
    %75 = vector.broadcast %74 : vector<1x10xf32> to vector<196x10xf32>
    %76 = arith.mulf %75, %71 : vector<196x10xf32>
    %77 = arith.select %73, %71, %76 : vector<196x10xi1>, vector<196x10xf32>
    %78 = vector.shape_cast %77 : vector<196x10xf32> to vector<98x2x10xf32>
    %79 = vector.extract_strided_slice %78 {offsets = [0, 0, 0], sizes = [98, 1, 10], strides = [1, 1, 1]} : vector<98x2x10xf32> to vector<98x1x10xf32>
    %80 = vector.shape_cast %79 : vector<98x1x10xf32> to vector<98x10xf32>
    %81 = vector.extract_strided_slice %78 {offsets = [0, 1, 0], sizes = [98, 1, 10], strides = [1, 1, 1]} : vector<98x2x10xf32> to vector<98x1x10xf32>
    %82 = vector.shape_cast %81 : vector<98x1x10xf32> to vector<98x10xf32>
    %83 = arith.maximumf %80, %82 : vector<98x10xf32>
    %84 = vector.shape_cast %83 : vector<98x10xf32> to vector<7x2x7x10xf32>
    %85 = vector.extract_strided_slice %84 {offsets = [0, 0, 0, 0], sizes = [7, 1, 7, 10], strides = [1, 1, 1, 1]} : vector<7x2x7x10xf32> to vector<7x1x7x10xf32>
    %86 = vector.shape_cast %85 : vector<7x1x7x10xf32> to vector<7x7x10xf32>
    %87 = vector.extract_strided_slice %84 {offsets = [0, 1, 0, 0], sizes = [7, 1, 7, 10], strides = [1, 1, 1, 1]} : vector<7x2x7x10xf32> to vector<7x1x7x10xf32>
    %88 = vector.shape_cast %87 : vector<7x1x7x10xf32> to vector<7x7x10xf32>
    %89 = arith.maximumf %86, %88 : vector<7x7x10xf32>
    %cst_38 = arith.constant 0.000000e+00 : f32
    %90 = vector.broadcast %cst_38 : f32 to vector<25x16xf32>
    %91 = vector.extract_strided_slice %89 {offsets = [0, 0, 0], sizes = [5, 5, 10], strides = [1, 1, 1]} : vector<7x7x10xf32> to vector<5x5x10xf32>
    %92 = vector.shape_cast %91 : vector<5x5x10xf32> to vector<25x10xf32>
    %93 = arith.truncf %92 : vector<25x10xf32> to vector<25x10xbf16>
    %c0_39 = arith.constant 0 : index
    %c0_40 = arith.constant 0 : index
    %c0_41 = arith.constant 0 : index
    %94 = vector.load %arg6[%c0_39, %c0_40, %c0_41] : memref<9x10x16xbf16, #tpu.memory_space<vmem>>, vector<1x10x16xbf16>
    %95 = vector.shape_cast %94 : vector<1x10x16xbf16> to vector<10x16xbf16>
    %cst_42 = arith.constant dense<0.000000e+00> : vector<25x16xf32>
    %96 = tpu.matmul %93, %95, %cst_42 {dimension_numbers = #tpu.dot_dimension_numbers<[1], [0], [0], [1], [0, 0, 1, 1], [], []>} : vector<25x10xbf16>, vector<10x16xbf16>, vector<25x16xf32> -> vector<25x16xf32>
    %97 = arith.addf %90, %96 : vector<25x16xf32>
    %98 = vector.extract_strided_slice %89 {offsets = [0, 1, 0], sizes = [5, 5, 10], strides = [1, 1, 1]} : vector<7x7x10xf32> to vector<5x5x10xf32>
    %99 = vector.shape_cast %98 : vector<5x5x10xf32> to vector<25x10xf32>
    %100 = arith.truncf %99 : vector<25x10xf32> to vector<25x10xbf16>
    %c1_43 = arith.constant 1 : index
    %c0_44 = arith.constant 0 : index
    %c0_45 = arith.constant 0 : index
    %101 = vector.load %arg6[%c1_43, %c0_44, %c0_45] : memref<9x10x16xbf16, #tpu.memory_space<vmem>>, vector<1x10x16xbf16>
    %102 = vector.shape_cast %101 : vector<1x10x16xbf16> to vector<10x16xbf16>
    %cst_46 = arith.constant dense<0.000000e+00> : vector<25x16xf32>
    %103 = tpu.matmul %100, %102, %cst_46 {dimension_numbers = #tpu.dot_dimension_numbers<[1], [0], [0], [1], [0, 0, 1, 1], [], []>} : vector<25x10xbf16>, vector<10x16xbf16>, vector<25x16xf32> -> vector<25x16xf32>
    %104 = arith.addf %97, %103 : vector<25x16xf32>
    %105 = vector.extract_strided_slice %89 {offsets = [0, 2, 0], sizes = [5, 5, 10], strides = [1, 1, 1]} : vector<7x7x10xf32> to vector<5x5x10xf32>
    %106 = vector.shape_cast %105 : vector<5x5x10xf32> to vector<25x10xf32>
    %107 = arith.truncf %106 : vector<25x10xf32> to vector<25x10xbf16>
    %c2_47 = arith.constant 2 : index
    %c0_48 = arith.constant 0 : index
    %c0_49 = arith.constant 0 : index
    %108 = vector.load %arg6[%c2_47, %c0_48, %c0_49] : memref<9x10x16xbf16, #tpu.memory_space<vmem>>, vector<1x10x16xbf16>
    %109 = vector.shape_cast %108 : vector<1x10x16xbf16> to vector<10x16xbf16>
    %cst_50 = arith.constant dense<0.000000e+00> : vector<25x16xf32>
    %110 = tpu.matmul %107, %109, %cst_50 {dimension_numbers = #tpu.dot_dimension_numbers<[1], [0], [0], [1], [0, 0, 1, 1], [], []>} : vector<25x10xbf16>, vector<10x16xbf16>, vector<25x16xf32> -> vector<25x16xf32>
    %111 = arith.addf %104, %110 : vector<25x16xf32>
    %112 = vector.extract_strided_slice %89 {offsets = [1, 0, 0], sizes = [5, 5, 10], strides = [1, 1, 1]} : vector<7x7x10xf32> to vector<5x5x10xf32>
    %113 = vector.shape_cast %112 : vector<5x5x10xf32> to vector<25x10xf32>
    %114 = arith.truncf %113 : vector<25x10xf32> to vector<25x10xbf16>
    %c3_51 = arith.constant 3 : index
    %c0_52 = arith.constant 0 : index
    %c0_53 = arith.constant 0 : index
    %115 = vector.load %arg6[%c3_51, %c0_52, %c0_53] : memref<9x10x16xbf16, #tpu.memory_space<vmem>>, vector<1x10x16xbf16>
    %116 = vector.shape_cast %115 : vector<1x10x16xbf16> to vector<10x16xbf16>
    %cst_54 = arith.constant dense<0.000000e+00> : vector<25x16xf32>
    %117 = tpu.matmul %114, %116, %cst_54 {dimension_numbers = #tpu.dot_dimension_numbers<[1], [0], [0], [1], [0, 0, 1, 1], [], []>} : vector<25x10xbf16>, vector<10x16xbf16>, vector<25x16xf32> -> vector<25x16xf32>
    %118 = arith.addf %111, %117 : vector<25x16xf32>
    %119 = vector.extract_strided_slice %89 {offsets = [1, 1, 0], sizes = [5, 5, 10], strides = [1, 1, 1]} : vector<7x7x10xf32> to vector<5x5x10xf32>
    %120 = vector.shape_cast %119 : vector<5x5x10xf32> to vector<25x10xf32>
    %121 = arith.truncf %120 : vector<25x10xf32> to vector<25x10xbf16>
    %c4_55 = arith.constant 4 : index
    %c0_56 = arith.constant 0 : index
    %c0_57 = arith.constant 0 : index
    %122 = vector.load %arg6[%c4_55, %c0_56, %c0_57] : memref<9x10x16xbf16, #tpu.memory_space<vmem>>, vector<1x10x16xbf16>
    %123 = vector.shape_cast %122 : vector<1x10x16xbf16> to vector<10x16xbf16>
    %cst_58 = arith.constant dense<0.000000e+00> : vector<25x16xf32>
    %124 = tpu.matmul %121, %123, %cst_58 {dimension_numbers = #tpu.dot_dimension_numbers<[1], [0], [0], [1], [0, 0, 1, 1], [], []>} : vector<25x10xbf16>, vector<10x16xbf16>, vector<25x16xf32> -> vector<25x16xf32>
    %125 = arith.addf %118, %124 : vector<25x16xf32>
    %126 = vector.extract_strided_slice %89 {offsets = [1, 2, 0], sizes = [5, 5, 10], strides = [1, 1, 1]} : vector<7x7x10xf32> to vector<5x5x10xf32>
    %127 = vector.shape_cast %126 : vector<5x5x10xf32> to vector<25x10xf32>
    %128 = arith.truncf %127 : vector<25x10xf32> to vector<25x10xbf16>
    %c5_59 = arith.constant 5 : index
    %c0_60 = arith.constant 0 : index
    %c0_61 = arith.constant 0 : index
    %129 = vector.load %arg6[%c5_59, %c0_60, %c0_61] : memref<9x10x16xbf16, #tpu.memory_space<vmem>>, vector<1x10x16xbf16>
    %130 = vector.shape_cast %129 : vector<1x10x16xbf16> to vector<10x16xbf16>
    %cst_62 = arith.constant dense<0.000000e+00> : vector<25x16xf32>
    %131 = tpu.matmul %128, %130, %cst_62 {dimension_numbers = #tpu.dot_dimension_numbers<[1], [0], [0], [1], [0, 0, 1, 1], [], []>} : vector<25x10xbf16>, vector<10x16xbf16>, vector<25x16xf32> -> vector<25x16xf32>
    %132 = arith.addf %125, %131 : vector<25x16xf32>
    %133 = vector.extract_strided_slice %89 {offsets = [2, 0, 0], sizes = [5, 5, 10], strides = [1, 1, 1]} : vector<7x7x10xf32> to vector<5x5x10xf32>
    %134 = vector.shape_cast %133 : vector<5x5x10xf32> to vector<25x10xf32>
    %135 = arith.truncf %134 : vector<25x10xf32> to vector<25x10xbf16>
    %c6_63 = arith.constant 6 : index
    %c0_64 = arith.constant 0 : index
    %c0_65 = arith.constant 0 : index
    %136 = vector.load %arg6[%c6_63, %c0_64, %c0_65] : memref<9x10x16xbf16, #tpu.memory_space<vmem>>, vector<1x10x16xbf16>
    %137 = vector.shape_cast %136 : vector<1x10x16xbf16> to vector<10x16xbf16>
    %cst_66 = arith.constant dense<0.000000e+00> : vector<25x16xf32>
    %138 = tpu.matmul %135, %137, %cst_66 {dimension_numbers = #tpu.dot_dimension_numbers<[1], [0], [0], [1], [0, 0, 1, 1], [], []>} : vector<25x10xbf16>, vector<10x16xbf16>, vector<25x16xf32> -> vector<25x16xf32>
    %139 = arith.addf %132, %138 : vector<25x16xf32>
    %140 = vector.extract_strided_slice %89 {offsets = [2, 1, 0], sizes = [5, 5, 10], strides = [1, 1, 1]} : vector<7x7x10xf32> to vector<5x5x10xf32>
    %141 = vector.shape_cast %140 : vector<5x5x10xf32> to vector<25x10xf32>
    %142 = arith.truncf %141 : vector<25x10xf32> to vector<25x10xbf16>
    %c7_67 = arith.constant 7 : index
    %c0_68 = arith.constant 0 : index
    %c0_69 = arith.constant 0 : index
    %143 = vector.load %arg6[%c7_67, %c0_68, %c0_69] : memref<9x10x16xbf16, #tpu.memory_space<vmem>>, vector<1x10x16xbf16>
    %144 = vector.shape_cast %143 : vector<1x10x16xbf16> to vector<10x16xbf16>
    %cst_70 = arith.constant dense<0.000000e+00> : vector<25x16xf32>
    %145 = tpu.matmul %142, %144, %cst_70 {dimension_numbers = #tpu.dot_dimension_numbers<[1], [0], [0], [1], [0, 0, 1, 1], [], []>} : vector<25x10xbf16>, vector<10x16xbf16>, vector<25x16xf32> -> vector<25x16xf32>
    %146 = arith.addf %139, %145 : vector<25x16xf32>
    %147 = vector.extract_strided_slice %89 {offsets = [2, 2, 0], sizes = [5, 5, 10], strides = [1, 1, 1]} : vector<7x7x10xf32> to vector<5x5x10xf32>
    %148 = vector.shape_cast %147 : vector<5x5x10xf32> to vector<25x10xf32>
    %149 = arith.truncf %148 : vector<25x10xf32> to vector<25x10xbf16>
    %c8_71 = arith.constant 8 : index
    %c0_72 = arith.constant 0 : index
    %c0_73 = arith.constant 0 : index
    %150 = vector.load %arg6[%c8_71, %c0_72, %c0_73] : memref<9x10x16xbf16, #tpu.memory_space<vmem>>, vector<1x10x16xbf16>
    %151 = vector.shape_cast %150 : vector<1x10x16xbf16> to vector<10x16xbf16>
    %cst_74 = arith.constant dense<0.000000e+00> : vector<25x16xf32>
    %152 = tpu.matmul %149, %151, %cst_74 {dimension_numbers = #tpu.dot_dimension_numbers<[1], [0], [0], [1], [0, 0, 1, 1], [], []>} : vector<25x10xbf16>, vector<10x16xbf16>, vector<25x16xf32> -> vector<25x16xf32>
    %153 = arith.addf %146, %152 : vector<25x16xf32>
    %c0_75 = arith.constant 0 : index
    %c0_76 = arith.constant 0 : index
    %154 = vector.load %arg7[%c0_75, %c0_76] : memref<1x16xf32, #tpu.memory_space<vmem>>, vector<1x16xf32>
    %155 = vector.broadcast %154 : vector<1x16xf32> to vector<25x16xf32>
    %156 = arith.mulf %153, %155 : vector<25x16xf32>
    %c0_77 = arith.constant 0 : index
    %c0_78 = arith.constant 0 : index
    %157 = vector.load %arg8[%c0_77, %c0_78] : memref<1x16xf32, #tpu.memory_space<vmem>>, vector<1x16xf32>
    %158 = vector.broadcast %157 : vector<1x16xf32> to vector<25x16xf32>
    %159 = arith.addf %156, %158 : vector<25x16xf32>
    %cst_79 = arith.constant 0.000000e+00 : f32
    %160 = vector.broadcast %cst_79 : f32 to vector<25x16xf32>
    %161 = arith.cmpf ogt, %159, %160 : vector<25x16xf32>
    %c0_80 = arith.constant 0 : index
    %c0_81 = arith.constant 0 : index
    %162 = vector.load %arg9[%c0_80, %c0_81] : memref<1x16xf32, #tpu.memory_space<vmem>>, vector<1x16xf32>
    %163 = vector.broadcast %162 : vector<1x16xf32> to vector<25x16xf32>
    %164 = arith.mulf %163, %159 : vector<25x16xf32>
    %165 = arith.select %161, %159, %164 : vector<25x16xi1>, vector<25x16xf32>
    %166 = vector.shape_cast %165 : vector<25x16xf32> to vector<5x5x16xf32>
    %cst_82 = arith.constant 0.000000e+00 : f32
    %167 = vector.broadcast %cst_82 : f32 to vector<9x32xf32>
    %168 = vector.extract_strided_slice %166 {offsets = [0, 0, 0], sizes = [3, 3, 16], strides = [1, 1, 1]} : vector<5x5x16xf32> to vector<3x3x16xf32>
    %169 = vector.shape_cast %168 : vector<3x3x16xf32> to vector<9x16xf32>
    %170 = arith.truncf %169 : vector<9x16xf32> to vector<9x16xbf16>
    %c0_83 = arith.constant 0 : index
    %c0_84 = arith.constant 0 : index
    %c0_85 = arith.constant 0 : index
    %171 = vector.load %arg10[%c0_83, %c0_84, %c0_85] : memref<9x16x32xbf16, #tpu.memory_space<vmem>>, vector<1x16x32xbf16>
    %172 = vector.shape_cast %171 : vector<1x16x32xbf16> to vector<16x32xbf16>
    %cst_86 = arith.constant dense<0.000000e+00> : vector<9x32xf32>
    %173 = tpu.matmul %170, %172, %cst_86 {dimension_numbers = #tpu.dot_dimension_numbers<[1], [0], [0], [1], [0, 0, 1, 1], [], []>} : vector<9x16xbf16>, vector<16x32xbf16>, vector<9x32xf32> -> vector<9x32xf32>
    %174 = arith.addf %167, %173 : vector<9x32xf32>
    %175 = vector.extract_strided_slice %166 {offsets = [0, 1, 0], sizes = [3, 3, 16], strides = [1, 1, 1]} : vector<5x5x16xf32> to vector<3x3x16xf32>
    %176 = vector.shape_cast %175 : vector<3x3x16xf32> to vector<9x16xf32>
    %177 = arith.truncf %176 : vector<9x16xf32> to vector<9x16xbf16>
    %c1_87 = arith.constant 1 : index
    %c0_88 = arith.constant 0 : index
    %c0_89 = arith.constant 0 : index
    %178 = vector.load %arg10[%c1_87, %c0_88, %c0_89] : memref<9x16x32xbf16, #tpu.memory_space<vmem>>, vector<1x16x32xbf16>
    %179 = vector.shape_cast %178 : vector<1x16x32xbf16> to vector<16x32xbf16>
    %cst_90 = arith.constant dense<0.000000e+00> : vector<9x32xf32>
    %180 = tpu.matmul %177, %179, %cst_90 {dimension_numbers = #tpu.dot_dimension_numbers<[1], [0], [0], [1], [0, 0, 1, 1], [], []>} : vector<9x16xbf16>, vector<16x32xbf16>, vector<9x32xf32> -> vector<9x32xf32>
    %181 = arith.addf %174, %180 : vector<9x32xf32>
    %182 = vector.extract_strided_slice %166 {offsets = [0, 2, 0], sizes = [3, 3, 16], strides = [1, 1, 1]} : vector<5x5x16xf32> to vector<3x3x16xf32>
    %183 = vector.shape_cast %182 : vector<3x3x16xf32> to vector<9x16xf32>
    %184 = arith.truncf %183 : vector<9x16xf32> to vector<9x16xbf16>
    %c2_91 = arith.constant 2 : index
    %c0_92 = arith.constant 0 : index
    %c0_93 = arith.constant 0 : index
    %185 = vector.load %arg10[%c2_91, %c0_92, %c0_93] : memref<9x16x32xbf16, #tpu.memory_space<vmem>>, vector<1x16x32xbf16>
    %186 = vector.shape_cast %185 : vector<1x16x32xbf16> to vector<16x32xbf16>
    %cst_94 = arith.constant dense<0.000000e+00> : vector<9x32xf32>
    %187 = tpu.matmul %184, %186, %cst_94 {dimension_numbers = #tpu.dot_dimension_numbers<[1], [0], [0], [1], [0, 0, 1, 1], [], []>} : vector<9x16xbf16>, vector<16x32xbf16>, vector<9x32xf32> -> vector<9x32xf32>
    %188 = arith.addf %181, %187 : vector<9x32xf32>
    %189 = vector.extract_strided_slice %166 {offsets = [1, 0, 0], sizes = [3, 3, 16], strides = [1, 1, 1]} : vector<5x5x16xf32> to vector<3x3x16xf32>
    %190 = vector.shape_cast %189 : vector<3x3x16xf32> to vector<9x16xf32>
    %191 = arith.truncf %190 : vector<9x16xf32> to vector<9x16xbf16>
    %c3_95 = arith.constant 3 : index
    %c0_96 = arith.constant 0 : index
    %c0_97 = arith.constant 0 : index
    %192 = vector.load %arg10[%c3_95, %c0_96, %c0_97] : memref<9x16x32xbf16, #tpu.memory_space<vmem>>, vector<1x16x32xbf16>
    %193 = vector.shape_cast %192 : vector<1x16x32xbf16> to vector<16x32xbf16>
    %cst_98 = arith.constant dense<0.000000e+00> : vector<9x32xf32>
    %194 = tpu.matmul %191, %193, %cst_98 {dimension_numbers = #tpu.dot_dimension_numbers<[1], [0], [0], [1], [0, 0, 1, 1], [], []>} : vector<9x16xbf16>, vector<16x32xbf16>, vector<9x32xf32> -> vector<9x32xf32>
    %195 = arith.addf %188, %194 : vector<9x32xf32>
    %196 = vector.extract_strided_slice %166 {offsets = [1, 1, 0], sizes = [3, 3, 16], strides = [1, 1, 1]} : vector<5x5x16xf32> to vector<3x3x16xf32>
    %197 = vector.shape_cast %196 : vector<3x3x16xf32> to vector<9x16xf32>
    %198 = arith.truncf %197 : vector<9x16xf32> to vector<9x16xbf16>
    %c4_99 = arith.constant 4 : index
    %c0_100 = arith.constant 0 : index
    %c0_101 = arith.constant 0 : index
    %199 = vector.load %arg10[%c4_99, %c0_100, %c0_101] : memref<9x16x32xbf16, #tpu.memory_space<vmem>>, vector<1x16x32xbf16>
    %200 = vector.shape_cast %199 : vector<1x16x32xbf16> to vector<16x32xbf16>
    %cst_102 = arith.constant dense<0.000000e+00> : vector<9x32xf32>
    %201 = tpu.matmul %198, %200, %cst_102 {dimension_numbers = #tpu.dot_dimension_numbers<[1], [0], [0], [1], [0, 0, 1, 1], [], []>} : vector<9x16xbf16>, vector<16x32xbf16>, vector<9x32xf32> -> vector<9x32xf32>
    %202 = arith.addf %195, %201 : vector<9x32xf32>
    %203 = vector.extract_strided_slice %166 {offsets = [1, 2, 0], sizes = [3, 3, 16], strides = [1, 1, 1]} : vector<5x5x16xf32> to vector<3x3x16xf32>
    %204 = vector.shape_cast %203 : vector<3x3x16xf32> to vector<9x16xf32>
    %205 = arith.truncf %204 : vector<9x16xf32> to vector<9x16xbf16>
    %c5_103 = arith.constant 5 : index
    %c0_104 = arith.constant 0 : index
    %c0_105 = arith.constant 0 : index
    %206 = vector.load %arg10[%c5_103, %c0_104, %c0_105] : memref<9x16x32xbf16, #tpu.memory_space<vmem>>, vector<1x16x32xbf16>
    %207 = vector.shape_cast %206 : vector<1x16x32xbf16> to vector<16x32xbf16>
    %cst_106 = arith.constant dense<0.000000e+00> : vector<9x32xf32>
    %208 = tpu.matmul %205, %207, %cst_106 {dimension_numbers = #tpu.dot_dimension_numbers<[1], [0], [0], [1], [0, 0, 1, 1], [], []>} : vector<9x16xbf16>, vector<16x32xbf16>, vector<9x32xf32> -> vector<9x32xf32>
    %209 = arith.addf %202, %208 : vector<9x32xf32>
    %210 = vector.extract_strided_slice %166 {offsets = [2, 0, 0], sizes = [3, 3, 16], strides = [1, 1, 1]} : vector<5x5x16xf32> to vector<3x3x16xf32>
    %211 = vector.shape_cast %210 : vector<3x3x16xf32> to vector<9x16xf32>
    %212 = arith.truncf %211 : vector<9x16xf32> to vector<9x16xbf16>
    %c6_107 = arith.constant 6 : index
    %c0_108 = arith.constant 0 : index
    %c0_109 = arith.constant 0 : index
    %213 = vector.load %arg10[%c6_107, %c0_108, %c0_109] : memref<9x16x32xbf16, #tpu.memory_space<vmem>>, vector<1x16x32xbf16>
    %214 = vector.shape_cast %213 : vector<1x16x32xbf16> to vector<16x32xbf16>
    %cst_110 = arith.constant dense<0.000000e+00> : vector<9x32xf32>
    %215 = tpu.matmul %212, %214, %cst_110 {dimension_numbers = #tpu.dot_dimension_numbers<[1], [0], [0], [1], [0, 0, 1, 1], [], []>} : vector<9x16xbf16>, vector<16x32xbf16>, vector<9x32xf32> -> vector<9x32xf32>
    %216 = arith.addf %209, %215 : vector<9x32xf32>
    %217 = vector.extract_strided_slice %166 {offsets = [2, 1, 0], sizes = [3, 3, 16], strides = [1, 1, 1]} : vector<5x5x16xf32> to vector<3x3x16xf32>
    %218 = vector.shape_cast %217 : vector<3x3x16xf32> to vector<9x16xf32>
    %219 = arith.truncf %218 : vector<9x16xf32> to vector<9x16xbf16>
    %c7_111 = arith.constant 7 : index
    %c0_112 = arith.constant 0 : index
    %c0_113 = arith.constant 0 : index
    %220 = vector.load %arg10[%c7_111, %c0_112, %c0_113] : memref<9x16x32xbf16, #tpu.memory_space<vmem>>, vector<1x16x32xbf16>
    %221 = vector.shape_cast %220 : vector<1x16x32xbf16> to vector<16x32xbf16>
    %cst_114 = arith.constant dense<0.000000e+00> : vector<9x32xf32>
    %222 = tpu.matmul %219, %221, %cst_114 {dimension_numbers = #tpu.dot_dimension_numbers<[1], [0], [0], [1], [0, 0, 1, 1], [], []>} : vector<9x16xbf16>, vector<16x32xbf16>, vector<9x32xf32> -> vector<9x32xf32>
    %223 = arith.addf %216, %222 : vector<9x32xf32>
    %224 = vector.extract_strided_slice %166 {offsets = [2, 2, 0], sizes = [3, 3, 16], strides = [1, 1, 1]} : vector<5x5x16xf32> to vector<3x3x16xf32>
    %225 = vector.shape_cast %224 : vector<3x3x16xf32> to vector<9x16xf32>
    %226 = arith.truncf %225 : vector<9x16xf32> to vector<9x16xbf16>
    %c8_115 = arith.constant 8 : index
    %c0_116 = arith.constant 0 : index
    %c0_117 = arith.constant 0 : index
    %227 = vector.load %arg10[%c8_115, %c0_116, %c0_117] : memref<9x16x32xbf16, #tpu.memory_space<vmem>>, vector<1x16x32xbf16>
    %228 = vector.shape_cast %227 : vector<1x16x32xbf16> to vector<16x32xbf16>
    %cst_118 = arith.constant dense<0.000000e+00> : vector<9x32xf32>
    %229 = tpu.matmul %226, %228, %cst_118 {dimension_numbers = #tpu.dot_dimension_numbers<[1], [0], [0], [1], [0, 0, 1, 1], [], []>} : vector<9x16xbf16>, vector<16x32xbf16>, vector<9x32xf32> -> vector<9x32xf32>
    %230 = arith.addf %223, %229 : vector<9x32xf32>
    %c0_119 = arith.constant 0 : index
    %c0_120 = arith.constant 0 : index
    %231 = vector.load %arg11[%c0_119, %c0_120] : memref<1x32xf32, #tpu.memory_space<vmem>>, vector<1x32xf32>
    %232 = vector.broadcast %231 : vector<1x32xf32> to vector<9x32xf32>
    %233 = arith.mulf %230, %232 : vector<9x32xf32>
    %c0_121 = arith.constant 0 : index
    %c0_122 = arith.constant 0 : index
    %234 = vector.load %arg12[%c0_121, %c0_122] : memref<1x32xf32, #tpu.memory_space<vmem>>, vector<1x32xf32>
    %235 = vector.broadcast %234 : vector<1x32xf32> to vector<9x32xf32>
    %236 = arith.addf %233, %235 : vector<9x32xf32>
    %cst_123 = arith.constant 0.000000e+00 : f32
    %237 = vector.broadcast %cst_123 : f32 to vector<9x32xf32>
    %238 = arith.cmpf ogt, %236, %237 : vector<9x32xf32>
    %c0_124 = arith.constant 0 : index
    %c0_125 = arith.constant 0 : index
    %239 = vector.load %arg13[%c0_124, %c0_125] : memref<1x32xf32, #tpu.memory_space<vmem>>, vector<1x32xf32>
    %240 = vector.broadcast %239 : vector<1x32xf32> to vector<9x32xf32>
    %241 = arith.mulf %240, %236 : vector<9x32xf32>
    %242 = arith.select %238, %236, %241 : vector<9x32xi1>, vector<9x32xf32>
    %243 = arith.truncf %242 : vector<9x32xf32> to vector<9x32xbf16>
    %c0_126 = arith.constant 0 : index
    %c0_127 = arith.constant 0 : index
    %244 = vector.load %arg14[%c0_126, %c0_127] : memref<32x5xbf16, #tpu.memory_space<vmem>>, vector<32x5xbf16>
    %cst_128 = arith.constant dense<0.000000e+00> : vector<9x5xf32>
    %245 = tpu.matmul %243, %244, %cst_128 {dimension_numbers = #tpu.dot_dimension_numbers<[1], [0], [0], [1], [0, 0, 1, 1], [], []>} : vector<9x32xbf16>, vector<32x5xbf16>, vector<9x5xf32> -> vector<9x5xf32>
    %c0_129 = arith.constant 0 : index
    %c0_130 = arith.constant 0 : index
    %246 = vector.load %arg15[%c0_129, %c0_130] : memref<1x5xf32, #tpu.memory_space<vmem>>, vector<1x5xf32>
    %247 = vector.broadcast %246 : vector<1x5xf32> to vector<9x5xf32>
    %248 = arith.addf %245, %247 : vector<9x5xf32>
    %cst_131 = arith.constant 0.000000e+00 : f32
    %249 = vector.broadcast %cst_131 : f32 to vector<9x5xf32>
    %250 = arith.subf %249, %248 : vector<9x5xf32>
    %251 = math.exp %250 : vector<9x5xf32>
    %cst_132 = arith.constant 1.000000e+00 : f32
    %252 = vector.broadcast %cst_132 : f32 to vector<9x5xf32>
    %253 = arith.addf %252, %251 : vector<9x5xf32>
    %254 = tpu.reciprocal %253 {approx = true} : vector<9x5xf32> -> vector<9x5xf32>
    %255 = tpu.iota {dimensions = array<i32: 1>} : vector<9x5xi32>
    %c0_i32 = arith.constant 0 : i32
    %256 = vector.broadcast %c0_i32 : i32 to vector<9x5xi32>
    %257 = arith.cmpi eq, %255, %256 : vector<9x5xi32>
    %258 = arith.select %257, %254, %248 : vector<9x5xi1>, vector<9x5xf32>
    %c0_133 = arith.constant 0 : index
    %c0_134 = arith.constant 0 : index
    %c0_135 = arith.constant 0 : index
    %259 = vector.load %arg16[%c0_133, %c0_134, %c0_135] : memref<1x9x5xf32, #tpu.memory_space<vmem>>, vector<1x9x5xf32>
    %260 = vector.shape_cast %259 : vector<1x9x5xf32> to vector<9x5xf32>
    %261 = vector.shape_cast %258 : vector<9x5xf32> to vector<1x9x5xf32>
    tpu.vector_store %arg16[%c0_133, %c0_134, %c0_135], %261 {strides = array<i32>} : memref<1x9x5xf32, #tpu.memory_space<vmem>>, vector<1x9x5xf32>,
    return
  }
  func.func @transform_0(%arg0: i32) -> (i32, i32, i32, i32) {
    %c0_i32 = arith.constant 0 : i32
    %c0_i32_0 = arith.constant 0 : i32
    %c0_i32_1 = arith.constant 0 : i32
    %c0_i32_2 = arith.constant 0 : i32
    return %arg0, %c0_i32, %c0_i32_0, %c0_i32_1 : i32, i32, i32, i32
  }
  func.func @transform_1(%arg0: i32) -> (i32, i32, i32) {
    %c0_i32 = arith.constant 0 : i32
    %c0_i32_0 = arith.constant 0 : i32
    %c0_i32_1 = arith.constant 0 : i32
    %c0_i32_2 = arith.constant 0 : i32
    return %c0_i32, %c0_i32_0, %c0_i32_1 : i32, i32, i32
  }
  func.func @transform_2(%arg0: i32) -> (i32, i32) {
    %c0_i32 = arith.constant 0 : i32
    %c0_i32_0 = arith.constant 0 : i32
    %c0_i32_1 = arith.constant 0 : i32
    return %c0_i32, %c0_i32_0 : i32, i32
  }
  func.func @transform_3(%arg0: i32) -> (i32, i32) {
    %c0_i32 = arith.constant 0 : i32
    %c0_i32_0 = arith.constant 0 : i32
    %c0_i32_1 = arith.constant 0 : i32
    return %c0_i32, %c0_i32_0 : i32, i32
  }
  func.func @transform_4(%arg0: i32) -> (i32, i32) {
    %c0_i32 = arith.constant 0 : i32
    %c0_i32_0 = arith.constant 0 : i32
    %c0_i32_1 = arith.constant 0 : i32
    return %c0_i32, %c0_i32_0 : i32, i32
  }
  func.func @transform_5(%arg0: i32) -> (i32, i32, i32) {
    %c0_i32 = arith.constant 0 : i32
    %c0_i32_0 = arith.constant 0 : i32
    %c0_i32_1 = arith.constant 0 : i32
    %c0_i32_2 = arith.constant 0 : i32
    return %c0_i32, %c0_i32_0, %c0_i32_1 : i32, i32, i32
  }
  func.func @transform_6(%arg0: i32) -> (i32, i32) {
    %c0_i32 = arith.constant 0 : i32
    %c0_i32_0 = arith.constant 0 : i32
    %c0_i32_1 = arith.constant 0 : i32
    return %c0_i32, %c0_i32_0 : i32, i32
  }
  func.func @transform_7(%arg0: i32) -> (i32, i32) {
    %c0_i32 = arith.constant 0 : i32
    %c0_i32_0 = arith.constant 0 : i32
    %c0_i32_1 = arith.constant 0 : i32
    return %c0_i32, %c0_i32_0 : i32, i32
  }
  func.func @transform_8(%arg0: i32) -> (i32, i32) {
    %c0_i32 = arith.constant 0 : i32
    %c0_i32_0 = arith.constant 0 : i32
    %c0_i32_1 = arith.constant 0 : i32
    return %c0_i32, %c0_i32_0 : i32, i32
  }
  func.func @transform_9(%arg0: i32) -> (i32, i32, i32) {
    %c0_i32 = arith.constant 0 : i32
    %c0_i32_0 = arith.constant 0 : i32
    %c0_i32_1 = arith.constant 0 : i32
    %c0_i32_2 = arith.constant 0 : i32
    return %c0_i32, %c0_i32_0, %c0_i32_1 : i32, i32, i32
  }
  func.func @transform_10(%arg0: i32) -> (i32, i32) {
    %c0_i32 = arith.constant 0 : i32
    %c0_i32_0 = arith.constant 0 : i32
    %c0_i32_1 = arith.constant 0 : i32
    return %c0_i32, %c0_i32_0 : i32, i32
  }
  func.func @transform_11(%arg0: i32) -> (i32, i32) {
    %c0_i32 = arith.constant 0 : i32
    %c0_i32_0 = arith.constant 0 : i32
    %c0_i32_1 = arith.constant 0 : i32
    return %c0_i32, %c0_i32_0 : i32, i32
  }
  func.func @transform_12(%arg0: i32) -> (i32, i32) {
    %c0_i32 = arith.constant 0 : i32
    %c0_i32_0 = arith.constant 0 : i32
    %c0_i32_1 = arith.constant 0 : i32
    return %c0_i32, %c0_i32_0 : i32, i32
  }
  func.func @transform_13(%arg0: i32) -> (i32, i32) {
    %c0_i32 = arith.constant 0 : i32
    %c0_i32_0 = arith.constant 0 : i32
    %c0_i32_1 = arith.constant 0 : i32
    return %c0_i32, %c0_i32_0 : i32, i32
  }
  func.func @transform_14(%arg0: i32) -> (i32, i32) {
    %c0_i32 = arith.constant 0 : i32
    %c0_i32_0 = arith.constant 0 : i32
    %c0_i32_1 = arith.constant 0 : i32
    return %c0_i32, %c0_i32_0 : i32, i32
  }
  func.func @transform_15(%arg0: i32) -> (i32, i32, i32) {
    %c0_i32 = arith.constant 0 : i32
    %c0_i32_0 = arith.constant 0 : i32
    %c0_i32_1 = arith.constant 0 : i32
    return %arg0, %c0_i32, %c0_i32_0 : i32, i32, i32
  }
}

</mosaic_0001>

<llo_original>
// kernel: pnet_forward.1
$region0: #{pnet_forward.1}
  #allocation0 [shape = 'u32[]', space=smem, size = 0x4, offset = 0x4, fixed_abs, tag = 'smem constant byte address 0x4 - core index']
  #allocation1 [shape = 'u32[144,128]{1,0:T(1,128)}', space=vmem, size = 0x12000, scoped, tag = 'internal scratch']
  %s0 = inlined_call_operand.vmem [shape: f32[2,16,16,3], index: 0, kind: input, shape index: {}]
  %s1 = inlined_call_operand.vmem [shape: bf16[9,3,10], index: 1, kind: input, shape index: {}]
  %s2 = inlined_call_operand.vmem [shape: f32[1,10], index: 2, kind: input, shape index: {}]
  %s3 = inlined_call_operand.vmem [shape: f32[1,10], index: 3, kind: input, shape index: {}]
  %s4 = inlined_call_operand.vmem [shape: f32[1,10], index: 4, kind: input, shape index: {}]
  %s5 = inlined_call_operand.vmem [shape: bf16[9,10,16], index: 5, kind: input, shape index: {}]
  %s6 = inlined_call_operand.vmem [shape: f32[1,16], index: 6, kind: input, shape index: {}]
  %s7 = inlined_call_operand.vmem [shape: f32[1,16], index: 7, kind: input, shape index: {}]
  %s8 = inlined_call_operand.vmem [shape: f32[1,16], index: 8, kind: input, shape index: {}]
  %s9 = inlined_call_operand.vmem [shape: bf16[9,16,32], index: 9, kind: input, shape index: {}]
  %s10 = inlined_call_operand.vmem [shape: f32[1,32], index: 10, kind: input, shape index: {}]
  %s11 = inlined_call_operand.vmem [shape: f32[1,32], index: 11, kind: input, shape index: {}]
  %s12 = inlined_call_operand.vmem [shape: f32[1,32], index: 12, kind: input, shape index: {}]
  %s13 = inlined_call_operand.vmem [shape: bf16[32,5], index: 13, kind: input, shape index: {}]
  %s14 = inlined_call_operand.vmem [shape: f32[1,5], index: 14, kind: input, shape index: {}]
  %s15 = inlined_call_operand.vmem [shape: f32[2,9,5], index: 15, kind: output, shape index: {}]
  %s16 = sld [smem:[#allocation0]]
  $region93: #{pnet_forward.1} parent=0
    _
  %s18 = ssub.s32 1, %s16
  %s19 = scalar_select 0, %s18, %s16
  loop: start=0, step=1, limit=4
  $region2: #{pnet_forward.1} parent=0 // loop_pre_header
    _
  $region3: #{pnet_forward.1} parent=0 // loop_header
    %s21 = sphi 0, %s25
    %p22 = scmp.ge.s32.totalorder %s21, 4
    %s31 = sphi 0, %s33
    %s34 = sphi 0, %s31
    %s35 = sphi 0, %s34
    %s51 = sphi 0, %s35
    %s55 = sphi 0, %s55
    %s57 = sphi 0, %s55
    %s58 = sphi 0, %s57
    %s72 = sphi 0, %s58
    %s76 = sphi 0, %s76
    %s78 = sphi 0, %s76
    %s79 = sphi 0, %s78
    %s93 = sphi 0, %s79
    %s97 = sphi 0, %s97
    %s99 = sphi 0, %s97
    %s100 = sphi 0, %s99
    %s114 = sphi 0, %s100
    %s118 = sphi 0, %s118
    %s120 = sphi 0, %s118
    %s121 = sphi 0, %s120
    %s135 = sphi 0, %s121
    %s139 = sphi 0, %s139
    %s141 = sphi 0, %s139
    %s142 = sphi 0, %s141
    %s156 = sphi 0, %s142
    %s160 = sphi 0, %s160
    %s162 = sphi 0, %s160
    %s163 = sphi 0, %s162
    %s177 = sphi 0, %s163
    %s181 = sphi 0, %s181
    %s183 = sphi 0, %s181
    %s184 = sphi 0, %s183
    %s198 = sphi 0, %s184
    %s202 = sphi 0, %s202
    %s204 = sphi 0, %s202
    %s205 = sphi 0, %s204
    %s219 = sphi 0, %s205
    %s223 = sphi 0, %s223
    %s225 = sphi 0, %s223
    %s226 = sphi 0, %s225
    %s240 = sphi 0, %s226
    %s244 = sphi 0, %s244
    %s246 = sphi 0, %s244
    %s247 = sphi 0, %s246
    %s261 = sphi 0, %s247
    %s265 = sphi 0, %s265
    %s267 = sphi 0, %s265
    %s268 = sphi 0, %s267
    %s282 = sphi 0, %s268
    %s286 = sphi 0, %s286
    %s288 = sphi 0, %s286
    %s289 = sphi 0, %s288
    %s303 = sphi 0, %s289
    %s307 = sphi 0, %s307
    %s309 = sphi 0, %s307
    %s310 = sphi 0, %s309
    %s324 = sphi 0, %s310
    %s328 = sphi 0, %s328
    %s330 = sphi 0, %s328
    %s331 = sphi 0, %s330
    %s345 = sphi 0, %s331
    %s351 = sphi 0, %s353
    %s354 = sphi 0, %s351
    %s355 = sphi 0, %s354
    %s371 = sphi 0, %s355
  $region4: #{pnet_forward.1} parent=0 // loop_header_branch
    %24 = sbr.rel (%p22) target = $region8
  $region5: #{pnet_forward.1} parent=0 // loop_body
    %s26 = ssub.s32 %s21, 1
    %s27 = ssub.s32 %s21, 2
    %s28 = sadd.s32 %s21, 1
    %s29 = ssub.s32 %s21, %s28
    %p30 = scmp.eq.s32.totalorder %s29, 0
    %s32 = sadd.s32 %s31, 1
    %s33 = scalar_select %p30, %s31, %s32
    %p36 = pneg %p30
    %p37 = scmp.eq.s32.totalorder %s21, 1
    %p38 = por %p36, %p37
    %p39 = scmp.ne.s32.totalorder %s31, %s34
    %p40 = scmp.eq.s32.totalorder %s21, 0
    %p41 = por %p39, %p40
    %p42 = scmp.ne.s32.totalorder %s31, %s34
    %p43 = scmp.eq.s32.totalorder %s26, 1
    %p44 = por %p42, %p43
    %p45 = scmp.ne.s32.totalorder %s34, %s35
    %p46 = scmp.eq.s32.totalorder %s26, 0
    %p47 = por %p45, %p46
    %p48 = scmp.ne.s32.totalorder %s34, %s35
    %p49 = scmp.eq.s32.totalorder %s27, 1
    %p50 = por %p48, %p49
    %p52 = scmp.ne.s32.totalorder %s35, %s51
    %p53 = scmp.eq.s32.totalorder %s27, 0
    %p54 = por %p52, %p53
    %s56 = sadd.s32 %s55, 1
    %p59 = scmp.eq.s32.totalorder %s21, 1
    %p60 = scmp.ne.s32.totalorder %s55, %s57
    %p61 = scmp.eq.s32.totalorder %s21, 0
    %p62 = por %p60, %p61
    %p63 = scmp.ne.s32.totalorder %s55, %s57
    %p64 = scmp.eq.s32.totalorder %s26, 1
    %p65 = por %p63, %p64
    %p66 = scmp.ne.s32.totalorder %s57, %s58
    %p67 = scmp.eq.s32.totalorder %s26, 0
    %p68 = por %p66, %p67
    %p69 = scmp.ne.s32.totalorder %s57, %s58
    %p70 = scmp.eq.s32.totalorder %s27, 1
    %p71 = por %p69, %p70
    %p73 = scmp.ne.s32.totalorder %s58, %s72
    %p74 = scmp.eq.s32.totalorder %s27, 0
    %p75 = por %p73, %p74
    %s77 = sadd.s32 %s76, 1
    %p80 = scmp.eq.s32.totalorder %s21, 1
    %p81 = scmp.ne.s32.totalorder %s76, %s78
    %p82 = scmp.eq.s32.totalorder %s21, 0
    %p83 = por %p81, %p82
    %p84 = scmp.ne.s32.totalorder %s76, %s78
    %p85 = scmp.eq.s32.totalorder %s26, 1
    %p86 = por %p84, %p85
    %p87 = scmp.ne.s32.totalorder %s78, %s79
    %p88 = scmp.eq.s32.totalorder %s26, 0
    %p89 = por %p87, %p88
    %p90 = scmp.ne.s32.totalorder %s78, %s79
    %p91 = scmp.eq.s32.totalorder %s27, 1
    %p92 = por %p90, %p91
    %p94 = scmp.ne.s32.totalorder %s79, %s93
    %p95 = scmp.eq.s32.totalorder %s27, 0
    %p96 = por %p94, %p95
    %s98 = sadd.s32 %s97, 1
    %p101 = scmp.eq.s32.totalorder %s21, 1
    %p102 = scmp.ne.s32.totalorder %s97, %s99
    %p103 = scmp.eq.s32.totalorder %s21, 0
    %p104 = por %p102, %p103
    %p105 = scmp.ne.s32.totalorder %s97, %s99
    %p106 = scmp.eq.s32.totalorder %s26, 1
    %p107 = por %p105, %p106
    %p108 = scmp.ne.s32.totalorder %s99, %s100
    %p109 = scmp.eq.s32.totalorder %s26, 0
    %p110 = por %p108, %p109
    %p111 = scmp.ne.s32.totalorder %s99, %s100
    %p112 = scmp.eq.s32.totalorder %s27, 1
    %p113 = por %p111, %p112
    %p115 = scmp.ne.s32.totalorder %s100, %s114
    %p116 = scmp.eq.s32.totalorder %s27, 0
    %p117 = por %p115, %p116
    %s119 = sadd.s32 %s118, 1
    %p122 = scmp.eq.s32.totalorder %s21, 1
    %p123 = scmp.ne.s32.totalorder %s118, %s120
    %p124 = scmp.eq.s32.totalorder %s21, 0
    %p125 = por %p123, %p124
    %p126 = scmp.ne.s32.totalorder %s118, %s120
    %p127 = scmp.eq.s32.totalorder %s26, 1
    %p128 = por %p126, %p127
    %p129 = scmp.ne.s32.totalorder %s120, %s121
    %p130 = scmp.eq.s32.totalorder %s26, 0
    %p131 = por %p129, %p130
    %p132 = scmp.ne.s32.totalorder %s120, %s121
    %p133 = scmp.eq.s32.totalorder %s27, 1
    %p134 = por %p132, %p133
    %p136 = scmp.ne.s32.totalorder %s121, %s135
    %p137 = scmp.eq.s32.totalorder %s27, 0
    %p138 = por %p136, %p137
    %s140 = sadd.s32 %s139, 1
    %p143 = scmp.eq.s32.totalorder %s21, 1
    %p144 = scmp.ne.s32.totalorder %s139, %s141
    %p145 = scmp.eq.s32.totalorder %s21, 0
    %p146 = por %p144, %p145
    %p147 = scmp.ne.s32.totalorder %s139, %s141
    %p148 = scmp.eq.s32.totalorder %s26, 1
    %p149 = por %p147, %p148
    %p150 = scmp.ne.s32.totalorder %s141, %s142
    %p151 = scmp.eq.s32.totalorder %s26, 0
    %p152 = por %p150, %p151
    %p153 = scmp.ne.s32.totalorder %s141, %s142
    %p154 = scmp.eq.s32.totalorder %s27, 1
    %p155 = por %p153, %p154
    %p157 = scmp.ne.s32.totalorder %s142, %s156
    %p158 = scmp.eq.s32.totalorder %s27, 0
    %p159 = por %p157, %p158
    %s161 = sadd.s32 %s160, 1
    %p164 = scmp.eq.s32.totalorder %s21, 1
    %p165 = scmp.ne.s32.totalorder %s160, %s162
    %p166 = scmp.eq.s32.totalorder %s21, 0
    %p167 = por %p165, %p166
    %p168 = scmp.ne.s32.totalorder %s160, %s162
    %p169 = scmp.eq.s32.totalorder %s26, 1
    %p170 = por %p168, %p169
    %p171 = scmp.ne.s32.totalorder %s162, %s163
    %p172 = scmp.eq.s32.totalorder %s26, 0
    %p173 = por %p171, %p172
    %p174 = scmp.ne.s32.totalorder %s162, %s163
    %p175 = scmp.eq.s32.totalorder %s27, 1
    %p176 = por %p174, %p175
    %p178 = scmp.ne.s32.totalorder %s163, %s177
    %p179 = scmp.eq.s32.totalorder %s27, 0
    %p180 = por %p178, %p179
    %s182 = sadd.s32 %s181, 1
    %p185 = scmp.eq.s32.totalorder %s21, 1
    %p186 = scmp.ne.s32.totalorder %s181, %s183
    %p187 = scmp.eq.s32.totalorder %s21, 0
    %p188 = por %p186, %p187
    %p189 = scmp.ne.s32.totalorder %s181, %s183
    %p190 = scmp.eq.s32.totalorder %s26, 1
    %p191 = por %p189, %p190
    %p192 = scmp.ne.s32.totalorder %s183, %s184
    %p193 = scmp.eq.s32.totalorder %s26, 0
    %p194 = por %p192, %p193
    %p195 = scmp.ne.s32.totalorder %s183, %s184
    %p196 = scmp.eq.s32.totalorder %s27, 1
    %p197 = por %p195, %p196
    %p199 = scmp.ne.s32.totalorder %s184, %s198
    %p200 = scmp.eq.s32.totalorder %s27, 0
    %p201 = por %p199, %p200
    %s203 = sadd.s32 %s202, 1
    %p206 = scmp.eq.s32.totalorder %s21, 1
    %p207 = scmp.ne.s32.totalorder %s202, %s204
    %p208 = scmp.eq.s32.totalorder %s21, 0
    %p209 = por %p207, %p208
    %p210 = scmp.ne.s32.totalorder %s202, %s204
    %p211 = scmp.eq.s32.totalorder %s26, 1
    %p212 = por %p210, %p211
    %p213 = scmp.ne.s32.totalorder %s204, %s205
    %p214 = scmp.eq.s32.totalorder %s26, 0
    %p215 = por %p213, %p214
    %p216 = scmp.ne.s32.totalorder %s204, %s205
    %p217 = scmp.eq.s32.totalorder %s27, 1
    %p218 = por %p216, %p217
    %p220 = scmp.ne.s32.totalorder %s205, %s219
    %p221 = scmp.eq.s32.totalorder %s27, 0
    %p222 = por %p220, %p221
    %s224 = sadd.s32 %s223, 1
    %p227 = scmp.eq.s32.totalorder %s21, 1
    %p228 = scmp.ne.s32.totalorder %s223, %s225
    %p229 = scmp.eq.s32.totalorder %s21, 0
    %p230 = por %p228, %p229
    %p231 = scmp.ne.s32.totalorder %s223, %s225
    %p232 = scmp.eq.s32.totalorder %s26, 1
    %p233 = por %p231, %p232
    %p234 = scmp.ne.s32.totalorder %s225, %s226
    %p235 = scmp.eq.s32.totalorder %s26, 0
    %p236 = por %p234, %p235
    %p237 = scmp.ne.s32.totalorder %s225, %s226
    %p238 = scmp.eq.s32.totalorder %s27, 1
    %p239 = por %p237, %p238
    %p241 = scmp.ne.s32.totalorder %s226, %s240
    %p242 = scmp.eq.s32.totalorder %s27, 0
    %p243 = por %p241, %p242
    %s245 = sadd.s32 %s244, 1
    %p248 = scmp.eq.s32.totalorder %s21, 1
    %p249 = scmp.ne.s32.totalorder %s244, %s246
    %p250 = scmp.eq.s32.totalorder %s21, 0
    %p251 = por %p249, %p250
    %p252 = scmp.ne.s32.totalorder %s244, %s246
    %p253 = scmp.eq.s32.totalorder %s26, 1
    %p254 = por %p252, %p253
    %p255 = scmp.ne.s32.totalorder %s246, %s247
    %p256 = scmp.eq.s32.totalorder %s26, 0
    %p257 = por %p255, %p256
    %p258 = scmp.ne.s32.totalorder %s246, %s247
    %p259 = scmp.eq.s32.totalorder %s27, 1
    %p260 = por %p258, %p259
    %p262 = scmp.ne.s32.totalorder %s247, %s261
    %p263 = scmp.eq.s32.totalorder %s27, 0
    %p264 = por %p262, %p263
    %s266 = sadd.s32 %s265, 1
    %p269 = scmp.eq.s32.totalorder %s21, 1
    %p270 = scmp.ne.s32.totalorder %s265, %s267
    %p271 = scmp.eq.s32.totalorder %s21, 0
    %p272 = por %p270, %p271
    %p273 = scmp.ne.s32.totalorder %s265, %s267
    %p274 = scmp.eq.s32.totalorder %s26, 1
    %p275 = por %p273, %p274
    %p276 = scmp.ne.s32.totalorder %s267, %s268
    %p277 = scmp.eq.s32.totalorder %s26, 0
    %p278 = por %p276, %p277
    %p279 = scmp.ne.s32.totalorder %s267, %s268
    %p280 = scmp.eq.s32.totalorder %s27, 1
    %p281 = por %p279, %p280
    %p283 = scmp.ne.s32.totalorder %s268, %s282
    %p284 = scmp.eq.s32.totalorder %s27, 0
    %p285 = por %p283, %p284
    %s287 = sadd.s32 %s286, 1
    %p290 = scmp.eq.s32.totalorder %s21, 1
    %p291 = scmp.ne.s32.totalorder %s286, %s288
    %p292 = scmp.eq.s32.totalorder %s21, 0
    %p293 = por %p291, %p292
    %p294 = scmp.ne.s32.totalorder %s286, %s288
    %p295 = scmp.eq.s32.totalorder %s26, 1
    %p296 = por %p294, %p295
    %p297 = scmp.ne.s32.totalorder %s288, %s289
    %p298 = scmp.eq.s32.totalorder %s26, 0
    %p299 = por %p297, %p298
    %p300 = scmp.ne.s32.totalorder %s288, %s289
    %p301 = scmp.eq.s32.totalorder %s27, 1
    %p302 = por %p300, %p301
    %p304 = scmp.ne.s32.totalorder %s289, %s303
    %p305 = scmp.eq.s32.totalorder %s27, 0
    %p306 = por %p304, %p305
    %s308 = sadd.s32 %s307, 1
    %p311 = scmp.eq.s32.totalorder %s21, 1
    %p312 = scmp.ne.s32.totalorder %s307, %s309
    %p313 = scmp.eq.s32.totalorder %s21, 0
    %p314 = por %p312, %p313
    %p315 = scmp.ne.s32.totalorder %s307, %s309
    %p316 = scmp.eq.s32.totalorder %s26, 1
    %p317 = por %p315, %p316
    %p318 = scmp.ne.s32.totalorder %s309, %s310
    %p319 = scmp.eq.s32.totalorder %s26, 0
    %p320 = por %p318, %p319
    %p321 = scmp.ne.s32.totalorder %s309, %s310
    %p322 = scmp.eq.s32.totalorder %s27, 1
    %p323 = por %p321, %p322
    %p325 = scmp.ne.s32.totalorder %s310, %s324
    %p326 = scmp.eq.s32.totalorder %s27, 0
    %p327 = por %p325, %p326
    %s329 = sadd.s32 %s328, 1
    %p332 = scmp.eq.s32.totalorder %s21, 1
    %p333 = scmp.ne.s32.totalorder %s328, %s330
    %p334 = scmp.eq.s32.totalorder %s21, 0
    %p335 = por %p333, %p334
    %p336 = scmp.ne.s32.totalorder %s328, %s330
    %p337 = scmp.eq.s32.totalorder %s26, 1
    %p338 = por %p336, %p337
    %p339 = scmp.ne.s32.totalorder %s330, %s331
    %p340 = scmp.eq.s32.totalorder %s26, 0
    %p341 = por %p339, %p340
    %p342 = scmp.ne.s32.totalorder %s330, %s331
    %p343 = scmp.eq.s32.totalorder %s27, 1
    %p344 = por %p342, %p343
    %p346 = scmp.ne.s32.totalorder %s331, %s345
    %p347 = scmp.eq.s32.totalorder %s27, 0
    %p348 = por %p346, %p347
    %s349 = ssub.s32 %s21, %s28
    %p350 = scmp.eq.s32.totalorder %s349, 0
    %s352 = sadd.s32 %s351, 1
    %s353 = scalar_select %p350, %s351, %s352
    %p356 = pneg %p350
    %p357 = scmp.eq.s32.totalorder %s21, 1
    %p358 = por %p356, %p357
    %p359 = scmp.ne.s32.totalorder %s351, %s354
    %p360 = scmp.eq.s32.totalorder %s21, 0
    %p361 = por %p359, %p360
    %p362 = scmp.ne.s32.totalorder %s351, %s354
    %p363 = scmp.eq.s32.totalorder %s26, 1
    %p364 = por %p362, %p363
    %p365 = scmp.ne.s32.totalorder %s354, %s355
    %p366 = scmp.eq.s32.totalorder %s26, 0
    %p367 = por %p365, %p366
    %p368 = scmp.ne.s32.totalorder %s354, %s355
    %p369 = scmp.eq.s32.totalorder %s27, 1
    %p370 = por %p368, %p369
    %p372 = scmp.ne.s32.totalorder %s355, %s371
    %p373 = scmp.eq.s32.totalorder %s27, 0
    %p374 = por %p372, %p373
    %p375 = scmp.le.s32.totalorder 1, %s21
    %p376 = scmp.lt.s32.totalorder %s21, 3
    %p377 = pnand %p375, %p376
    %p378 = pneg %p377
    // Predicated region
    $region9: #{pnet_forward.1} parent=5 // pred_check
      _
    $region10: #{pnet_forward.1} parent=5 // pred_check_branch
      %380 = sbr.rel (%p377) target = $region12
    $region11: #{pnet_forward.1} parent=5 // pred_region
      %s381 = ssub.s32 %s21, 1
      // Predicated region
      $region13: #{pnet_forward.1} parent=11 // pred_check
        %p382 = pneg %p68
      $region14: #{pnet_forward.1} parent=11 // pred_check_branch
        %384 = sbr.rel (%p382) target = $region16
      $region15: #{pnet_forward.1} parent=11 // pred_region
        _
      $region16: #{pnet_forward.1} parent=11 // pred_fallthru
        _
      // Predicated region
      $region17: #{pnet_forward.1} parent=11 // pred_check
        %p385 = pneg %p89
      $region18: #{pnet_forward.1} parent=11 // pred_check_branch
        %387 = sbr.rel (%p385) target = $region20
      $region19: #{pnet_forward.1} parent=11 // pred_region
        _
      $region20: #{pnet_forward.1} parent=11 // pred_fallthru
        _
      // Predicated region
      $region21: #{pnet_forward.1} parent=11 // pred_check
        %p388 = pneg %p110
      $region22: #{pnet_forward.1} parent=11 // pred_check_branch
        %390 = sbr.rel (%p388) target = $region24
      $region23: #{pnet_forward.1} parent=11 // pred_region
        _
      $region24: #{pnet_forward.1} parent=11 // pred_fallthru
        _
      // Predicated region
      $region25: #{pnet_forward.1} parent=11 // pred_check
        %p391 = pneg %p131
      $region26: #{pnet_forward.1} parent=11 // pred_check_branch
        %393 = sbr.rel (%p391) target = $region28
      $region27: #{pnet_forward.1} parent=11 // pred_region
        _
      $region28: #{pnet_forward.1} parent=11 // pred_fallthru
        _
      // Predicated region
      $region29: #{pnet_forward.1} parent=11 // pred_check
        %p394 = pneg %p152
      $region30: #{pnet_forward.1} parent=11 // pred_check_branch
        %396 = sbr.rel (%p394) target = $region32
      $region31: #{pnet_forward.1} parent=11 // pred_region
        _
      $region32: #{pnet_forward.1} parent=11 // pred_fallthru
        _
      // Predicated region
      $region33: #{pnet_forward.1} parent=11 // pred_check
        %p397 = pneg %p173
      $region34: #{pnet_forward.1} parent=11 // pred_check_branch
        %399 = sbr.rel (%p397) target = $region36
      $region35: #{pnet_forward.1} parent=11 // pred_region
        _
      $region36: #{pnet_forward.1} parent=11 // pred_fallthru
        _
      // Predicated region
      $region37: #{pnet_forward.1} parent=11 // pred_check
        %p400 = pneg %p194
      $region38: #{pnet_forward.1} parent=11 // pred_check_branch
        %402 = sbr.rel (%p400) target = $region40
      $region39: #{pnet_forward.1} parent=11 // pred_region
        _
      $region40: #{pnet_forward.1} parent=11 // pred_fallthru
        _
      // Predicated region
      $region41: #{pnet_forward.1} parent=11 // pred_check
        %p403 = pneg %p215
      $region42: #{pnet_forward.1} parent=11 // pred_check_branch
        %405 = sbr.rel (%p403) target = $region44
      $region43: #{pnet_forward.1} parent=11 // pred_region
        _
      $region44: #{pnet_forward.1} parent=11 // pred_fallthru
        _
      // Predicated region
      $region45: #{pnet_forward.1} parent=11 // pred_check
        %p406 = pneg %p236
      $region46: #{pnet_forward.1} parent=11 // pred_check_branch
        %408 = sbr.rel (%p406) target = $region48
      $region47: #{pnet_forward.1} parent=11 // pred_region
        _
      $region48: #{pnet_forward.1} parent=11 // pred_fallthru
        _
      // Predicated region
      $region49: #{pnet_forward.1} parent=11 // pred_check
        %p409 = pneg %p257
      $region50: #{pnet_forward.1} parent=11 // pred_check_branch
        %411 = sbr.rel (%p409) target = $region52
      $region51: #{pnet_forward.1} parent=11 // pred_region
        _
      $region52: #{pnet_forward.1} parent=11 // pred_fallthru
        _
      // Predicated region
      $region53: #{pnet_forward.1} parent=11 // pred_check
        %p412 = pneg %p278
      $region54: #{pnet_forward.1} parent=11 // pred_check_branch
        %414 = sbr.rel (%p412) target = $region56
      $region55: #{pnet_forward.1} parent=11 // pred_region
        _
      $region56: #{pnet_forward.1} parent=11 // pred_fallthru
        _
      // Predicated region
      $region57: #{pnet_forward.1} parent=11 // pred_check
        %p415 = pneg %p299
      $region58: #{pnet_forward.1} parent=11 // pred_check_branch
        %417 = sbr.rel (%p415) target = $region60
      $region59: #{pnet_forward.1} parent=11 // pred_region
        _
      $region60: #{pnet_forward.1} parent=11 // pred_fallthru
        _
      // Predicated region
      $region61: #{pnet_forward.1} parent=11 // pred_check
        %p418 = pneg %p320
      $region62: #{pnet_forward.1} parent=11 // pred_check_branch
        %420 = sbr.rel (%p418) target = $region64
      $region63: #{pnet_forward.1} parent=11 // pred_region
        _
      $region64: #{pnet_forward.1} parent=11 // pred_fallthru
        _
      // Predicated region
      $region65: #{pnet_forward.1} parent=11 // pred_check
        %p421 = pneg %p341
      $region66: #{pnet_forward.1} parent=11 // pred_check_branch
        %423 = sbr.rel (%p421) target = $region68
      $region67: #{pnet_forward.1} parent=11 // pred_region
        _
      $region68: #{pnet_forward.1} parent=11 // pred_fallthru
        _
    $region12: #{pnet_forward.1} parent=5 // pred_fallthru
      _
    %p424 = scmp.lt.s32.totalorder %s21, 2
    // Predicated region
    $region69: #{pnet_forward.1} parent=5 // pred_check
      %p425 = pneg %p424
    $region70: #{pnet_forward.1} parent=5 // pred_check_branch
      %427 = sbr.rel (%p425) target = $region72
    $region71: #{pnet_forward.1} parent=5 // pred_region
      // Predicated region
      $region73: #{pnet_forward.1} parent=71 // pred_check
        %p428 = pneg %p41
      $region74: #{pnet_forward.1} parent=71 // pred_check_branch
        %430 = sbr.rel (%p428) target = $region76
      $region75: #{pnet_forward.1} parent=71 // pred_region
        %p431 = scmp.lt.s32.totalorder %s21, 1
        %s432 = scalar_select %p431, %s21, 1
        %s433 = smul.addr %s432, 32
        %s434 = smul.addr %s433, 8
        %s435 = scalar_lea.vmem %s0, %s434
      $region76: #{pnet_forward.1} parent=71 // pred_fallthru
        _
    $region72: #{pnet_forward.1} parent=5 // pred_fallthru
      _
    %p436 = scmp.le.s32.totalorder 1, %s21
    %p437 = scmp.lt.s32.totalorder %s21, 3
    %p438 = pnand %p436, %p437
    %p439 = pneg %p438
    // Predicated region
    $region77: #{pnet_forward.1} parent=5 // pred_check
      _
    $region78: #{pnet_forward.1} parent=5 // pred_check_branch
      %441 = sbr.rel (%p438) target = $region80
    $region79: #{pnet_forward.1} parent=5 // pred_region
      %s442 = ssub.s32 %s21, 1
      %p443 = scmp.lt.s32.totalorder %s26, 1
      %s444 = scalar_select %p443, %s26, 1
      %s445 = smul.addr %s444, 32
      %s446 = smul.addr %s445, 8
      %s447 = scalar_lea.vmem %s0, %s446
      %p448 = pneg %p47
      %p449 = pneg %p44
      %p450 = pneg %p68
      %p451 = pneg %p65
      %p452 = pneg %p89
      %p453 = pneg %p86
      %p454 = pneg %p110
      %p455 = pneg %p107
      %p456 = pneg %p131
      %p457 = pneg %p128
      %p458 = pneg %p152
      %p459 = pneg %p149
      %p460 = pneg %p173
      %p461 = pneg %p170
      %p462 = pneg %p194
      %p463 = pneg %p191
      %p464 = pneg %p215
      %p465 = pneg %p212
      %p466 = pneg %p236
      %p467 = pneg %p233
      %p468 = pneg %p257
      %p469 = pneg %p254
      %p470 = pneg %p278
      %p471 = pneg %p275
      %p472 = pneg %p299
      %p473 = pneg %p296
      %p474 = pneg %p320
      %p475 = pneg %p317
      %p476 = pneg %p341
      %p477 = pneg %p338
      %p478 = pneg %p367
      %p479 = pneg %p364
      %p480 = scmp.lt.s32.totalorder %s26, 1
      %s481 = scalar_select %p480, %s26, 1
      %s482 = smul.addr %s481, 2
      %s483 = smul.addr %s482, 8
      %s484 = scalar_lea.vmem %s15, %s483
      %p485 = scmp.lt.s32.totalorder %s26, 1
      %s486 = scalar_select %p485, %s26, 1
      %s487 = smul.addr %s486, 32
      %s488 = smul.addr %s487, 8
      %s489 = scalar_lea.vmem %s0, %s488
      %p490 = scmp.lt.s32.totalorder %s26, 1
      %s491 = scalar_select %p490, %s26, 1
      %s492 = smul.addr %s491, 2
      %s493 = smul.addr %s492, 8
      %s494 = scalar_lea.vmem %s15, %s493
      %v496 = vld [vmem:[%s489] sm:$0xff]
      %v497 = vld [vmem:[%s489 + $0x8] sm:$0xff]
      %v498 = vld [vmem:[%s489 + $0x10] sm:$0xff]
      %v499 = vld [vmem:[%s489 + $0x18] sm:$0xff]
      %v500 = vld [vmem:[%s489 + $0x20] sm:$0xff]
      %v501 = vld [vmem:[%s489 + $0x28] sm:$0xff]
      %v502 = vld [vmem:[%s489 + $0x30] sm:$0xff]
      %v503 = vld [vmem:[%s489 + $0x38] sm:$0xff]
      %v504 = vld [vmem:[%s489 + $0x40] sm:$0xff]
      %v505 = vld [vmem:[%s489 + $0x48] sm:$0xff]
      %v506 = vld [vmem:[%s489 + $0x50] sm:$0xff]
      %v507 = vld [vmem:[%s489 + $0x58] sm:$0xff]
      %v508 = vld [vmem:[%s489 + $0x60] sm:$0xff]
      %v509 = vld [vmem:[%s489 + $0x68] sm:$0xff]
      %v510 = vld [vmem:[%s489 + $0x70] sm:$0xff]
      %v511 = vld [vmem:[%s489 + $0x78] sm:$0xff]
      %v512 = vld [vmem:[%s489 + $0x80] sm:$0xff]
      %v513 = vld [vmem:[%s489 + $0x88] sm:$0xff]
      %v514 = vld [vmem:[%s489 + $0x90] sm:$0xff]
      %v515 = vld [vmem:[%s489 + $0x98] sm:$0xff]
      %v516 = vld [vmem:[%s489 + $0xa0] sm:$0xff]
      %v517 = vld [vmem:[%s489 + $0xa8] sm:$0xff]
      %v518 = vld [vmem:[%s489 + $0xb0] sm:$0xff]
      %v519 = vld [vmem:[%s489 + $0xb8] sm:$0xff]
      %v520 = vld [vmem:[%s489 + $0xc0] sm:$0xff]
      %v521 = vld [vmem:[%s489 + $0xc8] sm:$0xff]
      %v522 = vld [vmem:[%s489 + $0xd0] sm:$0xff]
      %v523 = vld [vmem:[%s489 + $0xd8] sm:$0xff]
      %v524 = vld [vmem:[%s489 + $0xe0] sm:$0xff]
      %v525 = vld [vmem:[%s489 + $0xe8] sm:$0xff]
      %v526 = vld [vmem:[%s489 + $0xf0] sm:$0xff]
      %v527 = vld [vmem:[%s489 + $0xf8] sm:$0xff]
      %v556 = vcombine.high %v496, %v496
      %v558 = vunpack.c.l.s4 1983009808
      %v559 = vunpack.c.0.s8 %v558
      %v560 = vlaneseq
      %v561 = vshrl.u32 %v560, 7
      %v562 = vsub.s32 %v559, %v561
      %v563 = vrot.slane %v496, %v562
      %v565 = vunpack.c.l.s4 1983009808
      %v566 = vunpack.c.0.s8 %v565
      %v567 = vlaneseq
      %v568 = vshrl.u32 %v567, 7
      %v569 = vsub.s32 %v566, %v568
      %v570 = vrot.slane %v556, %v569
      %v571 = vcombine.high %v563, %v563
      %v572 = vcombine.high %v570, %v570
      %v573 = vcombine.high %v497, %v497
      %v575 = vunpack.c.l.s4 1983009808
      %v576 = vunpack.c.0.s8 %v575
      %v577 = vlaneseq
      %v578 = vshrl.u32 %v577, 7
      %v579 = vsub.s32 %v576, %v578
      %v580 = vrot.slane %v497, %v579
      %v582 = vunpack.c.l.s4 1983009808
      %v583 = vunpack.c.0.s8 %v582
      %v584 = vlaneseq
      %v585 = vshrl.u32 %v584, 7
      %v586 = vsub.s32 %v583, %v585
      %v587 = vrot.slane %v573, %v586
      %v588 = vcombine.high %v580, %v580
      %v589 = vcombine.high %v498, %v498
      %v591 = vunpack.c.l.s4 1983009808
      %v592 = vunpack.c.0.s8 %v591
      %v593 = vlaneseq
      %v594 = vshrl.u32 %v593, 7
      %v595 = vsub.s32 %v592, %v594
      %v596 = vrot.slane %v498, %v595
      %v598 = vunpack.c.l.s4 1983009808
      %v599 = vunpack.c.0.s8 %v598
      %v600 = vlaneseq
      %v601 = vshrl.u32 %v600, 7
      %v602 = vsub.s32 %v599, %v601
      %v603 = vrot.slane %v589, %v602
      %v604 = vcombine.high %v596, %v596
      %v605 = vcombine.high %v603, %v603
      %v606 = vcombine.high %v499, %v499
      %v608 = vunpack.c.l.s4 1983009808
      %v609 = vunpack.c.0.s8 %v608
      %v610 = vlaneseq
      %v611 = vshrl.u32 %v610, 7
      %v612 = vsub.s32 %v609, %v611
      %v613 = vrot.slane %v499, %v612
      %v615 = vunpack.c.l.s4 1983009808
      %v616 = vunpack.c.0.s8 %v615
      %v617 = vlaneseq
      %v618 = vshrl.u32 %v617, 7
      %v619 = vsub.s32 %v616, %v618
      %v620 = vrot.slane %v606, %v619
      %v621 = vcombine.high %v613, %v613
      %v622 = vcombine.high %v500, %v500
      %v624 = vunpack.c.l.s4 1983009808
      %v625 = vunpack.c.0.s8 %v624
      %v626 = vlaneseq
      %v627 = vshrl.u32 %v626, 7
      %v628 = vsub.s32 %v625, %v627
      %v629 = vrot.slane %v500, %v628
      %v631 = vunpack.c.l.s4 1983009808
      %v632 = vunpack.c.0.s8 %v631
      %v633 = vlaneseq
      %v634 = vshrl.u32 %v633, 7
      %v635 = vsub.s32 %v632, %v634
      %v636 = vrot.slane %v622, %v635
      %v637 = vcombine.high %v629, %v629
      %v638 = vcombine.high %v636, %v636
      %v639 = vcombine.high %v501, %v501
      %v641 = vunpack.c.l.s4 1983009808
      %v642 = vunpack.c.0.s8 %v641
      %v643 = vlaneseq
      %v644 = vshrl.u32 %v643, 7
      %v645 = vsub.s32 %v642, %v644
      %v646 = vrot.slane %v501, %v645
      %v648 = vunpack.c.l.s4 1983009808
      %v649 = vunpack.c.0.s8 %v648
      %v650 = vlaneseq
      %v651 = vshrl.u32 %v650, 7
      %v652 = vsub.s32 %v649, %v651
      %v653 = vrot.slane %v639, %v652
      %v654 = vcombine.high %v646, %v646
      %v655 = vcombine.high %v502, %v502
      %v657 = vunpack.c.l.s4 1983009808
      %v658 = vunpack.c.0.s8 %v657
      %v659 = vlaneseq
      %v660 = vshrl.u32 %v659, 7
      %v661 = vsub.s32 %v658, %v660
      %v662 = vrot.slane %v502, %v661
      %v664 = vunpack.c.l.s4 1983009808
      %v665 = vunpack.c.0.s8 %v664
      %v666 = vlaneseq
      %v667 = vshrl.u32 %v666, 7
      %v668 = vsub.s32 %v665, %v667
      %v669 = vrot.slane %v655, %v668
      %v670 = vcombine.high %v662, %v662
      %v671 = vcombine.high %v669, %v669
      %v672 = vcombine.high %v503, %v503
      %v674 = vunpack.c.l.s4 1983009808
      %v675 = vunpack.c.0.s8 %v674
      %v676 = vlaneseq
      %v677 = vshrl.u32 %v676, 7
      %v678 = vsub.s32 %v675, %v677
      %v679 = vrot.slane %v503, %v678
      %v681 = vunpack.c.l.s4 1983009808
      %v682 = vunpack.c.0.s8 %v681
      %v683 = vlaneseq
      %v684 = vshrl.u32 %v683, 7
      %v685 = vsub.s32 %v682, %v684
      %v686 = vrot.slane %v672, %v685
      %v687 = vcombine.high %v679, %v679
      %v688 = vcombine.high %v504, %v504
      %v690 = vunpack.c.l.s4 1983009808
      %v691 = vunpack.c.0.s8 %v690
      %v692 = vlaneseq
      %v693 = vshrl.u32 %v692, 7
      %v694 = vsub.s32 %v691, %v693
      %v695 = vrot.slane %v504, %v694
      %v697 = vunpack.c.l.s4 1983009808
      %v698 = vunpack.c.0.s8 %v697
      %v699 = vlaneseq
      %v700 = vshrl.u32 %v699, 7
      %v701 = vsub.s32 %v698, %v700
      %v702 = vrot.slane %v688, %v701
      %v703 = vcombine.high %v695, %v695
      %v704 = vcombine.high %v702, %v702
      %v705 = vcombine.high %v505, %v505
      %v707 = vunpack.c.l.s4 1983009808
      %v708 = vunpack.c.0.s8 %v707
      %v709 = vlaneseq
      %v710 = vshrl.u32 %v709, 7
      %v711 = vsub.s32 %v708, %v710
      %v712 = vrot.slane %v505, %v711
      %v714 = vunpack.c.l.s4 1983009808
      %v715 = vunpack.c.0.s8 %v714
      %v716 = vlaneseq
      %v717 = vshrl.u32 %v716, 7
      %v718 = vsub.s32 %v715, %v717
      %v719 = vrot.slane %v705, %v718
      %v720 = vcombine.high %v712, %v712
      %v721 = vcombine.high %v506, %v506
      %v723 = vunpack.c.l.s4 1983009808
      %v724 = vunpack.c.0.s8 %v723
      %v725 = vlaneseq
      %v726 = vshrl.u32 %v725, 7
      %v727 = vsub.s32 %v724, %v726
      %v728 = vrot.slane %v506, %v727
      %v730 = vunpack.c.l.s4 1983009808
      %v731 = vunpack.c.0.s8 %v730
      %v732 = vlaneseq
      %v733 = vshrl.u32 %v732, 7
      %v734 = vsub.s32 %v731, %v733
      %v735 = vrot.slane %v721, %v734
      %v736 = vcombine.high %v728, %v728
      %v737 = vcombine.high %v735, %v735
      %v738 = vcombine.high %v507, %v507
      %v740 = vunpack.c.l.s4 1983009808
      %v741 = vunpack.c.0.s8 %v740
      %v742 = vlaneseq
      %v743 = vshrl.u32 %v742, 7
      %v744 = vsub.s32 %v741, %v743
      %v745 = vrot.slane %v507, %v744
      %v747 = vunpack.c.l.s4 1983009808
      %v748 = vunpack.c.0.s8 %v747
      %v749 = vlaneseq
      %v750 = vshrl.u32 %v749, 7
      %v751 = vsub.s32 %v748, %v750
      %v752 = vrot.slane %v738, %v751
      %v753 = vcombine.high %v745, %v745
      %v754 = vcombine.high %v508, %v508
      %v756 = vunpack.c.l.s4 1983009808
      %v757 = vunpack.c.0.s8 %v756
      %v758 = vlaneseq
      %v759 = vshrl.u32 %v758, 7
      %v760 = vsub.s32 %v757, %v759
      %v761 = vrot.slane %v508, %v760
      %v763 = vunpack.c.l.s4 1983009808
      %v764 = vunpack.c.0.s8 %v763
      %v765 = vlaneseq
      %v766 = vshrl.u32 %v765, 7
      %v767 = vsub.s32 %v764, %v766
      %v768 = vrot.slane %v754, %v767
      %v769 = vcombine.high %v761, %v761
      %v770 = vcombine.high %v768, %v768
      %v771 = vcombine.high %v509, %v509
      %v773 = vunpack.c.l.s4 1983009808
      %v774 = vunpack.c.0.s8 %v773
      %v775 = vlaneseq
      %v776 = vshrl.u32 %v775, 7
      %v777 = vsub.s32 %v774, %v776
      %v778 = vrot.slane %v509, %v777
      %v780 = vunpack.c.l.s4 1983009808
      %v781 = vunpack.c.0.s8 %v780
      %v782 = vlaneseq
      %v783 = vshrl.u32 %v782, 7
      %v784 = vsub.s32 %v781, %v783
      %v785 = vrot.slane %v771, %v784
      %v786 = vcombine.high %v778, %v778
      %v787 = vcombine.high %v510, %v510
      %v789 = vunpack.c.l.s4 1983009808
      %v790 = vunpack.c.0.s8 %v789
      %v791 = vlaneseq
      %v792 = vshrl.u32 %v791, 7
      %v793 = vsub.s32 %v790, %v792
      %v794 = vrot.slane %v510, %v793
      %v796 = vunpack.c.l.s4 1983009808
      %v797 = vunpack.c.0.s8 %v796
      %v798 = vlaneseq
      %v799 = vshrl.u32 %v798, 7
      %v800 = vsub.s32 %v797, %v799
      %v801 = vrot.slane %v787, %v800
      %v802 = vcombine.high %v794, %v794
      %v803 = vcombine.high %v801, %v801
      %v804 = vcombine.high %v511, %v511
      %v806 = vunpack.c.l.s4 1983009808
      %v807 = vunpack.c.0.s8 %v806
      %v808 = vlaneseq
      %v809 = vshrl.u32 %v808, 7
      %v810 = vsub.s32 %v807, %v809
      %v811 = vrot.slane %v511, %v810
      %v813 = vunpack.c.l.s4 1983009808
      %v814 = vunpack.c.0.s8 %v813
      %v815 = vlaneseq
      %v816 = vshrl.u32 %v815, 7
      %v817 = vsub.s32 %v814, %v816
      %v818 = vrot.slane %v804, %v817
      %v819 = vcombine.high %v811, %v811
      %v820 = vcombine.high %v512, %v512
      %v822 = vunpack.c.l.s4 1983009808
      %v823 = vunpack.c.0.s8 %v822
      %v824 = vlaneseq
      %v825 = vshrl.u32 %v824, 7
      %v826 = vsub.s32 %v823, %v825
      %v827 = vrot.slane %v512, %v826
      %v829 = vunpack.c.l.s4 1983009808
      %v830 = vunpack.c.0.s8 %v829
      %v831 = vlaneseq
      %v832 = vshrl.u32 %v831, 7
      %v833 = vsub.s32 %v830, %v832
      %v834 = vrot.slane %v820, %v833
      %v835 = vcombine.high %v827, %v827
      %v836 = vcombine.high %v834, %v834
      %v837 = vcombine.high %v513, %v513
      %v839 = vunpack.c.l.s4 1983009808
      %v840 = vunpack.c.0.s8 %v839
      %v841 = vlaneseq
      %v842 = vshrl.u32 %v841, 7
      %v843 = vsub.s32 %v840, %v842
      %v844 = vrot.slane %v513, %v843
      %v846 = vunpack.c.l.s4 1983009808
      %v847 = vunpack.c.0.s8 %v846
      %v848 = vlaneseq
      %v849 = vshrl.u32 %v848, 7
      %v850 = vsub.s32 %v847, %v849
      %v851 = vrot.slane %v837, %v850
      %v852 = vcombine.high %v844, %v844
      %v853 = vcombine.high %v514, %v514
      %v855 = vunpack.c.l.s4 1983009808
      %v856 = vunpack.c.0.s8 %v855
      %v857 = vlaneseq
      %v858 = vshrl.u32 %v857, 7
      %v859 = vsub.s32 %v856, %v858
      %v860 = vrot.slane %v514, %v859
      %v862 = vunpack.c.l.s4 1983009808
      %v863 = vunpack.c.0.s8 %v862
      %v864 = vlaneseq
      %v865 = vshrl.u32 %v864, 7
      %v866 = vsub.s32 %v863, %v865
      %v867 = vrot.slane %v853, %v866
      %v868 = vcombine.high %v860, %v860
      %v869 = vcombine.high %v867, %v867
      %v870 = vcombine.high %v515, %v515
      %v872 = vunpack.c.l.s4 1983009808
      %v873 = vunpack.c.0.s8 %v872
      %v874 = vlaneseq
      %v875 = vshrl.u32 %v874, 7
      %v876 = vsub.s32 %v873, %v875
      %v877 = vrot.slane %v515, %v876
      %v879 = vunpack.c.l.s4 1983009808
      %v880 = vunpack.c.0.s8 %v879
      %v881 = vlaneseq
      %v882 = vshrl.u32 %v881, 7
      %v883 = vsub.s32 %v880, %v882
      %v884 = vrot.slane %v870, %v883
      %v885 = vcombine.high %v877, %v877
      %v886 = vcombine.high %v516, %v516
      %v888 = vunpack.c.l.s4 1983009808
      %v889 = vunpack.c.0.s8 %v888
      %v890 = vlaneseq
      %v891 = vshrl.u32 %v890, 7
      %v892 = vsub.s32 %v889, %v891
      %v893 = vrot.slane %v516, %v892
      %v895 = vunpack.c.l.s4 1983009808
      %v896 = vunpack.c.0.s8 %v895
      %v897 = vlaneseq
      %v898 = vshrl.u32 %v897, 7
      %v899 = vsub.s32 %v896, %v898
      %v900 = vrot.slane %v886, %v899
      %v901 = vcombine.high %v893, %v893
      %v902 = vcombine.high %v900, %v900
      %v903 = vcombine.high %v517, %v517
      %v905 = vunpack.c.l.s4 1983009808
      %v906 = vunpack.c.0.s8 %v905
      %v907 = vlaneseq
      %v908 = vshrl.u32 %v907, 7
      %v909 = vsub.s32 %v906, %v908
      %v910 = vrot.slane %v517, %v909
      %v912 = vunpack.c.l.s4 1983009808
      %v913 = vunpack.c.0.s8 %v912
      %v914 = vlaneseq
      %v915 = vshrl.u32 %v914, 7
      %v916 = vsub.s32 %v913, %v915
      %v917 = vrot.slane %v903, %v916
      %v918 = vcombine.high %v910, %v910
      %v919 = vcombine.high %v518, %v518
      %v921 = vunpack.c.l.s4 1983009808
      %v922 = vunpack.c.0.s8 %v921
      %v923 = vlaneseq
      %v924 = vshrl.u32 %v923, 7
      %v925 = vsub.s32 %v922, %v924
      %v926 = vrot.slane %v518, %v925
      %v928 = vunpack.c.l.s4 1983009808
      %v929 = vunpack.c.0.s8 %v928
      %v930 = vlaneseq
      %v931 = vshrl.u32 %v930, 7
      %v932 = vsub.s32 %v929, %v931
      %v933 = vrot.slane %v919, %v932
      %v934 = vcombine.high %v926, %v926
      %v935 = vcombine.high %v933, %v933
      %v936 = vcombine.high %v519, %v519
      %v938 = vunpack.c.l.s4 1983009808
      %v939 = vunpack.c.0.s8 %v938
      %v940 = vlaneseq
      %v941 = vshrl.u32 %v940, 7
      %v942 = vsub.s32 %v939, %v941
      %v943 = vrot.slane %v519, %v942
      %v945 = vunpack.c.l.s4 1983009808
      %v946 = vunpack.c.0.s8 %v945
      %v947 = vlaneseq
      %v948 = vshrl.u32 %v947, 7
      %v949 = vsub.s32 %v946, %v948
      %v950 = vrot.slane %v936, %v949
      %v951 = vcombine.high %v943, %v943
      %v952 = vcombine.high %v520, %v520
      %v954 = vunpack.c.l.s4 1983009808
      %v955 = vunpack.c.0.s8 %v954
      %v956 = vlaneseq
      %v957 = vshrl.u32 %v956, 7
      %v958 = vsub.s32 %v955, %v957
      %v959 = vrot.slane %v520, %v958
      %v961 = vunpack.c.l.s4 1983009808
      %v962 = vunpack.c.0.s8 %v961
      %v963 = vlaneseq
      %v964 = vshrl.u32 %v963, 7
      %v965 = vsub.s32 %v962, %v964
      %v966 = vrot.slane %v952, %v965
      %v967 = vcombine.high %v959, %v959
      %v968 = vcombine.high %v966, %v966
      %v969 = vcombine.high %v521, %v521
      %v971 = vunpack.c.l.s4 1983009808
      %v972 = vunpack.c.0.s8 %v971
      %v973 = vlaneseq
      %v974 = vshrl.u32 %v973, 7
      %v975 = vsub.s32 %v972, %v974
      %v976 = vrot.slane %v521, %v975
      %v978 = vunpack.c.l.s4 1983009808
      %v979 = vunpack.c.0.s8 %v978
      %v980 = vlaneseq
      %v981 = vshrl.u32 %v980, 7
      %v982 = vsub.s32 %v979, %v981
      %v983 = vrot.slane %v969, %v982
      %v984 = vcombine.high %v976, %v976
      %v985 = vcombine.high %v522, %v522
      %v987 = vunpack.c.l.s4 1983009808
      %v988 = vunpack.c.0.s8 %v987
      %v989 = vlaneseq
      %v990 = vshrl.u32 %v989, 7
      %v991 = vsub.s32 %v988, %v990
      %v992 = vrot.slane %v522, %v991
      %v994 = vunpack.c.l.s4 1983009808
      %v995 = vunpack.c.0.s8 %v994
      %v996 = vlaneseq
      %v997 = vshrl.u32 %v996, 7
      %v998 = vsub.s32 %v995, %v997
      %v999 = vrot.slane %v985, %v998
      %v1000 = vcombine.high %v992, %v992
      %v1001 = vcombine.high %v999, %v999
      %v1002 = vcombine.high %v523, %v523
      %v1004 = vunpack.c.l.s4 1983009808
      %v1005 = vunpack.c.0.s8 %v1004
      %v1006 = vlaneseq
      %v1007 = vshrl.u32 %v1006, 7
      %v1008 = vsub.s32 %v1005, %v1007
      %v1009 = vrot.slane %v523, %v1008
      %v1011 = vunpack.c.l.s4 1983009808
      %v1012 = vunpack.c.0.s8 %v1011
      %v1013 = vlaneseq
      %v1014 = vshrl.u32 %v1013, 7
      %v1015 = vsub.s32 %v1012, %v1014
      %v1016 = vrot.slane %v1002, %v1015
      %v1017 = vcombine.high %v1009, %v1009
      %v1018 = vcombine.low %v563, %v571
      %v1019 = vcombine.low %v570, %v572
      %v1021 = vunpack.c.l.s4 1983009808
      %v1022 = vunpack.c.0.s8 %v1021
      %v1023 = vlaneseq
      %v1024 = vshrl.u32 %v1023, 7
      %v1025 = vsub.s32 %v1022, %v1024
      %v1026 = vrot.slane %v1018, %v1025
      %v1028 = vunpack.c.l.s4 1983009808
      %v1029 = vunpack.c.0.s8 %v1028
      %v1030 = vlaneseq
      %v1031 = vshrl.u32 %v1030, 7
      %v1032 = vsub.s32 %v1029, %v1031
      %v1033 = vrot.slane %v1019, %v1032
      %v1034 = vcombine.low %v1026, %v1033
      %v1035 = vcombine.low %v580, %v588
      %v1036 = vcombine.low %v587, %v596
      %v1038 = vunpack.c.l.s4 1983009808
      %v1039 = vunpack.c.0.s8 %v1038
      %v1040 = vlaneseq
      %v1041 = vshrl.u32 %v1040, 7
      %v1042 = vsub.s32 %v1039, %v1041
      %v1043 = vrot.slane %v1035, %v1042
      %v1045 = vunpack.c.l.s4 1983009808
      %v1046 = vunpack.c.0.s8 %v1045
      %v1047 = vlaneseq
      %v1048 = vshrl.u32 %v1047, 7
      %v1049 = vsub.s32 %v1046, %v1048
      %v1050 = vrot.slane %v1036, %v1049
      %v1051 = vcombine.low %v1043, %v1050
      %v1052 = vcombine.low %v604, %v603
      %v1053 = vcombine.low %v605, %v613
      %v1055 = vunpack.c.l.s4 1983009808
      %v1056 = vunpack.c.0.s8 %v1055
      %v1057 = vlaneseq
      %v1058 = vshrl.u32 %v1057, 7
      %v1059 = vsub.s32 %v1056, %v1058
      %v1060 = vrot.slane %v1052, %v1059
      %v1062 = vunpack.c.l.s4 1983009808
      %v1063 = vunpack.c.0.s8 %v1062
      %v1064 = vlaneseq
      %v1065 = vshrl.u32 %v1064, 7
      %v1066 = vsub.s32 %v1063, %v1065
      %v1067 = vrot.slane %v1053, %v1066
      %v1068 = vcombine.low %v1060, %v1067
      %v1069 = vcombine.low %v621, %v620
      %v1070 = vcombine.low %v629, %v637
      %v1072 = vunpack.c.l.s4 1983009808
      %v1073 = vunpack.c.0.s8 %v1072
      %v1074 = vlaneseq
      %v1075 = vshrl.u32 %v1074, 7
      %v1076 = vsub.s32 %v1073, %v1075
      %v1077 = vrot.slane %v1069, %v1076
      %v1079 = vunpack.c.l.s4 1983009808
      %v1080 = vunpack.c.0.s8 %v1079
      %v1081 = vlaneseq
      %v1082 = vshrl.u32 %v1081, 7
      %v1083 = vsub.s32 %v1080, %v1082
      %v1084 = vrot.slane %v1070, %v1083
      %v1085 = vcombine.low %v1077, %v1084
      %v1086 = vcombine.low %v636, %v638
      %v1087 = vcombine.low %v646, %v654
      %v1089 = vunpack.c.l.s4 1983009808
      %v1090 = vunpack.c.0.s8 %v1089
      %v1091 = vlaneseq
      %v1092 = vshrl.u32 %v1091, 7
      %v1093 = vsub.s32 %v1090, %v1092
      %v1094 = vrot.slane %v1086, %v1093
      %v1096 = vunpack.c.l.s4 1983009808
      %v1097 = vunpack.c.0.s8 %v1096
      %v1098 = vlaneseq
      %v1099 = vshrl.u32 %v1098, 7
      %v1100 = vsub.s32 %v1097, %v1099
      %v1101 = vrot.slane %v1087, %v1100
      %v1102 = vcombine.low %v1094, %v1101
      %v1103 = vcombine.low %v653, %v662
      %v1104 = vcombine.low %v670, %v669
      %v1106 = vunpack.c.l.s4 1983009808
      %v1107 = vunpack.c.0.s8 %v1106
      %v1108 = vlaneseq
      %v1109 = vshrl.u32 %v1108, 7
      %v1110 = vsub.s32 %v1107, %v1109
      %v1111 = vrot.slane %v1103, %v1110
      %v1113 = vunpack.c.l.s4 1983009808
      %v1114 = vunpack.c.0.s8 %v1113
      %v1115 = vlaneseq
      %v1116 = vshrl.u32 %v1115, 7
      %v1117 = vsub.s32 %v1114, %v1116
      %v1118 = vrot.slane %v1104, %v1117
      %v1119 = vcombine.low %v1111, %v1118
      %v1120 = vcombine.low %v671, %v679
      %v1121 = vcombine.low %v687, %v686
      %v1123 = vunpack.c.l.s4 1983009808
      %v1124 = vunpack.c.0.s8 %v1123
      %v1125 = vlaneseq
      %v1126 = vshrl.u32 %v1125, 7
      %v1127 = vsub.s32 %v1124, %v1126
      %v1128 = vrot.slane %v1120, %v1127
      %v1130 = vunpack.c.l.s4 1983009808
      %v1131 = vunpack.c.0.s8 %v1130
      %v1132 = vlaneseq
      %v1133 = vshrl.u32 %v1132, 7
      %v1134 = vsub.s32 %v1131, %v1133
      %v1135 = vrot.slane %v1121, %v1134
      %v1136 = vcombine.low %v1128, %v1135
      %v1137 = vcombine.low %v695, %v703
      %v1138 = vcombine.low %v702, %v704
      %v1140 = vunpack.c.l.s4 1983009808
      %v1141 = vunpack.c.0.s8 %v1140
      %v1142 = vlaneseq
      %v1143 = vshrl.u32 %v1142, 7
      %v1144 = vsub.s32 %v1141, %v1143
      %v1145 = vrot.slane %v1137, %v1144
      %v1147 = vunpack.c.l.s4 1983009808
      %v1148 = vunpack.c.0.s8 %v1147
      %v1149 = vlaneseq
      %v1150 = vshrl.u32 %v1149, 7
      %v1151 = vsub.s32 %v1148, %v1150
      %v1152 = vrot.slane %v1138, %v1151
      %v1153 = vcombine.low %v1145, %v1152
      %v1154 = vcombine.low %v712, %v720
      %v1155 = vcombine.low %v719, %v728
      %v1157 = vunpack.c.l.s4 1983009808
      %v1158 = vunpack.c.0.s8 %v1157
      %v1159 = vlaneseq
      %v1160 = vshrl.u32 %v1159, 7
      %v1161 = vsub.s32 %v1158, %v1160
      %v1162 = vrot.slane %v1154, %v1161
      %v1164 = vunpack.c.l.s4 1983009808
      %v1165 = vunpack.c.0.s8 %v1164
      %v1166 = vlaneseq
      %v1167 = vshrl.u32 %v1166, 7
      %v1168 = vsub.s32 %v1165, %v1167
      %v1169 = vrot.slane %v1155, %v1168
      %v1170 = vcombine.low %v1162, %v1169
      %v1171 = vcombine.low %v736, %v735
      %v1172 = vcombine.low %v737, %v745
      %v1174 = vunpack.c.l.s4 1983009808
      %v1175 = vunpack.c.0.s8 %v1174
      %v1176 = vlaneseq
      %v1177 = vshrl.u32 %v1176, 7
      %v1178 = vsub.s32 %v1175, %v1177
      %v1179 = vrot.slane %v1171, %v1178
      %v1181 = vunpack.c.l.s4 1983009808
      %v1182 = vunpack.c.0.s8 %v1181
      %v1183 = vlaneseq
      %v1184 = vshrl.u32 %v1183, 7
      %v1185 = vsub.s32 %v1182, %v1184
      %v1186 = vrot.slane %v1172, %v1185
      %v1187 = vcombine.low %v1179, %v1186
      %v1188 = vcombine.low %v753, %v752
      %v1189 = vcombine.low %v761, %v769
      %v1191 = vunpack.c.l.s4 1983009808
      %v1192 = vunpack.c.0.s8 %v1191
      %v1193 = vlaneseq
      %v1194 = vshrl.u32 %v1193, 7
      %v1195 = vsub.s32 %v1192, %v1194
      %v1196 = vrot.slane %v1188, %v1195
      %v1198 = vunpack.c.l.s4 1983009808
      %v1199 = vunpack.c.0.s8 %v1198
      %v1200 = vlaneseq
      %v1201 = vshrl.u32 %v1200, 7
      %v1202 = vsub.s32 %v1199, %v1201
      %v1203 = vrot.slane %v1189, %v1202
      %v1204 = vcombine.low %v1196, %v1203
      %v1205 = vcombine.low %v768, %v770
      %v1206 = vcombine.low %v778, %v786
      %v1208 = vunpack.c.l.s4 1983009808
      %v1209 = vunpack.c.0.s8 %v1208
      %v1210 = vlaneseq
      %v1211 = vshrl.u32 %v1210, 7
      %v1212 = vsub.s32 %v1209, %v1211
      %v1213 = vrot.slane %v1205, %v1212
      %v1215 = vunpack.c.l.s4 1983009808
      %v1216 = vunpack.c.0.s8 %v1215
      %v1217 = vlaneseq
      %v1218 = vshrl.u32 %v1217, 7
      %v1219 = vsub.s32 %v1216, %v1218
      %v1220 = vrot.slane %v1206, %v1219
      %v1221 = vcombine.low %v1213, %v1220
      %v1222 = vcombine.low %v785, %v794
      %v1223 = vcombine.low %v802, %v801
      %v1225 = vunpack.c.l.s4 1983009808
      %v1226 = vunpack.c.0.s8 %v1225
      %v1227 = vlaneseq
      %v1228 = vshrl.u32 %v1227, 7
      %v1229 = vsub.s32 %v1226, %v1228
      %v1230 = vrot.slane %v1222, %v1229
      %v1232 = vunpack.c.l.s4 1983009808
      %v1233 = vunpack.c.0.s8 %v1232
      %v1234 = vlaneseq
      %v1235 = vshrl.u32 %v1234, 7
      %v1236 = vsub.s32 %v1233, %v1235
      %v1237 = vrot.slane %v1223, %v1236
      %v1238 = vcombine.low %v1230, %v1237
      %v1239 = vcombine.low %v803, %v811
      %v1240 = vcombine.low %v819, %v818
      %v1242 = vunpack.c.l.s4 1983009808
      %v1243 = vunpack.c.0.s8 %v1242
      %v1244 = vlaneseq
      %v1245 = vshrl.u32 %v1244, 7
      %v1246 = vsub.s32 %v1243, %v1245
      %v1247 = vrot.slane %v1239, %v1246
      %v1249 = vunpack.c.l.s4 1983009808
      %v1250 = vunpack.c.0.s8 %v1249
      %v1251 = vlaneseq
      %v1252 = vshrl.u32 %v1251, 7
      %v1253 = vsub.s32 %v1250, %v1252
      %v1254 = vrot.slane %v1240, %v1253
      %v1255 = vcombine.low %v1247, %v1254
      %v1256 = vcombine.low %v827, %v835
      %v1257 = vcombine.low %v834, %v836
      %v1259 = vunpack.c.l.s4 1983009808
      %v1260 = vunpack.c.0.s8 %v1259
      %v1261 = vlaneseq
      %v1262 = vshrl.u32 %v1261, 7
      %v1263 = vsub.s32 %v1260, %v1262
      %v1264 = vrot.slane %v1256, %v1263
      %v1266 = vunpack.c.l.s4 1983009808
      %v1267 = vunpack.c.0.s8 %v1266
      %v1268 = vlaneseq
      %v1269 = vshrl.u32 %v1268, 7
      %v1270 = vsub.s32 %v1267, %v1269
      %v1271 = vrot.slane %v1257, %v1270
      %v1272 = vcombine.low %v1264, %v1271
      %v1273 = vcombine.low %v844, %v852
      %v1274 = vcombine.low %v851, %v860
      %v1276 = vunpack.c.l.s4 1983009808
      %v1277 = vunpack.c.0.s8 %v1276
      %v1278 = vlaneseq
      %v1279 = vshrl.u32 %v1278, 7
      %v1280 = vsub.s32 %v1277, %v1279
      %v1281 = vrot.slane %v1273, %v1280
      %v1283 = vunpack.c.l.s4 1983009808
      %v1284 = vunpack.c.0.s8 %v1283
      %v1285 = vlaneseq
      %v1286 = vshrl.u32 %v1285, 7
      %v1287 = vsub.s32 %v1284, %v1286
      %v1288 = vrot.slane %v1274, %v1287
      %v1289 = vcombine.low %v1281, %v1288
      %v1290 = vcombine.low %v868, %v867
      %v1291 = vcombine.low %v869, %v877
      %v1293 = vunpack.c.l.s4 1983009808
      %v1294 = vunpack.c.0.s8 %v1293
      %v1295 = vlaneseq
      %v1296 = vshrl.u32 %v1295, 7
      %v1297 = vsub.s32 %v1294, %v1296
      %v1298 = vrot.slane %v1290, %v1297
      %v1300 = vunpack.c.l.s4 1983009808
      %v1301 = vunpack.c.0.s8 %v1300
      %v1302 = vlaneseq
      %v1303 = vshrl.u32 %v1302, 7
      %v1304 = vsub.s32 %v1301, %v1303
      %v1305 = vrot.slane %v1291, %v1304
      %v1306 = vcombine.low %v1298, %v1305
      %v1307 = vcombine.low %v885, %v884
      %v1308 = vcombine.low %v893, %v901
      %v1310 = vunpack.c.l.s4 1983009808
      %v1311 = vunpack.c.0.s8 %v1310
      %v1312 = vlaneseq
      %v1313 = vshrl.u32 %v1312, 7
      %v1314 = vsub.s32 %v1311, %v1313
      %v1315 = vrot.slane %v1307, %v1314
      %v1317 = vunpack.c.l.s4 1983009808
      %v1318 = vunpack.c.0.s8 %v1317
      %v1319 = vlaneseq
      %v1320 = vshrl.u32 %v1319, 7
      %v1321 = vsub.s32 %v1318, %v1320
      %v1322 = vrot.slane %v1308, %v1321
      %v1323 = vcombine.low %v1315, %v1322
      %v1324 = vcombine.low %v900, %v902
      %v1325 = vcombine.low %v910, %v918
      %v1327 = vunpack.c.l.s4 1983009808
      %v1328 = vunpack.c.0.s8 %v1327
      %v1329 = vlaneseq
      %v1330 = vshrl.u32 %v1329, 7
      %v1331 = vsub.s32 %v1328, %v1330
      %v1332 = vrot.slane %v1324, %v1331
      %v1334 = vunpack.c.l.s4 1983009808
      %v1335 = vunpack.c.0.s8 %v1334
      %v1336 = vlaneseq
      %v1337 = vshrl.u32 %v1336, 7
      %v1338 = vsub.s32 %v1335, %v1337
      %v1339 = vrot.slane %v1325, %v1338
      %v1340 = vcombine.low %v1332, %v1339
      %v1341 = vcombine.low %v917, %v926
      %v1342 = vcombine.low %v934, %v933
      %v1344 = vunpack.c.l.s4 1983009808
      %v1345 = vunpack.c.0.s8 %v1344
      %v1346 = vlaneseq
      %v1347 = vshrl.u32 %v1346, 7
      %v1348 = vsub.s32 %v1345, %v1347
      %v1349 = vrot.slane %v1341, %v1348
      %v1351 = vunpack.c.l.s4 1983009808
      %v1352 = vunpack.c.0.s8 %v1351
      %v1353 = vlaneseq
      %v1354 = vshrl.u32 %v1353, 7
      %v1355 = vsub.s32 %v1352, %v1354
      %v1356 = vrot.slane %v1342, %v1355
      %v1357 = vcombine.low %v1349, %v1356
      %v1358 = vcombine.low %v935, %v943
      %v1359 = vcombine.low %v951, %v950
      %v1361 = vunpack.c.l.s4 1983009808
      %v1362 = vunpack.c.0.s8 %v1361
      %v1363 = vlaneseq
      %v1364 = vshrl.u32 %v1363, 7
      %v1365 = vsub.s32 %v1362, %v1364
      %v1366 = vrot.slane %v1358, %v1365
      %v1368 = vunpack.c.l.s4 1983009808
      %v1369 = vunpack.c.0.s8 %v1368
      %v1370 = vlaneseq
      %v1371 = vshrl.u32 %v1370, 7
      %v1372 = vsub.s32 %v1369, %v1371
      %v1373 = vrot.slane %v1359, %v1372
      %v1374 = vcombine.low %v1366, %v1373
      %v1375 = vcombine.low %v959, %v967
      %v1376 = vcombine.low %v966, %v968
      %v1378 = vunpack.c.l.s4 1983009808
      %v1379 = vunpack.c.0.s8 %v1378
      %v1380 = vlaneseq
      %v1381 = vshrl.u32 %v1380, 7
      %v1382 = vsub.s32 %v1379, %v1381
      %v1383 = vrot.slane %v1375, %v1382
      %v1385 = vunpack.c.l.s4 1983009808
      %v1386 = vunpack.c.0.s8 %v1385
      %v1387 = vlaneseq
      %v1388 = vshrl.u32 %v1387, 7
      %v1389 = vsub.s32 %v1386, %v1388
      %v1390 = vrot.slane %v1376, %v1389
      %v1391 = vcombine.low %v1383, %v1390
      %v1392 = vcombine.low %v976, %v984
      %v1393 = vcombine.low %v983, %v992
      %v1395 = vunpack.c.l.s4 1983009808
      %v1396 = vunpack.c.0.s8 %v1395
      %v1397 = vlaneseq
      %v1398 = vshrl.u32 %v1397, 7
      %v1399 = vsub.s32 %v1396, %v1398
      %v1400 = vrot.slane %v1392, %v1399
      %v1402 = vunpack.c.l.s4 1983009808
      %v1403 = vunpack.c.0.s8 %v1402
      %v1404 = vlaneseq
      %v1405 = vshrl.u32 %v1404, 7
      %v1406 = vsub.s32 %v1403, %v1405
      %v1407 = vrot.slane %v1393, %v1406
      %v1408 = vcombine.low %v1400, %v1407
      %v1409 = vcombine.low %v1000, %v999
      %v1410 = vcombine.low %v1001, %v1009
      %v1412 = vunpack.c.l.s4 1983009808
      %v1413 = vunpack.c.0.s8 %v1412
      %v1414 = vlaneseq
      %v1415 = vshrl.u32 %v1414, 7
      %v1416 = vsub.s32 %v1413, %v1415
      %v1417 = vrot.slane %v1409, %v1416
      %v1419 = vunpack.c.l.s4 1983009808
      %v1420 = vunpack.c.0.s8 %v1419
      %v1421 = vlaneseq
      %v1422 = vshrl.u32 %v1421, 7
      %v1423 = vsub.s32 %v1420, %v1422
      %v1424 = vrot.slane %v1410, %v1423
      %v1425 = vcombine.low %v1417, %v1424
      %v1426 = vcombine.low %v1017, %v1016
      %v1428 = vunpack.c.l.s4 1983009808
      %v1429 = vunpack.c.0.s8 %v1428
      %v1430 = vlaneseq
      %v1431 = vshrl.u32 %v1430, 7
      %v1432 = vsub.s32 %v1429, %v1431
      %v1433 = vrot.slane %v1426, %v1432
      %v1459 = vpack.c.bf16 %v1051, %v1034
      %v1460 = vpack.c.bf16 %v1085, %v1068
      %v1461 = vpack.c.bf16 %v1119, %v1102
      %v1462 = vpack.c.bf16 %v1153, %v1136
      %v1463 = vpack.c.bf16 %v1187, %v1170
      %v1464 = vpack.c.bf16 %v1221, %v1204
      %v1465 = vpack.c.bf16 %v1255, %v1238
      %v1466 = vpack.c.bf16 %v1289, %v1272
      %v1467 = vpack.c.bf16 %v1323, %v1306
      %v1468 = vpack.c.bf16 %v1357, %v1340
      %v1469 = vpack.c.bf16 %v1391, %v1374
      %v1470 = vpack.c.bf16 %v1425, %v1408
      %v1471 = vpack.c.bf16 %v1433, %v1433
      %v1472 = vld [vmem:[%s1] sm:$0x3]
      %v1473 = vcombine.high %v587, %v587
      %v1474 = vcombine.high %v620, %v620
      %v1475 = vcombine.high %v653, %v653
      %v1476 = vcombine.high %v686, %v686
      %v1477 = vcombine.high %v719, %v719
      %v1478 = vcombine.high %v752, %v752
      %v1479 = vcombine.high %v785, %v785
      %v1480 = vcombine.high %v818, %v818
      %v1481 = vcombine.high %v851, %v851
      %v1482 = vcombine.high %v884, %v884
      %v1483 = vcombine.high %v917, %v917
      %v1484 = vcombine.high %v950, %v950
      %v1485 = vcombine.high %v983, %v983
      %v1486 = vcombine.high %v1016, %v1016
      %vm1487 = vcmask 1040384
      %vm1488 = vcmask 1042434
      %vm1489 = vmor %vm1487, %vm1488
      %vm1490 = vcmask 1044484
      %vm1491 = vmor %vm1489, %vm1490
      %vm1492 = vcmask 1046534
      %vm1493 = vmor %vm1491, %vm1492
      %v1494 = vrot.slane %v563, 7
      %v1495 = vrot.slane %v1494, 2
      %v1496 = vrot.slane %v571, 7
      %v1497 = vsel %vm1493, %v1495, %v1496
      %v1498 = vrot.slane %v1496, 2
      %v1499 = vrot.slane %v570, 7
      %v1500 = vsel %vm1493, %v1498, %v1499
      %v1501 = vrot.slane %v1499, 2
      %v1502 = vrot.slane %v572, 7
      %v1503 = vsel %vm1493, %v1501, %v1502
      %v1504 = vrot.slane %v1502, 2
      %v1505 = vrot.slane %v580, 7
      %v1506 = vsel %vm1493, %v1504, %v1505
      %v1507 = vrot.slane %v1505, 2
      %v1508 = vrot.slane %v588, 7
      %v1509 = vsel %vm1493, %v1507, %v1508
      %v1510 = vrot.slane %v1508, 2
      %v1511 = vrot.slane %v587, 7
      %v1512 = vsel %vm1493, %v1510, %v1511
      %v1513 = vrot.slane %v1511, 2
      %v1514 = vrot.slane %v1473, 7
      %v1515 = vsel %vm1493, %v1513, %v1514
      %v1516 = vrot.slane %v596, 7
      %v1517 = vrot.slane %v1516, 2
      %v1518 = vrot.slane %v604, 7
      %v1519 = vsel %vm1493, %v1517, %v1518
      %v1520 = vrot.slane %v1518, 2
      %v1521 = vrot.slane %v603, 7
      %v1522 = vsel %vm1493, %v1520, %v1521
      %v1523 = vrot.slane %v1521, 2
      %v1524 = vrot.slane %v605, 7
      %v1525 = vsel %vm1493, %v1523, %v1524
      %v1526 = vrot.slane %v1524, 2
      %v1527 = vrot.slane %v613, 7
      %v1528 = vsel %vm1493, %v1526, %v1527
      %v1529 = vrot.slane %v1527, 2
      %v1530 = vrot.slane %v621, 7
      %v1531 = vsel %vm1493, %v1529, %v1530
      %v1532 = vrot.slane %v1530, 2
      %v1533 = vrot.slane %v620, 7
      %v1534 = vsel %vm1493, %v1532, %v1533
      %v1535 = vrot.slane %v1533, 2
      %v1536 = vrot.slane %v1474, 7
      %v1537 = vsel %vm1493, %v1535, %v1536
      %v1538 = vrot.slane %v629, 7
      %v1539 = vrot.slane %v1538, 2
      %v1540 = vrot.slane %v637, 7
      %v1541 = vsel %vm1493, %v1539, %v1540
      %v1542 = vrot.slane %v1540, 2
      %v1543 = vrot.slane %v636, 7
      %v1544 = vsel %vm1493, %v1542, %v1543
      %v1545 = vrot.slane %v1543, 2
      %v1546 = vrot.slane %v638, 7
      %v1547 = vsel %vm1493, %v1545, %v1546
      %v1548 = vrot.slane %v1546, 2
      %v1549 = vrot.slane %v646, 7
      %v1550 = vsel %vm1493, %v1548, %v1549
      %v1551 = vrot.slane %v1549, 2
      %v1552 = vrot.slane %v654, 7
      %v1553 = vsel %vm1493, %v1551, %v1552
      %v1554 = vrot.slane %v1552, 2
      %v1555 = vrot.slane %v653, 7
      %v1556 = vsel %vm1493, %v1554, %v1555
      %v1557 = vrot.slane %v1555, 2
      %v1558 = vrot.slane %v1475, 7
      %v1559 = vsel %vm1493, %v1557, %v1558
      %v1560 = vrot.slane %v662, 7
      %v1561 = vrot.slane %v1560, 2
      %v1562 = vrot.slane %v670, 7
      %v1563 = vsel %vm1493, %v1561, %v1562
      %v1564 = vrot.slane %v1562, 2
      %v1565 = vrot.slane %v669, 7
      %v1566 = vsel %vm1493, %v1564, %v1565
      %v1567 = vrot.slane %v1565, 2
      %v1568 = vrot.slane %v671, 7
      %v1569 = vsel %vm1493, %v1567, %v1568
      %v1570 = vrot.slane %v1568, 2
      %v1571 = vrot.slane %v679, 7
      %v1572 = vsel %vm1493, %v1570, %v1571
      %v1573 = vrot.slane %v1571, 2
      %v1574 = vrot.slane %v687, 7
      %v1575 = vsel %vm1493, %v1573, %v1574
      %v1576 = vrot.slane %v1574, 2
      %v1577 = vrot.slane %v686, 7
      %v1578 = vsel %vm1493, %v1576, %v1577
      %v1579 = vrot.slane %v1577, 2
      %v1580 = vrot.slane %v1476, 7
      %v1581 = vsel %vm1493, %v1579, %v1580
      %v1582 = vrot.slane %v695, 7
      %v1583 = vrot.slane %v1582, 2
      %v1584 = vrot.slane %v703, 7
      %v1585 = vsel %vm1493, %v1583, %v1584
      %v1586 = vrot.slane %v1584, 2
      %v1587 = vrot.slane %v702, 7
      %v1588 = vsel %vm1493, %v1586, %v1587
      %v1589 = vrot.slane %v1587, 2
      %v1590 = vrot.slane %v704, 7
      %v1591 = vsel %vm1493, %v1589, %v1590
      %v1592 = vrot.slane %v1590, 2
      %v1593 = vrot.slane %v712, 7
      %v1594 = vsel %vm1493, %v1592, %v1593
      %v1595 = vrot.slane %v1593, 2
      %v1596 = vrot.slane %v720, 7
      %v1597 = vsel %vm1493, %v1595, %v1596
      %v1598 = vrot.slane %v1596, 2
      %v1599 = vrot.slane %v719, 7
      %v1600 = vsel %vm1493, %v1598, %v1599
      %v1601 = vrot.slane %v1599, 2
      %v1602 = vrot.slane %v1477, 7
      %v1603 = vsel %vm1493, %v1601, %v1602
      %v1604 = vrot.slane %v728, 7
      %v1605 = vrot.slane %v1604, 2
      %v1606 = vrot.slane %v736, 7
      %v1607 = vsel %vm1493, %v1605, %v1606
      %v1608 = vrot.slane %v1606, 2
      %v1609 = vrot.slane %v735, 7
      %v1610 = vsel %vm1493, %v1608, %v1609
      %v1611 = vrot.slane %v1609, 2
      %v1612 = vrot.slane %v737, 7
      %v1613 = vsel %vm1493, %v1611, %v1612
      %v1614 = vrot.slane %v1612, 2
      %v1615 = vrot.slane %v745, 7
      %v1616 = vsel %vm1493, %v1614, %v1615
      %v1617 = vrot.slane %v1615, 2
      %v1618 = vrot.slane %v753, 7
      %v1619 = vsel %vm1493, %v1617, %v1618
      %v1620 = vrot.slane %v1618, 2
      %v1621 = vrot.slane %v752, 7
      %v1622 = vsel %vm1493, %v1620, %v1621
      %v1623 = vrot.slane %v1621, 2
      %v1624 = vrot.slane %v1478, 7
      %v1625 = vsel %vm1493, %v1623, %v1624
      %v1626 = vrot.slane %v761, 7
      %v1627 = vrot.slane %v1626, 2
      %v1628 = vrot.slane %v769, 7
      %v1629 = vsel %vm1493, %v1627, %v1628
      %v1630 = vrot.slane %v1628, 2
      %v1631 = vrot.slane %v768, 7
      %v1632 = vsel %vm1493, %v1630, %v1631
      %v1633 = vrot.slane %v1631, 2
      %v1634 = vrot.slane %v770, 7
      %v1635 = vsel %vm1493, %v1633, %v1634
      %v1636 = vrot.slane %v1634, 2
      %v1637 = vrot.slane %v778, 7
      %v1638 = vsel %vm1493, %v1636, %v1637
      %v1639 = vrot.slane %v1637, 2
      %v1640 = vrot.slane %v786, 7
      %v1641 = vsel %vm1493, %v1639, %v1640
      %v1642 = vrot.slane %v1640, 2
      %v1643 = vrot.slane %v785, 7
      %v1644 = vsel %vm1493, %v1642, %v1643
      %v1645 = vrot.slane %v1643, 2
      %v1646 = vrot.slane %v1479, 7
      %v1647 = vsel %vm1493, %v1645, %v1646
      %v1648 = vrot.slane %v794, 7
      %v1649 = vrot.slane %v1648, 2
      %v1650 = vrot.slane %v802, 7
      %v1651 = vsel %vm1493, %v1649, %v1650
      %v1652 = vrot.slane %v1650, 2
      %v1653 = vrot.slane %v801, 7
      %v1654 = vsel %vm1493, %v1652, %v1653
      %v1655 = vrot.slane %v1653, 2
      %v1656 = vrot.slane %v803, 7
      %v1657 = vsel %vm1493, %v1655, %v1656
      %v1658 = vrot.slane %v1656, 2
      %v1659 = vrot.slane %v811, 7
      %v1660 = vsel %vm1493, %v1658, %v1659
      %v1661 = vrot.slane %v1659, 2
      %v1662 = vrot.slane %v819, 7
      %v1663 = vsel %vm1493, %v1661, %v1662
      %v1664 = vrot.slane %v1662, 2
      %v1665 = vrot.slane %v818, 7
      %v1666 = vsel %vm1493, %v1664, %v1665
      %v1667 = vrot.slane %v1665, 2
      %v1668 = vrot.slane %v1480, 7
      %v1669 = vsel %vm1493, %v1667, %v1668
      %v1670 = vrot.slane %v827, 7
      %v1671 = vrot.slane %v1670, 2
      %v1672 = vrot.slane %v835, 7
      %v1673 = vsel %vm1493, %v1671, %v1672
      %v1674 = vrot.slane %v1672, 2
      %v1675 = vrot.slane %v834, 7
      %v1676 = vsel %vm1493, %v1674, %v1675
      %v1677 = vrot.slane %v1675, 2
      %v1678 = vrot.slane %v836, 7
      %v1679 = vsel %vm1493, %v1677, %v1678
      %v1680 = vrot.slane %v1678, 2
      %v1681 = vrot.slane %v844, 7
      %v1682 = vsel %vm1493, %v1680, %v1681
      %v1683 = vrot.slane %v1681, 2
      %v1684 = vrot.slane %v852, 7
      %v1685 = vsel %vm1493, %v1683, %v1684
      %v1686 = vrot.slane %v1684, 2
      %v1687 = vrot.slane %v851, 7
      %v1688 = vsel %vm1493, %v1686, %v1687
      %v1689 = vrot.slane %v1687, 2
      %v1690 = vrot.slane %v1481, 7
      %v1691 = vsel %vm1493, %v1689, %v1690
      %v1692 = vrot.slane %v860, 7
      %v1693 = vrot.slane %v1692, 2
      %v1694 = vrot.slane %v868, 7
      %v1695 = vsel %vm1493, %v1693, %v1694
      %v1696 = vrot.slane %v1694, 2
      %v1697 = vrot.slane %v867, 7
      %v1698 = vsel %vm1493, %v1696, %v1697
      %v1699 = vrot.slane %v1697, 2
      %v1700 = vrot.slane %v869, 7
      %v1701 = vsel %vm1493, %v1699, %v1700
      %v1702 = vrot.slane %v1700, 2
      %v1703 = vrot.slane %v877, 7
      %v1704 = vsel %vm1493, %v1702, %v1703
      %v1705 = vrot.slane %v1703, 2
      %v1706 = vrot.slane %v885, 7
      %v1707 = vsel %vm1493, %v1705, %v1706
      %v1708 = vrot.slane %v1706, 2
      %v1709 = vrot.slane %v884, 7
      %v1710 = vsel %vm1493, %v1708, %v1709
      %v1711 = vrot.slane %v1709, 2
      %v1712 = vrot.slane %v1482, 7
      %v1713 = vsel %vm1493, %v1711, %v1712
      %v1714 = vrot.slane %v893, 7
      %v1715 = vrot.slane %v1714, 2
      %v1716 = vrot.slane %v901, 7
      %v1717 = vsel %vm1493, %v1715, %v1716
      %v1718 = vrot.slane %v1716, 2
      %v1719 = vrot.slane %v900, 7
      %v1720 = vsel %vm1493, %v1718, %v1719
      %v1721 = vrot.slane %v1719, 2
      %v1722 = vrot.slane %v902, 7
      %v1723 = vsel %vm1493, %v1721, %v1722
      %v1724 = vrot.slane %v1722, 2
      %v1725 = vrot.slane %v910, 7
      %v1726 = vsel %vm1493, %v1724, %v1725
      %v1727 = vrot.slane %v1725, 2
      %v1728 = vrot.slane %v918, 7
      %v1729 = vsel %vm1493, %v1727, %v1728
      %v1730 = vrot.slane %v1728, 2
      %v1731 = vrot.slane %v917, 7
      %v1732 = vsel %vm1493, %v1730, %v1731
      %v1733 = vrot.slane %v1731, 2
      %v1734 = vrot.slane %v1483, 7
      %v1735 = vsel %vm1493, %v1733, %v1734
      %v1736 = vrot.slane %v926, 7
      %v1737 = vrot.slane %v1736, 2
      %v1738 = vrot.slane %v934, 7
      %v1739 = vsel %vm1493, %v1737, %v1738
      %v1740 = vrot.slane %v1738, 2
      %v1741 = vrot.slane %v933, 7
      %v1742 = vsel %vm1493, %v1740, %v1741
      %v1743 = vrot.slane %v1741, 2
      %v1744 = vrot.slane %v935, 7
      %v1745 = vsel %vm1493, %v1743, %v1744
      %v1746 = vrot.slane %v1744, 2
      %v1747 = vrot.slane %v943, 7
      %v1748 = vsel %vm1493, %v1746, %v1747
      %v1749 = vrot.slane %v1747, 2
      %v1750 = vrot.slane %v951, 7
      %v1751 = vsel %vm1493, %v1749, %v1750
      %v1752 = vrot.slane %v1750, 2
      %v1753 = vrot.slane %v950, 7
      %v1754 = vsel %vm1493, %v1752, %v1753
      %v1755 = vrot.slane %v1753, 2
      %v1756 = vrot.slane %v1484, 7
      %v1757 = vsel %vm1493, %v1755, %v1756
      %v1758 = vrot.slane %v959, 7
      %v1759 = vrot.slane %v1758, 2
      %v1760 = vrot.slane %v967, 7
      %v1761 = vsel %vm1493, %v1759, %v1760
      %v1762 = vrot.slane %v1760, 2
      %v1763 = vrot.slane %v966, 7
      %v1764 = vsel %vm1493, %v1762, %v1763
      %v1765 = vrot.slane %v1763, 2
      %v1766 = vrot.slane %v968, 7
      %v1767 = vsel %vm1493, %v1765, %v1766
      %v1768 = vrot.slane %v1766, 2
      %v1769 = vrot.slane %v976, 7
      %v1770 = vsel %vm1493, %v1768, %v1769
      %v1771 = vrot.slane %v1769, 2
      %v1772 = vrot.slane %v984, 7
      %v1773 = vsel %vm1493, %v1771, %v1772
      %v1774 = vrot.slane %v1772, 2
      %v1775 = vrot.slane %v983, 7
      %v1776 = vsel %vm1493, %v1774, %v1775
      %v1777 = vrot.slane %v1775, 2
      %v1778 = vrot.slane %v1485, 7
      %v1779 = vsel %vm1493, %v1777, %v1778
      %v1780 = vrot.slane %v992, 7
      %v1781 = vrot.slane %v1780, 2
      %v1782 = vrot.slane %v1000, 7
      %v1783 = vsel %vm1493, %v1781, %v1782
      %v1784 = vrot.slane %v1782, 2
      %v1785 = vrot.slane %v999, 7
      %v1786 = vsel %vm1493, %v1784, %v1785
      %v1787 = vrot.slane %v1785, 2
      %v1788 = vrot.slane %v1001, 7
      %v1789 = vsel %vm1493, %v1787, %v1788
      %v1790 = vrot.slane %v1788, 2
      %v1791 = vrot.slane %v1009, 7
      %v1792 = vsel %vm1493, %v1790, %v1791
      %v1793 = vrot.slane %v1791, 2
      %v1794 = vrot.slane %v1017, 7
      %v1795 = vsel %vm1493, %v1793, %v1794
      %v1796 = vrot.slane %v1794, 2
      %v1797 = vrot.slane %v1016, 7
      %v1798 = vsel %vm1493, %v1796, %v1797
      %v1799 = vrot.slane %v1797, 2
      %v1800 = vrot.slane %v1486, 7
      %v1801 = vsel %vm1493, %v1799, %v1800
      %v1802 = vcombine.low %v1497, %v1500
      %v1803 = vcombine.low %v1503, %v1506
      %v1805 = vunpack.c.l.s4 1983009808
      %v1806 = vunpack.c.0.s8 %v1805
      %v1807 = vlaneseq
      %v1808 = vshrl.u32 %v1807, 7
      %v1809 = vsub.s32 %v1806, %v1808
      %v1810 = vrot.slane %v1802, %v1809
      %v1812 = vunpack.c.l.s4 1983009808
      %v1813 = vunpack.c.0.s8 %v1812
      %v1814 = vlaneseq
      %v1815 = vshrl.u32 %v1814, 7
      %v1816 = vsub.s32 %v1813, %v1815
      %v1817 = vrot.slane %v1803, %v1816
      %v1818 = vcombine.low %v1810, %v1817
      %v1819 = vcombine.low %v1509, %v1512
      %v1820 = vcombine.low %v1515, %v1519
      %v1822 = vunpack.c.l.s4 1983009808
      %v1823 = vunpack.c.0.s8 %v1822
      %v1824 = vlaneseq
      %v1825 = vshrl.u32 %v1824, 7
      %v1826 = vsub.s32 %v1823, %v1825
      %v1827 = vrot.slane %v1819, %v1826
      %v1829 = vunpack.c.l.s4 1983009808
      %v1830 = vunpack.c.0.s8 %v1829
      %v1831 = vlaneseq
      %v1832 = vshrl.u32 %v1831, 7
      %v1833 = vsub.s32 %v1830, %v1832
      %v1834 = vrot.slane %v1820, %v1833
      %v1835 = vcombine.low %v1827, %v1834
      %v1836 = vcombine.low %v1522, %v1525
      %v1837 = vcombine.low %v1528, %v1531
      %v1839 = vunpack.c.l.s4 1983009808
      %v1840 = vunpack.c.0.s8 %v1839
      %v1841 = vlaneseq
      %v1842 = vshrl.u32 %v1841, 7
      %v1843 = vsub.s32 %v1840, %v1842
      %v1844 = vrot.slane %v1836, %v1843
      %v1846 = vunpack.c.l.s4 1983009808
      %v1847 = vunpack.c.0.s8 %v1846
      %v1848 = vlaneseq
      %v1849 = vshrl.u32 %v1848, 7
      %v1850 = vsub.s32 %v1847, %v1849
      %v1851 = vrot.slane %v1837, %v1850
      %v1852 = vcombine.low %v1844, %v1851
      %v1853 = vcombine.low %v1534, %v1537
      %v1854 = vcombine.low %v1541, %v1544
      %v1856 = vunpack.c.l.s4 1983009808
      %v1857 = vunpack.c.0.s8 %v1856
      %v1858 = vlaneseq
      %v1859 = vshrl.u32 %v1858, 7
      %v1860 = vsub.s32 %v1857, %v1859
      %v1861 = vrot.slane %v1853, %v1860
      %v1863 = vunpack.c.l.s4 1983009808
      %v1864 = vunpack.c.0.s8 %v1863
      %v1865 = vlaneseq
      %v1866 = vshrl.u32 %v1865, 7
      %v1867 = vsub.s32 %v1864, %v1866
      %v1868 = vrot.slane %v1854, %v1867
      %v1869 = vcombine.low %v1861, %v1868
      %v1870 = vcombine.low %v1547, %v1550
      %v1871 = vcombine.low %v1553, %v1556
      %v1873 = vunpack.c.l.s4 1983009808
      %v1874 = vunpack.c.0.s8 %v1873
      %v1875 = vlaneseq
      %v1876 = vshrl.u32 %v1875, 7
      %v1877 = vsub.s32 %v1874, %v1876
      %v1878 = vrot.slane %v1870, %v1877
      %v1880 = vunpack.c.l.s4 1983009808
      %v1881 = vunpack.c.0.s8 %v1880
      %v1882 = vlaneseq
      %v1883 = vshrl.u32 %v1882, 7
      %v1884 = vsub.s32 %v1881, %v1883
      %v1885 = vrot.slane %v1871, %v1884
      %v1886 = vcombine.low %v1878, %v1885
      %v1887 = vcombine.low %v1559, %v1563
      %v1888 = vcombine.low %v1566, %v1569
      %v1890 = vunpack.c.l.s4 1983009808
      %v1891 = vunpack.c.0.s8 %v1890
      %v1892 = vlaneseq
      %v1893 = vshrl.u32 %v1892, 7
      %v1894 = vsub.s32 %v1891, %v1893
      %v1895 = vrot.slane %v1887, %v1894
      %v1897 = vunpack.c.l.s4 1983009808
      %v1898 = vunpack.c.0.s8 %v1897
      %v1899 = vlaneseq
      %v1900 = vshrl.u32 %v1899, 7
      %v1901 = vsub.s32 %v1898, %v1900
      %v1902 = vrot.slane %v1888, %v1901
      %v1903 = vcombine.low %v1895, %v1902
      %v1904 = vcombine.low %v1572, %v1575
      %v1905 = vcombine.low %v1578, %v1581
      %v1907 = vunpack.c.l.s4 1983009808
      %v1908 = vunpack.c.0.s8 %v1907
      %v1909 = vlaneseq
      %v1910 = vshrl.u32 %v1909, 7
      %v1911 = vsub.s32 %v1908, %v1910
      %v1912 = vrot.slane %v1904, %v1911
      %v1914 = vunpack.c.l.s4 1983009808
      %v1915 = vunpack.c.0.s8 %v1914
      %v1916 = vlaneseq
      %v1917 = vshrl.u32 %v1916, 7
      %v1918 = vsub.s32 %v1915, %v1917
      %v1919 = vrot.slane %v1905, %v1918
      %v1920 = vcombine.low %v1912, %v1919
      %v1921 = vcombine.low %v1585, %v1588
      %v1922 = vcombine.low %v1591, %v1594
      %v1924 = vunpack.c.l.s4 1983009808
      %v1925 = vunpack.c.0.s8 %v1924
      %v1926 = vlaneseq
      %v1927 = vshrl.u32 %v1926, 7
      %v1928 = vsub.s32 %v1925, %v1927
      %v1929 = vrot.slane %v1921, %v1928
      %v1931 = vunpack.c.l.s4 1983009808
      %v1932 = vunpack.c.0.s8 %v1931
      %v1933 = vlaneseq
      %v1934 = vshrl.u32 %v1933, 7
      %v1935 = vsub.s32 %v1932, %v1934
      %v1936 = vrot.slane %v1922, %v1935
      %v1937 = vcombine.low %v1929, %v1936
      %v1938 = vcombine.low %v1597, %v1600
      %v1939 = vcombine.low %v1603, %v1607
      %v1941 = vunpack.c.l.s4 1983009808
      %v1942 = vunpack.c.0.s8 %v1941
      %v1943 = vlaneseq
      %v1944 = vshrl.u32 %v1943, 7
      %v1945 = vsub.s32 %v1942, %v1944
      %v1946 = vrot.slane %v1938, %v1945
      %v1948 = vunpack.c.l.s4 1983009808
      %v1949 = vunpack.c.0.s8 %v1948
      %v1950 = vlaneseq
      %v1951 = vshrl.u32 %v1950, 7
      %v1952 = vsub.s32 %v1949, %v1951
      %v1953 = vrot.slane %v1939, %v1952
      %v1954 = vcombine.low %v1946, %v1953
      %v1955 = vcombine.low %v1610, %v1613
      %v1956 = vcombine.low %v1616, %v1619
      %v1958 = vunpack.c.l.s4 1983009808
      %v1959 = vunpack.c.0.s8 %v1958
      %v1960 = vlaneseq
      %v1961 = vshrl.u32 %v1960, 7
      %v1962 = vsub.s32 %v1959, %v1961
      %v1963 = vrot.slane %v1955, %v1962
      %v1965 = vunpack.c.l.s4 1983009808
      %v1966 = vunpack.c.0.s8 %v1965
      %v1967 = vlaneseq
      %v1968 = vshrl.u32 %v1967, 7
      %v1969 = vsub.s32 %v1966, %v1968
      %v1970 = vrot.slane %v1956, %v1969
      %v1971 = vcombine.low %v1963, %v1970
      %v1972 = vcombine.low %v1622, %v1625
      %v1973 = vcombine.low %v1629, %v1632
      %v1975 = vunpack.c.l.s4 1983009808
      %v1976 = vunpack.c.0.s8 %v1975
      %v1977 = vlaneseq
      %v1978 = vshrl.u32 %v1977, 7
      %v1979 = vsub.s32 %v1976, %v1978
      %v1980 = vrot.slane %v1972, %v1979
      %v1982 = vunpack.c.l.s4 1983009808
      %v1983 = vunpack.c.0.s8 %v1982
      %v1984 = vlaneseq
      %v1985 = vshrl.u32 %v1984, 7
      %v1986 = vsub.s32 %v1983, %v1985
      %v1987 = vrot.slane %v1973, %v1986
      %v1988 = vcombine.low %v1980, %v1987
      %v1989 = vcombine.low %v1635, %v1638
      %v1990 = vcombine.low %v1641, %v1644
      %v1992 = vunpack.c.l.s4 1983009808
      %v1993 = vunpack.c.0.s8 %v1992
      %v1994 = vlaneseq
      %v1995 = vshrl.u32 %v1994, 7
      %v1996 = vsub.s32 %v1993, %v1995
      %v1997 = vrot.slane %v1989, %v1996
      %v1999 = vunpack.c.l.s4 1983009808
      %v2000 = vunpack.c.0.s8 %v1999
      %v2001 = vlaneseq
      %v2002 = vshrl.u32 %v2001, 7
      %v2003 = vsub.s32 %v2000, %v2002
      %v2004 = vrot.slane %v1990, %v2003
      %v2005 = vcombine.low %v1997, %v2004
      %v2006 = vcombine.low %v1647, %v1651
      %v2007 = vcombine.low %v1654, %v1657
      %v2009 = vunpack.c.l.s4 1983009808
      %v2010 = vunpack.c.0.s8 %v2009
      %v2011 = vlaneseq
      %v2012 = vshrl.u32 %v2011, 7
      %v2013 = vsub.s32 %v2010, %v2012
      %v2014 = vrot.slane %v2006, %v2013
      %v2016 = vunpack.c.l.s4 1983009808
      %v2017 = vunpack.c.0.s8 %v2016
      %v2018 = vlaneseq
      %v2019 = vshrl.u32 %v2018, 7
      %v2020 = vsub.s32 %v2017, %v2019
      %v2021 = vrot.slane %v2007, %v2020
      %v2022 = vcombine.low %v2014, %v2021
      %v2023 = vcombine.low %v1660, %v1663
      %v2024 = vcombine.low %v1666, %v1669
      %v2026 = vunpack.c.l.s4 1983009808
      %v2027 = vunpack.c.0.s8 %v2026
      %v2028 = vlaneseq
      %v2029 = vshrl.u32 %v2028, 7
      %v2030 = vsub.s32 %v2027, %v2029
      %v2031 = vrot.slane %v2023, %v2030
      %v2033 = vunpack.c.l.s4 1983009808
      %v2034 = vunpack.c.0.s8 %v2033
      %v2035 = vlaneseq
      %v2036 = vshrl.u32 %v2035, 7
      %v2037 = vsub.s32 %v2034, %v2036
      %v2038 = vrot.slane %v2024, %v2037
      %v2039 = vcombine.low %v2031, %v2038
      %v2040 = vcombine.low %v1673, %v1676
      %v2041 = vcombine.low %v1679, %v1682
      %v2043 = vunpack.c.l.s4 1983009808
      %v2044 = vunpack.c.0.s8 %v2043
      %v2045 = vlaneseq
      %v2046 = vshrl.u32 %v2045, 7
      %v2047 = vsub.s32 %v2044, %v2046
      %v2048 = vrot.slane %v2040, %v2047
      %v2050 = vunpack.c.l.s4 1983009808
      %v2051 = vunpack.c.0.s8 %v2050
      %v2052 = vlaneseq
      %v2053 = vshrl.u32 %v2052, 7
      %v2054 = vsub.s32 %v2051, %v2053
      %v2055 = vrot.slane %v2041, %v2054
      %v2056 = vcombine.low %v2048, %v2055
      %v2057 = vcombine.low %v1685, %v1688
      %v2058 = vcombine.low %v1691, %v1695
      %v2060 = vunpack.c.l.s4 1983009808
      %v2061 = vunpack.c.0.s8 %v2060
      %v2062 = vlaneseq
      %v2063 = vshrl.u32 %v2062, 7
      %v2064 = vsub.s32 %v2061, %v2063
      %v2065 = vrot.slane %v2057, %v2064
      %v2067 = vunpack.c.l.s4 1983009808
      %v2068 = vunpack.c.0.s8 %v2067
      %v2069 = vlaneseq
      %v2070 = vshrl.u32 %v2069, 7
      %v2071 = vsub.s32 %v2068, %v2070
      %v2072 = vrot.slane %v2058, %v2071
      %v2073 = vcombine.low %v2065, %v2072
      %v2074 = vcombine.low %v1698, %v1701
      %v2075 = vcombine.low %v1704, %v1707
      %v2077 = vunpack.c.l.s4 1983009808
      %v2078 = vunpack.c.0.s8 %v2077
      %v2079 = vlaneseq
      %v2080 = vshrl.u32 %v2079, 7
      %v2081 = vsub.s32 %v2078, %v2080
      %v2082 = vrot.slane %v2074, %v2081
      %v2084 = vunpack.c.l.s4 1983009808
      %v2085 = vunpack.c.0.s8 %v2084
      %v2086 = vlaneseq
      %v2087 = vshrl.u32 %v2086, 7
      %v2088 = vsub.s32 %v2085, %v2087
      %v2089 = vrot.slane %v2075, %v2088
      %v2090 = vcombine.low %v2082, %v2089
      %v2091 = vcombine.low %v1710, %v1713
      %v2092 = vcombine.low %v1717, %v1720
      %v2094 = vunpack.c.l.s4 1983009808
      %v2095 = vunpack.c.0.s8 %v2094
      %v2096 = vlaneseq
      %v2097 = vshrl.u32 %v2096, 7
      %v2098 = vsub.s32 %v2095, %v2097
      %v2099 = vrot.slane %v2091, %v2098
      %v2101 = vunpack.c.l.s4 1983009808
      %v2102 = vunpack.c.0.s8 %v2101
      %v2103 = vlaneseq
      %v2104 = vshrl.u32 %v2103, 7
      %v2105 = vsub.s32 %v2102, %v2104
      %v2106 = vrot.slane %v2092, %v2105
      %v2107 = vcombine.low %v2099, %v2106
      %v2108 = vcombine.low %v1723, %v1726
      %v2109 = vcombine.low %v1729, %v1732
      %v2111 = vunpack.c.l.s4 1983009808
      %v2112 = vunpack.c.0.s8 %v2111
      %v2113 = vlaneseq
      %v2114 = vshrl.u32 %v2113, 7
      %v2115 = vsub.s32 %v2112, %v2114
      %v2116 = vrot.slane %v2108, %v2115
      %v2118 = vunpack.c.l.s4 1983009808
      %v2119 = vunpack.c.0.s8 %v2118
      %v2120 = vlaneseq
      %v2121 = vshrl.u32 %v2120, 7
      %v2122 = vsub.s32 %v2119, %v2121
      %v2123 = vrot.slane %v2109, %v2122
      %v2124 = vcombine.low %v2116, %v2123
      %v2125 = vcombine.low %v1735, %v1739
      %v2126 = vcombine.low %v1742, %v1745
      %v2128 = vunpack.c.l.s4 1983009808
      %v2129 = vunpack.c.0.s8 %v2128
      %v2130 = vlaneseq
      %v2131 = vshrl.u32 %v2130, 7
      %v2132 = vsub.s32 %v2129, %v2131
      %v2133 = vrot.slane %v2125, %v2132
      %v2135 = vunpack.c.l.s4 1983009808
      %v2136 = vunpack.c.0.s8 %v2135
      %v2137 = vlaneseq
      %v2138 = vshrl.u32 %v2137, 7
      %v2139 = vsub.s32 %v2136, %v2138
      %v2140 = vrot.slane %v2126, %v2139
      %v2141 = vcombine.low %v2133, %v2140
      %v2142 = vcombine.low %v1748, %v1751
      %v2143 = vcombine.low %v1754, %v1757
      %v2145 = vunpack.c.l.s4 1983009808
      %v2146 = vunpack.c.0.s8 %v2145
      %v2147 = vlaneseq
      %v2148 = vshrl.u32 %v2147, 7
      %v2149 = vsub.s32 %v2146, %v2148
      %v2150 = vrot.slane %v2142, %v2149
      %v2152 = vunpack.c.l.s4 1983009808
      %v2153 = vunpack.c.0.s8 %v2152
      %v2154 = vlaneseq
      %v2155 = vshrl.u32 %v2154, 7
      %v2156 = vsub.s32 %v2153, %v2155
      %v2157 = vrot.slane %v2143, %v2156
      %v2158 = vcombine.low %v2150, %v2157
      %v2159 = vcombine.low %v1761, %v1764
      %v2160 = vcombine.low %v1767, %v1770
      %v2162 = vunpack.c.l.s4 1983009808
      %v2163 = vunpack.c.0.s8 %v2162
      %v2164 = vlaneseq
      %v2165 = vshrl.u32 %v2164, 7
      %v2166 = vsub.s32 %v2163, %v2165
      %v2167 = vrot.slane %v2159, %v2166
      %v2169 = vunpack.c.l.s4 1983009808
      %v2170 = vunpack.c.0.s8 %v2169
      %v2171 = vlaneseq
      %v2172 = vshrl.u32 %v2171, 7
      %v2173 = vsub.s32 %v2170, %v2172
      %v2174 = vrot.slane %v2160, %v2173
      %v2175 = vcombine.low %v2167, %v2174
      %v2176 = vcombine.low %v1773, %v1776
      %v2177 = vcombine.low %v1779, %v1783
      %v2179 = vunpack.c.l.s4 1983009808
      %v2180 = vunpack.c.0.s8 %v2179
      %v2181 = vlaneseq
      %v2182 = vshrl.u32 %v2181, 7
      %v2183 = vsub.s32 %v2180, %v2182
      %v2184 = vrot.slane %v2176, %v2183
      %v2186 = vunpack.c.l.s4 1983009808
      %v2187 = vunpack.c.0.s8 %v2186
      %v2188 = vlaneseq
      %v2189 = vshrl.u32 %v2188, 7
      %v2190 = vsub.s32 %v2187, %v2189
      %v2191 = vrot.slane %v2177, %v2190
      %v2192 = vcombine.low %v2184, %v2191
      %v2193 = vcombine.low %v1786, %v1789
      %v2194 = vcombine.low %v1792, %v1795
      %v2196 = vunpack.c.l.s4 1983009808
      %v2197 = vunpack.c.0.s8 %v2196
      %v2198 = vlaneseq
      %v2199 = vshrl.u32 %v2198, 7
      %v2200 = vsub.s32 %v2197, %v2199
      %v2201 = vrot.slane %v2193, %v2200
      %v2203 = vunpack.c.l.s4 1983009808
      %v2204 = vunpack.c.0.s8 %v2203
      %v2205 = vlaneseq
      %v2206 = vshrl.u32 %v2205, 7
      %v2207 = vsub.s32 %v2204, %v2206
      %v2208 = vrot.slane %v2194, %v2207
      %v2209 = vcombine.low %v2201, %v2208
      %v2210 = vcombine.low %v1798, %v1801
      %v2212 = vunpack.c.l.s4 1983009808
      %v2213 = vunpack.c.0.s8 %v2212
      %v2214 = vlaneseq
      %v2215 = vshrl.u32 %v2214, 7
      %v2216 = vsub.s32 %v2213, %v2215
      %v2217 = vrot.slane %v2210, %v2216
      %v2243 = vpack.c.bf16 %v1835, %v1818
      %v2244 = vpack.c.bf16 %v1869, %v1852
      %v2245 = vpack.c.bf16 %v1903, %v1886
      %v2246 = vpack.c.bf16 %v1937, %v1920
      %v2247 = vpack.c.bf16 %v1971, %v1954
      %v2248 = vpack.c.bf16 %v2005, %v1988
      %v2249 = vpack.c.bf16 %v2039, %v2022
      %v2250 = vpack.c.bf16 %v2073, %v2056
      %v2251 = vpack.c.bf16 %v2107, %v2090
      %v2252 = vpack.c.bf16 %v2141, %v2124
      %v2253 = vpack.c.bf16 %v2175, %v2158
      %v2254 = vpack.c.bf16 %v2209, %v2192
      %v2255 = vpack.c.bf16 %v2217, %v2217
      %s2256 = scalar_lea.vmem %s1, 2
      %v2257 = vld [vmem:[%s2256] sm:$0x3]
      %vm2258 = vcmask 23552
      %v2260 = vsel %vm2258, %v2243, 0
      %v2263 = vsel %vm2258, %v2244, 0
      %v2266 = vsel %vm2258, %v2245, 0
      %v2269 = vsel %vm2258, %v2246, 0
      %v2272 = vsel %vm2258, %v2247, 0
      %v2275 = vsel %vm2258, %v2248, 0
      %v2278 = vsel %vm2258, %v2249, 0
      %v2281 = vsel %vm2258, %v2250, 0
      %v2284 = vsel %vm2258, %v2251, 0
      %v2287 = vsel %vm2258, %v2252, 0
      %v2290 = vsel %vm2258, %v2253, 0
      %v2293 = vsel %vm2258, %v2254, 0
      %v2296 = vsel %vm2258, %v2255, 0
      %vm2298 = vcmask 1041408
      %v2299 = vsel %vm1487, 4294967295, 65535
      %v2300 = vsel %vm2298, %v2299, 0
      %v2302 = vand.u32 %v2257, %v2300
      %2304 = vmatprep.subr.bf16.mxu0 0
      %2305 = vmatpush1.bf16.msra.mxu0 %v2302
      %2306 = vmatprep.subr.bf16.mxu0 0
      %2307 = vmatpush1.bf16.msra.mxu0 0
      %2308 = vmatprep.subr.bf16.mxu0 0
      %2309 = vmatpush1.bf16.msra.mxu0 0
      %2310 = vmatprep.subr.bf16.mxu0 0
      %2311 = vmatpush1.bf16.msra.mxu0 0
      %2312 = vmatprep.subr.bf16.mxu0 0
      %2313 = vmatpush1.bf16.msra.mxu0 0
      %2314 = vmatprep.subr.bf16.mxu0 0
      %2315 = vmatpush1.bf16.msra.mxu0 0
      %2316 = vmatprep.subr.bf16.mxu0 0
      %2317 = vmatpush1.bf16.msra.mxu0 0
      %2318 = vmatprep.subr.bf16.mxu0 0
      %2319 = vmatpush1.bf16.msra.mxu0 0
      %2320 = vmatprep.subr.bf16.mxu0 0
      %2321 = vmatpush1.bf16.msra.mxu0 0
      %2322 = vmatprep.subr.bf16.mxu0 0
      %2323 = vmatpush1.bf16.msra.mxu0 0
      %2324 = vmatprep.subr.bf16.mxu0 0
      %2325 = vmatpush1.bf16.msra.mxu0 0
      %2326 = vmatprep.subr.bf16.mxu0 0
      %2327 = vmatpush1.bf16.msra.mxu0 0
      %2328 = vmatprep.subr.bf16.mxu0 0
      %2329 = vmatpush1.bf16.msra.mxu0 0
      %2330 = vmatprep.subr.bf16.mxu0 0
      %2331 = vmatpush1.bf16.msra.mxu0 0
      %2332 = vmatprep.subr.bf16.mxu0 0
      %2333 = vmatpush1.bf16.msra.mxu0 0
      %2334 = vmatprep.subr.bf16.mxu0 0
      %2335 = vmatpush1.bf16.msra.mxu0 0
      %2336 = vmatprep.mubr.bf16.mxu0 0
      %2337 = vmatmul.mubr.bf16.gmra.mrb[0].mxu0 %v2260
      %v2338 = vpop.f32.mrb[0].mxu0
      %v2339 = vadd.f32 0.0, %v2338
      %v2340 = vpop.f32.mrb[0].mxu0
      %v2341 = vpop.f32.mrb[0].mxu0
      %v2342 = vadd.f32 0.0, %v2341
      %v2343 = vpop.f32.mrb[0].mxu0
      %2344 = vmatprep.mubr.bf16.mxu0 0
      %2345 = vmatmul.mubr.bf16.gmra.mrb[0].mxu0 %v2263
      %v2346 = vpop.f32.mrb[0].mxu0
      %v2347 = vadd.f32 0.0, %v2346
      %v2348 = vpop.f32.mrb[0].mxu0
      %v2349 = vpop.f32.mrb[0].mxu0
      %v2350 = vadd.f32 0.0, %v2349
      %v2351 = vpop.f32.mrb[0].mxu0
      %2352 = vmatprep.mubr.bf16.mxu0 0
      %2353 = vmatmul.mubr.bf16.gmra.mrb[0].mxu0 %v2266
      %v2354 = vpop.f32.mrb[0].mxu0
      %v2355 = vadd.f32 0.0, %v2354
      %v2356 = vpop.f32.mrb[0].mxu0
      %v2357 = vpop.f32.mrb[0].mxu0
      %v2358 = vadd.f32 0.0, %v2357
      %v2359 = vpop.f32.mrb[0].mxu0
      %2360 = vmatprep.mubr.bf16.mxu0 0
      %2361 = vmatmul.mubr.bf16.gmra.mrb[0].mxu0 %v2269
      %v2362 = vpop.f32.mrb[0].mxu0
      %v2363 = vadd.f32 0.0, %v2362
      %v2364 = vpop.f32.mrb[0].mxu0
      %v2365 = vpop.f32.mrb[0].mxu0
      %v2366 = vadd.f32 0.0, %v2365
      %v2367 = vpop.f32.mrb[0].mxu0
      %2368 = vmatprep.mubr.bf16.mxu0 0
      %2369 = vmatmul.mubr.bf16.gmra.mrb[0].mxu0 %v2272
      %v2370 = vpop.f32.mrb[0].mxu0
      %v2371 = vadd.f32 0.0, %v2370
      %v2372 = vpop.f32.mrb[0].mxu0
      %v2373 = vpop.f32.mrb[0].mxu0
      %v2374 = vadd.f32 0.0, %v2373
      %v2375 = vpop.f32.mrb[0].mxu0
      %2376 = vmatprep.mubr.bf16.mxu0 0
      %2377 = vmatmul.mubr.bf16.gmra.mrb[0].mxu0 %v2275
      %v2378 = vpop.f32.mrb[0].mxu0
      %v2379 = vadd.f32 0.0, %v2378
      %v2380 = vpop.f32.mrb[0].mxu0
      %v2381 = vpop.f32.mrb[0].mxu0
      %v2382 = vadd.f32 0.0, %v2381
      %v2383 = vpop.f32.mrb[0].mxu0
      %2384 = vmatprep.mubr.bf16.mxu0 0
      %2385 = vmatmul.mubr.bf16.gmra.mrb[0].mxu0 %v2278
      %v2386 = vpop.f32.mrb[0].mxu0
      %v2387 = vadd.f32 0.0, %v2386
      %v2388 = vpop.f32.mrb[0].mxu0
      %v2389 = vpop.f32.mrb[0].mxu0
      %v2390 = vadd.f32 0.0, %v2389
      %v2391 = vpop.f32.mrb[0].mxu0
      %2392 = vmatprep.mubr.bf16.mxu0 0
      %2393 = vmatmul.mubr.bf16.gmra.mrb[0].mxu0 %v2281
      %v2394 = vpop.f32.mrb[0].mxu0
      %v2395 = vadd.f32 0.0, %v2394
      %v2396 = vpop.f32.mrb[0].mxu0
      %v2397 = vpop.f32.mrb[0].mxu0
      %v2398 = vadd.f32 0.0, %v2397
      %v2399 = vpop.f32.mrb[0].mxu0
      %2400 = vmatprep.mubr.bf16.mxu0 0
      %2401 = vmatmul.mubr.bf16.gmra.mrb[0].mxu0 %v2284
      %v2402 = vpop.f32.mrb[0].mxu0
      %v2403 = vadd.f32 0.0, %v2402
      %v2404 = vpop.f32.mrb[0].mxu0
      %v2405 = vpop.f32.mrb[0].mxu0
      %v2406 = vadd.f32 0.0, %v2405
      %v2407 = vpop.f32.mrb[0].mxu0
      %2408 = vmatprep.mubr.bf16.mxu0 0
      %2409 = vmatmul.mubr.bf16.gmra.mrb[0].mxu0 %v2287
      %v2410 = vpop.f32.mrb[0].mxu0
      %v2411 = vadd.f32 0.0, %v2410
      %v2412 = vpop.f32.mrb[0].mxu0
      %v2413 = vpop.f32.mrb[0].mxu0
      %v2414 = vadd.f32 0.0, %v2413
      %v2415 = vpop.f32.mrb[0].mxu0
      %2416 = vmatprep.mubr.bf16.mxu0 0
      %2417 = vmatmul.mubr.bf16.gmra.mrb[0].mxu0 %v2290
      %v2418 = vpop.f32.mrb[0].mxu0
      %v2419 = vadd.f32 0.0, %v2418
      %v2420 = vpop.f32.mrb[0].mxu0
      %v2421 = vpop.f32.mrb[0].mxu0
      %v2422 = vadd.f32 0.0, %v2421
      %v2423 = vpop.f32.mrb[0].mxu0
      %2424 = vmatprep.mubr.bf16.mxu0 0
      %2425 = vmatmul.mubr.bf16.gmra.mrb[0].mxu0 %v2293
      %v2426 = vpop.f32.mrb[0].mxu0
      %v2427 = vadd.f32 0.0, %v2426
      %v2428 = vpop.f32.mrb[0].mxu0
      %v2429 = vpop.f32.mrb[0].mxu0
      %v2430 = vadd.f32 0.0, %v2429
      %v2431 = vpop.f32.mrb[0].mxu0
      %2432 = vmatprep.mubr.bf16.mxu0 0
      %2433 = vmatmul.mubr.bf16.gmra.mrb[0].mxu0 %v2296
      %v2434 = vpop.f32.mrb[0].mxu0
      %v2435 = vadd.f32 0.0, %v2434
      %v2436 = vpop.f32.mrb[0].mxu0
      %v2437 = vpop.f32.mrb[0].mxu0
      %v2438 = vpop.f32.mrb[0].mxu0
      %2439 = vdwg.mxu0
      %v2441 = vsel %vm2258, %v1459, 0
      %v2444 = vsel %vm2258, %v1460, 0
      %v2447 = vsel %vm2258, %v1461, 0
      %v2450 = vsel %vm2258, %v1462, 0
      %v2453 = vsel %vm2258, %v1463, 0
      %v2456 = vsel %vm2258, %v1464, 0
      %v2459 = vsel %vm2258, %v1465, 0
      %v2462 = vsel %vm2258, %v1466, 0
      %v2465 = vsel %vm2258, %v1467, 0
      %v2468 = vsel %vm2258, %v1468, 0
      %v2471 = vsel %vm2258, %v1469, 0
      %v2474 = vsel %vm2258, %v1470, 0
      %v2477 = vsel %vm2258, %v1471, 0
      %v2480 = vand.u32 %v1472, %v2300
      %2482 = vmatprep.subr.bf16.mxu0 0
      %2483 = vmatpush1.bf16.msra.mxu0 %v2480
      %2484 = vmatprep.subr.bf16.mxu0 0
      %2485 = vmatpush1.bf16.msra.mxu0 0
      %2486 = vmatprep.subr.bf16.mxu0 0
      %2487 = vmatpush1.bf16.msra.mxu0 0
      %2488 = vmatprep.subr.bf16.mxu0 0
      %2489 = vmatpush1.bf16.msra.mxu0 0
      %2490 = vmatprep.subr.bf16.mxu0 0
      %2491 = vmatpush1.bf16.msra.mxu0 0
      %2492 = vmatprep.subr.bf16.mxu0 0
      %2493 = vmatpush1.bf16.msra.mxu0 0
      %2494 = vmatprep.subr.bf16.mxu0 0
      %2495 = vmatpush1.bf16.msra.mxu0 0
      %2496 = vmatprep.subr.bf16.mxu0 0
      %2497 = vmatpush1.bf16.msra.mxu0 0
      %2498 = vmatprep.subr.bf16.mxu0 0
      %2499 = vmatpush1.bf16.msra.mxu0 0
      %2500 = vmatprep.subr.bf16.mxu0 0
      %2501 = vmatpush1.bf16.msra.mxu0 0
      %2502 = vmatprep.subr.bf16.mxu0 0
      %2503 = vmatpush1.bf16.msra.mxu0 0
      %2504 = vmatprep.subr.bf16.mxu0 0
      %2505 = vmatpush1.bf16.msra.mxu0 0
      %2506 = vmatprep.subr.bf16.mxu0 0
      %2507 = vmatpush1.bf16.msra.mxu0 0
      %2508 = vmatprep.subr.bf16.mxu0 0
      %2509 = vmatpush1.bf16.msra.mxu0 0
      %2510 = vmatprep.subr.bf16.mxu0 0
      %2511 = vmatpush1.bf16.msra.mxu0 0
      %2512 = vmatprep.subr.bf16.mxu0 0
      %2513 = vmatpush1.bf16.msra.mxu0 0
      %2514 = vmatprep.mubr.bf16.mxu0 0
      %2515 = vmatmul.mubr.bf16.gmra.mrb[0].mxu0 %v2441
      %v2516 = vpop.f32.mrb[0].mxu0
      %v2517 = vadd.f32 %v2339, %v2516
      %v2518 = vpop.f32.mrb[0].mxu0
      %v2519 = vpop.f32.mrb[0].mxu0
      %v2520 = vadd.f32 %v2342, %v2519
      %v2521 = vpop.f32.mrb[0].mxu0
      %2522 = vmatprep.mubr.bf16.mxu0 0
      %2523 = vmatmul.mubr.bf16.gmra.mrb[0].mxu0 %v2444
      %v2524 = vpop.f32.mrb[0].mxu0
      %v2525 = vadd.f32 %v2347, %v2524
      %v2526 = vpop.f32.mrb[0].mxu0
      %v2527 = vpop.f32.mrb[0].mxu0
      %v2528 = vadd.f32 %v2350, %v2527
      %v2529 = vpop.f32.mrb[0].mxu0
      %2530 = vmatprep.mubr.bf16.mxu0 0
      %2531 = vmatmul.mubr.bf16.gmra.mrb[0].mxu0 %v2447
      %v2532 = vpop.f32.mrb[0].mxu0
      %v2533 = vadd.f32 %v2355, %v2532
      %v2534 = vpop.f32.mrb[0].mxu0
      %v2535 = vpop.f32.mrb[0].mxu0
      %v2536 = vadd.f32 %v2358, %v2535
      %v2537 = vpop.f32.mrb[0].mxu0
      %2538 = vmatprep.mubr.bf16.mxu0 0
      %2539 = vmatmul.mubr.bf16.gmra.mrb[0].mxu0 %v2450
      %v2540 = vpop.f32.mrb[0].mxu0
      %v2541 = vadd.f32 %v2363, %v2540
      %v2542 = vpop.f32.mrb[0].mxu0
      %v2543 = vpop.f32.mrb[0].mxu0
      %v2544 = vadd.f32 %v2366, %v2543
      %v2545 = vpop.f32.mrb[0].mxu0
      %2546 = vmatprep.mubr.bf16.mxu0 0
      %2547 = vmatmul.mubr.bf16.gmra.mrb[0].mxu0 %v2453
      %v2548 = vpop.f32.mrb[0].mxu0
      %v2549 = vadd.f32 %v2371, %v2548
      %v2550 = vpop.f32.mrb[0].mxu0
      %v2551 = vpop.f32.mrb[0].mxu0
      %v2552 = vadd.f32 %v2374, %v2551
      %v2553 = vpop.f32.mrb[0].mxu0
      %2554 = vmatprep.mubr.bf16.mxu0 0
      %2555 = vmatmul.mubr.bf16.gmra.mrb[0].mxu0 %v2456
      %v2556 = vpop.f32.mrb[0].mxu0
      %v2557 = vadd.f32 %v2379, %v2556
      %v2558 = vpop.f32.mrb[0].mxu0
      %v2559 = vpop.f32.mrb[0].mxu0
      %v2560 = vadd.f32 %v2382, %v2559
      %v2561 = vpop.f32.mrb[0].mxu0
      %2562 = vmatprep.mubr.bf16.mxu0 0
      %2563 = vmatmul.mubr.bf16.gmra.mrb[0].mxu0 %v2459
      %v2564 = vpop.f32.mrb[0].mxu0
      %v2565 = vadd.f32 %v2387, %v2564
      %v2566 = vpop.f32.mrb[0].mxu0
      %v2567 = vpop.f32.mrb[0].mxu0
      %v2568 = vadd.f32 %v2390, %v2567
      %v2569 = vpop.f32.mrb[0].mxu0
      %2570 = vmatprep.mubr.bf16.mxu0 0
      %2571 = vmatmul.mubr.bf16.gmra.mrb[0].mxu0 %v2462
      %v2572 = vpop.f32.mrb[0].mxu0
      %v2573 = vadd.f32 %v2395, %v2572
      %v2574 = vpop.f32.mrb[0].mxu0
      %v2575 = vpop.f32.mrb[0].mxu0
      %v2576 = vadd.f32 %v2398, %v2575
      %v2577 = vpop.f32.mrb[0].mxu0
      %2578 = vmatprep.mubr.bf16.mxu0 0
      %2579 = vmatmul.mubr.bf16.gmra.mrb[0].mxu0 %v2465
      %v2580 = vpop.f32.mrb[0].mxu0
      %v2581 = vadd.f32 %v2403, %v2580
      %v2582 = vpop.f32.mrb[0].mxu0
      %v2583 = vpop.f32.mrb[0].mxu0
      %v2584 = vadd.f32 %v2406, %v2583
      %v2585 = vpop.f32.mrb[0].mxu0
      %2586 = vmatprep.mubr.bf16.mxu0 0
      %2587 = vmatmul.mubr.bf16.gmra.mrb[0].mxu0 %v2468
      %v2588 = vpop.f32.mrb[0].mxu0
      %v2589 = vadd.f32 %v2411, %v2588
      %v2590 = vpop.f32.mrb[0].mxu0
      %v2591 = vpop.f32.mrb[0].mxu0
      %v2592 = vadd.f32 %v2414, %v2591
      %v2593 = vpop.f32.mrb[0].mxu0
      %2594 = vmatprep.mubr.bf16.mxu0 0
      %2595 = vmatmul.mubr.bf16.gmra.mrb[0].mxu0 %v2471
      %v2596 = vpop.f32.mrb[0].mxu0
      %v2597 = vadd.f32 %v2419, %v2596
      %v2598 = vpop.f32.mrb[0].mxu0
      %v2599 = vpop.f32.mrb[0].mxu0
      %v2600 = vadd.f32 %v2422, %v2599
      %v2601 = vpop.f32.mrb[0].mxu0
      %2602 = vmatprep.mubr.bf16.mxu0 0
      %2603 = vmatmul.mubr.bf16.gmra.mrb[0].mxu0 %v2474
      %v2604 = vpop.f32.mrb[0].mxu0
      %v2605 = vadd.f32 %v2427, %v2604
      %v2606 = vpop.f32.mrb[0].mxu0
      %v2607 = vpop.f32.mrb[0].mxu0
      %v2608 = vadd.f32 %v2430, %v2607
      %v2609 = vpop.f32.mrb[0].mxu0
      %2610 = vmatprep.mubr.bf16.mxu0 0
      %2611 = vmatmul.mubr.bf16.gmra.mrb[0].mxu0 %v2477
      %v2612 = vpop.f32.mrb[0].mxu0
      %v2613 = vadd.f32 %v2435, %v2612
      %v2614 = vpop.f32.mrb[0].mxu0
      %v2615 = vpop.f32.mrb[0].mxu0
      %v2616 = vpop.f32.mrb[0].mxu0
      %2617 = vdwg.mxu0
      %v2618 = vcombine.low %v571, %v570
      %v2619 = vcombine.low %v572, %v580
      %v2621 = vunpack.c.l.s4 1983009808
      %v2622 = vunpack.c.0.s8 %v2621
      %v2623 = vlaneseq
      %v2624 = vshrl.u32 %v2623, 7
      %v2625 = vsub.s32 %v2622, %v2624
      %v2626 = vrot.slane %v2618, %v2625
      %v2628 = vunpack.c.l.s4 1983009808
      %v2629 = vunpack.c.0.s8 %v2628
      %v2630 = vlaneseq
      %v2631 = vshrl.u32 %v2630, 7
      %v2632 = vsub.s32 %v2629, %v2631
      %v2633 = vrot.slane %v2619, %v2632
      %v2634 = vcombine.low %v2626, %v2633
      %v2635 = vcombine.low %v588, %v587
      %v2636 = vcombine.low %v1473, %v604
      %v2638 = vunpack.c.l.s4 1983009808
      %v2639 = vunpack.c.0.s8 %v2638
      %v2640 = vlaneseq
      %v2641 = vshrl.u32 %v2640, 7
      %v2642 = vsub.s32 %v2639, %v2641
      %v2643 = vrot.slane %v2635, %v2642
      %v2645 = vunpack.c.l.s4 1983009808
      %v2646 = vunpack.c.0.s8 %v2645
      %v2647 = vlaneseq
      %v2648 = vshrl.u32 %v2647, 7
      %v2649 = vsub.s32 %v2646, %v2648
      %v2650 = vrot.slane %v2636, %v2649
      %v2651 = vcombine.low %v2643, %v2650
      %v2652 = vcombine.low %v603, %v605
      %v2653 = vcombine.low %v613, %v621
      %v2655 = vunpack.c.l.s4 1983009808
      %v2656 = vunpack.c.0.s8 %v2655
      %v2657 = vlaneseq
      %v2658 = vshrl.u32 %v2657, 7
      %v2659 = vsub.s32 %v2656, %v2658
      %v2660 = vrot.slane %v2652, %v2659
      %v2662 = vunpack.c.l.s4 1983009808
      %v2663 = vunpack.c.0.s8 %v2662
      %v2664 = vlaneseq
      %v2665 = vshrl.u32 %v2664, 7
      %v2666 = vsub.s32 %v2663, %v2665
      %v2667 = vrot.slane %v2653, %v2666
      %v2668 = vcombine.low %v2660, %v2667
      %v2669 = vcombine.low %v620, %v1474
      %v2670 = vcombine.low %v637, %v636
      %v2672 = vunpack.c.l.s4 1983009808
      %v2673 = vunpack.c.0.s8 %v2672
      %v2674 = vlaneseq
      %v2675 = vshrl.u32 %v2674, 7
      %v2676 = vsub.s32 %v2673, %v2675
      %v2677 = vrot.slane %v2669, %v2676
      %v2679 = vunpack.c.l.s4 1983009808
      %v2680 = vunpack.c.0.s8 %v2679
      %v2681 = vlaneseq
      %v2682 = vshrl.u32 %v2681, 7
      %v2683 = vsub.s32 %v2680, %v2682
      %v2684 = vrot.slane %v2670, %v2683
      %v2685 = vcombine.low %v2677, %v2684
      %v2686 = vcombine.low %v638, %v646
      %v2687 = vcombine.low %v654, %v653
      %v2689 = vunpack.c.l.s4 1983009808
      %v2690 = vunpack.c.0.s8 %v2689
      %v2691 = vlaneseq
      %v2692 = vshrl.u32 %v2691, 7
      %v2693 = vsub.s32 %v2690, %v2692
      %v2694 = vrot.slane %v2686, %v2693
      %v2696 = vunpack.c.l.s4 1983009808
      %v2697 = vunpack.c.0.s8 %v2696
      %v2698 = vlaneseq
      %v2699 = vshrl.u32 %v2698, 7
      %v2700 = vsub.s32 %v2697, %v2699
      %v2701 = vrot.slane %v2687, %v2700
      %v2702 = vcombine.low %v2694, %v2701
      %v2703 = vcombine.low %v1475, %v670
      %v2704 = vcombine.low %v669, %v671
      %v2706 = vunpack.c.l.s4 1983009808
      %v2707 = vunpack.c.0.s8 %v2706
      %v2708 = vlaneseq
      %v2709 = vshrl.u32 %v2708, 7
      %v2710 = vsub.s32 %v2707, %v2709
      %v2711 = vrot.slane %v2703, %v2710
      %v2713 = vunpack.c.l.s4 1983009808
      %v2714 = vunpack.c.0.s8 %v2713
      %v2715 = vlaneseq
      %v2716 = vshrl.u32 %v2715, 7
      %v2717 = vsub.s32 %v2714, %v2716
      %v2718 = vrot.slane %v2704, %v2717
      %v2719 = vcombine.low %v2711, %v2718
      %v2720 = vcombine.low %v679, %v687
      %v2721 = vcombine.low %v686, %v1476
      %v2723 = vunpack.c.l.s4 1983009808
      %v2724 = vunpack.c.0.s8 %v2723
      %v2725 = vlaneseq
      %v2726 = vshrl.u32 %v2725, 7
      %v2727 = vsub.s32 %v2724, %v2726
      %v2728 = vrot.slane %v2720, %v2727
      %v2730 = vunpack.c.l.s4 1983009808
      %v2731 = vunpack.c.0.s8 %v2730
      %v2732 = vlaneseq
      %v2733 = vshrl.u32 %v2732, 7
      %v2734 = vsub.s32 %v2731, %v2733
      %v2735 = vrot.slane %v2721, %v2734
      %v2736 = vcombine.low %v2728, %v2735
      %v2737 = vcombine.low %v703, %v702
      %v2738 = vcombine.low %v704, %v712
      %v2740 = vunpack.c.l.s4 1983009808
      %v2741 = vunpack.c.0.s8 %v2740
      %v2742 = vlaneseq
      %v2743 = vshrl.u32 %v2742, 7
      %v2744 = vsub.s32 %v2741, %v2743
      %v2745 = vrot.slane %v2737, %v2744
      %v2747 = vunpack.c.l.s4 1983009808
      %v2748 = vunpack.c.0.s8 %v2747
      %v2749 = vlaneseq
      %v2750 = vshrl.u32 %v2749, 7
      %v2751 = vsub.s32 %v2748, %v2750
      %v2752 = vrot.slane %v2738, %v2751
      %v2753 = vcombine.low %v2745, %v2752
      %v2754 = vcombine.low %v720, %v719
      %v2755 = vcombine.low %v1477, %v736
      %v2757 = vunpack.c.l.s4 1983009808
      %v2758 = vunpack.c.0.s8 %v2757
      %v2759 = vlaneseq
      %v2760 = vshrl.u32 %v2759, 7
      %v2761 = vsub.s32 %v2758, %v2760
      %v2762 = vrot.slane %v2754, %v2761
      %v2764 = vunpack.c.l.s4 1983009808
      %v2765 = vunpack.c.0.s8 %v2764
      %v2766 = vlaneseq
      %v2767 = vshrl.u32 %v2766, 7
      %v2768 = vsub.s32 %v2765, %v2767
      %v2769 = vrot.slane %v2755, %v2768
      %v2770 = vcombine.low %v2762, %v2769
      %v2771 = vcombine.low %v735, %v737
      %v2772 = vcombine.low %v745, %v753
      %v2774 = vunpack.c.l.s4 1983009808
      %v2775 = vunpack.c.0.s8 %v2774
      %v2776 = vlaneseq
      %v2777 = vshrl.u32 %v2776, 7
      %v2778 = vsub.s32 %v2775, %v2777
      %v2779 = vrot.slane %v2771, %v2778
      %v2781 = vunpack.c.l.s4 1983009808
      %v2782 = vunpack.c.0.s8 %v2781
      %v2783 = vlaneseq
      %v2784 = vshrl.u32 %v2783, 7
      %v2785 = vsub.s32 %v2782, %v2784
      %v2786 = vrot.slane %v2772, %v2785
      %v2787 = vcombine.low %v2779, %v2786
      %v2788 = vcombine.low %v752, %v1478
      %v2789 = vcombine.low %v769, %v768
      %v2791 = vunpack.c.l.s4 1983009808
      %v2792 = vunpack.c.0.s8 %v2791
      %v2793 = vlaneseq
      %v2794 = vshrl.u32 %v2793, 7
      %v2795 = vsub.s32 %v2792, %v2794
      %v2796 = vrot.slane %v2788, %v2795
      %v2798 = vunpack.c.l.s4 1983009808
      %v2799 = vunpack.c.0.s8 %v2798
      %v2800 = vlaneseq
      %v2801 = vshrl.u32 %v2800, 7
      %v2802 = vsub.s32 %v2799, %v2801
      %v2803 = vrot.slane %v2789, %v2802
      %v2804 = vcombine.low %v2796, %v2803
      %v2805 = vcombine.low %v770, %v778
      %v2806 = vcombine.low %v786, %v785
      %v2808 = vunpack.c.l.s4 1983009808
      %v2809 = vunpack.c.0.s8 %v2808
      %v2810 = vlaneseq
      %v2811 = vshrl.u32 %v2810, 7
      %v2812 = vsub.s32 %v2809, %v2811
      %v2813 = vrot.slane %v2805, %v2812
      %v2815 = vunpack.c.l.s4 1983009808
      %v2816 = vunpack.c.0.s8 %v2815
      %v2817 = vlaneseq
      %v2818 = vshrl.u32 %v2817, 7
      %v2819 = vsub.s32 %v2816, %v2818
      %v2820 = vrot.slane %v2806, %v2819
      %v2821 = vcombine.low %v2813, %v2820
      %v2822 = vcombine.low %v1479, %v802
      %v2823 = vcombine.low %v801, %v803
      %v2825 = vunpack.c.l.s4 1983009808
      %v2826 = vunpack.c.0.s8 %v2825
      %v2827 = vlaneseq
      %v2828 = vshrl.u32 %v2827, 7
      %v2829 = vsub.s32 %v2826, %v2828
      %v2830 = vrot.slane %v2822, %v2829
      %v2832 = vunpack.c.l.s4 1983009808
      %v2833 = vunpack.c.0.s8 %v2832
      %v2834 = vlaneseq
      %v2835 = vshrl.u32 %v2834, 7
      %v2836 = vsub.s32 %v2833, %v2835
      %v2837 = vrot.slane %v2823, %v2836
      %v2838 = vcombine.low %v2830, %v2837
      %v2839 = vcombine.low %v811, %v819
      %v2840 = vcombine.low %v818, %v1480
      %v2842 = vunpack.c.l.s4 1983009808
      %v2843 = vunpack.c.0.s8 %v2842
      %v2844 = vlaneseq
      %v2845 = vshrl.u32 %v2844, 7
      %v2846 = vsub.s32 %v2843, %v2845
      %v2847 = vrot.slane %v2839, %v2846
      %v2849 = vunpack.c.l.s4 1983009808
      %v2850 = vunpack.c.0.s8 %v2849
      %v2851 = vlaneseq
      %v2852 = vshrl.u32 %v2851, 7
      %v2853 = vsub.s32 %v2850, %v2852
      %v2854 = vrot.slane %v2840, %v2853
      %v2855 = vcombine.low %v2847, %v2854
      %v2856 = vcombine.low %v835, %v834
      %v2857 = vcombine.low %v836, %v844
      %v2859 = vunpack.c.l.s4 1983009808
      %v2860 = vunpack.c.0.s8 %v2859
      %v2861 = vlaneseq
      %v2862 = vshrl.u32 %v2861, 7
      %v2863 = vsub.s32 %v2860, %v2862
      %v2864 = vrot.slane %v2856, %v2863
      %v2866 = vunpack.c.l.s4 1983009808
      %v2867 = vunpack.c.0.s8 %v2866
      %v2868 = vlaneseq
      %v2869 = vshrl.u32 %v2868, 7
      %v2870 = vsub.s32 %v2867, %v2869
      %v2871 = vrot.slane %v2857, %v2870
      %v2872 = vcombine.low %v2864, %v2871
      %v2873 = vcombine.low %v852, %v851
      %v2874 = vcombine.low %v1481, %v868
      %v2876 = vunpack.c.l.s4 1983009808
      %v2877 = vunpack.c.0.s8 %v2876
      %v2878 = vlaneseq
      %v2879 = vshrl.u32 %v2878, 7
      %v2880 = vsub.s32 %v2877, %v2879
      %v2881 = vrot.slane %v2873, %v2880
      %v2883 = vunpack.c.l.s4 1983009808
      %v2884 = vunpack.c.0.s8 %v2883
      %v2885 = vlaneseq
      %v2886 = vshrl.u32 %v2885, 7
      %v2887 = vsub.s32 %v2884, %v2886
      %v2888 = vrot.slane %v2874, %v2887
      %v2889 = vcombine.low %v2881, %v2888
      %v2890 = vcombine.low %v867, %v869
      %v2891 = vcombine.low %v877, %v885
      %v2893 = vunpack.c.l.s4 1983009808
      %v2894 = vunpack.c.0.s8 %v2893
      %v2895 = vlaneseq
      %v2896 = vshrl.u32 %v2895, 7
      %v2897 = vsub.s32 %v2894, %v2896
      %v2898 = vrot.slane %v2890, %v2897
      %v2900 = vunpack.c.l.s4 1983009808
      %v2901 = vunpack.c.0.s8 %v2900
      %v2902 = vlaneseq
      %v2903 = vshrl.u32 %v2902, 7
      %v2904 = vsub.s32 %v2901, %v2903
      %v2905 = vrot.slane %v2891, %v2904
      %v2906 = vcombine.low %v2898, %v2905
      %v2907 = vcombine.low %v884, %v1482
      %v2908 = vcombine.low %v901, %v900
      %v2910 = vunpack.c.l.s4 1983009808
      %v2911 = vunpack.c.0.s8 %v2910
      %v2912 = vlaneseq
      %v2913 = vshrl.u32 %v2912, 7
      %v2914 = vsub.s32 %v2911, %v2913
      %v2915 = vrot.slane %v2907, %v2914
      %v2917 = vunpack.c.l.s4 1983009808
      %v2918 = vunpack.c.0.s8 %v2917
      %v2919 = vlaneseq
      %v2920 = vshrl.u32 %v2919, 7
      %v2921 = vsub.s32 %v2918, %v2920
      %v2922 = vrot.slane %v2908, %v2921
      %v2923 = vcombine.low %v2915, %v2922
      %v2924 = vcombine.low %v902, %v910
      %v2925 = vcombine.low %v918, %v917
      %v2927 = vunpack.c.l.s4 1983009808
      %v2928 = vunpack.c.0.s8 %v2927
      %v2929 = vlaneseq
      %v2930 = vshrl.u32 %v2929, 7
      %v2931 = vsub.s32 %v2928, %v2930
      %v2932 = vrot.slane %v2924, %v2931
      %v2934 = vunpack.c.l.s4 1983009808
      %v2935 = vunpack.c.0.s8 %v2934
      %v2936 = vlaneseq
      %v2937 = vshrl.u32 %v2936, 7
      %v2938 = vsub.s32 %v2935, %v2937
      %v2939 = vrot.slane %v2925, %v2938
      %v2940 = vcombine.low %v2932, %v2939
      %v2941 = vcombine.low %v1483, %v934
      %v2942 = vcombine.low %v933, %v935
      %v2944 = vunpack.c.l.s4 1983009808
      %v2945 = vunpack.c.0.s8 %v2944
      %v2946 = vlaneseq
      %v2947 = vshrl.u32 %v2946, 7
      %v2948 = vsub.s32 %v2945, %v2947
      %v2949 = vrot.slane %v2941, %v2948
      %v2951 = vunpack.c.l.s4 1983009808
      %v2952 = vunpack.c.0.s8 %v2951
      %v2953 = vlaneseq
      %v2954 = vshrl.u32 %v2953, 7
      %v2955 = vsub.s32 %v2952, %v2954
      %v2956 = vrot.slane %v2942, %v2955
      %v2957 = vcombine.low %v2949, %v2956
      %v2958 = vcombine.low %v943, %v951
      %v2959 = vcombine.low %v950, %v1484
      %v2961 = vunpack.c.l.s4 1983009808
      %v2962 = vunpack.c.0.s8 %v2961
      %v2963 = vlaneseq
      %v2964 = vshrl.u32 %v2963, 7
      %v2965 = vsub.s32 %v2962, %v2964
      %v2966 = vrot.slane %v2958, %v2965
      %v2968 = vunpack.c.l.s4 1983009808
      %v2969 = vunpack.c.0.s8 %v2968
      %v2970 = vlaneseq
      %v2971 = vshrl.u32 %v2970, 7
      %v2972 = vsub.s32 %v2969, %v2971
      %v2973 = vrot.slane %v2959, %v2972
      %v2974 = vcombine.low %v2966, %v2973
      %v2975 = vcombine.low %v967, %v966
      %v2976 = vcombine.low %v968, %v976
      %v2978 = vunpack.c.l.s4 1983009808
      %v2979 = vunpack.c.0.s8 %v2978
      %v2980 = vlaneseq
      %v2981 = vshrl.u32 %v2980, 7
      %v2982 = vsub.s32 %v2979, %v2981
      %v2983 = vrot.slane %v2975, %v2982
      %v2985 = vunpack.c.l.s4 1983009808
      %v2986 = vunpack.c.0.s8 %v2985
      %v2987 = vlaneseq
      %v2988 = vshrl.u32 %v2987, 7
      %v2989 = vsub.s32 %v2986, %v2988
      %v2990 = vrot.slane %v2976, %v2989
      %v2991 = vcombine.low %v2983, %v2990
      %v2992 = vcombine.low %v984, %v983
      %v2993 = vcombine.low %v1485, %v1000
      %v2995 = vunpack.c.l.s4 1983009808
      %v2996 = vunpack.c.0.s8 %v2995
      %v2997 = vlaneseq
      %v2998 = vshrl.u32 %v2997, 7
      %v2999 = vsub.s32 %v2996, %v2998
      %v3000 = vrot.slane %v2992, %v2999
      %v3002 = vunpack.c.l.s4 1983009808
      %v3003 = vunpack.c.0.s8 %v3002
      %v3004 = vlaneseq
      %v3005 = vshrl.u32 %v3004, 7
      %v3006 = vsub.s32 %v3003, %v3005
      %v3007 = vrot.slane %v2993, %v3006
      %v3008 = vcombine.low %v3000, %v3007
      %v3009 = vcombine.low %v999, %v1001
      %v3010 = vcombine.low %v1009, %v1017
      %v3012 = vunpack.c.l.s4 1983009808
      %v3013 = vunpack.c.0.s8 %v3012
      %v3014 = vlaneseq
      %v3015 = vshrl.u32 %v3014, 7
      %v3016 = vsub.s32 %v3013, %v3015
      %v3017 = vrot.slane %v3009, %v3016
      %v3019 = vunpack.c.l.s4 1983009808
      %v3020 = vunpack.c.0.s8 %v3019
      %v3021 = vlaneseq
      %v3022 = vshrl.u32 %v3021, 7
      %v3023 = vsub.s32 %v3020, %v3022
      %v3024 = vrot.slane %v3010, %v3023
      %v3025 = vcombine.low %v3017, %v3024
      %v3026 = vcombine.low %v1016, %v1486
      %v3028 = vunpack.c.l.s4 1983009808
      %v3029 = vunpack.c.0.s8 %v3028
      %v3030 = vlaneseq
      %v3031 = vshrl.u32 %v3030, 7
      %v3032 = vsub.s32 %v3029, %v3031
      %v3033 = vrot.slane %v3026, %v3032
      %v3059 = vpack.c.bf16 %v2651, %v2634
      %v3060 = vpack.c.bf16 %v2685, %v2668
      %v3061 = vpack.c.bf16 %v2719, %v2702
      %v3062 = vpack.c.bf16 %v2753, %v2736
      %v3063 = vpack.c.bf16 %v2787, %v2770
      %v3064 = vpack.c.bf16 %v2821, %v2804
      %v3065 = vpack.c.bf16 %v2855, %v2838
      %v3066 = vpack.c.bf16 %v2889, %v2872
      %v3067 = vpack.c.bf16 %v2923, %v2906
      %v3068 = vpack.c.bf16 %v2957, %v2940
      %v3069 = vpack.c.bf16 %v2991, %v2974
      %v3070 = vpack.c.bf16 %v3025, %v3008
      %v3071 = vpack.c.bf16 %v3033, %v3033
      %s3072 = scalar_lea.vmem %s1, 4
      %v3073 = vld [vmem:[%s3072] sm:$0x3]
      %v3075 = vsel %vm2258, %v3059, 0
      %v3078 = vsel %vm2258, %v3060, 0
      %v3081 = vsel %vm2258, %v3061, 0
      %v3084 = vsel %vm2258, %v3062, 0
      %v3087 = vsel %vm2258, %v3063, 0
      %v3090 = vsel %vm2258, %v3064, 0
      %v3093 = vsel %vm2258, %v3065, 0
      %v3096 = vsel %vm2258, %v3066, 0
      %v3099 = vsel %vm2258, %v3067, 0
      %v3102 = vsel %vm2258, %v3068, 0
      %v3105 = vsel %vm2258, %v3069, 0
      %v3108 = vsel %vm2258, %v3070, 0
      %v3111 = vsel %vm2258, %v3071, 0
      %v3114 = vand.u32 %v3073, %v2300
      %3116 = vmatprep.subr.bf16.mxu0 0
      %3117 = vmatpush1.bf16.msra.mxu0 %v3114
      %3118 = vmatprep.subr.bf16.mxu0 0
      %3119 = vmatpush1.bf16.msra.mxu0 0
      %3120 = vmatprep.subr.bf16.mxu0 0
      %3121 = vmatpush1.bf16.msra.mxu0 0
      %3122 = vmatprep.subr.bf16.mxu0 0
      %3123 = vmatpush1.bf16.msra.mxu0 0
      %3124 = vmatprep.subr.bf16.mxu0 0
      %3125 = vmatpush1.bf16.msra.mxu0 0
      %3126 = vmatprep.subr.bf16.mxu0 0
      %3127 = vmatpush1.bf16.msra.mxu0 0
      %3128 = vmatprep.subr.bf16.mxu0 0
      %3129 = vmatpush1.bf16.msra.mxu0 0
      %3130 = vmatprep.subr.bf16.mxu0 0
      %3131 = vmatpush1.bf16.msra.mxu0 0
      %3132 = vmatprep.subr.bf16.mxu0 0
      %3133 = vmatpush1.bf16.msra.mxu0 0
      %3134 = vmatprep.subr.bf16.mxu0 0
      %3135 = vmatpush1.bf16.msra.mxu0 0
      %3136 = vmatprep.subr.bf16.mxu0 0
      %3137 = vmatpush1.bf16.msra.mxu0 0
      %3138 = vmatprep.subr.bf16.mxu0 0
      %3139 = vmatpush1.bf16.msra.mxu0 0
      %3140 = vmatprep.subr.bf16.mxu0 0
      %3141 = vmatpush1.bf16.msra.mxu0 0
      %3142 = vmatprep.subr.bf16.mxu0 0
      %3143 = vmatpush1.bf16.msra.mxu0 0
      %3144 = vmatprep.subr.bf16.mxu0 0
      %3145 = vmatpush1.bf16.msra.mxu0 0
      %3146 = vmatprep.subr.bf16.mxu0 0
      %3147 = vmatpush1.bf16.msra.mxu0 0
      %3148 = vmatprep.mubr.bf16.mxu0 0
      %3149 = vmatmul.mubr.bf16.gmra.mrb[0].mxu0 %v3075
      %v3150 = vpop.f32.mrb[0].mxu0
      %v3151 = vadd.f32 0.0, %v3150
      %v3152 = vpop.f32.mrb[0].mxu0
      %v3153 = vpop.f32.mrb[0].mxu0
      %v3154 = vadd.f32 0.0, %v3153
      %v3155 = vpop.f32.mrb[0].mxu0
      %3156 = vmatprep.mubr.bf16.mxu0 0
      %3157 = vmatmul.mubr.bf16.gmra.mrb[0].mxu0 %v3078
      %v3158 = vpop.f32.mrb[0].mxu0
      %v3159 = vadd.f32 0.0, %v3158
      %v3160 = vpop.f32.mrb[0].mxu0
      %v3161 = vpop.f32.mrb[0].mxu0
      %v3162 = vadd.f32 0.0, %v3161
      %v3163 = vpop.f32.mrb[0].mxu0
      %3164 = vmatprep.mubr.bf16.mxu0 0
      %3165 = vmatmul.mubr.bf16.gmra.mrb[0].mxu0 %v3081
      %v3166 = vpop.f32.mrb[0].mxu0
      %v3167 = vadd.f32 0.0, %v3166
      %v3168 = vpop.f32.mrb[0].mxu0
      %v3169 = vpop.f32.mrb[0].mxu0
      %v3170 = vadd.f32 0.0, %v3169
      %v3171 = vpop.f32.mrb[0].mxu0
      %3172 = vmatprep.mubr.bf16.mxu0 0
      %3173 = vmatmul.mubr.bf16.gmra.mrb[0].mxu0 %v3084
      %v3174 = vpop.f32.mrb[0].mxu0
      %v3175 = vadd.f32 0.0, %v3174
      %v3176 = vpop.f32.mrb[0].mxu0
      %v3177 = vpop.f32.mrb[0].mxu0
      %v3178 = vadd.f32 0.0, %v3177
      %v3179 = vpop.f32.mrb[0].mxu0
      %3180 = vmatprep.mubr.bf16.mxu0 0
      %3181 = vmatmul.mubr.bf16.gmra.mrb[0].mxu0 %v3087
      %v3182 = vpop.f32.mrb[0].mxu0
      %v3183 = vadd.f32 0.0, %v3182
      %v3184 = vpop.f32.mrb[0].mxu0
      %v3185 = vpop.f32.mrb[0].mxu0
      %v3186 = vadd.f32 0.0, %v3185
      %v3187 = vpop.f32.mrb[0].mxu0
      %3188 = vmatprep.mubr.bf16.mxu0 0
      %3189 = vmatmul.mubr.bf16.gmra.mrb[0].mxu0 %v3090
      %v3190 = vpop.f32.mrb[0].mxu0
      %v3191 = vadd.f32 0.0, %v3190
      %v3192 = vpop.f32.mrb[0].mxu0
      %v3193 = vpop.f32.mrb[0].mxu0
      %v3194 = vadd.f32 0.0, %v3193
      %v3195 = vpop.f32.mrb[0].mxu0
      %3196 = vmatprep.mubr.bf16.mxu0 0
      %3197 = vmatmul.mubr.bf16.gmra.mrb[0].mxu0 %v3093
      %v3198 = vpop.f32.mrb[0].mxu0
      %v3199 = vadd.f32 0.0, %v3198
      %v3200 = vpop.f32.mrb[0].mxu0
      %v3201 = vpop.f32.mrb[0].mxu0
      %v3202 = vadd.f32 0.0, %v3201
      %v3203 = vpop.f32.mrb[0].mxu0
      %3204 = vmatprep.mubr.bf16.mxu0 0
      %3205 = vmatmul.mubr.bf16.gmra.mrb[0].mxu0 %v3096
      %v3206 = vpop.f32.mrb[0].mxu0
      %v3207 = vadd.f32 0.0, %v3206
      %v3208 = vpop.f32.mrb[0].mxu0
      %v3209 = vpop.f32.mrb[0].mxu0
      %v3210 = vadd.f32 0.0, %v3209
      %v3211 = vpop.f32.mrb[0].mxu0
      %3212 = vmatprep.mubr.bf16.mxu0 0
      %3213 = vmatmul.mubr.bf16.gmra.mrb[0].mxu0 %v3099
      %v3214 = vpop.f32.mrb[0].mxu0
      %v3215 = vadd.f32 0.0, %v3214
      %v3216 = vpop.f32.mrb[0].mxu0
      %v3217 = vpop.f32.mrb[0].mxu0
      %v3218 = vadd.f32 0.0, %v3217
      %v3219 = vpop.f32.mrb[0].mxu0
      %3220 = vmatprep.mubr.bf16.mxu0 0
      %3221 = vmatmul.mubr.bf16.gmra.mrb[0].mxu0 %v3102
      %v3222 = vpop.f32.mrb[0].mxu0
      %v3223 = vadd.f32 0.0, %v3222
      %v3224 = vpop.f32.mrb[0].mxu0
      %v3225 = vpop.f32.mrb[0].mxu0
      %v3226 = vadd.f32 0.0, %v3225
      %v3227 = vpop.f32.mrb[0].mxu0
      %3228 = vmatprep.mubr.bf16.mxu0 0
      %3229 = vmatmul.mubr.bf16.gmra.mrb[0].mxu0 %v3105
      %v3230 = vpop.f32.mrb[0].mxu0
      %v3231 = vadd.f32 0.0, %v3230
      %v3232 = vpop.f32.mrb[0].mxu0
      %v3233 = vpop.f32.mrb[0].mxu0
      %v3234 = vadd.f32 0.0, %v3233
      %v3235 = vpop.f32.mrb[0].mxu0
      %3236 = vmatprep.mubr.bf16.mxu0 0
      %3237 = vmatmul.mubr.bf16.gmra.mrb[0].mxu0 %v3108
      %v3238 = vpop.f32.mrb[0].mxu0
      %v3239 = vadd.f32 0.0, %v3238
      %v3240 = vpop.f32.mrb[0].mxu0
      %v3241 = vpop.f32.mrb[0].mxu0
      %v3242 = vadd.f32 0.0, %v3241
      %v3243 = vpop.f32.mrb[0].mxu0
      %3244 = vmatprep.mubr.bf16.mxu0 0
      %3245 = vmatmul.mubr.bf16.gmra.mrb[0].mxu0 %v3111
      %v3246 = vpop.f32.mrb[0].mxu0
      %v3247 = vadd.f32 0.0, %v3246
      %v3248 = vpop.f32.mrb[0].mxu0
      %v3249 = vpop.f32.mrb[0].mxu0
      %v3250 = vpop.f32.mrb[0].mxu0
      %3251 = vdwg.mxu0
      %v3252 = vadd.f32 %v2517, %v3151
      %v3253 = vadd.f32 %v2520, %v3154
      %v3254 = vadd.f32 %v2525, %v3159
      %v3255 = vadd.f32 %v2528, %v3162
      %v3256 = vadd.f32 %v2533, %v3167
      %v3257 = vadd.f32 %v2536, %v3170
      %v3258 = vadd.f32 %v2541, %v3175
      %v3259 = vadd.f32 %v2544, %v3178
      %v3260 = vadd.f32 %v2549, %v3183
      %v3261 = vadd.f32 %v2552, %v3186
      %v3262 = vadd.f32 %v2557, %v3191
      %v3263 = vadd.f32 %v2560, %v3194
      %v3264 = vadd.f32 %v2565, %v3199
      %v3265 = vadd.f32 %v2568, %v3202
      %v3266 = vadd.f32 %v2573, %v3207
      %v3267 = vadd.f32 %v2576, %v3210
      %v3268 = vadd.f32 %v2581, %v3215
      %v3269 = vadd.f32 %v2584, %v3218
      %v3270 = vadd.f32 %v2589, %v3223
      %v3271 = vadd.f32 %v2592, %v3226
      %v3272 = vadd.f32 %v2597, %v3231
      %v3273 = vadd.f32 %v2600, %v3234
      %v3274 = vadd.f32 %v2605, %v3239
      %v3275 = vadd.f32 %v2608, %v3242
      %v3276 = vadd.f32 %v2613, %v3247
      %v3279 = vcombine.high %v524, %v524
      %v3281 = vunpack.c.l.s4 1983009808
      %v3282 = vunpack.c.0.s8 %v3281
      %v3283 = vlaneseq
      %v3284 = vshrl.u32 %v3283, 7
      %v3285 = vsub.s32 %v3282, %v3284
      %v3286 = vrot.slane %v524, %v3285
      %v3288 = vunpack.c.l.s4 1983009808
      %v3289 = vunpack.c.0.s8 %v3288
      %v3290 = vlaneseq
      %v3291 = vshrl.u32 %v3290, 7
      %v3292 = vsub.s32 %v3289, %v3291
      %v3293 = vrot.slane %v3279, %v3292
      %v3294 = vcombine.high %v3286, %v3286
      %v3295 = vcombine.high %v3293, %v3293
      %v3296 = vcombine.high %v525, %v525
      %v3298 = vunpack.c.l.s4 1983009808
      %v3299 = vunpack.c.0.s8 %v3298
      %v3300 = vlaneseq
      %v3301 = vshrl.u32 %v3300, 7
      %v3302 = vsub.s32 %v3299, %v3301
      %v3303 = vrot.slane %v525, %v3302
      %v3305 = vunpack.c.l.s4 1983009808
      %v3306 = vunpack.c.0.s8 %v3305
      %v3307 = vlaneseq
      %v3308 = vshrl.u32 %v3307, 7
      %v3309 = vsub.s32 %v3306, %v3308
      %v3310 = vrot.slane %v3296, %v3309
      %v3311 = vcombine.high %v3303, %v3303
      %v3312 = vcombine.low %v596, %v604
      %v3314 = vunpack.c.l.s4 1983009808
      %v3315 = vunpack.c.0.s8 %v3314
      %v3316 = vlaneseq
      %v3317 = vshrl.u32 %v3316, 7
      %v3318 = vsub.s32 %v3315, %v3317
      %v3319 = vrot.slane %v3312, %v3318
      %v3320 = vcombine.low %v3319, %v2660
      %v3321 = vcombine.low %v620, %v629
      %v3323 = vunpack.c.l.s4 1983009808
      %v3324 = vunpack.c.0.s8 %v3323
      %v3325 = vlaneseq
      %v3326 = vshrl.u32 %v3325, 7
      %v3327 = vsub.s32 %v3324, %v3326
      %v3328 = vrot.slane %v3321, %v3327
      %v3329 = vcombine.low %v2667, %v3328
      %v3330 = vcombine.low %v2684, %v2694
      %v3331 = vcombine.low %v662, %v670
      %v3333 = vunpack.c.l.s4 1983009808
      %v3334 = vunpack.c.0.s8 %v3333
      %v3335 = vlaneseq
      %v3336 = vshrl.u32 %v3335, 7
      %v3337 = vsub.s32 %v3334, %v3336
      %v3338 = vrot.slane %v3331, %v3337
      %v3339 = vcombine.low %v2701, %v3338
      %v3340 = vcombine.low %v2718, %v2728
      %v3341 = vcombine.low %v686, %v695
      %v3343 = vunpack.c.l.s4 1983009808
      %v3344 = vunpack.c.0.s8 %v3343
      %v3345 = vlaneseq
      %v3346 = vshrl.u32 %v3345, 7
      %v3347 = vsub.s32 %v3344, %v3346
      %v3348 = vrot.slane %v3341, %v3347
      %v3349 = vcombine.low %v3348, %v2745
      %v3350 = vcombine.low %v2752, %v2762
      %v3351 = vcombine.low %v728, %v736
      %v3353 = vunpack.c.l.s4 1983009808
      %v3354 = vunpack.c.0.s8 %v3353
      %v3355 = vlaneseq
      %v3356 = vshrl.u32 %v3355, 7
      %v3357 = vsub.s32 %v3354, %v3356
      %v3358 = vrot.slane %v3351, %v3357
      %v3359 = vcombine.low %v3358, %v2779
      %v3360 = vcombine.low %v752, %v761
      %v3362 = vunpack.c.l.s4 1983009808
      %v3363 = vunpack.c.0.s8 %v3362
      %v3364 = vlaneseq
      %v3365 = vshrl.u32 %v3364, 7
      %v3366 = vsub.s32 %v3363, %v3365
      %v3367 = vrot.slane %v3360, %v3366
      %v3368 = vcombine.low %v2786, %v3367
      %v3369 = vcombine.low %v2803, %v2813
      %v3370 = vcombine.low %v794, %v802
      %v3372 = vunpack.c.l.s4 1983009808
      %v3373 = vunpack.c.0.s8 %v3372
      %v3374 = vlaneseq
      %v3375 = vshrl.u32 %v3374, 7
      %v3376 = vsub.s32 %v3373, %v3375
      %v3377 = vrot.slane %v3370, %v3376
      %v3378 = vcombine.low %v2820, %v3377
      %v3379 = vcombine.low %v2837, %v2847
      %v3380 = vcombine.low %v818, %v827
      %v3382 = vunpack.c.l.s4 1983009808
      %v3383 = vunpack.c.0.s8 %v3382
      %v3384 = vlaneseq
      %v3385 = vshrl.u32 %v3384, 7
      %v3386 = vsub.s32 %v3383, %v3385
      %v3387 = vrot.slane %v3380, %v3386
      %v3388 = vcombine.low %v3387, %v2864
      %v3389 = vcombine.low %v2871, %v2881
      %v3390 = vcombine.low %v860, %v868
      %v3392 = vunpack.c.l.s4 1983009808
      %v3393 = vunpack.c.0.s8 %v3392
      %v3394 = vlaneseq
      %v3395 = vshrl.u32 %v3394, 7
      %v3396 = vsub.s32 %v3393, %v3395
      %v3397 = vrot.slane %v3390, %v3396
      %v3398 = vcombine.low %v3397, %v2898
      %v3399 = vcombine.low %v884, %v893
      %v3401 = vunpack.c.l.s4 1983009808
      %v3402 = vunpack.c.0.s8 %v3401
      %v3403 = vlaneseq
      %v3404 = vshrl.u32 %v3403, 7
      %v3405 = vsub.s32 %v3402, %v3404
      %v3406 = vrot.slane %v3399, %v3405
      %v3407 = vcombine.low %v2905, %v3406
      %v3408 = vcombine.low %v2922, %v2932
      %v3409 = vcombine.low %v926, %v934
      %v3411 = vunpack.c.l.s4 1983009808
      %v3412 = vunpack.c.0.s8 %v3411
      %v3413 = vlaneseq
      %v3414 = vshrl.u32 %v3413, 7
      %v3415 = vsub.s32 %v3412, %v3414
      %v3416 = vrot.slane %v3409, %v3415
      %v3417 = vcombine.low %v2939, %v3416
      %v3418 = vcombine.low %v2956, %v2966
      %v3419 = vcombine.low %v950, %v959
      %v3421 = vunpack.c.l.s4 1983009808
      %v3422 = vunpack.c.0.s8 %v3421
      %v3423 = vlaneseq
      %v3424 = vshrl.u32 %v3423, 7
      %v3425 = vsub.s32 %v3422, %v3424
      %v3426 = vrot.slane %v3419, %v3425
      %v3427 = vcombine.low %v3426, %v2983
      %v3428 = vcombine.low %v2990, %v3000
      %v3429 = vcombine.low %v992, %v1000
      %v3431 = vunpack.c.l.s4 1983009808
      %v3432 = vunpack.c.0.s8 %v3431
      %v3433 = vlaneseq
      %v3434 = vshrl.u32 %v3433, 7
      %v3435 = vsub.s32 %v3432, %v3434
      %v3436 = vrot.slane %v3429, %v3435
      %v3437 = vcombine.low %v3436, %v3017
      %v3438 = vcombine.low %v1016, %v3286
      %v3440 = vunpack.c.l.s4 1983009808
      %v3441 = vunpack.c.0.s8 %v3440
      %v3442 = vlaneseq
      %v3443 = vshrl.u32 %v3442, 7
      %v3444 = vsub.s32 %v3441, %v3443
      %v3445 = vrot.slane %v3438, %v3444
      %v3446 = vcombine.low %v3024, %v3445
      %v3447 = vcombine.low %v3294, %v3293
      %v3448 = vcombine.low %v3295, %v3303
      %v3450 = vunpack.c.l.s4 1983009808
      %v3451 = vunpack.c.0.s8 %v3450
      %v3452 = vlaneseq
      %v3453 = vshrl.u32 %v3452, 7
      %v3454 = vsub.s32 %v3451, %v3453
      %v3455 = vrot.slane %v3447, %v3454
      %v3457 = vunpack.c.l.s4 1983009808
      %v3458 = vunpack.c.0.s8 %v3457
      %v3459 = vlaneseq
      %v3460 = vshrl.u32 %v3459, 7
      %v3461 = vsub.s32 %v3458, %v3460
      %v3462 = vrot.slane %v3448, %v3461
      %v3463 = vcombine.low %v3455, %v3462
      %v3464 = vcombine.low %v3311, %v3310
      %v3466 = vunpack.c.l.s4 1983009808
      %v3467 = vunpack.c.0.s8 %v3466
      %v3468 = vlaneseq
      %v3469 = vshrl.u32 %v3468, 7
      %v3470 = vsub.s32 %v3467, %v3469
      %v3471 = vrot.slane %v3464, %v3470
      %v3497 = vpack.c.bf16 %v3329, %v3320
      %v3498 = vpack.c.bf16 %v3339, %v3330
      %v3499 = vpack.c.bf16 %v3349, %v3340
      %v3500 = vpack.c.bf16 %v3359, %v3350
      %v3501 = vpack.c.bf16 %v3369, %v3368
      %v3502 = vpack.c.bf16 %v3379, %v3378
      %v3503 = vpack.c.bf16 %v3389, %v3388
      %v3504 = vpack.c.bf16 %v3407, %v3398
      %v3505 = vpack.c.bf16 %v3417, %v3408
      %v3506 = vpack.c.bf16 %v3427, %v3418
      %v3507 = vpack.c.bf16 %v3437, %v3428
      %v3508 = vpack.c.bf16 %v3463, %v3446
      %v3509 = vpack.c.bf16 %v3471, %v3471
      %s3510 = scalar_lea.vmem %s1, 6
      %v3511 = vld [vmem:[%s3510] sm:$0x3]
      %v3513 = vsel %vm2258, %v3497, 0
      %v3516 = vsel %vm2258, %v3498, 0
      %v3519 = vsel %vm2258, %v3499, 0
      %v3522 = vsel %vm2258, %v3500, 0
      %v3525 = vsel %vm2258, %v3501, 0
      %v3528 = vsel %vm2258, %v3502, 0
      %v3531 = vsel %vm2258, %v3503, 0
      %v3534 = vsel %vm2258, %v3504, 0
      %v3537 = vsel %vm2258, %v3505, 0
      %v3540 = vsel %vm2258, %v3506, 0
      %v3543 = vsel %vm2258, %v3507, 0
      %v3546 = vsel %vm2258, %v3508, 0
      %v3549 = vsel %vm2258, %v3509, 0
      %v3552 = vand.u32 %v3511, %v2300
      %3554 = vmatprep.subr.bf16.mxu0 0
      %3555 = vmatpush1.bf16.msra.mxu0 %v3552
      %3556 = vmatprep.subr.bf16.mxu0 0
      %3557 = vmatpush1.bf16.msra.mxu0 0
      %3558 = vmatprep.subr.bf16.mxu0 0
      %3559 = vmatpush1.bf16.msra.mxu0 0
      %3560 = vmatprep.subr.bf16.mxu0 0
      %3561 = vmatpush1.bf16.msra.mxu0 0
      %3562 = vmatprep.subr.bf16.mxu0 0
      %3563 = vmatpush1.bf16.msra.mxu0 0
      %3564 = vmatprep.subr.bf16.mxu0 0
      %3565 = vmatpush1.bf16.msra.mxu0 0
      %3566 = vmatprep.subr.bf16.mxu0 0
      %3567 = vmatpush1.bf16.msra.mxu0 0
      %3568 = vmatprep.subr.bf16.mxu0 0
      %3569 = vmatpush1.bf16.msra.mxu0 0
      %3570 = vmatprep.subr.bf16.mxu0 0
      %3571 = vmatpush1.bf16.msra.mxu0 0
      %3572 = vmatprep.subr.bf16.mxu0 0
      %3573 = vmatpush1.bf16.msra.mxu0 0
      %3574 = vmatprep.subr.bf16.mxu0 0
      %3575 = vmatpush1.bf16.msra.mxu0 0
      %3576 = vmatprep.subr.bf16.mxu0 0
      %3577 = vmatpush1.bf16.msra.mxu0 0
      %3578 = vmatprep.subr.bf16.mxu0 0
      %3579 = vmatpush1.bf16.msra.mxu0 0
      %3580 = vmatprep.subr.bf16.mxu0 0
      %3581 = vmatpush1.bf16.msra.mxu0 0
      %3582 = vmatprep.subr.bf16.mxu0 0
      %3583 = vmatpush1.bf16.msra.mxu0 0
      %3584 = vmatprep.subr.bf16.mxu0 0
      %3585 = vmatpush1.bf16.msra.mxu0 0
      %3586 = vmatprep.mubr.bf16.mxu0 0
      %3587 = vmatmul.mubr.bf16.gmra.mrb[0].mxu0 %v3513
      %v3588 = vpop.f32.mrb[0].mxu0
      %v3589 = vadd.f32 0.0, %v3588
      %v3590 = vpop.f32.mrb[0].mxu0
      %v3591 = vpop.f32.mrb[0].mxu0
      %v3592 = vadd.f32 0.0, %v3591
      %v3593 = vpop.f32.mrb[0].mxu0
      %3594 = vmatprep.mubr.bf16.mxu0 0
      %3595 = vmatmul.mubr.bf16.gmra.mrb[0].mxu0 %v3516
      %v3596 = vpop.f32.mrb[0].mxu0
      %v3597 = vadd.f32 0.0, %v3596
      %v3598 = vpop.f32.mrb[0].mxu0
      %v3599 = vpop.f32.mrb[0].mxu0
      %v3600 = vadd.f32 0.0, %v3599
      %v3601 = vpop.f32.mrb[0].mxu0
      %3602 = vmatprep.mubr.bf16.mxu0 0
      %3603 = vmatmul.mubr.bf16.gmra.mrb[0].mxu0 %v3519
      %v3604 = vpop.f32.mrb[0].mxu0
      %v3605 = vadd.f32 0.0, %v3604
      %v3606 = vpop.f32.mrb[0].mxu0
      %v3607 = vpop.f32.mrb[0].mxu0
      %v3608 = vadd.f32 0.0, %v3607
      %v3609 = vpop.f32.mrb[0].mxu0
      %3610 = vmatprep.mubr.bf16.mxu0 0
      %3611 = vmatmul.mubr.bf16.gmra.mrb[0].mxu0 %v3522
      %v3612 = vpop.f32.mrb[0].mxu0
      %v3613 = vadd.f32 0.0, %v3612
      %v3614 = vpop.f32.mrb[0].mxu0
      %v3615 = vpop.f32.mrb[0].mxu0
      %v3616 = vadd.f32 0.0, %v3615
      %v3617 = vpop.f32.mrb[0].mxu0
      %3618 = vmatprep.mubr.bf16.mxu0 0
      %3619 = vmatmul.mubr.bf16.gmra.mrb[0].mxu0 %v3525
      %v3620 = vpop.f32.mrb[0].mxu0
      %v3621 = vadd.f32 0.0, %v3620
      %v3622 = vpop.f32.mrb[0].mxu0
      %v3623 = vpop.f32.mrb[0].mxu0
      %v3624 = vadd.f32 0.0, %v3623
      %v3625 = vpop.f32.mrb[0].mxu0
      %3626 = vmatprep.mubr.bf16.mxu0 0
      %3627 = vmatmul.mubr.bf16.gmra.mrb[0].mxu0 %v3528
      %v3628 = vpop.f32.mrb[0].mxu0
      %v3629 = vadd.f32 0.0, %v3628
      %v3630 = vpop.f32.mrb[0].mxu0
      %v3631 = vpop.f32.mrb[0].mxu0
      %v3632 = vadd.f32 0.0, %v3631
      %v3633 = vpop.f32.mrb[0].mxu0
      %3634 = vmatprep.mubr.bf16.mxu0 0
      %3635 = vmatmul.mubr.bf16.gmra.mrb[0].mxu0 %v3531
      %v3636 = vpop.f32.mrb[0].mxu0
      %v3637 = vadd.f32 0.0, %v3636
      %v3638 = vpop.f32.mrb[0].mxu0
      %v3639 = vpop.f32.mrb[0].mxu0
      %v3640 = vadd.f32 0.0, %v3639
      %v3641 = vpop.f32.mrb[0].mxu0
      %3642 = vmatprep.mubr.bf16.mxu0 0
      %3643 = vmatmul.mubr.bf16.gmra.mrb[0].mxu0 %v3534
      %v3644 = vpop.f32.mrb[0].mxu0
      %v3645 = vadd.f32 0.0, %v3644
      %v3646 = vpop.f32.mrb[0].mxu0
      %v3647 = vpop.f32.mrb[0].mxu0
      %v3648 = vadd.f32 0.0, %v3647
      %v3649 = vpop.f32.mrb[0].mxu0
      %3650 = vmatprep.mubr.bf16.mxu0 0
      %3651 = vmatmul.mubr.bf16.gmra.mrb[0].mxu0 %v3537
      %v3652 = vpop.f32.mrb[0].mxu0
      %v3653 = vadd.f32 0.0, %v3652
      %v3654 = vpop.f32.mrb[0].mxu0
      %v3655 = vpop.f32.mrb[0].mxu0
      %v3656 = vadd.f32 0.0, %v3655
      %v3657 = vpop.f32.mrb[0].mxu0
      %3658 = vmatprep.mubr.bf16.mxu0 0
      %3659 = vmatmul.mubr.bf16.gmra.mrb[0].mxu0 %v3540
      %v3660 = vpop.f32.mrb[0].mxu0
      %v3661 = vadd.f32 0.0, %v3660
      %v3662 = vpop.f32.mrb[0].mxu0
      %v3663 = vpop.f32.mrb[0].mxu0
      %v3664 = vadd.f32 0.0, %v3663
      %v3665 = vpop.f32.mrb[0].mxu0
      %3666 = vmatprep.mubr.bf16.mxu0 0
      %3667 = vmatmul.mubr.bf16.gmra.mrb[0].mxu0 %v3543
      %v3668 = vpop.f32.mrb[0].mxu0
      %v3669 = vadd.f32 0.0, %v3668
      %v3670 = vpop.f32.mrb[0].mxu0
      %v3671 = vpop.f32.mrb[0].mxu0
      %v3672 = vadd.f32 0.0, %v3671
      %v3673 = vpop.f32.mrb[0].mxu0
      %3674 = vmatprep.mubr.bf16.mxu0 0
      %3675 = vmatmul.mubr.bf16.gmra.mrb[0].mxu0 %v3546
      %v3676 = vpop.f32.mrb[0].mxu0
      %v3677 = vadd.f32 0.0, %v3676
      %v3678 = vpop.f32.mrb[0].mxu0
      %v3679 = vpop.f32.mrb[0].mxu0
      %v3680 = vadd.f32 0.0, %v3679
      %v3681 = vpop.f32.mrb[0].mxu0
      %3682 = vmatprep.mubr.bf16.mxu0 0
      %3683 = vmatmul.mubr.bf16.gmra.mrb[0].mxu0 %v3549
      %v3684 = vpop.f32.mrb[0].mxu0
      %v3685 = vadd.f32 0.0, %v3684
      %v3686 = vpop.f32.mrb[0].mxu0
      %v3687 = vpop.f32.mrb[0].mxu0
      %v3688 = vpop.f32.mrb[0].mxu0
      %3689 = vdwg.mxu0
      %v3690 = vadd.f32 %v3252, %v3589
      %v3691 = vadd.f32 %v3253, %v3592
      %v3692 = vadd.f32 %v3254, %v3597
      %v3693 = vadd.f32 %v3255, %v3600
      %v3694 = vadd.f32 %v3256, %v3605
      %v3695 = vadd.f32 %v3257, %v3608
      %v3696 = vadd.f32 %v3258, %v3613
      %v3697 = vadd.f32 %v3259, %v3616
      %v3698 = vadd.f32 %v3260, %v3621
      %v3699 = vadd.f32 %v3261, %v3624
      %v3700 = vadd.f32 %v3262, %v3629
      %v3701 = vadd.f32 %v3263, %v3632
      %v3702 = vadd.f32 %v3264, %v3637
      %v3703 = vadd.f32 %v3265, %v3640
      %v3704 = vadd.f32 %v3266, %v3645
      %v3705 = vadd.f32 %v3267, %v3648
      %v3706 = vadd.f32 %v3268, %v3653
      %v3707 = vadd.f32 %v3269, %v3656
      %v3708 = vadd.f32 %v3270, %v3661
      %v3709 = vadd.f32 %v3271, %v3664
      %v3710 = vadd.f32 %v3272, %v3669
      %v3711 = vadd.f32 %v3273, %v3672
      %v3712 = vadd.f32 %v3274, %v3677
      %v3713 = vadd.f32 %v3275, %v3680
      %v3714 = vadd.f32 %v3276, %v3685
      %v3715 = vcombine.high %v3310, %v3310
      %v3716 = vrot.slane %v3286, 7
      %v3717 = vrot.slane %v3716, 2
      %v3718 = vrot.slane %v3294, 7
      %v3719 = vsel %vm1493, %v3717, %v3718
      %v3720 = vrot.slane %v3718, 2
      %v3721 = vrot.slane %v3293, 7
      %v3722 = vsel %vm1493, %v3720, %v3721
      %v3723 = vrot.slane %v3721, 2
      %v3724 = vrot.slane %v3295, 7
      %v3725 = vsel %vm1493, %v3723, %v3724
      %v3726 = vrot.slane %v3724, 2
      %v3727 = vrot.slane %v3303, 7
      %v3728 = vsel %vm1493, %v3726, %v3727
      %v3729 = vrot.slane %v3727, 2
      %v3730 = vrot.slane %v3311, 7
      %v3731 = vsel %vm1493, %v3729, %v3730
      %v3732 = vrot.slane %v3730, 2
      %v3733 = vrot.slane %v3310, 7
      %v3734 = vsel %vm1493, %v3732, %v3733
      %v3735 = vrot.slane %v3733, 2
      %v3736 = vrot.slane %v3715, 7
      %v3737 = vsel %vm1493, %v3735, %v3736
      %v3738 = vcombine.low %v1519, %v1522
      %v3739 = vcombine.low %v1525, %v1528
      %v3741 = vunpack.c.l.s4 1983009808
      %v3742 = vunpack.c.0.s8 %v3741
      %v3743 = vlaneseq
      %v3744 = vshrl.u32 %v3743, 7
      %v3745 = vsub.s32 %v3742, %v3744
      %v3746 = vrot.slane %v3738, %v3745
      %v3748 = vunpack.c.l.s4 1983009808
      %v3749 = vunpack.c.0.s8 %v3748
      %v3750 = vlaneseq
      %v3751 = vshrl.u32 %v3750, 7
      %v3752 = vsub.s32 %v3749, %v3751
      %v3753 = vrot.slane %v3739, %v3752
      %v3754 = vcombine.low %v3746, %v3753
      %v3755 = vcombine.low %v1531, %v1534
      %v3756 = vcombine.low %v1537, %v1541
      %v3758 = vunpack.c.l.s4 1983009808
      %v3759 = vunpack.c.0.s8 %v3758
      %v3760 = vlaneseq
      %v3761 = vshrl.u32 %v3760, 7
      %v3762 = vsub.s32 %v3759, %v3761
      %v3763 = vrot.slane %v3755, %v3762
      %v3765 = vunpack.c.l.s4 1983009808
      %v3766 = vunpack.c.0.s8 %v3765
      %v3767 = vlaneseq
      %v3768 = vshrl.u32 %v3767, 7
      %v3769 = vsub.s32 %v3766, %v3768
      %v3770 = vrot.slane %v3756, %v3769
      %v3771 = vcombine.low %v3763, %v3770
      %v3772 = vcombine.low %v1544, %v1547
      %v3773 = vcombine.low %v1550, %v1553
      %v3775 = vunpack.c.l.s4 1983009808
      %v3776 = vunpack.c.0.s8 %v3775
      %v3777 = vlaneseq
      %v3778 = vshrl.u32 %v3777, 7
      %v3779 = vsub.s32 %v3776, %v3778
      %v3780 = vrot.slane %v3772, %v3779
      %v3782 = vunpack.c.l.s4 1983009808
      %v3783 = vunpack.c.0.s8 %v3782
      %v3784 = vlaneseq
      %v3785 = vshrl.u32 %v3784, 7
      %v3786 = vsub.s32 %v3783, %v3785
      %v3787 = vrot.slane %v3773, %v3786
      %v3788 = vcombine.low %v3780, %v3787
      %v3789 = vcombine.low %v1556, %v1559
      %v3790 = vcombine.low %v1563, %v1566
      %v3792 = vunpack.c.l.s4 1983009808
      %v3793 = vunpack.c.0.s8 %v3792
      %v3794 = vlaneseq
      %v3795 = vshrl.u32 %v3794, 7
      %v3796 = vsub.s32 %v3793, %v3795
      %v3797 = vrot.slane %v3789, %v3796
      %v3799 = vunpack.c.l.s4 1983009808
      %v3800 = vunpack.c.0.s8 %v3799
      %v3801 = vlaneseq
      %v3802 = vshrl.u32 %v3801, 7
      %v3803 = vsub.s32 %v3800, %v3802
      %v3804 = vrot.slane %v3790, %v3803
      %v3805 = vcombine.low %v3797, %v3804
      %v3806 = vcombine.low %v1569, %v1572
      %v3807 = vcombine.low %v1575, %v1578
      %v3809 = vunpack.c.l.s4 1983009808
      %v3810 = vunpack.c.0.s8 %v3809
      %v3811 = vlaneseq
      %v3812 = vshrl.u32 %v3811, 7
      %v3813 = vsub.s32 %v3810, %v3812
      %v3814 = vrot.slane %v3806, %v3813
      %v3816 = vunpack.c.l.s4 1983009808
      %v3817 = vunpack.c.0.s8 %v3816
      %v3818 = vlaneseq
      %v3819 = vshrl.u32 %v3818, 7
      %v3820 = vsub.s32 %v3817, %v3819
      %v3821 = vrot.slane %v3807, %v3820
      %v3822 = vcombine.low %v3814, %v3821
      %v3823 = vcombine.low %v1581, %v1585
      %v3824 = vcombine.low %v1588, %v1591
      %v3826 = vunpack.c.l.s4 1983009808
      %v3827 = vunpack.c.0.s8 %v3826
      %v3828 = vlaneseq
      %v3829 = vshrl.u32 %v3828, 7
      %v3830 = vsub.s32 %v3827, %v3829
      %v3831 = vrot.slane %v3823, %v3830
      %v3833 = vunpack.c.l.s4 1983009808
      %v3834 = vunpack.c.0.s8 %v3833
      %v3835 = vlaneseq
      %v3836 = vshrl.u32 %v3835, 7
      %v3837 = vsub.s32 %v3834, %v3836
      %v3838 = vrot.slane %v3824, %v3837
      %v3839 = vcombine.low %v3831, %v3838
      %v3840 = vcombine.low %v1594, %v1597
      %v3841 = vcombine.low %v1600, %v1603
      %v3843 = vunpack.c.l.s4 1983009808
      %v3844 = vunpack.c.0.s8 %v3843
      %v3845 = vlaneseq
      %v3846 = vshrl.u32 %v3845, 7
      %v3847 = vsub.s32 %v3844, %v3846
      %v3848 = vrot.slane %v3840, %v3847
      %v3850 = vunpack.c.l.s4 1983009808
      %v3851 = vunpack.c.0.s8 %v3850
      %v3852 = vlaneseq
      %v3853 = vshrl.u32 %v3852, 7
      %v3854 = vsub.s32 %v3851, %v3853
      %v3855 = vrot.slane %v3841, %v3854
      %v3856 = vcombine.low %v3848, %v3855
      %v3857 = vcombine.low %v1607, %v1610
      %v3858 = vcombine.low %v1613, %v1616
      %v3860 = vunpack.c.l.s4 1983009808
      %v3861 = vunpack.c.0.s8 %v3860
      %v3862 = vlaneseq
      %v3863 = vshrl.u32 %v3862, 7
      %v3864 = vsub.s32 %v3861, %v3863
      %v3865 = vrot.slane %v3857, %v3864
      %v3867 = vunpack.c.l.s4 1983009808
      %v3868 = vunpack.c.0.s8 %v3867
      %v3869 = vlaneseq
      %v3870 = vshrl.u32 %v3869, 7
      %v3871 = vsub.s32 %v3868, %v3870
      %v3872 = vrot.slane %v3858, %v3871
      %v3873 = vcombine.low %v3865, %v3872
      %v3874 = vcombine.low %v1619, %v1622
      %v3875 = vcombine.low %v1625, %v1629
      %v3877 = vunpack.c.l.s4 1983009808
      %v3878 = vunpack.c.0.s8 %v3877
      %v3879 = vlaneseq
      %v3880 = vshrl.u32 %v3879, 7
      %v3881 = vsub.s32 %v3878, %v3880
      %v3882 = vrot.slane %v3874, %v3881
      %v3884 = vunpack.c.l.s4 1983009808
      %v3885 = vunpack.c.0.s8 %v3884
      %v3886 = vlaneseq
      %v3887 = vshrl.u32 %v3886, 7
      %v3888 = vsub.s32 %v3885, %v3887
      %v3889 = vrot.slane %v3875, %v3888
      %v3890 = vcombine.low %v3882, %v3889
      %v3891 = vcombine.low %v1632, %v1635
      %v3892 = vcombine.low %v1638, %v1641
      %v3894 = vunpack.c.l.s4 1983009808
      %v3895 = vunpack.c.0.s8 %v3894
      %v3896 = vlaneseq
      %v3897 = vshrl.u32 %v3896, 7
      %v3898 = vsub.s32 %v3895, %v3897
      %v3899 = vrot.slane %v3891, %v3898
      %v3901 = vunpack.c.l.s4 1983009808
      %v3902 = vunpack.c.0.s8 %v3901
      %v3903 = vlaneseq
      %v3904 = vshrl.u32 %v3903, 7
      %v3905 = vsub.s32 %v3902, %v3904
      %v3906 = vrot.slane %v3892, %v3905
      %v3907 = vcombine.low %v3899, %v3906
      %v3908 = vcombine.low %v1644, %v1647
      %v3909 = vcombine.low %v1651, %v1654
      %v3911 = vunpack.c.l.s4 1983009808
      %v3912 = vunpack.c.0.s8 %v3911
      %v3913 = vlaneseq
      %v3914 = vshrl.u32 %v3913, 7
      %v3915 = vsub.s32 %v3912, %v3914
      %v3916 = vrot.slane %v3908, %v3915
      %v3918 = vunpack.c.l.s4 1983009808
      %v3919 = vunpack.c.0.s8 %v3918
      %v3920 = vlaneseq
      %v3921 = vshrl.u32 %v3920, 7
      %v3922 = vsub.s32 %v3919, %v3921
      %v3923 = vrot.slane %v3909, %v3922
      %v3924 = vcombine.low %v3916, %v3923
      %v3925 = vcombine.low %v1657, %v1660
      %v3926 = vcombine.low %v1663, %v1666
      %v3928 = vunpack.c.l.s4 1983009808
      %v3929 = vunpack.c.0.s8 %v3928
      %v3930 = vlaneseq
      %v3931 = vshrl.u32 %v3930, 7
      %v3932 = vsub.s32 %v3929, %v3931
      %v3933 = vrot.slane %v3925, %v3932
      %v3935 = vunpack.c.l.s4 1983009808
      %v3936 = vunpack.c.0.s8 %v3935
      %v3937 = vlaneseq
      %v3938 = vshrl.u32 %v3937, 7
      %v3939 = vsub.s32 %v3936, %v3938
      %v3940 = vrot.slane %v3926, %v3939
      %v3941 = vcombine.low %v3933, %v3940
      %v3942 = vcombine.low %v1669, %v1673
      %v3943 = vcombine.low %v1676, %v1679
      %v3945 = vunpack.c.l.s4 1983009808
      %v3946 = vunpack.c.0.s8 %v3945
      %v3947 = vlaneseq
      %v3948 = vshrl.u32 %v3947, 7
      %v3949 = vsub.s32 %v3946, %v3948
      %v3950 = vrot.slane %v3942, %v3949
      %v3952 = vunpack.c.l.s4 1983009808
      %v3953 = vunpack.c.0.s8 %v3952
      %v3954 = vlaneseq
      %v3955 = vshrl.u32 %v3954, 7
      %v3956 = vsub.s32 %v3953, %v3955
      %v3957 = vrot.slane %v3943, %v3956
      %v3958 = vcombine.low %v3950, %v3957
      %v3959 = vcombine.low %v1682, %v1685
      %v3960 = vcombine.low %v1688, %v1691
      %v3962 = vunpack.c.l.s4 1983009808
      %v3963 = vunpack.c.0.s8 %v3962
      %v3964 = vlaneseq
      %v3965 = vshrl.u32 %v3964, 7
      %v3966 = vsub.s32 %v3963, %v3965
      %v3967 = vrot.slane %v3959, %v3966
      %v3969 = vunpack.c.l.s4 1983009808
      %v3970 = vunpack.c.0.s8 %v3969
      %v3971 = vlaneseq
      %v3972 = vshrl.u32 %v3971, 7
      %v3973 = vsub.s32 %v3970, %v3972
      %v3974 = vrot.slane %v3960, %v3973
      %v3975 = vcombine.low %v3967, %v3974
      %v3976 = vcombine.low %v1695, %v1698
      %v3977 = vcombine.low %v1701, %v1704
      %v3979 = vunpack.c.l.s4 1983009808
      %v3980 = vunpack.c.0.s8 %v3979
      %v3981 = vlaneseq
      %v3982 = vshrl.u32 %v3981, 7
      %v3983 = vsub.s32 %v3980, %v3982
      %v3984 = vrot.slane %v3976, %v3983
      %v3986 = vunpack.c.l.s4 1983009808
      %v3987 = vunpack.c.0.s8 %v3986
      %v3988 = vlaneseq
      %v3989 = vshrl.u32 %v3988, 7
      %v3990 = vsub.s32 %v3987, %v3989
      %v3991 = vrot.slane %v3977, %v3990
      %v3992 = vcombine.low %v3984, %v3991
      %v3993 = vcombine.low %v1707, %v1710
      %v3994 = vcombine.low %v1713, %v1717
      %v3996 = vunpack.c.l.s4 1983009808
      %v3997 = vunpack.c.0.s8 %v3996
      %v3998 = vlaneseq
      %v3999 = vshrl.u32 %v3998, 7
      %v4000 = vsub.s32 %v3997, %v3999
      %v4001 = vrot.slane %v3993, %v4000
      %v4003 = vunpack.c.l.s4 1983009808
      %v4004 = vunpack.c.0.s8 %v4003
      %v4005 = vlaneseq
      %v4006 = vshrl.u32 %v4005, 7
      %v4007 = vsub.s32 %v4004, %v4006
      %v4008 = vrot.slane %v3994, %v4007
      %v4009 = vcombine.low %v4001, %v4008
      %v4010 = vcombine.low %v1720, %v1723
      %v4011 = vcombine.low %v1726, %v1729
      %v4013 = vunpack.c.l.s4 1983009808
      %v4014 = vunpack.c.0.s8 %v4013
      %v4015 = vlaneseq
      %v4016 = vshrl.u32 %v4015, 7
      %v4017 = vsub.s32 %v4014, %v4016
      %v4018 = vrot.slane %v4010, %v4017
      %v4020 = vunpack.c.l.s4 1983009808
      %v4021 = vunpack.c.0.s8 %v4020
      %v4022 = vlaneseq
      %v4023 = vshrl.u32 %v4022, 7
      %v4024 = vsub.s32 %v4021, %v4023
      %v4025 = vrot.slane %v4011, %v4024
      %v4026 = vcombine.low %v4018, %v4025
      %v4027 = vcombine.low %v1732, %v1735
      %v4028 = vcombine.low %v1739, %v1742
      %v4030 = vunpack.c.l.s4 1983009808
      %v4031 = vunpack.c.0.s8 %v4030
      %v4032 = vlaneseq
      %v4033 = vshrl.u32 %v4032, 7
      %v4034 = vsub.s32 %v4031, %v4033
      %v4035 = vrot.slane %v4027, %v4034
      %v4037 = vunpack.c.l.s4 1983009808
      %v4038 = vunpack.c.0.s8 %v4037
      %v4039 = vlaneseq
      %v4040 = vshrl.u32 %v4039, 7
      %v4041 = vsub.s32 %v4038, %v4040
      %v4042 = vrot.slane %v4028, %v4041
      %v4043 = vcombine.low %v4035, %v4042
      %v4044 = vcombine.low %v1745, %v1748
      %v4045 = vcombine.low %v1751, %v1754
      %v4047 = vunpack.c.l.s4 1983009808
      %v4048 = vunpack.c.0.s8 %v4047
      %v4049 = vlaneseq
      %v4050 = vshrl.u32 %v4049, 7
      %v4051 = vsub.s32 %v4048, %v4050
      %v4052 = vrot.slane %v4044, %v4051
      %v4054 = vunpack.c.l.s4 1983009808
      %v4055 = vunpack.c.0.s8 %v4054
      %v4056 = vlaneseq
      %v4057 = vshrl.u32 %v4056, 7
      %v4058 = vsub.s32 %v4055, %v4057
      %v4059 = vrot.slane %v4045, %v4058
      %v4060 = vcombine.low %v4052, %v4059
      %v4061 = vcombine.low %v1757, %v1761
      %v4062 = vcombine.low %v1764, %v1767
      %v4064 = vunpack.c.l.s4 1983009808
      %v4065 = vunpack.c.0.s8 %v4064
      %v4066 = vlaneseq
      %v4067 = vshrl.u32 %v4066, 7
      %v4068 = vsub.s32 %v4065, %v4067
      %v4069 = vrot.slane %v4061, %v4068
      %v4071 = vunpack.c.l.s4 1983009808
      %v4072 = vunpack.c.0.s8 %v4071
      %v4073 = vlaneseq
      %v4074 = vshrl.u32 %v4073, 7
      %v4075 = vsub.s32 %v4072, %v4074
      %v4076 = vrot.slane %v4062, %v4075
      %v4077 = vcombine.low %v4069, %v4076
      %v4078 = vcombine.low %v1770, %v1773
      %v4079 = vcombine.low %v1776, %v1779
      %v4081 = vunpack.c.l.s4 1983009808
      %v4082 = vunpack.c.0.s8 %v4081
      %v4083 = vlaneseq
      %v4084 = vshrl.u32 %v4083, 7
      %v4085 = vsub.s32 %v4082, %v4084
      %v4086 = vrot.slane %v4078, %v4085
      %v4088 = vunpack.c.l.s4 1983009808
      %v4089 = vunpack.c.0.s8 %v4088
      %v4090 = vlaneseq
      %v4091 = vshrl.u32 %v4090, 7
      %v4092 = vsub.s32 %v4089, %v4091
      %v4093 = vrot.slane %v4079, %v4092
      %v4094 = vcombine.low %v4086, %v4093
      %v4095 = vcombine.low %v1783, %v1786
      %v4096 = vcombine.low %v1789, %v1792
      %v4098 = vunpack.c.l.s4 1983009808
      %v4099 = vunpack.c.0.s8 %v4098
      %v4100 = vlaneseq
      %v4101 = vshrl.u32 %v4100, 7
      %v4102 = vsub.s32 %v4099, %v4101
      %v4103 = vrot.slane %v4095, %v4102
      %v4105 = vunpack.c.l.s4 1983009808
      %v4106 = vunpack.c.0.s8 %v4105
      %v4107 = vlaneseq
      %v4108 = vshrl.u32 %v4107, 7
      %v4109 = vsub.s32 %v4106, %v4108
      %v4110 = vrot.slane %v4096, %v4109
      %v4111 = vcombine.low %v4103, %v4110
      %v4112 = vcombine.low %v1795, %v1798
      %v4113 = vcombine.low %v1801, %v3719
      %v4115 = vunpack.c.l.s4 1983009808
      %v4116 = vunpack.c.0.s8 %v4115
      %v4117 = vlaneseq
      %v4118 = vshrl.u32 %v4117, 7
      %v4119 = vsub.s32 %v4116, %v4118
      %v4120 = vrot.slane %v4112, %v4119
      %v4122 = vunpack.c.l.s4 1983009808
      %v4123 = vunpack.c.0.s8 %v4122
      %v4124 = vlaneseq
      %v4125 = vshrl.u32 %v4124, 7
      %v4126 = vsub.s32 %v4123, %v4125
      %v4127 = vrot.slane %v4113, %v4126
      %v4128 = vcombine.low %v4120, %v4127
      %v4129 = vcombine.low %v3722, %v3725
      %v4130 = vcombine.low %v3728, %v3731
      %v4132 = vunpack.c.l.s4 1983009808
      %v4133 = vunpack.c.0.s8 %v4132
      %v4134 = vlaneseq
      %v4135 = vshrl.u32 %v4134, 7
      %v4136 = vsub.s32 %v4133, %v4135
      %v4137 = vrot.slane %v4129, %v4136
      %v4139 = vunpack.c.l.s4 1983009808
      %v4140 = vunpack.c.0.s8 %v4139
      %v4141 = vlaneseq
      %v4142 = vshrl.u32 %v4141, 7
      %v4143 = vsub.s32 %v4140, %v4142
      %v4144 = vrot.slane %v4130, %v4143
      %v4145 = vcombine.low %v4137, %v4144
      %v4146 = vcombine.low %v3734, %v3737
      %v4148 = vunpack.c.l.s4 1983009808
      %v4149 = vunpack.c.0.s8 %v4148
      %v4150 = vlaneseq
      %v4151 = vshrl.u32 %v4150, 7
      %v4152 = vsub.s32 %v4149, %v4151
      %v4153 = vrot.slane %v4146, %v4152
      %v4179 = vpack.c.bf16 %v3771, %v3754
      %v4180 = vpack.c.bf16 %v3805, %v3788
      %v4181 = vpack.c.bf16 %v3839, %v3822
      %v4182 = vpack.c.bf16 %v3873, %v3856
      %v4183 = vpack.c.bf16 %v3907, %v3890
      %v4184 = vpack.c.bf16 %v3941, %v3924
      %v4185 = vpack.c.bf16 %v3975, %v3958
      %v4186 = vpack.c.bf16 %v4009, %v3992
      %v4187 = vpack.c.bf16 %v4043, %v4026
      %v4188 = vpack.c.bf16 %v4077, %v4060
      %v4189 = vpack.c.bf16 %v4111, %v4094
      %v4190 = vpack.c.bf16 %v4145, %v4128
      %v4191 = vpack.c.bf16 %v4153, %v4153
      %s4192 = scalar_lea.vmem %s1, 8
      %v4193 = vld [vmem:[%s4192] sm:$0x3]
      %v4195 = vsel %vm2258, %v4179, 0
      %v4198 = vsel %vm2258, %v4180, 0
      %v4201 = vsel %vm2258, %v4181, 0
      %v4204 = vsel %vm2258, %v4182, 0
      %v4207 = vsel %vm2258, %v4183, 0
      %v4210 = vsel %vm2258, %v4184, 0
      %v4213 = vsel %vm2258, %v4185, 0
      %v4216 = vsel %vm2258, %v4186, 0
      %v4219 = vsel %vm2258, %v4187, 0
      %v4222 = vsel %vm2258, %v4188, 0
      %v4225 = vsel %vm2258, %v4189, 0
      %v4228 = vsel %vm2258, %v4190, 0
      %v4231 = vsel %vm2258, %v4191, 0
      %v4234 = vand.u32 %v4193, %v2300
      %4236 = vmatprep.subr.bf16.mxu0 0
      %4237 = vmatpush1.bf16.msra.mxu0 %v4234
      %4238 = vmatprep.subr.bf16.mxu0 0
      %4239 = vmatpush1.bf16.msra.mxu0 0
      %4240 = vmatprep.subr.bf16.mxu0 0
      %4241 = vmatpush1.bf16.msra.mxu0 0
      %4242 = vmatprep.subr.bf16.mxu0 0
      %4243 = vmatpush1.bf16.msra.mxu0 0
      %4244 = vmatprep.subr.bf16.mxu0 0
      %4245 = vmatpush1.bf16.msra.mxu0 0
      %4246 = vmatprep.subr.bf16.mxu0 0
      %4247 = vmatpush1.bf16.msra.mxu0 0
      %4248 = vmatprep.subr.bf16.mxu0 0
      %4249 = vmatpush1.bf16.msra.mxu0 0
      %4250 = vmatprep.subr.bf16.mxu0 0
      %4251 = vmatpush1.bf16.msra.mxu0 0
      %4252 = vmatprep.subr.bf16.mxu0 0
      %4253 = vmatpush1.bf16.msra.mxu0 0
      %4254 = vmatprep.subr.bf16.mxu0 0
      %4255 = vmatpush1.bf16.msra.mxu0 0
      %4256 = vmatprep.subr.bf16.mxu0 0
      %4257 = vmatpush1.bf16.msra.mxu0 0
      %4258 = vmatprep.subr.bf16.mxu0 0
      %4259 = vmatpush1.bf16.msra.mxu0 0
      %4260 = vmatprep.subr.bf16.mxu0 0
      %4261 = vmatpush1.bf16.msra.mxu0 0
      %4262 = vmatprep.subr.bf16.mxu0 0
      %4263 = vmatpush1.bf16.msra.mxu0 0
      %4264 = vmatprep.subr.bf16.mxu0 0
      %4265 = vmatpush1.bf16.msra.mxu0 0
      %4266 = vmatprep.subr.bf16.mxu0 0
      %4267 = vmatpush1.bf16.msra.mxu0 0
      %4268 = vmatprep.mubr.bf16.mxu0 0
      %4269 = vmatmul.mubr.bf16.gmra.mrb[0].mxu0 %v4195
      %v4270 = vpop.f32.mrb[0].mxu0
      %v4271 = vadd.f32 0.0, %v4270
      %v4272 = vpop.f32.mrb[0].mxu0
      %v4273 = vpop.f32.mrb[0].mxu0
      %v4274 = vadd.f32 0.0, %v4273
      %v4275 = vpop.f32.mrb[0].mxu0
      %4276 = vmatprep.mubr.bf16.mxu0 0
      %4277 = vmatmul.mubr.bf16.gmra.mrb[0].mxu0 %v4198
      %v4278 = vpop.f32.mrb[0].mxu0
      %v4279 = vadd.f32 0.0, %v4278
      %v4280 = vpop.f32.mrb[0].mxu0
      %v4281 = vpop.f32.mrb[0].mxu0
      %v4282 = vadd.f32 0.0, %v4281
      %v4283 = vpop.f32.mrb[0].mxu0
      %4284 = vmatprep.mubr.bf16.mxu0 0
      %4285 = vmatmul.mubr.bf16.gmra.mrb[0].mxu0 %v4201
      %v4286 = vpop.f32.mrb[0].mxu0
      %v4287 = vadd.f32 0.0, %v4286
      %v4288 = vpop.f32.mrb[0].mxu0
      %v4289 = vpop.f32.mrb[0].mxu0
      %v4290 = vadd.f32 0.0, %v4289
      %v4291 = vpop.f32.mrb[0].mxu0
      %4292 = vmatprep.mubr.bf16.mxu0 0
      %4293 = vmatmul.mubr.bf16.gmra.mrb[0].mxu0 %v4204
      %v4294 = vpop.f32.mrb[0].mxu0
      %v4295 = vadd.f32 0.0, %v4294
      %v4296 = vpop.f32.mrb[0].mxu0
      %v4297 = vpop.f32.mrb[0].mxu0
      %v4298 = vadd.f32 0.0, %v4297
      %v4299 = vpop.f32.mrb[0].mxu0
      %4300 = vmatprep.mubr.bf16.mxu0 0
      %4301 = vmatmul.mubr.bf16.gmra.mrb[0].mxu0 %v4207
      %v4302 = vpop.f32.mrb[0].mxu0
      %v4303 = vadd.f32 0.0, %v4302
      %v4304 = vpop.f32.mrb[0].mxu0
      %v4305 = vpop.f32.mrb[0].mxu0
      %v4306 = vadd.f32 0.0, %v4305
      %v4307 = vpop.f32.mrb[0].mxu0
      %4308 = vmatprep.mubr.bf16.mxu0 0
      %4309 = vmatmul.mubr.bf16.gmra.mrb[0].mxu0 %v4210
      %v4310 = vpop.f32.mrb[0].mxu0
      %v4311 = vadd.f32 0.0, %v4310
      %v4312 = vpop.f32.mrb[0].mxu0
      %v4313 = vpop.f32.mrb[0].mxu0
      %v4314 = vadd.f32 0.0, %v4313
      %v4315 = vpop.f32.mrb[0].mxu0
      %4316 = vmatprep.mubr.bf16.mxu0 0
      %4317 = vmatmul.mubr.bf16.gmra.mrb[0].mxu0 %v4213
      %v4318 = vpop.f32.mrb[0].mxu0
      %v4319 = vadd.f32 0.0, %v4318
      %v4320 = vpop.f32.mrb[0].mxu0
      %v4321 = vpop.f32.mrb[0].mxu0
      %v4322 = vadd.f32 0.0, %v4321
      %v4323 = vpop.f32.mrb[0].mxu0
      %4324 = vmatprep.mubr.bf16.mxu0 0
      %4325 = vmatmul.mubr.bf16.gmra.mrb[0].mxu0 %v4216
      %v4326 = vpop.f32.mrb[0].mxu0
      %v4327 = vadd.f32 0.0, %v4326
      %v4328 = vpop.f32.mrb[0].mxu0
      %v4329 = vpop.f32.mrb[0].mxu0
      %v4330 = vadd.f32 0.0, %v4329
      %v4331 = vpop.f32.mrb[0].mxu0
      %4332 = vmatprep.mubr.bf16.mxu0 0
      %4333 = vmatmul.mubr.bf16.gmra.mrb[0].mxu0 %v4219
      %v4334 = vpop.f32.mrb[0].mxu0
      %v4335 = vadd.f32 0.0, %v4334
      %v4336 = vpop.f32.mrb[0].mxu0
      %v4337 = vpop.f32.mrb[0].mxu0
      %v4338 = vadd.f32 0.0, %v4337
      %v4339 = vpop.f32.mrb[0].mxu0
      %4340 = vmatprep.mubr.bf16.mxu0 0
      %4341 = vmatmul.mubr.bf16.gmra.mrb[0].mxu0 %v4222
      %v4342 = vpop.f32.mrb[0].mxu0
      %v4343 = vadd.f32 0.0, %v4342
      %v4344 = vpop.f32.mrb[0].mxu0
      %v4345 = vpop.f32.mrb[0].mxu0
      %v4346 = vadd.f32 0.0, %v4345
      %v4347 = vpop.f32.mrb[0].mxu0
      %4348 = vmatprep.mubr.bf16.mxu0 0
      %4349 = vmatmul.mubr.bf16.gmra.mrb[0].mxu0 %v4225
      %v4350 = vpop.f32.mrb[0].mxu0
      %v4351 = vadd.f32 0.0, %v4350
      %v4352 = vpop.f32.mrb[0].mxu0
      %v4353 = vpop.f32.mrb[0].mxu0
      %v4354 = vadd.f32 0.0, %v4353
      %v4355 = vpop.f32.mrb[0].mxu0
      %4356 = vmatprep.mubr.bf16.mxu0 0
      %4357 = vmatmul.mubr.bf16.gmra.mrb[0].mxu0 %v4228
      %v4358 = vpop.f32.mrb[0].mxu0
      %v4359 = vadd.f32 0.0, %v4358
      %v4360 = vpop.f32.mrb[0].mxu0
      %v4361 = vpop.f32.mrb[0].mxu0
      %v4362 = vadd.f32 0.0, %v4361
      %v4363 = vpop.f32.mrb[0].mxu0
      %4364 = vmatprep.mubr.bf16.mxu0 0
      %4365 = vmatmul.mubr.bf16.gmra.mrb[0].mxu0 %v4231
      %v4366 = vpop.f32.mrb[0].mxu0
      %v4367 = vadd.f32 0.0, %v4366
      %v4368 = vpop.f32.mrb[0].mxu0
      %v4369 = vpop.f32.mrb[0].mxu0
      %v4370 = vpop.f32.mrb[0].mxu0
      %4371 = vdwg.mxu0
      %v4372 = vadd.f32 %v3690, %v4271
      %v4373 = vadd.f32 %v3691, %v4274
      %v4374 = vadd.f32 %v3692, %v4279
      %v4375 = vadd.f32 %v3693, %v4282
      %v4376 = vadd.f32 %v3694, %v4287
      %v4377 = vadd.f32 %v3695, %v4290
      %v4378 = vadd.f32 %v3696, %v4295
      %v4379 = vadd.f32 %v3697, %v4298
      %v4380 = vadd.f32 %v3698, %v4303
      %v4381 = vadd.f32 %v3699, %v4306
      %v4382 = vadd.f32 %v3700, %v4311
      %v4383 = vadd.f32 %v3701, %v4314
      %v4384 = vadd.f32 %v3702, %v4319
      %v4385 = vadd.f32 %v3703, %v4322
      %v4386 = vadd.f32 %v3704, %v4327
      %v4387 = vadd.f32 %v3705, %v4330
      %v4388 = vadd.f32 %v3706, %v4335
      %v4389 = vadd.f32 %v3707, %v4338
      %v4390 = vadd.f32 %v3708, %v4343
      %v4391 = vadd.f32 %v3709, %v4346
      %v4392 = vadd.f32 %v3710, %v4351
      %v4393 = vadd.f32 %v3711, %v4354
      %v4394 = vadd.f32 %v3712, %v4359
      %v4395 = vadd.f32 %v3713, %v4362
      %v4396 = vadd.f32 %v3714, %v4367
      %v4397 = vcombine.low %v1474, %v637
      %v4399 = vunpack.c.l.s4 1983009808
      %v4400 = vunpack.c.0.s8 %v4399
      %v4401 = vlaneseq
      %v4402 = vshrl.u32 %v4401, 7
      %v4403 = vsub.s32 %v4400, %v4402
      %v4404 = vrot.slane %v4397, %v4403
      %v4405 = vcombine.low %v1077, %v4404
      %v4406 = vcombine.low %v653, %v1475
      %v4408 = vunpack.c.l.s4 1983009808
      %v4409 = vunpack.c.0.s8 %v4408
      %v4410 = vlaneseq
      %v4411 = vshrl.u32 %v4410, 7
      %v4412 = vsub.s32 %v4409, %v4411
      %v4413 = vrot.slane %v4406, %v4412
      %v4414 = vcombine.low %v4413, %v1118
      %v4415 = vcombine.low %v1476, %v703
      %v4417 = vunpack.c.l.s4 1983009808
      %v4418 = vunpack.c.0.s8 %v4417
      %v4419 = vlaneseq
      %v4420 = vshrl.u32 %v4419, 7
      %v4421 = vsub.s32 %v4418, %v4420
      %v4422 = vrot.slane %v4415, %v4421
      %v4423 = vcombine.low %v4422, %v1152
      %v4424 = vcombine.low %v719, %v1477
      %v4426 = vunpack.c.l.s4 1983009808
      %v4427 = vunpack.c.0.s8 %v4426
      %v4428 = vlaneseq
      %v4429 = vshrl.u32 %v4428, 7
      %v4430 = vsub.s32 %v4427, %v4429
      %v4431 = vrot.slane %v4424, %v4430
      %v4432 = vcombine.low %v1162, %v4431
      %v4433 = vcombine.low %v1478, %v769
      %v4435 = vunpack.c.l.s4 1983009808
      %v4436 = vunpack.c.0.s8 %v4435
      %v4437 = vlaneseq
      %v4438 = vshrl.u32 %v4437, 7
      %v4439 = vsub.s32 %v4436, %v4438
      %v4440 = vrot.slane %v4433, %v4439
      %v4441 = vcombine.low %v1196, %v4440
      %v4442 = vcombine.low %v785, %v1479
      %v4444 = vunpack.c.l.s4 1983009808
      %v4445 = vunpack.c.0.s8 %v4444
      %v4446 = vlaneseq
      %v4447 = vshrl.u32 %v4446, 7
      %v4448 = vsub.s32 %v4445, %v4447
      %v4449 = vrot.slane %v4442, %v4448
      %v4450 = vcombine.low %v4449, %v1237
      %v4451 = vcombine.low %v1480, %v835
      %v4453 = vunpack.c.l.s4 1983009808
      %v4454 = vunpack.c.0.s8 %v4453
      %v4455 = vlaneseq
      %v4456 = vshrl.u32 %v4455, 7
      %v4457 = vsub.s32 %v4454, %v4456
      %v4458 = vrot.slane %v4451, %v4457
      %v4459 = vcombine.low %v4458, %v1271
      %v4460 = vcombine.low %v851, %v1481
      %v4462 = vunpack.c.l.s4 1983009808
      %v4463 = vunpack.c.0.s8 %v4462
      %v4464 = vlaneseq
      %v4465 = vshrl.u32 %v4464, 7
      %v4466 = vsub.s32 %v4463, %v4465
      %v4467 = vrot.slane %v4460, %v4466
      %v4468 = vcombine.low %v1281, %v4467
      %v4469 = vcombine.low %v1482, %v901
      %v4471 = vunpack.c.l.s4 1983009808
      %v4472 = vunpack.c.0.s8 %v4471
      %v4473 = vlaneseq
      %v4474 = vshrl.u32 %v4473, 7
      %v4475 = vsub.s32 %v4472, %v4474
      %v4476 = vrot.slane %v4469, %v4475
      %v4477 = vcombine.low %v1315, %v4476
      %v4478 = vcombine.low %v917, %v1483
      %v4480 = vunpack.c.l.s4 1983009808
      %v4481 = vunpack.c.0.s8 %v4480
      %v4482 = vlaneseq
      %v4483 = vshrl.u32 %v4482, 7
      %v4484 = vsub.s32 %v4481, %v4483
      %v4485 = vrot.slane %v4478, %v4484
      %v4486 = vcombine.low %v4485, %v1356
      %v4487 = vcombine.low %v1484, %v967
      %v4489 = vunpack.c.l.s4 1983009808
      %v4490 = vunpack.c.0.s8 %v4489
      %v4491 = vlaneseq
      %v4492 = vshrl.u32 %v4491, 7
      %v4493 = vsub.s32 %v4490, %v4492
      %v4494 = vrot.slane %v4487, %v4493
      %v4495 = vcombine.low %v4494, %v1390
      %v4496 = vcombine.low %v983, %v1485
      %v4498 = vunpack.c.l.s4 1983009808
      %v4499 = vunpack.c.0.s8 %v4498
      %v4500 = vlaneseq
      %v4501 = vshrl.u32 %v4500, 7
      %v4502 = vsub.s32 %v4499, %v4501
      %v4503 = vrot.slane %v4496, %v4502
      %v4504 = vcombine.low %v1400, %v4503
      %v4505 = vcombine.low %v1486, %v3294
      %v4507 = vunpack.c.l.s4 1983009808
      %v4508 = vunpack.c.0.s8 %v4507
      %v4509 = vlaneseq
      %v4510 = vshrl.u32 %v4509, 7
      %v4511 = vsub.s32 %v4508, %v4510
      %v4512 = vrot.slane %v4505, %v4511
      %v4513 = vcombine.low %v1433, %v4512
      %v4514 = vcombine.low %v3293, %v3295
      %v4515 = vcombine.low %v3303, %v3311
      %v4517 = vunpack.c.l.s4 1983009808
      %v4518 = vunpack.c.0.s8 %v4517
      %v4519 = vlaneseq
      %v4520 = vshrl.u32 %v4519, 7
      %v4521 = vsub.s32 %v4518, %v4520
      %v4522 = vrot.slane %v4514, %v4521
      %v4524 = vunpack.c.l.s4 1983009808
      %v4525 = vunpack.c.0.s8 %v4524
      %v4526 = vlaneseq
      %v4527 = vshrl.u32 %v4526, 7
      %v4528 = vsub.s32 %v4525, %v4527
      %v4529 = vrot.slane %v4515, %v4528
      %v4530 = vcombine.low %v4522, %v4529
      %v4531 = vcombine.low %v3310, %v3715
      %v4533 = vunpack.c.l.s4 1983009808
      %v4534 = vunpack.c.0.s8 %v4533
      %v4535 = vlaneseq
      %v4536 = vshrl.u32 %v4535, 7
      %v4537 = vsub.s32 %v4534, %v4536
      %v4538 = vrot.slane %v4531, %v4537
      %v4554 = vpack.c.bf16 %v4405, %v1068
      %v4555 = vpack.c.bf16 %v4414, %v1102
      %v4556 = vpack.c.bf16 %v4423, %v1136
      %v4557 = vpack.c.bf16 %v1187, %v4432
      %v4558 = vpack.c.bf16 %v1221, %v4441
      %v4559 = vpack.c.bf16 %v1255, %v4450
      %v4560 = vpack.c.bf16 %v4468, %v4459
      %v4561 = vpack.c.bf16 %v4477, %v1306
      %v4562 = vpack.c.bf16 %v4486, %v1340
      %v4563 = vpack.c.bf16 %v4495, %v1374
      %v4564 = vpack.c.bf16 %v1425, %v4504
      %v4565 = vpack.c.bf16 %v4530, %v4513
      %v4566 = vpack.c.bf16 %v4538, %v4538
      %s4567 = scalar_lea.vmem %s1, 10
      %v4568 = vld [vmem:[%s4567] sm:$0x3]
      %v4570 = vsel %vm2258, %v4554, 0
      %v4573 = vsel %vm2258, %v4555, 0
      %v4576 = vsel %vm2258, %v4556, 0
      %v4579 = vsel %vm2258, %v4557, 0
      %v4582 = vsel %vm2258, %v4558, 0
      %v4585 = vsel %vm2258, %v4559, 0
      %v4588 = vsel %vm2258, %v4560, 0
      %v4591 = vsel %vm2258, %v4561, 0
      %v4594 = vsel %vm2258, %v4562, 0
      %v4597 = vsel %vm2258, %v4563, 0
      %v4600 = vsel %vm2258, %v4564, 0
      %v4603 = vsel %vm2258, %v4565, 0
      %v4606 = vsel %vm2258, %v4566, 0
      %v4609 = vand.u32 %v4568, %v2300
      %4611 = vmatprep.subr.bf16.mxu0 0
      %4612 = vmatpush1.bf16.msra.mxu0 %v4609
      %4613 = vmatprep.subr.bf16.mxu0 0
      %4614 = vmatpush1.bf16.msra.mxu0 0
      %4615 = vmatprep.subr.bf16.mxu0 0
      %4616 = vmatpush1.bf16.msra.mxu0 0
      %4617 = vmatprep.subr.bf16.mxu0 0
      %4618 = vmatpush1.bf16.msra.mxu0 0
      %4619 = vmatprep.subr.bf16.mxu0 0
      %4620 = vmatpush1.bf16.msra.mxu0 0
      %4621 = vmatprep.subr.bf16.mxu0 0
      %4622 = vmatpush1.bf16.msra.mxu0 0
      %4623 = vmatprep.subr.bf16.mxu0 0
      %4624 = vmatpush1.bf16.msra.mxu0 0
      %4625 = vmatprep.subr.bf16.mxu0 0
      %4626 = vmatpush1.bf16.msra.mxu0 0
      %4627 = vmatprep.subr.bf16.mxu0 0
      %4628 = vmatpush1.bf16.msra.mxu0 0
      %4629 = vmatprep.subr.bf16.mxu0 0
      %4630 = vmatpush1.bf16.msra.mxu0 0
      %4631 = vmatprep.subr.bf16.mxu0 0
      %4632 = vmatpush1.bf16.msra.mxu0 0
      %4633 = vmatprep.subr.bf16.mxu0 0
      %4634 = vmatpush1.bf16.msra.mxu0 0
      %4635 = vmatprep.subr.bf16.mxu0 0
      %4636 = vmatpush1.bf16.msra.mxu0 0
      %4637 = vmatprep.subr.bf16.mxu0 0
      %4638 = vmatpush1.bf16.msra.mxu0 0
      %4639 = vmatprep.subr.bf16.mxu0 0
      %4640 = vmatpush1.bf16.msra.mxu0 0
      %4641 = vmatprep.subr.bf16.mxu0 0
      %4642 = vmatpush1.bf16.msra.mxu0 0
      %4643 = vmatprep.mubr.bf16.mxu0 0
      %4644 = vmatmul.mubr.bf16.gmra.mrb[0].mxu0 %v4570
      %v4645 = vpop.f32.mrb[0].mxu0
      %v4646 = vadd.f32 0.0, %v4645
      %v4647 = vpop.f32.mrb[0].mxu0
      %v4648 = vpop.f32.mrb[0].mxu0
      %v4649 = vadd.f32 0.0, %v4648
      %v4650 = vpop.f32.mrb[0].mxu0
      %4651 = vmatprep.mubr.bf16.mxu0 0
      %4652 = vmatmul.mubr.bf16.gmra.mrb[0].mxu0 %v4573
      %v4653 = vpop.f32.mrb[0].mxu0
      %v4654 = vadd.f32 0.0, %v4653
      %v4655 = vpop.f32.mrb[0].mxu0
      %v4656 = vpop.f32.mrb[0].mxu0
      %v4657 = vadd.f32 0.0, %v4656
      %v4658 = vpop.f32.mrb[0].mxu0
      %4659 = vmatprep.mubr.bf16.mxu0 0
      %4660 = vmatmul.mubr.bf16.gmra.mrb[0].mxu0 %v4576
      %v4661 = vpop.f32.mrb[0].mxu0
      %v4662 = vadd.f32 0.0, %v4661
      %v4663 = vpop.f32.mrb[0].mxu0
      %v4664 = vpop.f32.mrb[0].mxu0
      %v4665 = vadd.f32 0.0, %v4664
      %v4666 = vpop.f32.mrb[0].mxu0
      %4667 = vmatprep.mubr.bf16.mxu0 0
      %4668 = vmatmul.mubr.bf16.gmra.mrb[0].mxu0 %v4579
      %v4669 = vpop.f32.mrb[0].mxu0
      %v4670 = vadd.f32 0.0, %v4669
      %v4671 = vpop.f32.mrb[0].mxu0
      %v4672 = vpop.f32.mrb[0].mxu0
      %v4673 = vadd.f32 0.0, %v4672
      %v4674 = vpop.f32.mrb[0].mxu0
      %4675 = vmatprep.mubr.bf16.mxu0 0
      %4676 = vmatmul.mubr.bf16.gmra.mrb[0].mxu0 %v4582
      %v4677 = vpop.f32.mrb[0].mxu0
      %v4678 = vadd.f32 0.0, %v4677
      %v4679 = vpop.f32.mrb[0].mxu0
      %v4680 = vpop.f32.mrb[0].mxu0
      %v4681 = vadd.f32 0.0, %v4680
      %v4682 = vpop.f32.mrb[0].mxu0
      %4683 = vmatprep.mubr.bf16.mxu0 0
      %4684 = vmatmul.mubr.bf16.gmra.mrb[0].mxu0 %v4585
      %v4685 = vpop.f32.mrb[0].mxu0
      %v4686 = vadd.f32 0.0, %v4685
      %v4687 = vpop.f32.mrb[0].mxu0
      %v4688 = vpop.f32.mrb[0].mxu0
      %v4689 = vadd.f32 0.0, %v4688
      %v4690 = vpop.f32.mrb[0].mxu0
      %4691 = vmatprep.mubr.bf16.mxu0 0
      %4692 = vmatmul.mubr.bf16.gmra.mrb[0].mxu0 %v4588
      %v4693 = vpop.f32.mrb[0].mxu0
      %v4694 = vadd.f32 0.0, %v4693
      %v4695 = vpop.f32.mrb[0].mxu0
      %v4696 = vpop.f32.mrb[0].mxu0
      %v4697 = vadd.f32 0.0, %v4696
      %v4698 = vpop.f32.mrb[0].mxu0
      %4699 = vmatprep.mubr.bf16.mxu0 0
      %4700 = vmatmul.mubr.bf16.gmra.mrb[0].mxu0 %v4591
      %v4701 = vpop.f32.mrb[0].mxu0
      %v4702 = vadd.f32 0.0, %v4701
      %v4703 = vpop.f32.mrb[0].mxu0
      %v4704 = vpop.f32.mrb[0].mxu0
      %v4705 = vadd.f32 0.0, %v4704
      %v4706 = vpop.f32.mrb[0].mxu0
      %4707 = vmatprep.mubr.bf16.mxu0 0
      %4708 = vmatmul.mubr.bf16.gmra.mrb[0].mxu0 %v4594
      %v4709 = vpop.f32.mrb[0].mxu0
      %v4710 = vadd.f32 0.0, %v4709
      %v4711 = vpop.f32.mrb[0].mxu0
      %v4712 = vpop.f32.mrb[0].mxu0
      %v4713 = vadd.f32 0.0, %v4712
      %v4714 = vpop.f32.mrb[0].mxu0
      %4715 = vmatprep.mubr.bf16.mxu0 0
      %4716 = vmatmul.mubr.bf16.gmra.mrb[0].mxu0 %v4597
      %v4717 = vpop.f32.mrb[0].mxu0
      %v4718 = vadd.f32 0.0, %v4717
      %v4719 = vpop.f32.mrb[0].mxu0
      %v4720 = vpop.f32.mrb[0].mxu0
      %v4721 = vadd.f32 0.0, %v4720
      %v4722 = vpop.f32.mrb[0].mxu0
      %4723 = vmatprep.mubr.bf16.mxu0 0
      %4724 = vmatmul.mubr.bf16.gmra.mrb[0].mxu0 %v4600
      %v4725 = vpop.f32.mrb[0].mxu0
      %v4726 = vadd.f32 0.0, %v4725
      %v4727 = vpop.f32.mrb[0].mxu0
      %v4728 = vpop.f32.mrb[0].mxu0
      %v4729 = vadd.f32 0.0, %v4728
      %v4730 = vpop.f32.mrb[0].mxu0
      %4731 = vmatprep.mubr.bf16.mxu0 0
      %4732 = vmatmul.mubr.bf16.gmra.mrb[0].mxu0 %v4603
      %v4733 = vpop.f32.mrb[0].mxu0
      %v4734 = vadd.f32 0.0, %v4733
      %v4735 = vpop.f32.mrb[0].mxu0
      %v4736 = vpop.f32.mrb[0].mxu0
      %v4737 = vadd.f32 0.0, %v4736
      %v4738 = vpop.f32.mrb[0].mxu0
      %4739 = vmatprep.mubr.bf16.mxu0 0
      %4740 = vmatmul.mubr.bf16.gmra.mrb[0].mxu0 %v4606
      %v4741 = vpop.f32.mrb[0].mxu0
      %v4742 = vadd.f32 0.0, %v4741
      %v4743 = vpop.f32.mrb[0].mxu0
      %v4744 = vpop.f32.mrb[0].mxu0
      %v4745 = vpop.f32.mrb[0].mxu0
      %4746 = vdwg.mxu0
      %v4747 = vadd.f32 %v4372, %v4646
      %v4748 = vadd.f32 %v4373, %v4649
      %v4749 = vadd.f32 %v4374, %v4654
      %v4750 = vadd.f32 %v4375, %v4657
      %v4751 = vadd.f32 %v4376, %v4662
      %v4752 = vadd.f32 %v4377, %v4665
      %v4753 = vadd.f32 %v4378, %v4670
      %v4754 = vadd.f32 %v4379, %v4673
      %v4755 = vadd.f32 %v4380, %v4678
      %v4756 = vadd.f32 %v4381, %v4681
      %v4757 = vadd.f32 %v4382, %v4686
      %v4758 = vadd.f32 %v4383, %v4689
      %v4759 = vadd.f32 %v4384, %v4694
      %v4760 = vadd.f32 %v4385, %v4697
      %v4761 = vadd.f32 %v4386, %v4702
      %v4762 = vadd.f32 %v4387, %v4705
      %v4763 = vadd.f32 %v4388, %v4710
      %v4764 = vadd.f32 %v4389, %v4713
      %v4765 = vadd.f32 %v4390, %v4718
      %v4766 = vadd.f32 %v4391, %v4721
      %v4767 = vadd.f32 %v4392, %v4726
      %v4768 = vadd.f32 %v4393, %v4729
      %v4769 = vadd.f32 %v4394, %v4734
      %v4770 = vadd.f32 %v4395, %v4737
      %v4771 = vadd.f32 %v4396, %v4742
      %v4774 = vcombine.high %v526, %v526
      %v4776 = vunpack.c.l.s4 1983009808
      %v4777 = vunpack.c.0.s8 %v4776
      %v4778 = vlaneseq
      %v4779 = vshrl.u32 %v4778, 7
      %v4780 = vsub.s32 %v4777, %v4779
      %v4781 = vrot.slane %v526, %v4780
      %v4783 = vunpack.c.l.s4 1983009808
      %v4784 = vunpack.c.0.s8 %v4783
      %v4785 = vlaneseq
      %v4786 = vshrl.u32 %v4785, 7
      %v4787 = vsub.s32 %v4784, %v4786
      %v4788 = vrot.slane %v4774, %v4787
      %v4789 = vcombine.high %v4781, %v4781
      %v4790 = vcombine.high %v4788, %v4788
      %v4791 = vcombine.high %v527, %v527
      %v4793 = vunpack.c.l.s4 1983009808
      %v4794 = vunpack.c.0.s8 %v4793
      %v4795 = vlaneseq
      %v4796 = vshrl.u32 %v4795, 7
      %v4797 = vsub.s32 %v4794, %v4796
      %v4798 = vrot.slane %v527, %v4797
      %v4800 = vunpack.c.l.s4 1983009808
      %v4801 = vunpack.c.0.s8 %v4800
      %v4802 = vlaneseq
      %v4803 = vshrl.u32 %v4802, 7
      %v4804 = vsub.s32 %v4801, %v4803
      %v4805 = vrot.slane %v4791, %v4804
      %v4806 = vcombine.high %v4798, %v4798
      %v4807 = vcombine.low %v1084, %v1094
      %v4808 = vcombine.low %v1101, %v1111
      %v4809 = vcombine.low %v1118, %v1128
      %v4810 = vcombine.low %v1135, %v1145
      %v4811 = vcombine.low %v1152, %v1162
      %v4812 = vcombine.low %v1169, %v1179
      %v4813 = vcombine.low %v1186, %v1196
      %v4814 = vcombine.low %v1203, %v1213
      %v4815 = vcombine.low %v1220, %v1230
      %v4816 = vcombine.low %v1237, %v1247
      %v4817 = vcombine.low %v1254, %v1264
      %v4818 = vcombine.low %v1271, %v1281
      %v4819 = vcombine.low %v1288, %v1298
      %v4820 = vcombine.low %v1305, %v1315
      %v4821 = vcombine.low %v1322, %v1332
      %v4822 = vcombine.low %v1339, %v1349
      %v4823 = vcombine.low %v1356, %v1366
      %v4824 = vcombine.low %v1373, %v1383
      %v4825 = vcombine.low %v1390, %v1400
      %v4826 = vcombine.low %v1407, %v1417
      %v4827 = vcombine.low %v1424, %v1433
      %v4828 = vcombine.low %v3286, %v3294
      %v4830 = vunpack.c.l.s4 1983009808
      %v4831 = vunpack.c.0.s8 %v4830
      %v4832 = vlaneseq
      %v4833 = vshrl.u32 %v4832, 7
      %v4834 = vsub.s32 %v4831, %v4833
      %v4835 = vrot.slane %v4828, %v4834
      %v4836 = vcombine.low %v4835, %v4522
      %v4837 = vcombine.low %v3310, %v4781
      %v4839 = vunpack.c.l.s4 1983009808
      %v4840 = vunpack.c.0.s8 %v4839
      %v4841 = vlaneseq
      %v4842 = vshrl.u32 %v4841, 7
      %v4843 = vsub.s32 %v4840, %v4842
      %v4844 = vrot.slane %v4837, %v4843
      %v4845 = vcombine.low %v4529, %v4844
      %v4846 = vcombine.low %v4789, %v4788
      %v4847 = vcombine.low %v4790, %v4798
      %v4849 = vunpack.c.l.s4 1983009808
      %v4850 = vunpack.c.0.s8 %v4849
      %v4851 = vlaneseq
      %v4852 = vshrl.u32 %v4851, 7
      %v4853 = vsub.s32 %v4850, %v4852
      %v4854 = vrot.slane %v4846, %v4853
      %v4856 = vunpack.c.l.s4 1983009808
      %v4857 = vunpack.c.0.s8 %v4856
      %v4858 = vlaneseq
      %v4859 = vshrl.u32 %v4858, 7
      %v4860 = vsub.s32 %v4857, %v4859
      %v4861 = vrot.slane %v4847, %v4860
      %v4862 = vcombine.low %v4854, %v4861
      %v4863 = vcombine.low %v4806, %v4805
      %v4865 = vunpack.c.l.s4 1983009808
      %v4866 = vunpack.c.0.s8 %v4865
      %v4867 = vlaneseq
      %v4868 = vshrl.u32 %v4867, 7
      %v4869 = vsub.s32 %v4866, %v4868
      %v4870 = vrot.slane %v4863, %v4869
      %v4896 = vpack.c.bf16 %v4808, %v4807
      %v4897 = vpack.c.bf16 %v4810, %v4809
      %v4898 = vpack.c.bf16 %v4812, %v4811
      %v4899 = vpack.c.bf16 %v4814, %v4813
      %v4900 = vpack.c.bf16 %v4816, %v4815
      %v4901 = vpack.c.bf16 %v4818, %v4817
      %v4902 = vpack.c.bf16 %v4820, %v4819
      %v4903 = vpack.c.bf16 %v4822, %v4821
      %v4904 = vpack.c.bf16 %v4824, %v4823
      %v4905 = vpack.c.bf16 %v4826, %v4825
      %v4906 = vpack.c.bf16 %v4836, %v4827
      %v4907 = vpack.c.bf16 %v4862, %v4845
      %v4908 = vpack.c.bf16 %v4870, %v4870
      %s4909 = scalar_lea.vmem %s1, 12
      %v4910 = vld [vmem:[%s4909] sm:$0x3]
      %v4912 = vsel %vm2258, %v4896, 0
      %v4915 = vsel %vm2258, %v4897, 0
      %v4918 = vsel %vm2258, %v4898, 0
      %v4921 = vsel %vm2258, %v4899, 0
      %v4924 = vsel %vm2258, %v4900, 0
      %v4927 = vsel %vm2258, %v4901, 0
      %v4930 = vsel %vm2258, %v4902, 0
      %v4933 = vsel %vm2258, %v4903, 0
      %v4936 = vsel %vm2258, %v4904, 0
      %v4939 = vsel %vm2258, %v4905, 0
      %v4942 = vsel %vm2258, %v4906, 0
      %v4945 = vsel %vm2258, %v4907, 0
      %v4948 = vsel %vm2258, %v4908, 0
      %v4951 = vand.u32 %v4910, %v2300
      %4953 = vmatprep.subr.bf16.mxu0 0
      %4954 = vmatpush1.bf16.msra.mxu0 %v4951
      %4955 = vmatprep.subr.bf16.mxu0 0
      %4956 = vmatpush1.bf16.msra.mxu0 0
      %4957 = vmatprep.subr.bf16.mxu0 0
      %4958 = vmatpush1.bf16.msra.mxu0 0
      %4959 = vmatprep.subr.bf16.mxu0 0
      %4960 = vmatpush1.bf16.msra.mxu0 0
      %4961 = vmatprep.subr.bf16.mxu0 0
      %4962 = vmatpush1.bf16.msra.mxu0 0
      %4963 = vmatprep.subr.bf16.mxu0 0
      %4964 = vmatpush1.bf16.msra.mxu0 0
      %4965 = vmatprep.subr.bf16.mxu0 0
      %4966 = vmatpush1.bf16.msra.mxu0 0
      %4967 = vmatprep.subr.bf16.mxu0 0
      %4968 = vmatpush1.bf16.msra.mxu0 0
      %4969 = vmatprep.subr.bf16.mxu0 0
      %4970 = vmatpush1.bf16.msra.mxu0 0
      %4971 = vmatprep.subr.bf16.mxu0 0
      %4972 = vmatpush1.bf16.msra.mxu0 0
      %4973 = vmatprep.subr.bf16.mxu0 0
      %4974 = vmatpush1.bf16.msra.mxu0 0
      %4975 = vmatprep.subr.bf16.mxu0 0
      %4976 = vmatpush1.bf16.msra.mxu0 0
      %4977 = vmatprep.subr.bf16.mxu0 0
      %4978 = vmatpush1.bf16.msra.mxu0 0
      %4979 = vmatprep.subr.bf16.mxu0 0
      %4980 = vmatpush1.bf16.msra.mxu0 0
      %4981 = vmatprep.subr.bf16.mxu0 0
      %4982 = vmatpush1.bf16.msra.mxu0 0
      %4983 = vmatprep.subr.bf16.mxu0 0
      %4984 = vmatpush1.bf16.msra.mxu0 0
      %4985 = vmatprep.mubr.bf16.mxu0 0
      %4986 = vmatmul.mubr.bf16.gmra.mrb[0].mxu0 %v4912
      %v4987 = vpop.f32.mrb[0].mxu0
      %v4988 = vadd.f32 0.0, %v4987
      %v4989 = vpop.f32.mrb[0].mxu0
      %v4990 = vpop.f32.mrb[0].mxu0
      %v4991 = vadd.f32 0.0, %v4990
      %v4992 = vpop.f32.mrb[0].mxu0
      %4993 = vmatprep.mubr.bf16.mxu0 0
      %4994 = vmatmul.mubr.bf16.gmra.mrb[0].mxu0 %v4915
      %v4995 = vpop.f32.mrb[0].mxu0
      %v4996 = vadd.f32 0.0, %v4995
      %v4997 = vpop.f32.mrb[0].mxu0
      %v4998 = vpop.f32.mrb[0].mxu0
      %v4999 = vadd.f32 0.0, %v4998
      %v5000 = vpop.f32.mrb[0].mxu0
      %5001 = vmatprep.mubr.bf16.mxu0 0
      %5002 = vmatmul.mubr.bf16.gmra.mrb[0].mxu0 %v4918
      %v5003 = vpop.f32.mrb[0].mxu0
      %v5004 = vadd.f32 0.0, %v5003
      %v5005 = vpop.f32.mrb[0].mxu0
      %v5006 = vpop.f32.mrb[0].mxu0
      %v5007 = vadd.f32 0.0, %v5006
      %v5008 = vpop.f32.mrb[0].mxu0
      %5009 = vmatprep.mubr.bf16.mxu0 0
      %5010 = vmatmul.mubr.bf16.gmra.mrb[0].mxu0 %v4921
      %v5011 = vpop.f32.mrb[0].mxu0
      %v5012 = vadd.f32 0.0, %v5011
      %v5013 = vpop.f32.mrb[0].mxu0
      %v5014 = vpop.f32.mrb[0].mxu0
      %v5015 = vadd.f32 0.0, %v5014
      %v5016 = vpop.f32.mrb[0].mxu0
      %5017 = vmatprep.mubr.bf16.mxu0 0
      %5018 = vmatmul.mubr.bf16.gmra.mrb[0].mxu0 %v4924
      %v5019 = vpop.f32.mrb[0].mxu0
      %v5020 = vadd.f32 0.0, %v5019
      %v5021 = vpop.f32.mrb[0].mxu0
      %v5022 = vpop.f32.mrb[0].mxu0
      %v5023 = vadd.f32 0.0, %v5022
      %v5024 = vpop.f32.mrb[0].mxu0
      %5025 = vmatprep.mubr.bf16.mxu0 0
      %5026 = vmatmul.mubr.bf16.gmra.mrb[0].mxu0 %v4927
      %v5027 = vpop.f32.mrb[0].mxu0
      %v5028 = vadd.f32 0.0, %v5027
      %v5029 = vpop.f32.mrb[0].mxu0
      %v5030 = vpop.f32.mrb[0].mxu0
      %v5031 = vadd.f32 0.0, %v5030
      %v5032 = vpop.f32.mrb[0].mxu0
      %5033 = vmatprep.mubr.bf16.mxu0 0
      %5034 = vmatmul.mubr.bf16.gmra.mrb[0].mxu0 %v4930
      %v5035 = vpop.f32.mrb[0].mxu0
      %v5036 = vadd.f32 0.0, %v5035
      %v5037 = vpop.f32.mrb[0].mxu0
      %v5038 = vpop.f32.mrb[0].mxu0
      %v5039 = vadd.f32 0.0, %v5038
      %v5040 = vpop.f32.mrb[0].mxu0
      %5041 = vmatprep.mubr.bf16.mxu0 0
      %5042 = vmatmul.mubr.bf16.gmra.mrb[0].mxu0 %v4933
      %v5043 = vpop.f32.mrb[0].mxu0
      %v5044 = vadd.f32 0.0, %v5043
      %v5045 = vpop.f32.mrb[0].mxu0
      %v5046 = vpop.f32.mrb[0].mxu0
      %v5047 = vadd.f32 0.0, %v5046
      %v5048 = vpop.f32.mrb[0].mxu0
      %5049 = vmatprep.mubr.bf16.mxu0 0
      %5050 = vmatmul.mubr.bf16.gmra.mrb[0].mxu0 %v4936
      %v5051 = vpop.f32.mrb[0].mxu0
      %v5052 = vadd.f32 0.0, %v5051
      %v5053 = vpop.f32.mrb[0].mxu0
      %v5054 = vpop.f32.mrb[0].mxu0
      %v5055 = vadd.f32 0.0, %v5054
      %v5056 = vpop.f32.mrb[0].mxu0
      %5057 = vmatprep.mubr.bf16.mxu0 0
      %5058 = vmatmul.mubr.bf16.gmra.mrb[0].mxu0 %v4939
      %v5059 = vpop.f32.mrb[0].mxu0
      %v5060 = vadd.f32 0.0, %v5059
      %v5061 = vpop.f32.mrb[0].mxu0
      %v5062 = vpop.f32.mrb[0].mxu0
      %v5063 = vadd.f32 0.0, %v5062
      %v5064 = vpop.f32.mrb[0].mxu0
      %5065 = vmatprep.mubr.bf16.mxu0 0
      %5066 = vmatmul.mubr.bf16.gmra.mrb[0].mxu0 %v4942
      %v5067 = vpop.f32.mrb[0].mxu0
      %v5068 = vadd.f32 0.0, %v5067
      %v5069 = vpop.f32.mrb[0].mxu0
      %v5070 = vpop.f32.mrb[0].mxu0
      %v5071 = vadd.f32 0.0, %v5070
      %v5072 = vpop.f32.mrb[0].mxu0
      %5073 = vmatprep.mubr.bf16.mxu0 0
      %5074 = vmatmul.mubr.bf16.gmra.mrb[0].mxu0 %v4945
      %v5075 = vpop.f32.mrb[0].mxu0
      %v5076 = vadd.f32 0.0, %v5075
      %v5077 = vpop.f32.mrb[0].mxu0
      %v5078 = vpop.f32.mrb[0].mxu0
      %v5079 = vadd.f32 0.0, %v5078
      %v5080 = vpop.f32.mrb[0].mxu0
      %5081 = vmatprep.mubr.bf16.mxu0 0
      %5082 = vmatmul.mubr.bf16.gmra.mrb[0].mxu0 %v4948
      %v5083 = vpop.f32.mrb[0].mxu0
      %v5084 = vadd.f32 0.0, %v5083
      %v5085 = vpop.f32.mrb[0].mxu0
      %v5086 = vpop.f32.mrb[0].mxu0
      %v5087 = vpop.f32.mrb[0].mxu0
      %5088 = vdwg.mxu0
      %v5089 = vadd.f32 %v4747, %v4988
      %v5090 = vadd.f32 %v4748, %v4991
      %v5091 = vadd.f32 %v4749, %v4996
      %v5092 = vadd.f32 %v4750, %v4999
      %v5093 = vadd.f32 %v4751, %v5004
      %v5094 = vadd.f32 %v4752, %v5007
      %v5095 = vadd.f32 %v4753, %v5012
      %v5096 = vadd.f32 %v4754, %v5015
      %v5097 = vadd.f32 %v4755, %v5020
      %v5098 = vadd.f32 %v4756, %v5023
      %v5099 = vadd.f32 %v4757, %v5028
      %v5100 = vadd.f32 %v4758, %v5031
      %v5101 = vadd.f32 %v4759, %v5036
      %v5102 = vadd.f32 %v4760, %v5039
      %v5103 = vadd.f32 %v4761, %v5044
      %v5104 = vadd.f32 %v4762, %v5047
      %v5105 = vadd.f32 %v4763, %v5052
      %v5106 = vadd.f32 %v4764, %v5055
      %v5107 = vadd.f32 %v4765, %v5060
      %v5108 = vadd.f32 %v4766, %v5063
      %v5109 = vadd.f32 %v4767, %v5068
      %v5110 = vadd.f32 %v4768, %v5071
      %v5111 = vadd.f32 %v4769, %v5076
      %v5112 = vadd.f32 %v4770, %v5079
      %v5113 = vadd.f32 %v4771, %v5084
      %v5114 = vcombine.high %v4805, %v4805
      %v5115 = vrot.slane %v4781, 7
      %v5116 = vrot.slane %v5115, 2
      %v5117 = vrot.slane %v4789, 7
      %v5118 = vsel %vm1493, %v5116, %v5117
      %v5119 = vrot.slane %v5117, 2
      %v5120 = vrot.slane %v4788, 7
      %v5121 = vsel %vm1493, %v5119, %v5120
      %v5122 = vrot.slane %v5120, 2
      %v5123 = vrot.slane %v4790, 7
      %v5124 = vsel %vm1493, %v5122, %v5123
      %v5125 = vrot.slane %v5123, 2
      %v5126 = vrot.slane %v4798, 7
      %v5127 = vsel %vm1493, %v5125, %v5126
      %v5128 = vrot.slane %v5126, 2
      %v5129 = vrot.slane %v4806, 7
      %v5130 = vsel %vm1493, %v5128, %v5129
      %v5131 = vrot.slane %v5129, 2
      %v5132 = vrot.slane %v4805, 7
      %v5133 = vsel %vm1493, %v5131, %v5132
      %v5134 = vrot.slane %v5132, 2
      %v5135 = vrot.slane %v5114, 7
      %v5136 = vsel %vm1493, %v5134, %v5135
      %v5137 = vcombine.low %v1868, %v1878
      %v5138 = vcombine.low %v1885, %v1895
      %v5139 = vcombine.low %v1902, %v1912
      %v5140 = vcombine.low %v1919, %v1929
      %v5141 = vcombine.low %v1936, %v1946
      %v5142 = vcombine.low %v1953, %v1963
      %v5143 = vcombine.low %v1970, %v1980
      %v5144 = vcombine.low %v1987, %v1997
      %v5145 = vcombine.low %v2004, %v2014
      %v5146 = vcombine.low %v2021, %v2031
      %v5147 = vcombine.low %v2038, %v2048
      %v5148 = vcombine.low %v2055, %v2065
      %v5149 = vcombine.low %v2072, %v2082
      %v5150 = vcombine.low %v2089, %v2099
      %v5151 = vcombine.low %v2106, %v2116
      %v5152 = vcombine.low %v2123, %v2133
      %v5153 = vcombine.low %v2140, %v2150
      %v5154 = vcombine.low %v2157, %v2167
      %v5155 = vcombine.low %v2174, %v2184
      %v5156 = vcombine.low %v2191, %v2201
      %v5157 = vcombine.low %v2208, %v2217
      %v5158 = vcombine.low %v3719, %v3722
      %v5159 = vcombine.low %v3725, %v3728
      %v5161 = vunpack.c.l.s4 1983009808
      %v5162 = vunpack.c.0.s8 %v5161
      %v5163 = vlaneseq
      %v5164 = vshrl.u32 %v5163, 7
      %v5165 = vsub.s32 %v5162, %v5164
      %v5166 = vrot.slane %v5158, %v5165
      %v5168 = vunpack.c.l.s4 1983009808
      %v5169 = vunpack.c.0.s8 %v5168
      %v5170 = vlaneseq
      %v5171 = vshrl.u32 %v5170, 7
      %v5172 = vsub.s32 %v5169, %v5171
      %v5173 = vrot.slane %v5159, %v5172
      %v5174 = vcombine.low %v5166, %v5173
      %v5175 = vcombine.low %v3731, %v3734
      %v5176 = vcombine.low %v3737, %v5118
      %v5178 = vunpack.c.l.s4 1983009808
      %v5179 = vunpack.c.0.s8 %v5178
      %v5180 = vlaneseq
      %v5181 = vshrl.u32 %v5180, 7
      %v5182 = vsub.s32 %v5179, %v5181
      %v5183 = vrot.slane %v5175, %v5182
      %v5185 = vunpack.c.l.s4 1983009808
      %v5186 = vunpack.c.0.s8 %v5185
      %v5187 = vlaneseq
      %v5188 = vshrl.u32 %v5187, 7
      %v5189 = vsub.s32 %v5186, %v5188
      %v5190 = vrot.slane %v5176, %v5189
      %v5191 = vcombine.low %v5183, %v5190
      %v5192 = vcombine.low %v5121, %v5124
      %v5193 = vcombine.low %v5127, %v5130
      %v5195 = vunpack.c.l.s4 1983009808
      %v5196 = vunpack.c.0.s8 %v5195
      %v5197 = vlaneseq
      %v5198 = vshrl.u32 %v5197, 7
      %v5199 = vsub.s32 %v5196, %v5198
      %v5200 = vrot.slane %v5192, %v5199
      %v5202 = vunpack.c.l.s4 1983009808
      %v5203 = vunpack.c.0.s8 %v5202
      %v5204 = vlaneseq
      %v5205 = vshrl.u32 %v5204, 7
      %v5206 = vsub.s32 %v5203, %v5205
      %v5207 = vrot.slane %v5193, %v5206
      %v5208 = vcombine.low %v5200, %v5207
      %v5209 = vcombine.low %v5133, %v5136
      %v5211 = vunpack.c.l.s4 1983009808
      %v5212 = vunpack.c.0.s8 %v5211
      %v5213 = vlaneseq
      %v5214 = vshrl.u32 %v5213, 7
      %v5215 = vsub.s32 %v5212, %v5214
      %v5216 = vrot.slane %v5209, %v5215
      %v5242 = vpack.c.bf16 %v5138, %v5137
      %v5243 = vpack.c.bf16 %v5140, %v5139
      %v5244 = vpack.c.bf16 %v5142, %v5141
      %v5245 = vpack.c.bf16 %v5144, %v5143
      %v5246 = vpack.c.bf16 %v5146, %v5145
      %v5247 = vpack.c.bf16 %v5148, %v5147
      %v5248 = vpack.c.bf16 %v5150, %v5149
      %v5249 = vpack.c.bf16 %v5152, %v5151
      %v5250 = vpack.c.bf16 %v5154, %v5153
      %v5251 = vpack.c.bf16 %v5156, %v5155
      %v5252 = vpack.c.bf16 %v5174, %v5157
      %v5253 = vpack.c.bf16 %v5208, %v5191
      %v5254 = vpack.c.bf16 %v5216, %v5216
      %s5255 = scalar_lea.vmem %s1, 14
      %v5256 = vld [vmem:[%s5255] sm:$0x3]
      %v5258 = vsel %vm2258, %v5242, 0
      %v5261 = vsel %vm2258, %v5243, 0
      %v5264 = vsel %vm2258, %v5244, 0
      %v5267 = vsel %vm2258, %v5245, 0
      %v5270 = vsel %vm2258, %v5246, 0
      %v5273 = vsel %vm2258, %v5247, 0
      %v5276 = vsel %vm2258, %v5248, 0
      %v5279 = vsel %vm2258, %v5249, 0
      %v5282 = vsel %vm2258, %v5250, 0
      %v5285 = vsel %vm2258, %v5251, 0
      %v5288 = vsel %vm2258, %v5252, 0
      %v5291 = vsel %vm2258, %v5253, 0
      %v5294 = vsel %vm2258, %v5254, 0
      %v5297 = vand.u32 %v5256, %v2300
      %5299 = vmatprep.subr.bf16.mxu0 0
      %5300 = vmatpush1.bf16.msra.mxu0 %v5297
      %5301 = vmatprep.subr.bf16.mxu0 0
      %5302 = vmatpush1.bf16.msra.mxu0 0
      %5303 = vmatprep.subr.bf16.mxu0 0
      %5304 = vmatpush1.bf16.msra.mxu0 0
      %5305 = vmatprep.subr.bf16.mxu0 0
      %5306 = vmatpush1.bf16.msra.mxu0 0
      %5307 = vmatprep.subr.bf16.mxu0 0
      %5308 = vmatpush1.bf16.msra.mxu0 0
      %5309 = vmatprep.subr.bf16.mxu0 0
      %5310 = vmatpush1.bf16.msra.mxu0 0
      %5311 = vmatprep.subr.bf16.mxu0 0
      %5312 = vmatpush1.bf16.msra.mxu0 0
      %5313 = vmatprep.subr.bf16.mxu0 0
      %5314 = vmatpush1.bf16.msra.mxu0 0
      %5315 = vmatprep.subr.bf16.mxu0 0
      %5316 = vmatpush1.bf16.msra.mxu0 0
      %5317 = vmatprep.subr.bf16.mxu0 0
      %5318 = vmatpush1.bf16.msra.mxu0 0
      %5319 = vmatprep.subr.bf16.mxu0 0
      %5320 = vmatpush1.bf16.msra.mxu0 0
      %5321 = vmatprep.subr.bf16.mxu0 0
      %5322 = vmatpush1.bf16.msra.mxu0 0
      %5323 = vmatprep.subr.bf16.mxu0 0
      %5324 = vmatpush1.bf16.msra.mxu0 0
      %5325 = vmatprep.subr.bf16.mxu0 0
      %5326 = vmatpush1.bf16.msra.mxu0 0
      %5327 = vmatprep.subr.bf16.mxu0 0
      %5328 = vmatpush1.bf16.msra.mxu0 0
      %5329 = vmatprep.subr.bf16.mxu0 0
      %5330 = vmatpush1.bf16.msra.mxu0 0
      %5331 = vmatprep.mubr.bf16.mxu0 0
      %5332 = vmatmul.mubr.bf16.gmra.mrb[0].mxu0 %v5258
      %v5333 = vpop.f32.mrb[0].mxu0
      %v5334 = vadd.f32 0.0, %v5333
      %v5335 = vpop.f32.mrb[0].mxu0
      %v5336 = vpop.f32.mrb[0].mxu0
      %v5337 = vadd.f32 0.0, %v5336
      %v5338 = vpop.f32.mrb[0].mxu0
      %5339 = vmatprep.mubr.bf16.mxu0 0
      %5340 = vmatmul.mubr.bf16.gmra.mrb[0].mxu0 %v5261
      %v5341 = vpop.f32.mrb[0].mxu0
      %v5342 = vadd.f32 0.0, %v5341
      %v5343 = vpop.f32.mrb[0].mxu0
      %v5344 = vpop.f32.mrb[0].mxu0
      %v5345 = vadd.f32 0.0, %v5344
      %v5346 = vpop.f32.mrb[0].mxu0
      %5347 = vmatprep.mubr.bf16.mxu0 0
      %5348 = vmatmul.mubr.bf16.gmra.mrb[0].mxu0 %v5264
      %v5349 = vpop.f32.mrb[0].mxu0
      %v5350 = vadd.f32 0.0, %v5349
      %v5351 = vpop.f32.mrb[0].mxu0
      %v5352 = vpop.f32.mrb[0].mxu0
      %v5353 = vadd.f32 0.0, %v5352
      %v5354 = vpop.f32.mrb[0].mxu0
      %5355 = vmatprep.mubr.bf16.mxu0 0
      %5356 = vmatmul.mubr.bf16.gmra.mrb[0].mxu0 %v5267
      %v5357 = vpop.f32.mrb[0].mxu0
      %v5358 = vadd.f32 0.0, %v5357
      %v5359 = vpop.f32.mrb[0].mxu0
      %v5360 = vpop.f32.mrb[0].mxu0
      %v5361 = vadd.f32 0.0, %v5360
      %v5362 = vpop.f32.mrb[0].mxu0
      %5363 = vmatprep.mubr.bf16.mxu0 0
      %5364 = vmatmul.mubr.bf16.gmra.mrb[0].mxu0 %v5270
      %v5365 = vpop.f32.mrb[0].mxu0
      %v5366 = vadd.f32 0.0, %v5365
      %v5367 = vpop.f32.mrb[0].mxu0
      %v5368 = vpop.f32.mrb[0].mxu0
      %v5369 = vadd.f32 0.0, %v5368
      %v5370 = vpop.f32.mrb[0].mxu0
      %5371 = vmatprep.mubr.bf16.mxu0 0
      %5372 = vmatmul.mubr.bf16.gmra.mrb[0].mxu0 %v5273
      %v5373 = vpop.f32.mrb[0].mxu0
      %v5374 = vadd.f32 0.0, %v5373
      %v5375 = vpop.f32.mrb[0].mxu0
      %v5376 = vpop.f32.mrb[0].mxu0
      %v5377 = vadd.f32 0.0, %v5376
      %v5378 = vpop.f32.mrb[0].mxu0
      %5379 = vmatprep.mubr.bf16.mxu0 0
      %5380 = vmatmul.mubr.bf16.gmra.mrb[0].mxu0 %v5276
      %v5381 = vpop.f32.mrb[0].mxu0
      %v5382 = vadd.f32 0.0, %v5381
      %v5383 = vpop.f32.mrb[0].mxu0
      %v5384 = vpop.f32.mrb[0].mxu0
      %v5385 = vadd.f32 0.0, %v5384
      %v5386 = vpop.f32.mrb[0].mxu0
      %5387 = vmatprep.mubr.bf16.mxu0 0
      %5388 = vmatmul.mubr.bf16.gmra.mrb[0].mxu0 %v5279
      %v5389 = vpop.f32.mrb[0].mxu0
      %v5390 = vadd.f32 0.0, %v5389
      %v5391 = vpop.f32.mrb[0].mxu0
      %v5392 = vpop.f32.mrb[0].mxu0
      %v5393 = vadd.f32 0.0, %v5392
      %v5394 = vpop.f32.mrb[0].mxu0
      %5395 = vmatprep.mubr.bf16.mxu0 0
      %5396 = vmatmul.mubr.bf16.gmra.mrb[0].mxu0 %v5282
      %v5397 = vpop.f32.mrb[0].mxu0
      %v5398 = vadd.f32 0.0, %v5397
      %v5399 = vpop.f32.mrb[0].mxu0
      %v5400 = vpop.f32.mrb[0].mxu0
      %v5401 = vadd.f32 0.0, %v5400
      %v5402 = vpop.f32.mrb[0].mxu0
      %5403 = vmatprep.mubr.bf16.mxu0 0
      %5404 = vmatmul.mubr.bf16.gmra.mrb[0].mxu0 %v5285
      %v5405 = vpop.f32.mrb[0].mxu0
      %v5406 = vadd.f32 0.0, %v5405
      %v5407 = vpop.f32.mrb[0].mxu0
      %v5408 = vpop.f32.mrb[0].mxu0
      %v5409 = vadd.f32 0.0, %v5408
      %v5410 = vpop.f32.mrb[0].mxu0
      %5411 = vmatprep.mubr.bf16.mxu0 0
      %5412 = vmatmul.mubr.bf16.gmra.mrb[0].mxu0 %v5288
      %v5413 = vpop.f32.mrb[0].mxu0
      %v5414 = vadd.f32 0.0, %v5413
      %v5415 = vpop.f32.mrb[0].mxu0
      %v5416 = vpop.f32.mrb[0].mxu0
      %v5417 = vadd.f32 0.0, %v5416
      %v5418 = vpop.f32.mrb[0].mxu0
      %5419 = vmatprep.mubr.bf16.mxu0 0
      %5420 = vmatmul.mubr.bf16.gmra.mrb[0].mxu0 %v5291
      %v5421 = vpop.f32.mrb[0].mxu0
      %v5422 = vadd.f32 0.0, %v5421
      %v5423 = vpop.f32.mrb[0].mxu0
      %v5424 = vpop.f32.mrb[0].mxu0
      %v5425 = vadd.f32 0.0, %v5424
      %v5426 = vpop.f32.mrb[0].mxu0
      %5427 = vmatprep.mubr.bf16.mxu0 0
      %5428 = vmatmul.mubr.bf16.gmra.mrb[0].mxu0 %v5294
      %v5429 = vpop.f32.mrb[0].mxu0
      %v5430 = vadd.f32 0.0, %v5429
      %v5431 = vpop.f32.mrb[0].mxu0
      %v5432 = vpop.f32.mrb[0].mxu0
      %v5433 = vpop.f32.mrb[0].mxu0
      %5434 = vdwg.mxu0
      %v5435 = vadd.f32 %v5089, %v5334
      %v5436 = vadd.f32 %v5090, %v5337
      %v5437 = vadd.f32 %v5091, %v5342
      %v5438 = vadd.f32 %v5092, %v5345
      %v5439 = vadd.f32 %v5093, %v5350
      %v5440 = vadd.f32 %v5094, %v5353
      %v5441 = vadd.f32 %v5095, %v5358
      %v5442 = vadd.f32 %v5096, %v5361
      %v5443 = vadd.f32 %v5097, %v5366
      %v5444 = vadd.f32 %v5098, %v5369
      %v5445 = vadd.f32 %v5099, %v5374
      %v5446 = vadd.f32 %v5100, %v5377
      %v5447 = vadd.f32 %v5101, %v5382
      %v5448 = vadd.f32 %v5102, %v5385
      %v5449 = vadd.f32 %v5103, %v5390
      %v5450 = vadd.f32 %v5104, %v5393
      %v5451 = vadd.f32 %v5105, %v5398
      %v5452 = vadd.f32 %v5106, %v5401
      %v5453 = vadd.f32 %v5107, %v5406
      %v5454 = vadd.f32 %v5108, %v5409
      %v5455 = vadd.f32 %v5109, %v5414
      %v5456 = vadd.f32 %v5110, %v5417
      %v5457 = vadd.f32 %v5111, %v5422
      %v5458 = vadd.f32 %v5112, %v5425
      %v5459 = vadd.f32 %v5113, %v5430
      %v5460 = vcombine.low %v2701, %v2711
      %v5461 = vcombine.low %v2735, %v2745
      %v5462 = vcombine.low %v2769, %v2779
      %v5463 = vcombine.low %v2786, %v2796
      %v5464 = vcombine.low %v2820, %v2830
      %v5465 = vcombine.low %v2854, %v2864
      %v5466 = vcombine.low %v2888, %v2898
      %v5467 = vcombine.low %v2905, %v2915
      %v5468 = vcombine.low %v2939, %v2949
      %v5469 = vcombine.low %v2973, %v2983
      %v5470 = vcombine.low %v3007, %v3017
      %v5471 = vcombine.low %v3024, %v3033
      %v5472 = vcombine.low %v3715, %v4789
      %v5474 = vunpack.c.l.s4 1983009808
      %v5475 = vunpack.c.0.s8 %v5474
      %v5476 = vlaneseq
      %v5477 = vshrl.u32 %v5476, 7
      %v5478 = vsub.s32 %v5475, %v5477
      %v5479 = vrot.slane %v5472, %v5478
      %v5480 = vcombine.low %v3471, %v5479
      %v5481 = vcombine.low %v4788, %v4790
      %v5482 = vcombine.low %v4798, %v4806
      %v5484 = vunpack.c.l.s4 1983009808
      %v5485 = vunpack.c.0.s8 %v5484
      %v5486 = vlaneseq
      %v5487 = vshrl.u32 %v5486, 7
      %v5488 = vsub.s32 %v5485, %v5487
      %v5489 = vrot.slane %v5481, %v5488
      %v5491 = vunpack.c.l.s4 1983009808
      %v5492 = vunpack.c.0.s8 %v5491
      %v5493 = vlaneseq
      %v5494 = vshrl.u32 %v5493, 7
      %v5495 = vsub.s32 %v5492, %v5494
      %v5496 = vrot.slane %v5482, %v5495
      %v5497 = vcombine.low %v5489, %v5496
      %v5498 = vcombine.low %v4805, %v5114
      %v5500 = vunpack.c.l.s4 1983009808
      %v5501 = vunpack.c.0.s8 %v5500
      %v5502 = vlaneseq
      %v5503 = vshrl.u32 %v5502, 7
      %v5504 = vsub.s32 %v5501, %v5503
      %v5505 = vrot.slane %v5498, %v5504
      %v5521 = vpack.c.bf16 %v5460, %v3330
      %v5522 = vpack.c.bf16 %v5461, %v3340
      %v5523 = vpack.c.bf16 %v5462, %v3350
      %v5524 = vpack.c.bf16 %v3369, %v5463
      %v5525 = vpack.c.bf16 %v3379, %v5464
      %v5526 = vpack.c.bf16 %v3389, %v5465
      %v5527 = vpack.c.bf16 %v5467, %v5466
      %v5528 = vpack.c.bf16 %v5468, %v3408
      %v5529 = vpack.c.bf16 %v5469, %v3418
      %v5530 = vpack.c.bf16 %v5470, %v3428
      %v5531 = vpack.c.bf16 %v3463, %v5471
      %v5532 = vpack.c.bf16 %v5497, %v5480
      %v5533 = vpack.c.bf16 %v5505, %v5505
      %s5534 = scalar_lea.vmem %s1, 16
      %v5535 = vld [vmem:[%s5534] sm:$0x3]
      %v5537 = vsel %vm2258, %v5521, 0
      %v5540 = vsel %vm2258, %v5522, 0
      %v5543 = vsel %vm2258, %v5523, 0
      %v5546 = vsel %vm2258, %v5524, 0
      %v5549 = vsel %vm2258, %v5525, 0
      %v5552 = vsel %vm2258, %v5526, 0
      %v5555 = vsel %vm2258, %v5527, 0
      %v5558 = vsel %vm2258, %v5528, 0
      %v5561 = vsel %vm2258, %v5529, 0
      %v5564 = vsel %vm2258, %v5530, 0
      %v5567 = vsel %vm2258, %v5531, 0
      %v5570 = vsel %vm2258, %v5532, 0
      %v5573 = vsel %vm2258, %v5533, 0
      %v5576 = vand.u32 %v5535, %v2300
      %5578 = vmatprep.subr.bf16.mxu0 0
      %5579 = vmatpush1.bf16.msra.mxu0 %v5576
      %5580 = vmatprep.subr.bf16.mxu0 0
      %5581 = vmatpush1.bf16.msra.mxu0 0
      %5582 = vmatprep.subr.bf16.mxu0 0
      %5583 = vmatpush1.bf16.msra.mxu0 0
      %5584 = vmatprep.subr.bf16.mxu0 0
      %5585 = vmatpush1.bf16.msra.mxu0 0
      %5586 = vmatprep.subr.bf16.mxu0 0
      %5587 = vmatpush1.bf16.msra.mxu0 0
      %5588 = vmatprep.subr.bf16.mxu0 0
      %5589 = vmatpush1.bf16.msra.mxu0 0
      %5590 = vmatprep.subr.bf16.mxu0 0
      %5591 = vmatpush1.bf16.msra.mxu0 0
      %5592 = vmatprep.subr.bf16.mxu0 0
      %5593 = vmatpush1.bf16.msra.mxu0 0
      %5594 = vmatprep.subr.bf16.mxu0 0
      %5595 = vmatpush1.bf16.msra.mxu0 0
      %5596 = vmatprep.subr.bf16.mxu0 0
      %5597 = vmatpush1.bf16.msra.mxu0 0
      %5598 = vmatprep.subr.bf16.mxu0 0
      %5599 = vmatpush1.bf16.msra.mxu0 0
      %5600 = vmatprep.subr.bf16.mxu0 0
      %5601 = vmatpush1.bf16.msra.mxu0 0
      %5602 = vmatprep.subr.bf16.mxu0 0
      %5603 = vmatpush1.bf16.msra.mxu0 0
      %5604 = vmatprep.subr.bf16.mxu0 0
      %5605 = vmatpush1.bf16.msra.mxu0 0
      %5606 = vmatprep.subr.bf16.mxu0 0
      %5607 = vmatpush1.bf16.msra.mxu0 0
      %5608 = vmatprep.subr.bf16.mxu0 0
      %5609 = vmatpush1.bf16.msra.mxu0 0
      %5610 = vmatprep.mubr.bf16.mxu0 0
      %5611 = vmatmul.mubr.bf16.gmra.mrb[0].mxu0 %v5537
      %v5612 = vpop.f32.mrb[0].mxu0
      %v5613 = vadd.f32 0.0, %v5612
      %v5614 = vpop.f32.mrb[0].mxu0
      %v5615 = vpop.f32.mrb[0].mxu0
      %v5616 = vadd.f32 0.0, %v5615
      %v5617 = vpop.f32.mrb[0].mxu0
      %5618 = vmatprep.mubr.bf16.mxu0 0
      %5619 = vmatmul.mubr.bf16.gmra.mrb[0].mxu0 %v5540
      %v5620 = vpop.f32.mrb[0].mxu0
      %v5621 = vadd.f32 0.0, %v5620
      %v5622 = vpop.f32.mrb[0].mxu0
      %v5623 = vpop.f32.mrb[0].mxu0
      %v5624 = vadd.f32 0.0, %v5623
      %v5625 = vpop.f32.mrb[0].mxu0
      %5626 = vmatprep.mubr.bf16.mxu0 0
      %5627 = vmatmul.mubr.bf16.gmra.mrb[0].mxu0 %v5543
      %v5628 = vpop.f32.mrb[0].mxu0
      %v5629 = vadd.f32 0.0, %v5628
      %v5630 = vpop.f32.mrb[0].mxu0
      %v5631 = vpop.f32.mrb[0].mxu0
      %v5632 = vadd.f32 0.0, %v5631
      %v5633 = vpop.f32.mrb[0].mxu0
      %5634 = vmatprep.mubr.bf16.mxu0 0
      %5635 = vmatmul.mubr.bf16.gmra.mrb[0].mxu0 %v5546
      %v5636 = vpop.f32.mrb[0].mxu0
      %v5637 = vadd.f32 0.0, %v5636
      %v5638 = vpop.f32.mrb[0].mxu0
      %v5639 = vpop.f32.mrb[0].mxu0
      %v5640 = vadd.f32 0.0, %v5639
      %v5641 = vpop.f32.mrb[0].mxu0
      %5642 = vmatprep.mubr.bf16.mxu0 0
      %5643 = vmatmul.mubr.bf16.gmra.mrb[0].mxu0 %v5549
      %v5644 = vpop.f32.mrb[0].mxu0
      %v5645 = vadd.f32 0.0, %v5644
      %v5646 = vpop.f32.mrb[0].mxu0
      %v5647 = vpop.f32.mrb[0].mxu0
      %v5648 = vadd.f32 0.0, %v5647
      %v5649 = vpop.f32.mrb[0].mxu0
      %5650 = vmatprep.mubr.bf16.mxu0 0
      %5651 = vmatmul.mubr.bf16.gmra.mrb[0].mxu0 %v5552
      %v5652 = vpop.f32.mrb[0].mxu0
      %v5653 = vadd.f32 0.0, %v5652
      %v5654 = vpop.f32.mrb[0].mxu0
      %v5655 = vpop.f32.mrb[0].mxu0
      %v5656 = vadd.f32 0.0, %v5655
      %v5657 = vpop.f32.mrb[0].mxu0
      %5658 = vmatprep.mubr.bf16.mxu0 0
      %5659 = vmatmul.mubr.bf16.gmra.mrb[0].mxu0 %v5555
      %v5660 = vpop.f32.mrb[0].mxu0
      %v5661 = vadd.f32 0.0, %v5660
      %v5662 = vpop.f32.mrb[0].mxu0
      %v5663 = vpop.f32.mrb[0].mxu0
      %v5664 = vadd.f32 0.0, %v5663
      %v5665 = vpop.f32.mrb[0].mxu0
      %5666 = vmatprep.mubr.bf16.mxu0 0
      %5667 = vmatmul.mubr.bf16.gmra.mrb[0].mxu0 %v5558
      %v5668 = vpop.f32.mrb[0].mxu0
      %v5669 = vadd.f32 0.0, %v5668
      %v5670 = vpop.f32.mrb[0].mxu0
      %v5671 = vpop.f32.mrb[0].mxu0
      %v5672 = vadd.f32 0.0, %v5671
      %v5673 = vpop.f32.mrb[0].mxu0
      %5674 = vmatprep.mubr.bf16.mxu0 0
      %5675 = vmatmul.mubr.bf16.gmra.mrb[0].mxu0 %v5561
      %v5676 = vpop.f32.mrb[0].mxu0
      %v5677 = vadd.f32 0.0, %v5676
      %v5678 = vpop.f32.mrb[0].mxu0
      %v5679 = vpop.f32.mrb[0].mxu0
      %v5680 = vadd.f32 0.0, %v5679
      %v5681 = vpop.f32.mrb[0].mxu0
      %5682 = vmatprep.mubr.bf16.mxu0 0
      %5683 = vmatmul.mubr.bf16.gmra.mrb[0].mxu0 %v5564
      %v5684 = vpop.f32.mrb[0].mxu0
      %v5685 = vadd.f32 0.0, %v5684
      %v5686 = vpop.f32.mrb[0].mxu0
      %v5687 = vpop.f32.mrb[0].mxu0
      %v5688 = vadd.f32 0.0, %v5687
      %v5689 = vpop.f32.mrb[0].mxu0
      %5690 = vmatprep.mubr.bf16.mxu0 0
      %5691 = vmatmul.mubr.bf16.gmra.mrb[0].mxu0 %v5567
      %v5692 = vpop.f32.mrb[0].mxu0
      %v5693 = vadd.f32 0.0, %v5692
      %v5694 = vpop.f32.mrb[0].mxu0
      %v5695 = vpop.f32.mrb[0].mxu0
      %v5696 = vadd.f32 0.0, %v5695
      %v5697 = vpop.f32.mrb[0].mxu0
      %5698 = vmatprep.mubr.bf16.mxu0 0
      %5699 = vmatmul.mubr.bf16.gmra.mrb[0].mxu0 %v5570
      %v5700 = vpop.f32.mrb[0].mxu0
      %v5701 = vadd.f32 0.0, %v5700
      %v5702 = vpop.f32.mrb[0].mxu0
      %v5703 = vpop.f32.mrb[0].mxu0
      %v5704 = vadd.f32 0.0, %v5703
      %v5705 = vpop.f32.mrb[0].mxu0
      %5706 = vmatprep.mubr.bf16.mxu0 0
      %5707 = vmatmul.mubr.bf16.gmra.mrb[0].mxu0 %v5573
      %v5708 = vpop.f32.mrb[0].mxu0
      %v5709 = vadd.f32 0.0, %v5708
      %v5710 = vpop.f32.mrb[0].mxu0
      %v5711 = vpop.f32.mrb[0].mxu0
      %v5712 = vpop.f32.mrb[0].mxu0
      %5713 = vdwg.mxu0
      %v5714 = vadd.f32 %v5435, %v5613
      %v5715 = vadd.f32 %v5436, %v5616
      %v5716 = vadd.f32 %v5437, %v5621
      %v5717 = vadd.f32 %v5438, %v5624
      %v5718 = vadd.f32 %v5439, %v5629
      %v5719 = vadd.f32 %v5440, %v5632
      %v5720 = vadd.f32 %v5441, %v5637
      %v5721 = vadd.f32 %v5442, %v5640
      %v5722 = vadd.f32 %v5443, %v5645
      %v5723 = vadd.f32 %v5444, %v5648
      %v5724 = vadd.f32 %v5445, %v5653
      %v5725 = vadd.f32 %v5446, %v5656
      %v5726 = vadd.f32 %v5447, %v5661
      %v5727 = vadd.f32 %v5448, %v5664
      %v5728 = vadd.f32 %v5449, %v5669
      %v5729 = vadd.f32 %v5450, %v5672
      %v5730 = vadd.f32 %v5451, %v5677
      %v5731 = vadd.f32 %v5452, %v5680
      %v5732 = vadd.f32 %v5453, %v5685
      %v5733 = vadd.f32 %v5454, %v5688
      %v5734 = vadd.f32 %v5455, %v5693
      %v5735 = vadd.f32 %v5456, %v5696
      %v5736 = vadd.f32 %v5457, %v5701
      %v5737 = vadd.f32 %v5458, %v5704
      %v5738 = vadd.f32 %v5459, %v5709
      %v5739 = vld [vmem:[%s2] sm:$0x1]
      %v5741 = vlaneseq
      %v5742 = vshrl.u32 %v5741, 7
      %v5743 = vsub.s32 0, %v5742
      %v5744 = vrot.slane %v5739, %v5743
      %v5746 = vmul.f32 %v5714, %v5744
      %v5747 = vmul.f32 %v5715, %v5744
      %v5748 = vmul.f32 %v5716, %v5744
      %v5749 = vmul.f32 %v5717, %v5744
      %v5750 = vmul.f32 %v5718, %v5744
      %v5751 = vmul.f32 %v5719, %v5744
      %v5752 = vmul.f32 %v5720, %v5744
      %v5753 = vmul.f32 %v5721, %v5744
      %v5754 = vmul.f32 %v5722, %v5744
      %v5755 = vmul.f32 %v5723, %v5744
      %v5756 = vmul.f32 %v5724, %v5744
      %v5757 = vmul.f32 %v5725, %v5744
      %v5758 = vmul.f32 %v5726, %v5744
      %v5759 = vmul.f32 %v5727, %v5744
      %v5760 = vmul.f32 %v5728, %v5744
      %v5761 = vmul.f32 %v5729, %v5744
      %v5762 = vmul.f32 %v5730, %v5744
      %v5763 = vmul.f32 %v5731, %v5744
      %v5764 = vmul.f32 %v5732, %v5744
      %v5765 = vmul.f32 %v5733, %v5744
      %v5766 = vmul.f32 %v5734, %v5744
      %v5767 = vmul.f32 %v5735, %v5744
      %v5768 = vmul.f32 %v5736, %v5744
      %v5769 = vmul.f32 %v5737, %v5744
      %v5770 = vmul.f32 %v5738, %v5744
      %v5771 = vld [vmem:[%s3] sm:$0x1]
      %v5773 = vlaneseq
      %v5774 = vshrl.u32 %v5773, 7
      %v5775 = vsub.s32 0, %v5774
      %v5776 = vrot.slane %v5771, %v5775
      %v5778 = vadd.f32 %v5746, %v5776
      %v5779 = vadd.f32 %v5747, %v5776
      %v5780 = vadd.f32 %v5748, %v5776
      %v5781 = vadd.f32 %v5749, %v5776
      %v5782 = vadd.f32 %v5750, %v5776
      %v5783 = vadd.f32 %v5751, %v5776
      %v5784 = vadd.f32 %v5752, %v5776
      %v5785 = vadd.f32 %v5753, %v5776
      %v5786 = vadd.f32 %v5754, %v5776
      %v5787 = vadd.f32 %v5755, %v5776
      %v5788 = vadd.f32 %v5756, %v5776
      %v5789 = vadd.f32 %v5757, %v5776
      %v5790 = vadd.f32 %v5758, %v5776
      %v5791 = vadd.f32 %v5759, %v5776
      %v5792 = vadd.f32 %v5760, %v5776
      %v5793 = vadd.f32 %v5761, %v5776
      %v5794 = vadd.f32 %v5762, %v5776
      %v5795 = vadd.f32 %v5763, %v5776
      %v5796 = vadd.f32 %v5764, %v5776
      %v5797 = vadd.f32 %v5765, %v5776
      %v5798 = vadd.f32 %v5766, %v5776
      %v5799 = vadd.f32 %v5767, %v5776
      %v5800 = vadd.f32 %v5768, %v5776
      %v5801 = vadd.f32 %v5769, %v5776
      %v5802 = vadd.f32 %v5770, %v5776
      %vm5803 = vcmp.gt.f32.partialorder %v5778, 0.0
      %vm5804 = vcmp.gt.f32.partialorder %v5779, 0.0
      %vm5805 = vcmp.gt.f32.partialorder %v5780, 0.0
      %vm5806 = vcmp.gt.f32.partialorder %v5781, 0.0
      %vm5807 = vcmp.gt.f32.partialorder %v5782, 0.0
      %vm5808 = vcmp.gt.f32.partialorder %v5783, 0.0
      %vm5809 = vcmp.gt.f32.partialorder %v5784, 0.0
      %vm5810 = vcmp.gt.f32.partialorder %v5785, 0.0
      %vm5811 = vcmp.gt.f32.partialorder %v5786, 0.0
      %vm5812 = vcmp.gt.f32.partialorder %v5787, 0.0
      %vm5813 = vcmp.gt.f32.partialorder %v5788, 0.0
      %vm5814 = vcmp.gt.f32.partialorder %v5789, 0.0
      %vm5815 = vcmp.gt.f32.partialorder %v5790, 0.0
      %vm5816 = vcmp.gt.f32.partialorder %v5791, 0.0
      %vm5817 = vcmp.gt.f32.partialorder %v5792, 0.0
      %vm5818 = vcmp.gt.f32.partialorder %v5793, 0.0
      %vm5819 = vcmp.gt.f32.partialorder %v5794, 0.0
      %vm5820 = vcmp.gt.f32.partialorder %v5795, 0.0
      %vm5821 = vcmp.gt.f32.partialorder %v5796, 0.0
      %vm5822 = vcmp.gt.f32.partialorder %v5797, 0.0
      %vm5823 = vcmp.gt.f32.partialorder %v5798, 0.0
      %vm5824 = vcmp.gt.f32.partialorder %v5799, 0.0
      %vm5825 = vcmp.gt.f32.partialorder %v5800, 0.0
      %vm5826 = vcmp.gt.f32.partialorder %v5801, 0.0
      %vm5827 = vcmp.gt.f32.partialorder %v5802, 0.0
      %v5828 = vld [vmem:[%s4] sm:$0x1]
      %v5830 = vlaneseq
      %v5831 = vshrl.u32 %v5830, 7
      %v5832 = vsub.s32 0, %v5831
      %v5833 = vrot.slane %v5828, %v5832
      %v5835 = vmul.f32 %v5833, %v5778
      %v5836 = vmul.f32 %v5833, %v5779
      %v5837 = vmul.f32 %v5833, %v5780
      %v5838 = vmul.f32 %v5833, %v5781
      %v5839 = vmul.f32 %v5833, %v5782
      %v5840 = vmul.f32 %v5833, %v5783
      %v5841 = vmul.f32 %v5833, %v5784
      %v5842 = vmul.f32 %v5833, %v5785
      %v5843 = vmul.f32 %v5833, %v5786
      %v5844 = vmul.f32 %v5833, %v5787
      %v5845 = vmul.f32 %v5833, %v5788
      %v5846 = vmul.f32 %v5833, %v5789
      %v5847 = vmul.f32 %v5833, %v5790
      %v5848 = vmul.f32 %v5833, %v5791
      %v5849 = vmul.f32 %v5833, %v5792
      %v5850 = vmul.f32 %v5833, %v5793
      %v5851 = vmul.f32 %v5833, %v5794
      %v5852 = vmul.f32 %v5833, %v5795
      %v5853 = vmul.f32 %v5833, %v5796
      %v5854 = vmul.f32 %v5833, %v5797
      %v5855 = vmul.f32 %v5833, %v5798
      %v5856 = vmul.f32 %v5833, %v5799
      %v5857 = vmul.f32 %v5833, %v5800
      %v5858 = vmul.f32 %v5833, %v5801
      %v5859 = vmul.f32 %v5833, %v5802
      %v5860 = vsel %vm5803, %v5778, %v5835
      %v5861 = vsel %vm5804, %v5779, %v5836
      %v5862 = vsel %vm5805, %v5780, %v5837
      %v5863 = vsel %vm5806, %v5781, %v5838
      %v5864 = vsel %vm5807, %v5782, %v5839
      %v5865 = vsel %vm5808, %v5783, %v5840
      %v5866 = vsel %vm5809, %v5784, %v5841
      %v5867 = vsel %vm5810, %v5785, %v5842
      %v5868 = vsel %vm5811, %v5786, %v5843
      %v5869 = vsel %vm5812, %v5787, %v5844
      %v5870 = vsel %vm5813, %v5788, %v5845
      %v5871 = vsel %vm5814, %v5789, %v5846
      %v5872 = vsel %vm5815, %v5790, %v5847
      %v5873 = vsel %vm5816, %v5791, %v5848
      %v5874 = vsel %vm5817, %v5792, %v5849
      %v5875 = vsel %vm5818, %v5793, %v5850
      %v5876 = vsel %vm5819, %v5794, %v5851
      %v5877 = vsel %vm5820, %v5795, %v5852
      %v5878 = vsel %vm5821, %v5796, %v5853
      %v5879 = vsel %vm5822, %v5797, %v5854
      %v5880 = vsel %vm5823, %v5798, %v5855
      %v5881 = vsel %vm5824, %v5799, %v5856
      %v5882 = vsel %vm5825, %v5800, %v5857
      %v5883 = vsel %vm5826, %v5801, %v5858
      %v5884 = vsel %vm5827, %v5802, %v5859
      %v5910 = vcombine.high %v5860, %v5860
      %v5912 = vunpack.c.l.s4 1983009808
      %v5913 = vunpack.c.0.s8 %v5912
      %v5914 = vlaneseq
      %v5915 = vshrl.u32 %v5914, 7
      %v5916 = vsub.s32 %v5913, %v5915
      %v5917 = vrot.slane %v5860, %v5916
      %v5919 = vunpack.c.l.s4 1983009808
      %v5920 = vunpack.c.0.s8 %v5919
      %v5921 = vlaneseq
      %v5922 = vshrl.u32 %v5921, 7
      %v5923 = vsub.s32 %v5920, %v5922
      %v5924 = vrot.slane %v5910, %v5923
      %v5925 = vcombine.high %v5917, %v5917
      %v5926 = vcombine.high %v5924, %v5924
      %v5927 = vcombine.high %v5861, %v5861
      %v5929 = vunpack.c.l.s4 1983009808
      %v5930 = vunpack.c.0.s8 %v5929
      %v5931 = vlaneseq
      %v5932 = vshrl.u32 %v5931, 7
      %v5933 = vsub.s32 %v5930, %v5932
      %v5934 = vrot.slane %v5861, %v5933
      %v5936 = vunpack.c.l.s4 1983009808
      %v5937 = vunpack.c.0.s8 %v5936
      %v5938 = vlaneseq
      %v5939 = vshrl.u32 %v5938, 7
      %v5940 = vsub.s32 %v5937, %v5939
      %v5941 = vrot.slane %v5927, %v5940
      %v5942 = vcombine.high %v5934, %v5934
      %v5943 = vcombine.high %v5941, %v5941
      %v5944 = vcombine.high %v5862, %v5862
      %v5946 = vunpack.c.l.s4 1983009808
      %v5947 = vunpack.c.0.s8 %v5946
      %v5948 = vlaneseq
      %v5949 = vshrl.u32 %v5948, 7
      %v5950 = vsub.s32 %v5947, %v5949
      %v5951 = vrot.slane %v5862, %v5950
      %v5953 = vunpack.c.l.s4 1983009808
      %v5954 = vunpack.c.0.s8 %v5953
      %v5955 = vlaneseq
      %v5956 = vshrl.u32 %v5955, 7
      %v5957 = vsub.s32 %v5954, %v5956
      %v5958 = vrot.slane %v5944, %v5957
      %v5959 = vcombine.high %v5951, %v5951
      %v5960 = vcombine.high %v5958, %v5958
      %v5961 = vcombine.high %v5863, %v5863
      %v5963 = vunpack.c.l.s4 1983009808
      %v5964 = vunpack.c.0.s8 %v5963
      %v5965 = vlaneseq
      %v5966 = vshrl.u32 %v5965, 7
      %v5967 = vsub.s32 %v5964, %v5966
      %v5968 = vrot.slane %v5863, %v5967
      %v5970 = vunpack.c.l.s4 1983009808
      %v5971 = vunpack.c.0.s8 %v5970
      %v5972 = vlaneseq
      %v5973 = vshrl.u32 %v5972, 7
      %v5974 = vsub.s32 %v5971, %v5973
      %v5975 = vrot.slane %v5961, %v5974
      %v5976 = vcombine.high %v5968, %v5968
      %v5977 = vcombine.high %v5975, %v5975
      %v5978 = vcombine.high %v5864, %v5864
      %v5980 = vunpack.c.l.s4 1983009808
      %v5981 = vunpack.c.0.s8 %v5980
      %v5982 = vlaneseq
      %v5983 = vshrl.u32 %v5982, 7
      %v5984 = vsub.s32 %v5981, %v5983
      %v5985 = vrot.slane %v5864, %v5984
      %v5987 = vunpack.c.l.s4 1983009808
      %v5988 = vunpack.c.0.s8 %v5987
      %v5989 = vlaneseq
      %v5990 = vshrl.u32 %v5989, 7
      %v5991 = vsub.s32 %v5988, %v5990
      %v5992 = vrot.slane %v5978, %v5991
      %v5993 = vcombine.high %v5985, %v5985
      %v5994 = vcombine.high %v5992, %v5992
      %v5995 = vcombine.high %v5865, %v5865
      %v5997 = vunpack.c.l.s4 1983009808
      %v5998 = vunpack.c.0.s8 %v5997
      %v5999 = vlaneseq
      %v6000 = vshrl.u32 %v5999, 7
      %v6001 = vsub.s32 %v5998, %v6000
      %v6002 = vrot.slane %v5865, %v6001
      %v6004 = vunpack.c.l.s4 1983009808
      %v6005 = vunpack.c.0.s8 %v6004
      %v6006 = vlaneseq
      %v6007 = vshrl.u32 %v6006, 7
      %v6008 = vsub.s32 %v6005, %v6007
      %v6009 = vrot.slane %v5995, %v6008
      %v6010 = vcombine.high %v6002, %v6002
      %v6011 = vcombine.high %v6009, %v6009
      %v6012 = vcombine.high %v5866, %v5866
      %v6014 = vunpack.c.l.s4 1983009808
      %v6015 = vunpack.c.0.s8 %v6014
      %v6016 = vlaneseq
      %v6017 = vshrl.u32 %v6016, 7
      %v6018 = vsub.s32 %v6015, %v6017
      %v6019 = vrot.slane %v5866, %v6018
      %v6021 = vunpack.c.l.s4 1983009808
      %v6022 = vunpack.c.0.s8 %v6021
      %v6023 = vlaneseq
      %v6024 = vshrl.u32 %v6023, 7
      %v6025 = vsub.s32 %v6022, %v6024
      %v6026 = vrot.slane %v6012, %v6025
      %v6027 = vcombine.high %v6019, %v6019
      %v6028 = vcombine.high %v6026, %v6026
      %v6029 = vcombine.high %v5867, %v5867
      %v6031 = vunpack.c.l.s4 1983009808
      %v6032 = vunpack.c.0.s8 %v6031
      %v6033 = vlaneseq
      %v6034 = vshrl.u32 %v6033, 7
      %v6035 = vsub.s32 %v6032, %v6034
      %v6036 = vrot.slane %v5867, %v6035
      %v6038 = vunpack.c.l.s4 1983009808
      %v6039 = vunpack.c.0.s8 %v6038
      %v6040 = vlaneseq
      %v6041 = vshrl.u32 %v6040, 7
      %v6042 = vsub.s32 %v6039, %v6041
      %v6043 = vrot.slane %v6029, %v6042
      %v6044 = vcombine.high %v6036, %v6036
      %v6045 = vcombine.high %v6043, %v6043
      %v6046 = vcombine.high %v5868, %v5868
      %v6048 = vunpack.c.l.s4 1983009808
      %v6049 = vunpack.c.0.s8 %v6048
      %v6050 = vlaneseq
      %v6051 = vshrl.u32 %v6050, 7
      %v6052 = vsub.s32 %v6049, %v6051
      %v6053 = vrot.slane %v5868, %v6052
      %v6055 = vunpack.c.l.s4 1983009808
      %v6056 = vunpack.c.0.s8 %v6055
      %v6057 = vlaneseq
      %v6058 = vshrl.u32 %v6057, 7
      %v6059 = vsub.s32 %v6056, %v6058
      %v6060 = vrot.slane %v6046, %v6059
      %v6061 = vcombine.high %v6053, %v6053
      %v6062 = vcombine.high %v6060, %v6060
      %v6063 = vcombine.high %v5869, %v5869
      %v6065 = vunpack.c.l.s4 1983009808
      %v6066 = vunpack.c.0.s8 %v6065
      %v6067 = vlaneseq
      %v6068 = vshrl.u32 %v6067, 7
      %v6069 = vsub.s32 %v6066, %v6068
      %v6070 = vrot.slane %v5869, %v6069
      %v6072 = vunpack.c.l.s4 1983009808
      %v6073 = vunpack.c.0.s8 %v6072
      %v6074 = vlaneseq
      %v6075 = vshrl.u32 %v6074, 7
      %v6076 = vsub.s32 %v6073, %v6075
      %v6077 = vrot.slane %v6063, %v6076
      %v6078 = vcombine.high %v6070, %v6070
      %v6079 = vcombine.high %v6077, %v6077
      %v6080 = vcombine.high %v5870, %v5870
      %v6082 = vunpack.c.l.s4 1983009808
      %v6083 = vunpack.c.0.s8 %v6082
      %v6084 = vlaneseq
      %v6085 = vshrl.u32 %v6084, 7
      %v6086 = vsub.s32 %v6083, %v6085
      %v6087 = vrot.slane %v5870, %v6086
      %v6089 = vunpack.c.l.s4 1983009808
      %v6090 = vunpack.c.0.s8 %v6089
      %v6091 = vlaneseq
      %v6092 = vshrl.u32 %v6091, 7
      %v6093 = vsub.s32 %v6090, %v6092
      %v6094 = vrot.slane %v6080, %v6093
      %v6095 = vcombine.high %v6087, %v6087
      %v6096 = vcombine.high %v6094, %v6094
      %v6097 = vcombine.high %v5871, %v5871
      %v6099 = vunpack.c.l.s4 1983009808
      %v6100 = vunpack.c.0.s8 %v6099
      %v6101 = vlaneseq
      %v6102 = vshrl.u32 %v6101, 7
      %v6103 = vsub.s32 %v6100, %v6102
      %v6104 = vrot.slane %v5871, %v6103
      %v6106 = vunpack.c.l.s4 1983009808
      %v6107 = vunpack.c.0.s8 %v6106
      %v6108 = vlaneseq
      %v6109 = vshrl.u32 %v6108, 7
      %v6110 = vsub.s32 %v6107, %v6109
      %v6111 = vrot.slane %v6097, %v6110
      %v6112 = vcombine.high %v6104, %v6104
      %v6113 = vcombine.high %v6111, %v6111
      %v6114 = vcombine.high %v5872, %v5872
      %v6116 = vunpack.c.l.s4 1983009808
      %v6117 = vunpack.c.0.s8 %v6116
      %v6118 = vlaneseq
      %v6119 = vshrl.u32 %v6118, 7
      %v6120 = vsub.s32 %v6117, %v6119
      %v6121 = vrot.slane %v5872, %v6120
      %v6123 = vunpack.c.l.s4 1983009808
      %v6124 = vunpack.c.0.s8 %v6123
      %v6125 = vlaneseq
      %v6126 = vshrl.u32 %v6125, 7
      %v6127 = vsub.s32 %v6124, %v6126
      %v6128 = vrot.slane %v6114, %v6127
      %v6129 = vcombine.high %v6121, %v6121
      %v6130 = vcombine.high %v6128, %v6128
      %v6131 = vcombine.high %v5873, %v5873
      %v6133 = vunpack.c.l.s4 1983009808
      %v6134 = vunpack.c.0.s8 %v6133
      %v6135 = vlaneseq
      %v6136 = vshrl.u32 %v6135, 7
      %v6137 = vsub.s32 %v6134, %v6136
      %v6138 = vrot.slane %v5873, %v6137
      %v6140 = vunpack.c.l.s4 1983009808
      %v6141 = vunpack.c.0.s8 %v6140
      %v6142 = vlaneseq
      %v6143 = vshrl.u32 %v6142, 7
      %v6144 = vsub.s32 %v6141, %v6143
      %v6145 = vrot.slane %v6131, %v6144
      %v6146 = vcombine.high %v6138, %v6138
      %v6147 = vcombine.high %v6145, %v6145
      %v6148 = vcombine.high %v5874, %v5874
      %v6150 = vunpack.c.l.s4 1983009808
      %v6151 = vunpack.c.0.s8 %v6150
      %v6152 = vlaneseq
      %v6153 = vshrl.u32 %v6152, 7
      %v6154 = vsub.s32 %v6151, %v6153
      %v6155 = vrot.slane %v5874, %v6154
      %v6157 = vunpack.c.l.s4 1983009808
      %v6158 = vunpack.c.0.s8 %v6157
      %v6159 = vlaneseq
      %v6160 = vshrl.u32 %v6159, 7
      %v6161 = vsub.s32 %v6158, %v6160
      %v6162 = vrot.slane %v6148, %v6161
      %v6163 = vcombine.high %v6155, %v6155
      %v6164 = vcombine.high %v6162, %v6162
      %v6165 = vcombine.high %v5875, %v5875
      %v6167 = vunpack.c.l.s4 1983009808
      %v6168 = vunpack.c.0.s8 %v6167
      %v6169 = vlaneseq
      %v6170 = vshrl.u32 %v6169, 7
      %v6171 = vsub.s32 %v6168, %v6170
      %v6172 = vrot.slane %v5875, %v6171
      %v6174 = vunpack.c.l.s4 1983009808
      %v6175 = vunpack.c.0.s8 %v6174
      %v6176 = vlaneseq
      %v6177 = vshrl.u32 %v6176, 7
      %v6178 = vsub.s32 %v6175, %v6177
      %v6179 = vrot.slane %v6165, %v6178
      %v6180 = vcombine.high %v6172, %v6172
      %v6181 = vcombine.high %v6179, %v6179
      %v6182 = vcombine.high %v5876, %v5876
      %v6184 = vunpack.c.l.s4 1983009808
      %v6185 = vunpack.c.0.s8 %v6184
      %v6186 = vlaneseq
      %v6187 = vshrl.u32 %v6186, 7
      %v6188 = vsub.s32 %v6185, %v6187
      %v6189 = vrot.slane %v5876, %v6188
      %v6191 = vunpack.c.l.s4 1983009808
      %v6192 = vunpack.c.0.s8 %v6191
      %v6193 = vlaneseq
      %v6194 = vshrl.u32 %v6193, 7
      %v6195 = vsub.s32 %v6192, %v6194
      %v6196 = vrot.slane %v6182, %v6195
      %v6197 = vcombine.high %v6189, %v6189
      %v6198 = vcombine.high %v6196, %v6196
      %v6199 = vcombine.high %v5877, %v5877
      %v6201 = vunpack.c.l.s4 1983009808
      %v6202 = vunpack.c.0.s8 %v6201
      %v6203 = vlaneseq
      %v6204 = vshrl.u32 %v6203, 7
      %v6205 = vsub.s32 %v6202, %v6204
      %v6206 = vrot.slane %v5877, %v6205
      %v6208 = vunpack.c.l.s4 1983009808
      %v6209 = vunpack.c.0.s8 %v6208
      %v6210 = vlaneseq
      %v6211 = vshrl.u32 %v6210, 7
      %v6212 = vsub.s32 %v6209, %v6211
      %v6213 = vrot.slane %v6199, %v6212
      %v6214 = vcombine.high %v6206, %v6206
      %v6215 = vcombine.high %v6213, %v6213
      %v6216 = vcombine.high %v5878, %v5878
      %v6218 = vunpack.c.l.s4 1983009808
      %v6219 = vunpack.c.0.s8 %v6218
      %v6220 = vlaneseq
      %v6221 = vshrl.u32 %v6220, 7
      %v6222 = vsub.s32 %v6219, %v6221
      %v6223 = vrot.slane %v5878, %v6222
      %v6225 = vunpack.c.l.s4 1983009808
      %v6226 = vunpack.c.0.s8 %v6225
      %v6227 = vlaneseq
      %v6228 = vshrl.u32 %v6227, 7
      %v6229 = vsub.s32 %v6226, %v6228
      %v6230 = vrot.slane %v6216, %v6229
      %v6231 = vcombine.high %v6223, %v6223
      %v6232 = vcombine.high %v6230, %v6230
      %v6233 = vcombine.high %v5879, %v5879
      %v6235 = vunpack.c.l.s4 1983009808
      %v6236 = vunpack.c.0.s8 %v6235
      %v6237 = vlaneseq
      %v6238 = vshrl.u32 %v6237, 7
      %v6239 = vsub.s32 %v6236, %v6238
      %v6240 = vrot.slane %v5879, %v6239
      %v6242 = vunpack.c.l.s4 1983009808
      %v6243 = vunpack.c.0.s8 %v6242
      %v6244 = vlaneseq
      %v6245 = vshrl.u32 %v6244, 7
      %v6246 = vsub.s32 %v6243, %v6245
      %v6247 = vrot.slane %v6233, %v6246
      %v6248 = vcombine.high %v6240, %v6240
      %v6249 = vcombine.high %v6247, %v6247
      %v6250 = vcombine.high %v5880, %v5880
      %v6252 = vunpack.c.l.s4 1983009808
      %v6253 = vunpack.c.0.s8 %v6252
      %v6254 = vlaneseq
      %v6255 = vshrl.u32 %v6254, 7
      %v6256 = vsub.s32 %v6253, %v6255
      %v6257 = vrot.slane %v5880, %v6256
      %v6259 = vunpack.c.l.s4 1983009808
      %v6260 = vunpack.c.0.s8 %v6259
      %v6261 = vlaneseq
      %v6262 = vshrl.u32 %v6261, 7
      %v6263 = vsub.s32 %v6260, %v6262
      %v6264 = vrot.slane %v6250, %v6263
      %v6265 = vcombine.high %v6257, %v6257
      %v6266 = vcombine.high %v6264, %v6264
      %v6267 = vcombine.high %v5881, %v5881
      %v6269 = vunpack.c.l.s4 1983009808
      %v6270 = vunpack.c.0.s8 %v6269
      %v6271 = vlaneseq
      %v6272 = vshrl.u32 %v6271, 7
      %v6273 = vsub.s32 %v6270, %v6272
      %v6274 = vrot.slane %v5881, %v6273
      %v6276 = vunpack.c.l.s4 1983009808
      %v6277 = vunpack.c.0.s8 %v6276
      %v6278 = vlaneseq
      %v6279 = vshrl.u32 %v6278, 7
      %v6280 = vsub.s32 %v6277, %v6279
      %v6281 = vrot.slane %v6267, %v6280
      %v6282 = vcombine.high %v6274, %v6274
      %v6283 = vcombine.high %v6281, %v6281
      %v6284 = vcombine.high %v5882, %v5882
      %v6286 = vunpack.c.l.s4 1983009808
      %v6287 = vunpack.c.0.s8 %v6286
      %v6288 = vlaneseq
      %v6289 = vshrl.u32 %v6288, 7
      %v6290 = vsub.s32 %v6287, %v6289
      %v6291 = vrot.slane %v5882, %v6290
      %v6293 = vunpack.c.l.s4 1983009808
      %v6294 = vunpack.c.0.s8 %v6293
      %v6295 = vlaneseq
      %v6296 = vshrl.u32 %v6295, 7
      %v6297 = vsub.s32 %v6294, %v6296
      %v6298 = vrot.slane %v6284, %v6297
      %v6299 = vcombine.high %v6291, %v6291
      %v6300 = vcombine.high %v6298, %v6298
      %v6301 = vcombine.high %v5883, %v5883
      %v6303 = vunpack.c.l.s4 1983009808
      %v6304 = vunpack.c.0.s8 %v6303
      %v6305 = vlaneseq
      %v6306 = vshrl.u32 %v6305, 7
      %v6307 = vsub.s32 %v6304, %v6306
      %v6308 = vrot.slane %v5883, %v6307
      %v6310 = vunpack.c.l.s4 1983009808
      %v6311 = vunpack.c.0.s8 %v6310
      %v6312 = vlaneseq
      %v6313 = vshrl.u32 %v6312, 7
      %v6314 = vsub.s32 %v6311, %v6313
      %v6315 = vrot.slane %v6301, %v6314
      %v6316 = vcombine.high %v6308, %v6308
      %v6317 = vcombine.high %v6315, %v6315
      %v6319 = vunpack.c.l.s4 1983009808
      %v6320 = vunpack.c.0.s8 %v6319
      %v6321 = vlaneseq
      %v6322 = vshrl.u32 %v6321, 7
      %v6323 = vsub.s32 %v6320, %v6322
      %v6324 = vrot.slane %v5884, %v6323
      %v6325 = vcombine.high %v6324, %v6324
      %v6424 = vrot.slane %v5917, 7
      %v6425 = vrot.slane %v6424, 2
      %v6426 = vrot.slane %v5925, 7
      %v6427 = vrot.slane %v6426, 2
      %v6428 = vrot.slane %v5924, 7
      %v6429 = vrot.slane %v6428, 2
      %v6430 = vrot.slane %v5926, 7
      %v6431 = vrot.slane %v6430, 2
      %v6432 = vrot.slane %v5934, 7
      %v6433 = vrot.slane %v6432, 2
      %v6434 = vrot.slane %v5942, 7
      %v6435 = vrot.slane %v6434, 2
      %v6436 = vrot.slane %v5941, 7
      %v6437 = vrot.slane %v6436, 2
      %v6438 = vrot.slane %v5943, 7
      %v6439 = vrot.slane %v6438, 2
      %v6440 = vrot.slane %v5951, 7
      %v6441 = vrot.slane %v6440, 2
      %v6442 = vrot.slane %v5959, 7
      %v6443 = vrot.slane %v6442, 2
      %v6444 = vrot.slane %v5958, 7
      %v6445 = vrot.slane %v6444, 2
      %v6446 = vrot.slane %v5960, 7
      %v6447 = vrot.slane %v6446, 2
      %v6448 = vrot.slane %v5968, 7
      %v6449 = vrot.slane %v6448, 2
      %v6450 = vrot.slane %v5976, 7
      %v6451 = vrot.slane %v6450, 2
      %v6452 = vrot.slane %v5975, 7
      %v6453 = vrot.slane %v6452, 2
      %v6454 = vrot.slane %v5977, 7
      %v6455 = vrot.slane %v6454, 2
      %v6456 = vrot.slane %v5985, 7
      %v6457 = vrot.slane %v6456, 2
      %v6458 = vrot.slane %v5993, 7
      %v6459 = vrot.slane %v6458, 2
      %v6460 = vrot.slane %v5992, 7
      %v6461 = vrot.slane %v6460, 2
      %v6462 = vrot.slane %v5994, 7
      %v6463 = vrot.slane %v6462, 2
      %v6464 = vrot.slane %v6002, 7
      %v6465 = vrot.slane %v6464, 2
      %v6466 = vrot.slane %v6010, 7
      %v6467 = vrot.slane %v6466, 2
      %v6468 = vrot.slane %v6009, 7
      %v6469 = vrot.slane %v6468, 2
      %v6470 = vrot.slane %v6011, 7
      %v6471 = vrot.slane %v6470, 2
      %v6472 = vrot.slane %v6019, 7
      %v6473 = vrot.slane %v6472, 2
      %v6474 = vrot.slane %v6027, 7
      %v6475 = vrot.slane %v6474, 2
      %v6476 = vrot.slane %v6026, 7
      %v6477 = vrot.slane %v6476, 2
      %v6478 = vrot.slane %v6028, 7
      %v6479 = vrot.slane %v6478, 2
      %v6480 = vrot.slane %v6036, 7
      %v6481 = vrot.slane %v6480, 2
      %v6482 = vrot.slane %v6044, 7
      %v6483 = vrot.slane %v6482, 2
      %v6484 = vrot.slane %v6043, 7
      %v6485 = vrot.slane %v6484, 2
      %v6486 = vrot.slane %v6045, 7
      %v6487 = vrot.slane %v6486, 2
      %v6488 = vrot.slane %v6053, 7
      %v6489 = vrot.slane %v6488, 2
      %v6490 = vrot.slane %v6061, 7
      %v6491 = vrot.slane %v6490, 2
      %v6492 = vrot.slane %v6060, 7
      %v6493 = vrot.slane %v6492, 2
      %v6494 = vrot.slane %v6062, 7
      %v6495 = vrot.slane %v6494, 2
      %v6496 = vrot.slane %v6070, 7
      %v6497 = vrot.slane %v6496, 2
      %v6498 = vrot.slane %v6078, 7
      %v6499 = vrot.slane %v6498, 2
      %v6500 = vrot.slane %v6077, 7
      %v6501 = vrot.slane %v6500, 2
      %v6502 = vrot.slane %v6079, 7
      %v6503 = vrot.slane %v6502, 2
      %v6504 = vrot.slane %v6087, 7
      %v6505 = vrot.slane %v6504, 2
      %v6506 = vrot.slane %v6095, 7
      %v6507 = vrot.slane %v6506, 2
      %v6508 = vrot.slane %v6094, 7
      %v6509 = vrot.slane %v6508, 2
      %v6510 = vrot.slane %v6096, 7
      %v6511 = vrot.slane %v6510, 2
      %v6512 = vrot.slane %v6104, 7
      %v6513 = vrot.slane %v6512, 2
      %v6514 = vrot.slane %v6112, 7
      %v6515 = vrot.slane %v6514, 2
      %v6516 = vrot.slane %v6111, 7
      %v6517 = vrot.slane %v6516, 2
      %v6518 = vrot.slane %v6113, 7
      %v6519 = vrot.slane %v6518, 2
      %v6520 = vrot.slane %v6121, 7
      %v6521 = vrot.slane %v6520, 2
      %v6522 = vrot.slane %v6129, 7
      %v6523 = vrot.slane %v6522, 2
      %v6524 = vrot.slane %v6128, 7
      %v6525 = vrot.slane %v6524, 2
      %v6526 = vrot.slane %v6130, 7
      %v6527 = vrot.slane %v6526, 2
      %v6528 = vrot.slane %v6138, 7
      %v6529 = vrot.slane %v6528, 2
      %v6530 = vrot.slane %v6146, 7
      %v6531 = vrot.slane %v6530, 2
      %v6532 = vrot.slane %v6145, 7
      %v6533 = vrot.slane %v6532, 2
      %v6534 = vrot.slane %v6147, 7
      %v6535 = vrot.slane %v6534, 2
      %v6536 = vrot.slane %v6155, 7
      %v6537 = vrot.slane %v6536, 2
      %v6538 = vrot.slane %v6163, 7
      %v6539 = vrot.slane %v6538, 2
      %v6540 = vrot.slane %v6162, 7
      %v6541 = vrot.slane %v6540, 2
      %v6542 = vrot.slane %v6164, 7
      %v6543 = vrot.slane %v6542, 2
      %v6544 = vrot.slane %v6172, 7
      %v6545 = vrot.slane %v6544, 2
      %v6546 = vrot.slane %v6180, 7
      %v6547 = vrot.slane %v6546, 2
      %v6548 = vrot.slane %v6179, 7
      %v6549 = vrot.slane %v6548, 2
      %v6550 = vrot.slane %v6181, 7
      %v6551 = vrot.slane %v6550, 2
      %v6552 = vrot.slane %v6189, 7
      %v6553 = vrot.slane %v6552, 2
      %v6554 = vrot.slane %v6197, 7
      %v6555 = vrot.slane %v6554, 2
      %v6556 = vrot.slane %v6196, 7
      %v6557 = vrot.slane %v6556, 2
      %v6558 = vrot.slane %v6198, 7
      %v6559 = vrot.slane %v6558, 2
      %v6560 = vrot.slane %v6206, 7
      %v6561 = vrot.slane %v6560, 2
      %v6562 = vrot.slane %v6214, 7
      %v6563 = vrot.slane %v6562, 2
      %v6564 = vrot.slane %v6213, 7
      %v6565 = vrot.slane %v6564, 2
      %v6566 = vrot.slane %v6215, 7
      %v6567 = vrot.slane %v6566, 2
      %v6568 = vrot.slane %v6223, 7
      %v6569 = vrot.slane %v6568, 2
      %v6570 = vrot.slane %v6231, 7
      %v6571 = vrot.slane %v6570, 2
      %v6572 = vrot.slane %v6230, 7
      %v6573 = vrot.slane %v6572, 2
      %v6574 = vrot.slane %v6232, 7
      %v6575 = vrot.slane %v6574, 2
      %v6576 = vrot.slane %v6240, 7
      %v6577 = vrot.slane %v6576, 2
      %v6578 = vrot.slane %v6248, 7
      %v6579 = vrot.slane %v6578, 2
      %v6580 = vrot.slane %v6247, 7
      %v6581 = vrot.slane %v6580, 2
      %v6582 = vrot.slane %v6249, 7
      %v6583 = vrot.slane %v6582, 2
      %v6584 = vrot.slane %v6257, 7
      %v6585 = vrot.slane %v6584, 2
      %v6586 = vrot.slane %v6265, 7
      %v6587 = vrot.slane %v6586, 2
      %v6588 = vrot.slane %v6264, 7
      %v6589 = vrot.slane %v6588, 2
      %v6590 = vrot.slane %v6266, 7
      %v6591 = vrot.slane %v6590, 2
      %v6592 = vrot.slane %v6274, 7
      %v6593 = vrot.slane %v6592, 2
      %v6594 = vrot.slane %v6282, 7
      %v6595 = vrot.slane %v6594, 2
      %v6596 = vrot.slane %v6281, 7
      %v6597 = vrot.slane %v6596, 2
      %v6598 = vrot.slane %v6283, 7
      %v6599 = vrot.slane %v6598, 2
      %v6600 = vrot.slane %v6291, 7
      %v6601 = vrot.slane %v6600, 2
      %v6602 = vrot.slane %v6299, 7
      %v6603 = vrot.slane %v6602, 2
      %v6604 = vrot.slane %v6298, 7
      %v6605 = vrot.slane %v6604, 2
      %v6606 = vrot.slane %v6300, 7
      %v6607 = vrot.slane %v6606, 2
      %v6608 = vrot.slane %v6308, 7
      %v6609 = vrot.slane %v6608, 2
      %v6610 = vrot.slane %v6316, 7
      %v6611 = vrot.slane %v6610, 2
      %v6612 = vrot.slane %v6315, 7
      %v6613 = vrot.slane %v6612, 2
      %v6614 = vrot.slane %v6317, 7
      %v6615 = vrot.slane %v6614, 2
      %v6616 = vrot.slane %v6324, 7
      %v6617 = vrot.slane %v6616, 2
      %v6618 = vrot.slane %v6325, 7
      %v6619 = vrot.slane %v6618, 2
      %v6718 = vmax.f32 %v5917, %v6425
      %v6719 = vmax.f32 %v5925, %v6427
      %v6720 = vmax.f32 %v5924, %v6429
      %v6721 = vmax.f32 %v5926, %v6431
      %v6722 = vmax.f32 %v5934, %v6433
      %v6723 = vmax.f32 %v5942, %v6435
      %v6724 = vmax.f32 %v5941, %v6437
      %v6725 = vmax.f32 %v5943, %v6439
      %v6726 = vmax.f32 %v5951, %v6441
      %v6727 = vmax.f32 %v5959, %v6443
      %v6728 = vmax.f32 %v5958, %v6445
      %v6729 = vmax.f32 %v5960, %v6447
      %v6730 = vmax.f32 %v5968, %v6449
      %v6731 = vmax.f32 %v5976, %v6451
      %v6732 = vmax.f32 %v5975, %v6453
      %v6733 = vmax.f32 %v5977, %v6455
      %v6734 = vmax.f32 %v5985, %v6457
      %v6735 = vmax.f32 %v5993, %v6459
      %v6736 = vmax.f32 %v5992, %v6461
      %v6737 = vmax.f32 %v5994, %v6463
      %v6738 = vmax.f32 %v6002, %v6465
      %v6739 = vmax.f32 %v6010, %v6467
      %v6740 = vmax.f32 %v6009, %v6469
      %v6741 = vmax.f32 %v6011, %v6471
      %v6742 = vmax.f32 %v6019, %v6473
      %v6743 = vmax.f32 %v6027, %v6475
      %v6744 = vmax.f32 %v6026, %v6477
      %v6745 = vmax.f32 %v6028, %v6479
      %v6746 = vmax.f32 %v6036, %v6481
      %v6747 = vmax.f32 %v6044, %v6483
      %v6748 = vmax.f32 %v6043, %v6485
      %v6749 = vmax.f32 %v6045, %v6487
      %v6750 = vmax.f32 %v6053, %v6489
      %v6751 = vmax.f32 %v6061, %v6491
      %v6752 = vmax.f32 %v6060, %v6493
      %v6753 = vmax.f32 %v6062, %v6495
      %v6754 = vmax.f32 %v6070, %v6497
      %v6755 = vmax.f32 %v6078, %v6499
      %v6756 = vmax.f32 %v6077, %v6501
      %v6757 = vmax.f32 %v6079, %v6503
      %v6758 = vmax.f32 %v6087, %v6505
      %v6759 = vmax.f32 %v6095, %v6507
      %v6760 = vmax.f32 %v6094, %v6509
      %v6761 = vmax.f32 %v6096, %v6511
      %v6762 = vmax.f32 %v6104, %v6513
      %v6763 = vmax.f32 %v6112, %v6515
      %v6764 = vmax.f32 %v6111, %v6517
      %v6765 = vmax.f32 %v6113, %v6519
      %v6766 = vmax.f32 %v6121, %v6521
      %v6767 = vmax.f32 %v6129, %v6523
      %v6768 = vmax.f32 %v6128, %v6525
      %v6769 = vmax.f32 %v6130, %v6527
      %v6770 = vmax.f32 %v6138, %v6529
      %v6771 = vmax.f32 %v6146, %v6531
      %v6772 = vmax.f32 %v6145, %v6533
      %v6773 = vmax.f32 %v6147, %v6535
      %v6774 = vmax.f32 %v6155, %v6537
      %v6775 = vmax.f32 %v6163, %v6539
      %v6776 = vmax.f32 %v6162, %v6541
      %v6777 = vmax.f32 %v6164, %v6543
      %v6778 = vmax.f32 %v6172, %v6545
      %v6779 = vmax.f32 %v6180, %v6547
      %v6780 = vmax.f32 %v6179, %v6549
      %v6781 = vmax.f32 %v6181, %v6551
      %v6782 = vmax.f32 %v6189, %v6553
      %v6783 = vmax.f32 %v6197, %v6555
      %v6784 = vmax.f32 %v6196, %v6557
      %v6785 = vmax.f32 %v6198, %v6559
      %v6786 = vmax.f32 %v6206, %v6561
      %v6787 = vmax.f32 %v6214, %v6563
      %v6788 = vmax.f32 %v6213, %v6565
      %v6789 = vmax.f32 %v6215, %v6567
      %v6790 = vmax.f32 %v6223, %v6569
      %v6791 = vmax.f32 %v6231, %v6571
      %v6792 = vmax.f32 %v6230, %v6573
      %v6793 = vmax.f32 %v6232, %v6575
      %v6794 = vmax.f32 %v6240, %v6577
      %v6795 = vmax.f32 %v6248, %v6579
      %v6796 = vmax.f32 %v6247, %v6581
      %v6797 = vmax.f32 %v6249, %v6583
      %v6798 = vmax.f32 %v6257, %v6585
      %v6799 = vmax.f32 %v6265, %v6587
      %v6800 = vmax.f32 %v6264, %v6589
      %v6801 = vmax.f32 %v6266, %v6591
      %v6802 = vmax.f32 %v6274, %v6593
      %v6803 = vmax.f32 %v6282, %v6595
      %v6804 = vmax.f32 %v6281, %v6597
      %v6805 = vmax.f32 %v6283, %v6599
      %v6806 = vmax.f32 %v6291, %v6601
      %v6807 = vmax.f32 %v6299, %v6603
      %v6808 = vmax.f32 %v6298, %v6605
      %v6809 = vmax.f32 %v6300, %v6607
      %v6810 = vmax.f32 %v6308, %v6609
      %v6811 = vmax.f32 %v6316, %v6611
      %v6812 = vmax.f32 %v6315, %v6613
      %v6813 = vmax.f32 %v6317, %v6615
      %v6814 = vmax.f32 %v6324, %v6617
      %v6815 = vmax.f32 %v6325, %v6619
      %v6816 = vmax.f32 %v6718, %v6725
      %v6817 = vmax.f32 %v6719, %v6726
      %v6818 = vmax.f32 %v6720, %v6727
      %v6819 = vmax.f32 %v6721, %v6728
      %v6820 = vmax.f32 %v6722, %v6729
      %v6821 = vmax.f32 %v6723, %v6730
      %v6822 = vmax.f32 %v6724, %v6731
      %v6823 = vmax.f32 %v6732, %v6739
      %v6824 = vmax.f32 %v6733, %v6740
      %v6825 = vmax.f32 %v6734, %v6741
      %v6826 = vmax.f32 %v6735, %v6742
      %v6827 = vmax.f32 %v6736, %v6743
      %v6828 = vmax.f32 %v6737, %v6744
      %v6829 = vmax.f32 %v6738, %v6745
      %v6830 = vmax.f32 %v6746, %v6753
      %v6831 = vmax.f32 %v6747, %v6754
      %v6832 = vmax.f32 %v6748, %v6755
      %v6833 = vmax.f32 %v6749, %v6756
      %v6834 = vmax.f32 %v6750, %v6757
      %v6835 = vmax.f32 %v6751, %v6758
      %v6836 = vmax.f32 %v6752, %v6759
      %v6837 = vmax.f32 %v6760, %v6767
      %v6838 = vmax.f32 %v6761, %v6768
      %v6839 = vmax.f32 %v6762, %v6769
      %v6840 = vmax.f32 %v6763, %v6770
      %v6841 = vmax.f32 %v6764, %v6771
      %v6842 = vmax.f32 %v6765, %v6772
      %v6843 = vmax.f32 %v6766, %v6773
      %v6844 = vmax.f32 %v6774, %v6781
      %v6845 = vmax.f32 %v6775, %v6782
      %v6846 = vmax.f32 %v6776, %v6783
      %v6847 = vmax.f32 %v6777, %v6784
      %v6848 = vmax.f32 %v6778, %v6785
      %v6849 = vmax.f32 %v6779, %v6786
      %v6850 = vmax.f32 %v6780, %v6787
      %v6851 = vmax.f32 %v6788, %v6795
      %v6852 = vmax.f32 %v6789, %v6796
      %v6853 = vmax.f32 %v6790, %v6797
      %v6854 = vmax.f32 %v6791, %v6798
      %v6855 = vmax.f32 %v6792, %v6799
      %v6856 = vmax.f32 %v6793, %v6800
      %v6857 = vmax.f32 %v6794, %v6801
      %v6858 = vmax.f32 %v6802, %v6809
      %v6859 = vmax.f32 %v6803, %v6810
      %v6860 = vmax.f32 %v6804, %v6811
      %v6861 = vmax.f32 %v6805, %v6812
      %v6862 = vmax.f32 %v6806, %v6813
      %v6863 = vmax.f32 %v6807, %v6814
      %v6864 = vmax.f32 %v6808, %v6815
      %v6865 = vpack.c.bf16 %v6816, %v6816
      %v6866 = vpack.c.bf16 %v6817, %v6817
      %v6867 = vpack.c.bf16 %v6818, %v6818
      %v6868 = vpack.c.bf16 %v6819, %v6819
      %v6869 = vpack.c.bf16 %v6820, %v6820
      %v6870 = vpack.c.bf16 %v6823, %v6823
      %v6871 = vpack.c.bf16 %v6824, %v6824
      %v6872 = vpack.c.bf16 %v6825, %v6825
      %v6873 = vpack.c.bf16 %v6826, %v6826
      %v6874 = vpack.c.bf16 %v6827, %v6827
      %v6875 = vpack.c.bf16 %v6830, %v6830
      %v6876 = vpack.c.bf16 %v6831, %v6831
      %v6877 = vpack.c.bf16 %v6832, %v6832
      %v6878 = vpack.c.bf16 %v6833, %v6833
      %v6879 = vpack.c.bf16 %v6834, %v6834
      %v6880 = vpack.c.bf16 %v6837, %v6837
      %v6881 = vpack.c.bf16 %v6838, %v6838
      %v6882 = vpack.c.bf16 %v6839, %v6839
      %v6883 = vpack.c.bf16 %v6840, %v6840
      %v6884 = vpack.c.bf16 %v6841, %v6841
      %v6885 = vpack.c.bf16 %v6844, %v6844
      %v6886 = vpack.c.bf16 %v6845, %v6845
      %v6887 = vpack.c.bf16 %v6846, %v6846
      %v6888 = vpack.c.bf16 %v6847, %v6847
      %v6889 = vpack.c.bf16 %v6848, %v6848
      %v6890 = vld [vmem:[%s5] sm:$0xf]
      %v6891 = vld [vmem:[%s5 + $0x4] sm:$0x1]
      %v6892 = vpack.c.bf16 %v6821, %v6821
      %v6893 = vpack.c.bf16 %v6828, %v6828
      %v6894 = vpack.c.bf16 %v6835, %v6835
      %v6895 = vpack.c.bf16 %v6842, %v6842
      %v6896 = vpack.c.bf16 %v6849, %v6849
      %s6897 = scalar_lea.vmem %s5, 8
      %v6898 = vld [vmem:[%s6897] sm:$0xf]
      %v6899 = vld [vmem:[%s6897 + $0x4] sm:$0x1]
      %v6925 = vunpack.c.l.b16 %v6866
      %v6926 = vunpack.c.l.b16 %v6867
      %v6927 = vunpack.c.l.b16 %v6868
      %v6928 = vunpack.c.l.b16 %v6869
      %v6929 = vunpack.c.l.b16 %v6892
      %v6930 = vunpack.c.l.b16 %v6871
      %v6931 = vunpack.c.l.b16 %v6872
      %v6932 = vunpack.c.l.b16 %v6873
      %v6933 = vunpack.c.l.b16 %v6874
      %v6934 = vunpack.c.l.b16 %v6893
      %v6935 = vunpack.c.l.b16 %v6876
      %v6936 = vunpack.c.l.b16 %v6877
      %v6937 = vunpack.c.l.b16 %v6878
      %v6938 = vunpack.c.l.b16 %v6879
      %v6939 = vunpack.c.l.b16 %v6894
      %v6940 = vunpack.c.l.b16 %v6881
      %v6941 = vunpack.c.l.b16 %v6882
      %v6942 = vunpack.c.l.b16 %v6883
      %v6943 = vunpack.c.l.b16 %v6884
      %v6944 = vunpack.c.l.b16 %v6895
      %v6945 = vunpack.c.l.b16 %v6886
      %v6946 = vunpack.c.l.b16 %v6887
      %v6947 = vunpack.c.l.b16 %v6888
      %v6948 = vunpack.c.l.b16 %v6889
      %v6949 = vunpack.c.l.b16 %v6896
      %v6950 = vrot.slane %v6926, 7
      %vm6951 = vcmask 1041409
      %v6952 = vsel %vm6951, %v6950, %v6925
      %v6953 = vrot.slane %v6927, 6
      %v6954 = vsel %vm1488, %v6953, %v6952
      %v6955 = vrot.slane %v6928, 5
      %vm6956 = vcmask 1043459
      %v6957 = vsel %vm6956, %v6955, %v6954
      %v6958 = vrot.slane %v6929, 4
      %v6959 = vsel %vm1490, %v6958, %v6957
      %v6960 = vrot.slane %v6930, 3
      %vm6961 = vcmask 1045509
      %v6962 = vsel %vm6961, %v6960, %v6959
      %v6963 = vrot.slane %v6931, 2
      %v6964 = vsel %vm1492, %v6963, %v6962
      %v6965 = vrot.slane %v6932, 1
      %vm6966 = vcmask 1047559
      %v6967 = vsel %vm6966, %v6965, %v6964
      %v6968 = vrot.slane %v6934, 7
      %v6969 = vsel %vm6951, %v6968, %v6933
      %v6970 = vrot.slane %v6935, 6
      %v6971 = vsel %vm1488, %v6970, %v6969
      %v6972 = vrot.slane %v6936, 5
      %v6973 = vsel %vm6956, %v6972, %v6971
      %v6974 = vrot.slane %v6937, 4
      %v6975 = vsel %vm1490, %v6974, %v6973
      %v6976 = vrot.slane %v6938, 3
      %v6977 = vsel %vm6961, %v6976, %v6975
      %v6978 = vrot.slane %v6939, 2
      %v6979 = vsel %vm1492, %v6978, %v6977
      %v6980 = vrot.slane %v6940, 1
      %v6981 = vsel %vm6966, %v6980, %v6979
      %v6982 = vrot.slane %v6942, 7
      %v6983 = vsel %vm6951, %v6982, %v6941
      %v6984 = vrot.slane %v6943, 6
      %v6985 = vsel %vm1488, %v6984, %v6983
      %v6986 = vrot.slane %v6944, 5
      %v6987 = vsel %vm6956, %v6986, %v6985
      %v6988 = vrot.slane %v6945, 4
      %v6989 = vsel %vm1490, %v6988, %v6987
      %v6990 = vrot.slane %v6946, 3
      %v6991 = vsel %vm6961, %v6990, %v6989
      %v6992 = vrot.slane %v6947, 2
      %v6993 = vsel %vm1492, %v6992, %v6991
      %v6994 = vrot.slane %v6948, 1
      %v6995 = vsel %vm6966, %v6994, %v6993
      %v6996 = vpack.c.b16 %v6981, %v6967
      %v6997 = vpack.c.b16 %v6949, %v6995
      %v7000 = vunpack.c.l.b16 %v6898
      %v7001 = vunpack.c.l.b16 %v6899
      %v7002 = vpack.c.b16 %v7001, %v7000
      %vm7003 = vcmask 80896
      %v7005 = vsel %vm7003, %v6996, 0
      %v7008 = vsel %vm7003, %v6997, 0
      %vm7010 = vcmask 1044480
      %v7012 = vsel %vm7010, %v7002, 0
      %7014 = vmatprep.subr.bf16.mxu0 0
      %7015 = vmatpush1.bf16.msra.mxu0 %v7012
      %7016 = vmatprep.subr.bf16.mxu0 0
      %7017 = vmatpush1.bf16.msra.mxu0 0
      %7018 = vmatprep.subr.bf16.mxu0 0
      %7019 = vmatpush1.bf16.msra.mxu0 0
      %7020 = vmatprep.subr.bf16.mxu0 0
      %7021 = vmatpush1.bf16.msra.mxu0 0
      %7022 = vmatprep.subr.bf16.mxu0 0
      %7023 = vmatpush1.bf16.msra.mxu0 0
      %7024 = vmatprep.subr.bf16.mxu0 0
      %7025 = vmatpush1.bf16.msra.mxu0 0
      %7026 = vmatprep.subr.bf16.mxu0 0
      %7027 = vmatpush1.bf16.msra.mxu0 0
      %7028 = vmatprep.subr.bf16.mxu0 0
      %7029 = vmatpush1.bf16.msra.mxu0 0
      %7030 = vmatprep.subr.bf16.mxu0 0
      %7031 = vmatpush1.bf16.msra.mxu0 0
      %7032 = vmatprep.subr.bf16.mxu0 0
      %7033 = vmatpush1.bf16.msra.mxu0 0
      %7034 = vmatprep.subr.bf16.mxu0 0
      %7035 = vmatpush1.bf16.msra.mxu0 0
      %7036 = vmatprep.subr.bf16.mxu0 0
      %7037 = vmatpush1.bf16.msra.mxu0 0
      %7038 = vmatprep.subr.bf16.mxu0 0
      %7039 = vmatpush1.bf16.msra.mxu0 0
      %7040 = vmatprep.subr.bf16.mxu0 0
      %7041 = vmatpush1.bf16.msra.mxu0 0
      %7042 = vmatprep.subr.bf16.mxu0 0
      %7043 = vmatpush1.bf16.msra.mxu0 0
      %7044 = vmatprep.subr.bf16.mxu0 0
      %7045 = vmatpush1.bf16.msra.mxu0 0
      %7046 = vmatprep.mubr.bf16.mxu0 0
      %7047 = vmatmul.mubr.bf16.gmra.mrb[0].mxu0 %v7005
      %v7048 = vpop.f32.mrb[0].mxu0
      %v7049 = vadd.f32 0.0, %v7048
      %v7050 = vpop.f32.mrb[0].mxu0
      %v7051 = vpop.f32.mrb[0].mxu0
      %v7052 = vadd.f32 0.0, %v7051
      %v7053 = vpop.f32.mrb[0].mxu0
      %7054 = vmatprep.mubr.bf16.mxu0 0
      %7055 = vmatmul.mubr.bf16.gmra.mrb[0].mxu0 %v7008
      %v7056 = vpop.f32.mrb[0].mxu0
      %v7057 = vadd.f32 0.0, %v7056
      %v7058 = vpop.f32.mrb[0].mxu0
      %v7059 = vpop.f32.mrb[0].mxu0
      %v7060 = vadd.f32 0.0, %v7059
      %v7061 = vpop.f32.mrb[0].mxu0
      %7062 = vdwg.mxu0
      %v7068 = vunpack.c.l.b16 %v6865
      %v7069 = vunpack.c.l.b16 %v6870
      %v7070 = vunpack.c.l.b16 %v6875
      %v7071 = vunpack.c.l.b16 %v6880
      %v7072 = vunpack.c.l.b16 %v6885
      %v7073 = vrot.slane %v6925, 7
      %v7074 = vsel %vm6951, %v7073, %v7068
      %v7075 = vrot.slane %v6926, 6
      %v7076 = vsel %vm1488, %v7075, %v7074
      %v7077 = vrot.slane %v6927, 5
      %v7078 = vsel %vm6956, %v7077, %v7076
      %v7079 = vrot.slane %v6928, 4
      %v7080 = vsel %vm1490, %v7079, %v7078
      %v7081 = vrot.slane %v7069, 3
      %v7082 = vsel %vm6961, %v7081, %v7080
      %v7083 = vrot.slane %v6930, 2
      %v7084 = vsel %vm1492, %v7083, %v7082
      %v7085 = vrot.slane %v6931, 1
      %v7086 = vsel %vm6966, %v7085, %v7084
      %v7087 = vrot.slane %v6933, 7
      %v7088 = vsel %vm6951, %v7087, %v6932
      %v7089 = vrot.slane %v7070, 6
      %v7090 = vsel %vm1488, %v7089, %v7088
      %v7091 = vrot.slane %v6935, 5
      %v7092 = vsel %vm6956, %v7091, %v7090
      %v7093 = vrot.slane %v6936, 4
      %v7094 = vsel %vm1490, %v7093, %v7092
      %v7095 = vrot.slane %v6937, 3
      %v7096 = vsel %vm6961, %v7095, %v7094
      %v7097 = vrot.slane %v6938, 2
      %v7098 = vsel %vm1492, %v7097, %v7096
      %v7099 = vrot.slane %v7071, 1
      %v7100 = vsel %vm6966, %v7099, %v7098
      %v7101 = vrot.slane %v6941, 7
      %v7102 = vsel %vm6951, %v7101, %v6940
      %v7103 = vrot.slane %v6942, 6
      %v7104 = vsel %vm1488, %v7103, %v7102
      %v7105 = vrot.slane %v6943, 5
      %v7106 = vsel %vm6956, %v7105, %v7104
      %v7107 = vrot.slane %v7072, 4
      %v7108 = vsel %vm1490, %v7107, %v7106
      %v7109 = vrot.slane %v6945, 3
      %v7110 = vsel %vm6961, %v7109, %v7108
      %v7111 = vrot.slane %v6946, 2
      %v7112 = vsel %vm1492, %v7111, %v7110
      %v7113 = vrot.slane %v6947, 1
      %v7114 = vsel %vm6966, %v7113, %v7112
      %v7115 = vpack.c.b16 %v7100, %v7086
      %v7116 = vpack.c.b16 %v6948, %v7114
      %v7119 = vunpack.c.l.b16 %v6890
      %v7120 = vunpack.c.l.b16 %v6891
      %v7121 = vpack.c.b16 %v7120, %v7119
      %v7123 = vsel %vm7003, %v7115, 0
      %v7126 = vsel %vm7003, %v7116, 0
      %v7129 = vsel %vm7010, %v7121, 0
      %7131 = vmatprep.subr.bf16.mxu0 0
      %7132 = vmatpush1.bf16.msra.mxu0 %v7129
      %7133 = vmatprep.subr.bf16.mxu0 0
      %7134 = vmatpush1.bf16.msra.mxu0 0
      %7135 = vmatprep.subr.bf16.mxu0 0
      %7136 = vmatpush1.bf16.msra.mxu0 0
      %7137 = vmatprep.subr.bf16.mxu0 0
      %7138 = vmatpush1.bf16.msra.mxu0 0
      %7139 = vmatprep.subr.bf16.mxu0 0
      %7140 = vmatpush1.bf16.msra.mxu0 0
      %7141 = vmatprep.subr.bf16.mxu0 0
      %7142 = vmatpush1.bf16.msra.mxu0 0
      %7143 = vmatprep.subr.bf16.mxu0 0
      %7144 = vmatpush1.bf16.msra.mxu0 0
      %7145 = vmatprep.subr.bf16.mxu0 0
      %7146 = vmatpush1.bf16.msra.mxu0 0
      %7147 = vmatprep.subr.bf16.mxu0 0
      %7148 = vmatpush1.bf16.msra.mxu0 0
      %7149 = vmatprep.subr.bf16.mxu0 0
      %7150 = vmatpush1.bf16.msra.mxu0 0
      %7151 = vmatprep.subr.bf16.mxu0 0
      %7152 = vmatpush1.bf16.msra.mxu0 0
      %7153 = vmatprep.subr.bf16.mxu0 0
      %7154 = vmatpush1.bf16.msra.mxu0 0
      %7155 = vmatprep.subr.bf16.mxu0 0
      %7156 = vmatpush1.bf16.msra.mxu0 0
      %7157 = vmatprep.subr.bf16.mxu0 0
      %7158 = vmatpush1.bf16.msra.mxu0 0
      %7159 = vmatprep.subr.bf16.mxu0 0
      %7160 = vmatpush1.bf16.msra.mxu0 0
      %7161 = vmatprep.subr.bf16.mxu0 0
      %7162 = vmatpush1.bf16.msra.mxu0 0
      %7163 = vmatprep.mubr.bf16.mxu0 0
      %7164 = vmatmul.mubr.bf16.gmra.mrb[0].mxu0 %v7123
      %v7165 = vpop.f32.mrb[0].mxu0
      %v7166 = vadd.f32 %v7049, %v7165
      %v7167 = vpop.f32.mrb[0].mxu0
      %v7168 = vpop.f32.mrb[0].mxu0
      %v7169 = vadd.f32 %v7052, %v7168
      %v7170 = vpop.f32.mrb[0].mxu0
      %7171 = vmatprep.mubr.bf16.mxu0 0
      %7172 = vmatmul.mubr.bf16.gmra.mrb[0].mxu0 %v7126
      %v7173 = vpop.f32.mrb[0].mxu0
      %v7174 = vadd.f32 %v7057, %v7173
      %v7175 = vpop.f32.mrb[0].mxu0
      %v7176 = vpop.f32.mrb[0].mxu0
      %v7177 = vadd.f32 %v7060, %v7176
      %v7178 = vpop.f32.mrb[0].mxu0
      %7179 = vdwg.mxu0
      %v7180 = vpack.c.bf16 %v6822, %v6822
      %v7181 = vpack.c.bf16 %v6829, %v6829
      %v7182 = vpack.c.bf16 %v6836, %v6836
      %v7183 = vpack.c.bf16 %v6843, %v6843
      %v7184 = vpack.c.bf16 %v6850, %v6850
      %s7185 = scalar_lea.vmem %s5, 16
      %v7186 = vld [vmem:[%s7185] sm:$0xf]
      %v7187 = vld [vmem:[%s7185 + $0x4] sm:$0x1]
      %v7193 = vunpack.c.l.b16 %v7180
      %v7194 = vunpack.c.l.b16 %v7181
      %v7195 = vunpack.c.l.b16 %v7182
      %v7196 = vunpack.c.l.b16 %v7183
      %v7197 = vunpack.c.l.b16 %v7184
      %v7198 = vrot.slane %v6927, 7
      %v7199 = vsel %vm6951, %v7198, %v6926
      %v7200 = vrot.slane %v6928, 6
      %v7201 = vsel %vm1488, %v7200, %v7199
      %v7202 = vrot.slane %v6929, 5
      %v7203 = vsel %vm6956, %v7202, %v7201
      %v7204 = vrot.slane %v7193, 4
      %v7205 = vsel %vm1490, %v7204, %v7203
      %v7206 = vrot.slane %v6931, 3
      %v7207 = vsel %vm6961, %v7206, %v7205
      %v7208 = vrot.slane %v6932, 2
      %v7209 = vsel %vm1492, %v7208, %v7207
      %v7210 = vrot.slane %v6933, 1
      %v7211 = vsel %vm6966, %v7210, %v7209
      %v7212 = vrot.slane %v7194, 7
      %v7213 = vsel %vm6951, %v7212, %v6934
      %v7214 = vrot.slane %v6936, 6
      %v7215 = vsel %vm1488, %v7214, %v7213
      %v7216 = vrot.slane %v6937, 5
      %v7217 = vsel %vm6956, %v7216, %v7215
      %v7218 = vrot.slane %v6938, 4
      %v7219 = vsel %vm1490, %v7218, %v7217
      %v7220 = vrot.slane %v6939, 3
      %v7221 = vsel %vm6961, %v7220, %v7219
      %v7222 = vrot.slane %v7195, 2
      %v7223 = vsel %vm1492, %v7222, %v7221
      %v7224 = vrot.slane %v6941, 1
      %v7225 = vsel %vm6966, %v7224, %v7223
      %v7226 = vrot.slane %v6943, 7
      %v7227 = vsel %vm6951, %v7226, %v6942
      %v7228 = vrot.slane %v6944, 6
      %v7229 = vsel %vm1488, %v7228, %v7227
      %v7230 = vrot.slane %v7196, 5
      %v7231 = vsel %vm6956, %v7230, %v7229
      %v7232 = vrot.slane %v6946, 4
      %v7233 = vsel %vm1490, %v7232, %v7231
      %v7234 = vrot.slane %v6947, 3
      %v7235 = vsel %vm6961, %v7234, %v7233
      %v7236 = vrot.slane %v6948, 2
      %v7237 = vsel %vm1492, %v7236, %v7235
      %v7238 = vrot.slane %v6949, 1
      %v7239 = vsel %vm6966, %v7238, %v7237
      %v7240 = vpack.c.b16 %v7225, %v7211
      %v7241 = vpack.c.b16 %v7197, %v7239
      %v7244 = vunpack.c.l.b16 %v7186
      %v7245 = vunpack.c.l.b16 %v7187
      %v7246 = vpack.c.b16 %v7245, %v7244
      %v7248 = vsel %vm7003, %v7240, 0
      %v7251 = vsel %vm7003, %v7241, 0
      %v7254 = vsel %vm7010, %v7246, 0
      %7256 = vmatprep.subr.bf16.mxu0 0
      %7257 = vmatpush1.bf16.msra.mxu0 %v7254
      %7258 = vmatprep.subr.bf16.mxu0 0
      %7259 = vmatpush1.bf16.msra.mxu0 0
      %7260 = vmatprep.subr.bf16.mxu0 0
      %7261 = vmatpush1.bf16.msra.mxu0 0
      %7262 = vmatprep.subr.bf16.mxu0 0
      %7263 = vmatpush1.bf16.msra.mxu0 0
      %7264 = vmatprep.subr.bf16.mxu0 0
      %7265 = vmatpush1.bf16.msra.mxu0 0
      %7266 = vmatprep.subr.bf16.mxu0 0
      %7267 = vmatpush1.bf16.msra.mxu0 0
      %7268 = vmatprep.subr.bf16.mxu0 0
      %7269 = vmatpush1.bf16.msra.mxu0 0
      %7270 = vmatprep.subr.bf16.mxu0 0
      %7271 = vmatpush1.bf16.msra.mxu0 0
      %7272 = vmatprep.subr.bf16.mxu0 0
      %7273 = vmatpush1.bf16.msra.mxu0 0
      %7274 = vmatprep.subr.bf16.mxu0 0
      %7275 = vmatpush1.bf16.msra.mxu0 0
      %7276 = vmatprep.subr.bf16.mxu0 0
      %7277 = vmatpush1.bf16.msra.mxu0 0
      %7278 = vmatprep.subr.bf16.mxu0 0
      %7279 = vmatpush1.bf16.msra.mxu0 0
      %7280 = vmatprep.subr.bf16.mxu0 0
      %7281 = vmatpush1.bf16.msra.mxu0 0
      %7282 = vmatprep.subr.bf16.mxu0 0
      %7283 = vmatpush1.bf16.msra.mxu0 0
      %7284 = vmatprep.subr.bf16.mxu0 0
      %7285 = vmatpush1.bf16.msra.mxu0 0
      %7286 = vmatprep.subr.bf16.mxu0 0
      %7287 = vmatpush1.bf16.msra.mxu0 0
      %7288 = vmatprep.mubr.bf16.mxu0 0
      %7289 = vmatmul.mubr.bf16.gmra.mrb[0].mxu0 %v7248
      %v7290 = vpop.f32.mrb[0].mxu0
      %v7291 = vadd.f32 0.0, %v7290
      %v7292 = vpop.f32.mrb[0].mxu0
      %v7293 = vpop.f32.mrb[0].mxu0
      %v7294 = vadd.f32 0.0, %v7293
      %v7295 = vpop.f32.mrb[0].mxu0
      %7296 = vmatprep.mubr.bf16.mxu0 0
      %7297 = vmatmul.mubr.bf16.gmra.mrb[0].mxu0 %v7251
      %v7298 = vpop.f32.mrb[0].mxu0
      %v7299 = vadd.f32 0.0, %v7298
      %v7300 = vpop.f32.mrb[0].mxu0
      %v7301 = vpop.f32.mrb[0].mxu0
      %v7302 = vadd.f32 0.0, %v7301
      %v7303 = vpop.f32.mrb[0].mxu0
      %7304 = vdwg.mxu0
      %v7305 = vadd.f32 %v7166, %v7291
      %v7306 = vadd.f32 %v7169, %v7294
      %v7307 = vadd.f32 %v7174, %v7299
      %v7308 = vadd.f32 %v7177, %v7302
      %v7309 = vpack.c.bf16 %v6851, %v6851
      %v7310 = vpack.c.bf16 %v6852, %v6852
      %v7311 = vpack.c.bf16 %v6853, %v6853
      %v7312 = vpack.c.bf16 %v6854, %v6854
      %v7313 = vpack.c.bf16 %v6855, %v6855
      %s7314 = scalar_lea.vmem %s5, 24
      %v7315 = vld [vmem:[%s7314] sm:$0xf]
      %v7316 = vld [vmem:[%s7314 + $0x4] sm:$0x1]
      %v7322 = vunpack.c.l.b16 %v7309
      %v7323 = vunpack.c.l.b16 %v7310
      %v7324 = vunpack.c.l.b16 %v7311
      %v7325 = vunpack.c.l.b16 %v7312
      %v7326 = vunpack.c.l.b16 %v7313
      %v7327 = vrot.slane %v6930, 7
      %v7328 = vsel %vm6951, %v7327, %v7069
      %v7329 = vrot.slane %v6931, 6
      %v7330 = vsel %vm1488, %v7329, %v7328
      %v7331 = vrot.slane %v6932, 5
      %v7332 = vsel %vm6956, %v7331, %v7330
      %v7333 = vrot.slane %v6933, 4
      %v7334 = vsel %vm1490, %v7333, %v7332
      %v7335 = vrot.slane %v7070, 3
      %v7336 = vsel %vm6961, %v7335, %v7334
      %v7337 = vrot.slane %v6935, 2
      %v7338 = vsel %vm1492, %v7337, %v7336
      %v7339 = vrot.slane %v6936, 1
      %v7340 = vsel %vm6966, %v7339, %v7338
      %v7341 = vrot.slane %v6938, 7
      %v7342 = vsel %vm6951, %v7341, %v6937
      %v7343 = vrot.slane %v7071, 6
      %v7344 = vsel %vm1488, %v7343, %v7342
      %v7345 = vrot.slane %v6940, 5
      %v7346 = vsel %vm6956, %v7345, %v7344
      %v7347 = vrot.slane %v6941, 4
      %v7348 = vsel %vm1490, %v7347, %v7346
      %v7349 = vrot.slane %v6942, 3
      %v7350 = vsel %vm6961, %v7349, %v7348
      %v7351 = vrot.slane %v6943, 2
      %v7352 = vsel %vm1492, %v7351, %v7350
      %v7353 = vrot.slane %v7072, 1
      %v7354 = vsel %vm6966, %v7353, %v7352
      %v7355 = vrot.slane %v6946, 7
      %v7356 = vsel %vm6951, %v7355, %v6945
      %v7357 = vrot.slane %v6947, 6
      %v7358 = vsel %vm1488, %v7357, %v7356
      %v7359 = vrot.slane %v6948, 5
      %v7360 = vsel %vm6956, %v7359, %v7358
      %v7361 = vrot.slane %v7322, 4
      %v7362 = vsel %vm1490, %v7361, %v7360
      %v7363 = vrot.slane %v7323, 3
      %v7364 = vsel %vm6961, %v7363, %v7362
      %v7365 = vrot.slane %v7324, 2
      %v7366 = vsel %vm1492, %v7365, %v7364
      %v7367 = vrot.slane %v7325, 1
      %v7368 = vsel %vm6966, %v7367, %v7366
      %v7369 = vpack.c.b16 %v7354, %v7340
      %v7370 = vpack.c.b16 %v7326, %v7368
      %v7373 = vunpack.c.l.b16 %v7315
      %v7374 = vunpack.c.l.b16 %v7316
      %v7375 = vpack.c.b16 %v7374, %v7373
      %v7377 = vsel %vm7003, %v7369, 0
      %v7380 = vsel %vm7003, %v7370, 0
      %v7383 = vsel %vm7010, %v7375, 0
      %7385 = vmatprep.subr.bf16.mxu0 0
      %7386 = vmatpush1.bf16.msra.mxu0 %v7383
      %7387 = vmatprep.subr.bf16.mxu0 0
      %7388 = vmatpush1.bf16.msra.mxu0 0
      %7389 = vmatprep.subr.bf16.mxu0 0
      %7390 = vmatpush1.bf16.msra.mxu0 0
      %7391 = vmatprep.subr.bf16.mxu0 0
      %7392 = vmatpush1.bf16.msra.mxu0 0
      %7393 = vmatprep.subr.bf16.mxu0 0
      %7394 = vmatpush1.bf16.msra.mxu0 0
      %7395 = vmatprep.subr.bf16.mxu0 0
      %7396 = vmatpush1.bf16.msra.mxu0 0
      %7397 = vmatprep.subr.bf16.mxu0 0
      %7398 = vmatpush1.bf16.msra.mxu0 0
      %7399 = vmatprep.subr.bf16.mxu0 0
      %7400 = vmatpush1.bf16.msra.mxu0 0
      %7401 = vmatprep.subr.bf16.mxu0 0
      %7402 = vmatpush1.bf16.msra.mxu0 0
      %7403 = vmatprep.subr.bf16.mxu0 0
      %7404 = vmatpush1.bf16.msra.mxu0 0
      %7405 = vmatprep.subr.bf16.mxu0 0
      %7406 = vmatpush1.bf16.msra.mxu0 0
      %7407 = vmatprep.subr.bf16.mxu0 0
      %7408 = vmatpush1.bf16.msra.mxu0 0
      %7409 = vmatprep.subr.bf16.mxu0 0
      %7410 = vmatpush1.bf16.msra.mxu0 0
      %7411 = vmatprep.subr.bf16.mxu0 0
      %7412 = vmatpush1.bf16.msra.mxu0 0
      %7413 = vmatprep.subr.bf16.mxu0 0
      %7414 = vmatpush1.bf16.msra.mxu0 0
      %7415 = vmatprep.subr.bf16.mxu0 0
      %7416 = vmatpush1.bf16.msra.mxu0 0
      %7417 = vmatprep.mubr.bf16.mxu0 0
      %7418 = vmatmul.mubr.bf16.gmra.mrb[0].mxu0 %v7377
      %v7419 = vpop.f32.mrb[0].mxu0
      %v7420 = vadd.f32 0.0, %v7419
      %v7421 = vpop.f32.mrb[0].mxu0
      %v7422 = vpop.f32.mrb[0].mxu0
      %v7423 = vadd.f32 0.0, %v7422
      %v7424 = vpop.f32.mrb[0].mxu0
      %7425 = vmatprep.mubr.bf16.mxu0 0
      %7426 = vmatmul.mubr.bf16.gmra.mrb[0].mxu0 %v7380
      %v7427 = vpop.f32.mrb[0].mxu0
      %v7428 = vadd.f32 0.0, %v7427
      %v7429 = vpop.f32.mrb[0].mxu0
      %v7430 = vpop.f32.mrb[0].mxu0
      %v7431 = vadd.f32 0.0, %v7430
      %v7432 = vpop.f32.mrb[0].mxu0
      %7433 = vdwg.mxu0
      %v7434 = vadd.f32 %v7305, %v7420
      %v7435 = vadd.f32 %v7306, %v7423
      %v7436 = vadd.f32 %v7307, %v7428
      %v7437 = vadd.f32 %v7308, %v7431
      %v7438 = vpack.c.bf16 %v6856, %v6856
      %s7439 = scalar_lea.vmem %s5, 32
      %v7440 = vld [vmem:[%s7439] sm:$0xf]
      %v7441 = vld [vmem:[%s7439 + $0x4] sm:$0x1]
      %v7443 = vunpack.c.l.b16 %v7438
      %v7444 = vrot.slane %v6931, 7
      %v7445 = vsel %vm6951, %v7444, %v6930
      %v7446 = vrot.slane %v6932, 6
      %v7447 = vsel %vm1488, %v7446, %v7445
      %v7448 = vrot.slane %v6933, 5
      %v7449 = vsel %vm6956, %v7448, %v7447
      %v7450 = vrot.slane %v6934, 4
      %v7451 = vsel %vm1490, %v7450, %v7449
      %v7452 = vrot.slane %v6935, 3
      %v7453 = vsel %vm6961, %v7452, %v7451
      %v7454 = vrot.slane %v6936, 2
      %v7455 = vsel %vm1492, %v7454, %v7453
      %v7456 = vrot.slane %v6937, 1
      %v7457 = vsel %vm6966, %v7456, %v7455
      %v7458 = vrot.slane %v6939, 7
      %v7459 = vsel %vm6951, %v7458, %v6938
      %v7460 = vrot.slane %v6940, 6
      %v7461 = vsel %vm1488, %v7460, %v7459
      %v7462 = vrot.slane %v6941, 5
      %v7463 = vsel %vm6956, %v7462, %v7461
      %v7464 = vrot.slane %v6942, 4
      %v7465 = vsel %vm1490, %v7464, %v7463
      %v7466 = vrot.slane %v6943, 3
      %v7467 = vsel %vm6961, %v7466, %v7465
      %v7468 = vrot.slane %v6944, 2
      %v7469 = vsel %vm1492, %v7468, %v7467
      %v7470 = vrot.slane %v6945, 1
      %v7471 = vsel %vm6966, %v7470, %v7469
      %v7472 = vrot.slane %v6947, 7
      %v7473 = vsel %vm6951, %v7472, %v6946
      %v7474 = vrot.slane %v6948, 6
      %v7475 = vsel %vm1488, %v7474, %v7473
      %v7476 = vrot.slane %v6949, 5
      %v7477 = vsel %vm6956, %v7476, %v7475
      %v7478 = vrot.slane %v7323, 4
      %v7479 = vsel %vm1490, %v7478, %v7477
      %v7480 = vrot.slane %v7324, 3
      %v7481 = vsel %vm6961, %v7480, %v7479
      %v7482 = vrot.slane %v7325, 2
      %v7483 = vsel %vm1492, %v7482, %v7481
      %v7484 = vrot.slane %v7326, 1
      %v7485 = vsel %vm6966, %v7484, %v7483
      %v7486 = vpack.c.b16 %v7471, %v7457
      %v7487 = vpack.c.b16 %v7443, %v7485
      %v7490 = vunpack.c.l.b16 %v7440
      %v7491 = vunpack.c.l.b16 %v7441
      %v7492 = vpack.c.b16 %v7491, %v7490
      %v7494 = vsel %vm7003, %v7486, 0
      %v7497 = vsel %vm7003, %v7487, 0
      %v7500 = vsel %vm7010, %v7492, 0
      %7502 = vmatprep.subr.bf16.mxu0 0
      %7503 = vmatpush1.bf16.msra.mxu0 %v7500
      %7504 = vmatprep.subr.bf16.mxu0 0
      %7505 = vmatpush1.bf16.msra.mxu0 0
      %7506 = vmatprep.subr.bf16.mxu0 0
      %7507 = vmatpush1.bf16.msra.mxu0 0
      %7508 = vmatprep.subr.bf16.mxu0 0
      %7509 = vmatpush1.bf16.msra.mxu0 0
      %7510 = vmatprep.subr.bf16.mxu0 0
      %7511 = vmatpush1.bf16.msra.mxu0 0
      %7512 = vmatprep.subr.bf16.mxu0 0
      %7513 = vmatpush1.bf16.msra.mxu0 0
      %7514 = vmatprep.subr.bf16.mxu0 0
      %7515 = vmatpush1.bf16.msra.mxu0 0
      %7516 = vmatprep.subr.bf16.mxu0 0
      %7517 = vmatpush1.bf16.msra.mxu0 0
      %7518 = vmatprep.subr.bf16.mxu0 0
      %7519 = vmatpush1.bf16.msra.mxu0 0
      %7520 = vmatprep.subr.bf16.mxu0 0
      %7521 = vmatpush1.bf16.msra.mxu0 0
      %7522 = vmatprep.subr.bf16.mxu0 0
      %7523 = vmatpush1.bf16.msra.mxu0 0
      %7524 = vmatprep.subr.bf16.mxu0 0
      %7525 = vmatpush1.bf16.msra.mxu0 0
      %7526 = vmatprep.subr.bf16.mxu0 0
      %7527 = vmatpush1.bf16.msra.mxu0 0
      %7528 = vmatprep.subr.bf16.mxu0 0
      %7529 = vmatpush1.bf16.msra.mxu0 0
      %7530 = vmatprep.subr.bf16.mxu0 0
      %7531 = vmatpush1.bf16.msra.mxu0 0
      %7532 = vmatprep.subr.bf16.mxu0 0
      %7533 = vmatpush1.bf16.msra.mxu0 0
      %7534 = vmatprep.mubr.bf16.mxu0 0
      %7535 = vmatmul.mubr.bf16.gmra.mrb[0].mxu0 %v7494
      %v7536 = vpop.f32.mrb[0].mxu0
      %v7537 = vadd.f32 0.0, %v7536
      %v7538 = vpop.f32.mrb[0].mxu0
      %v7539 = vpop.f32.mrb[0].mxu0
      %v7540 = vadd.f32 0.0, %v7539
      %v7541 = vpop.f32.mrb[0].mxu0
      %7542 = vmatprep.mubr.bf16.mxu0 0
      %7543 = vmatmul.mubr.bf16.gmra.mrb[0].mxu0 %v7497
      %v7544 = vpop.f32.mrb[0].mxu0
      %v7545 = vadd.f32 0.0, %v7544
      %v7546 = vpop.f32.mrb[0].mxu0
      %v7547 = vpop.f32.mrb[0].mxu0
      %v7548 = vadd.f32 0.0, %v7547
      %v7549 = vpop.f32.mrb[0].mxu0
      %7550 = vdwg.mxu0
      %v7551 = vadd.f32 %v7434, %v7537
      %v7552 = vadd.f32 %v7435, %v7540
      %v7553 = vadd.f32 %v7436, %v7545
      %v7554 = vadd.f32 %v7437, %v7548
      %v7555 = vpack.c.bf16 %v6857, %v6857
      %s7556 = scalar_lea.vmem %s5, 40
      %v7557 = vld [vmem:[%s7556] sm:$0xf]
      %v7558 = vld [vmem:[%s7556 + $0x4] sm:$0x1]
      %v7560 = vunpack.c.l.b16 %v7555
      %v7561 = vrot.slane %v6932, 7
      %v7562 = vsel %vm6951, %v7561, %v6931
      %v7563 = vrot.slane %v6933, 6
      %v7564 = vsel %vm1488, %v7563, %v7562
      %v7565 = vrot.slane %v6934, 5
      %v7566 = vsel %vm6956, %v7565, %v7564
      %v7567 = vrot.slane %v7194, 4
      %v7568 = vsel %vm1490, %v7567, %v7566
      %v7569 = vrot.slane %v6936, 3
      %v7570 = vsel %vm6961, %v7569, %v7568
      %v7571 = vrot.slane %v6937, 2
      %v7572 = vsel %vm1492, %v7571, %v7570
      %v7573 = vrot.slane %v6938, 1
      %v7574 = vsel %vm6966, %v7573, %v7572
      %v7575 = vrot.slane %v7195, 7
      %v7576 = vsel %vm6951, %v7575, %v6939
      %v7577 = vrot.slane %v6941, 6
      %v7578 = vsel %vm1488, %v7577, %v7576
      %v7579 = vrot.slane %v6942, 5
      %v7580 = vsel %vm6956, %v7579, %v7578
      %v7581 = vrot.slane %v6943, 4
      %v7582 = vsel %vm1490, %v7581, %v7580
      %v7583 = vrot.slane %v6944, 3
      %v7584 = vsel %vm6961, %v7583, %v7582
      %v7585 = vrot.slane %v7196, 2
      %v7586 = vsel %vm1492, %v7585, %v7584
      %v7587 = vrot.slane %v6946, 1
      %v7588 = vsel %vm6966, %v7587, %v7586
      %v7589 = vrot.slane %v6948, 7
      %v7590 = vsel %vm6951, %v7589, %v6947
      %v7591 = vrot.slane %v6949, 6
      %v7592 = vsel %vm1488, %v7591, %v7590
      %v7593 = vrot.slane %v7197, 5
      %v7594 = vsel %vm6956, %v7593, %v7592
      %v7595 = vrot.slane %v7324, 4
      %v7596 = vsel %vm1490, %v7595, %v7594
      %v7597 = vrot.slane %v7325, 3
      %v7598 = vsel %vm6961, %v7597, %v7596
      %v7599 = vrot.slane %v7326, 2
      %v7600 = vsel %vm1492, %v7599, %v7598
      %v7601 = vrot.slane %v7443, 1
      %v7602 = vsel %vm6966, %v7601, %v7600
      %v7603 = vpack.c.b16 %v7588, %v7574
      %v7604 = vpack.c.b16 %v7560, %v7602
      %v7607 = vunpack.c.l.b16 %v7557
      %v7608 = vunpack.c.l.b16 %v7558
      %v7609 = vpack.c.b16 %v7608, %v7607
      %v7611 = vsel %vm7003, %v7603, 0
      %v7614 = vsel %vm7003, %v7604, 0
      %v7617 = vsel %vm7010, %v7609, 0
      %7619 = vmatprep.subr.bf16.mxu0 0
      %7620 = vmatpush1.bf16.msra.mxu0 %v7617
      %7621 = vmatprep.subr.bf16.mxu0 0
      %7622 = vmatpush1.bf16.msra.mxu0 0
      %7623 = vmatprep.subr.bf16.mxu0 0
      %7624 = vmatpush1.bf16.msra.mxu0 0
      %7625 = vmatprep.subr.bf16.mxu0 0
      %7626 = vmatpush1.bf16.msra.mxu0 0
      %7627 = vmatprep.subr.bf16.mxu0 0
      %7628 = vmatpush1.bf16.msra.mxu0 0
      %7629 = vmatprep.subr.bf16.mxu0 0
      %7630 = vmatpush1.bf16.msra.mxu0 0
      %7631 = vmatprep.subr.bf16.mxu0 0
      %7632 = vmatpush1.bf16.msra.mxu0 0
      %7633 = vmatprep.subr.bf16.mxu0 0
      %7634 = vmatpush1.bf16.msra.mxu0 0
      %7635 = vmatprep.subr.bf16.mxu0 0
      %7636 = vmatpush1.bf16.msra.mxu0 0
      %7637 = vmatprep.subr.bf16.mxu0 0
      %7638 = vmatpush1.bf16.msra.mxu0 0
      %7639 = vmatprep.subr.bf16.mxu0 0
      %7640 = vmatpush1.bf16.msra.mxu0 0
      %7641 = vmatprep.subr.bf16.mxu0 0
      %7642 = vmatpush1.bf16.msra.mxu0 0
      %7643 = vmatprep.subr.bf16.mxu0 0
      %7644 = vmatpush1.bf16.msra.mxu0 0
      %7645 = vmatprep.subr.bf16.mxu0 0
      %7646 = vmatpush1.bf16.msra.mxu0 0
      %7647 = vmatprep.subr.bf16.mxu0 0
      %7648 = vmatpush1.bf16.msra.mxu0 0
      %7649 = vmatprep.subr.bf16.mxu0 0
      %7650 = vmatpush1.bf16.msra.mxu0 0
      %7651 = vmatprep.mubr.bf16.mxu0 0
      %7652 = vmatmul.mubr.bf16.gmra.mrb[0].mxu0 %v7611
      %v7653 = vpop.f32.mrb[0].mxu0
      %v7654 = vadd.f32 0.0, %v7653
      %v7655 = vpop.f32.mrb[0].mxu0
      %v7656 = vpop.f32.mrb[0].mxu0
      %v7657 = vadd.f32 0.0, %v7656
      %v7658 = vpop.f32.mrb[0].mxu0
      %7659 = vmatprep.mubr.bf16.mxu0 0
      %7660 = vmatmul.mubr.bf16.gmra.mrb[0].mxu0 %v7614
      %v7661 = vpop.f32.mrb[0].mxu0
      %v7662 = vadd.f32 0.0, %v7661
      %v7663 = vpop.f32.mrb[0].mxu0
      %v7664 = vpop.f32.mrb[0].mxu0
      %v7665 = vadd.f32 0.0, %v7664
      %v7666 = vpop.f32.mrb[0].mxu0
      %7667 = vdwg.mxu0
      %v7668 = vadd.f32 %v7551, %v7654
      %v7669 = vadd.f32 %v7552, %v7657
      %v7670 = vadd.f32 %v7553, %v7662
      %v7671 = vadd.f32 %v7554, %v7665
      %v7672 = vpack.c.bf16 %v6858, %v6858
      %v7673 = vpack.c.bf16 %v6859, %v6859
      %v7674 = vpack.c.bf16 %v6860, %v6860
      %v7675 = vpack.c.bf16 %v6861, %v6861
      %v7676 = vpack.c.bf16 %v6862, %v6862
      %s7677 = scalar_lea.vmem %s5, 48
      %v7678 = vld [vmem:[%s7677] sm:$0xf]
      %v7679 = vld [vmem:[%s7677 + $0x4] sm:$0x1]
      %v7685 = vunpack.c.l.b16 %v7672
      %v7686 = vunpack.c.l.b16 %v7673
      %v7687 = vunpack.c.l.b16 %v7674
      %v7688 = vunpack.c.l.b16 %v7675
      %v7689 = vunpack.c.l.b16 %v7676
      %v7690 = vrot.slane %v6935, 7
      %v7691 = vsel %vm6951, %v7690, %v7070
      %v7692 = vsel %vm1488, %v7214, %v7691
      %v7693 = vsel %vm6956, %v7216, %v7692
      %v7694 = vsel %vm1490, %v7218, %v7693
      %v7695 = vrot.slane %v7071, 3
      %v7696 = vsel %vm6961, %v7695, %v7694
      %v7697 = vrot.slane %v6940, 2
      %v7698 = vsel %vm1492, %v7697, %v7696
      %v7699 = vsel %vm6966, %v7224, %v7698
      %v7700 = vrot.slane %v7072, 6
      %v7701 = vsel %vm1488, %v7700, %v7227
      %v7702 = vrot.slane %v6945, 5
      %v7703 = vsel %vm6956, %v7702, %v7701
      %v7704 = vsel %vm1490, %v7232, %v7703
      %v7705 = vsel %vm6961, %v7234, %v7704
      %v7706 = vsel %vm1492, %v7236, %v7705
      %v7707 = vrot.slane %v7322, 1
      %v7708 = vsel %vm6966, %v7707, %v7706
      %v7709 = vrot.slane %v7324, 7
      %v7710 = vsel %vm6951, %v7709, %v7323
      %v7711 = vrot.slane %v7325, 6
      %v7712 = vsel %vm1488, %v7711, %v7710
      %v7713 = vrot.slane %v7326, 5
      %v7714 = vsel %vm6956, %v7713, %v7712
      %v7715 = vrot.slane %v7685, 4
      %v7716 = vsel %vm1490, %v7715, %v7714
      %v7717 = vrot.slane %v7686, 3
      %v7718 = vsel %vm6961, %v7717, %v7716
      %v7719 = vrot.slane %v7687, 2
      %v7720 = vsel %vm1492, %v7719, %v7718
      %v7721 = vrot.slane %v7688, 1
      %v7722 = vsel %vm6966, %v7721, %v7720
      %v7723 = vpack.c.b16 %v7708, %v7699
      %v7724 = vpack.c.b16 %v7689, %v7722
      %v7727 = vunpack.c.l.b16 %v7678
      %v7728 = vunpack.c.l.b16 %v7679
      %v7729 = vpack.c.b16 %v7728, %v7727
      %v7731 = vsel %vm7003, %v7723, 0
      %v7734 = vsel %vm7003, %v7724, 0
      %v7737 = vsel %vm7010, %v7729, 0
      %7739 = vmatprep.subr.bf16.mxu0 0
      %7740 = vmatpush1.bf16.msra.mxu0 %v7737
      %7741 = vmatprep.subr.bf16.mxu0 0
      %7742 = vmatpush1.bf16.msra.mxu0 0
      %7743 = vmatprep.subr.bf16.mxu0 0
      %7744 = vmatpush1.bf16.msra.mxu0 0
      %7745 = vmatprep.subr.bf16.mxu0 0
      %7746 = vmatpush1.bf16.msra.mxu0 0
      %7747 = vmatprep.subr.bf16.mxu0 0
      %7748 = vmatpush1.bf16.msra.mxu0 0
      %7749 = vmatprep.subr.bf16.mxu0 0
      %7750 = vmatpush1.bf16.msra.mxu0 0
      %7751 = vmatprep.subr.bf16.mxu0 0
      %7752 = vmatpush1.bf16.msra.mxu0 0
      %7753 = vmatprep.subr.bf16.mxu0 0
      %7754 = vmatpush1.bf16.msra.mxu0 0
      %7755 = vmatprep.subr.bf16.mxu0 0
      %7756 = vmatpush1.bf16.msra.mxu0 0
      %7757 = vmatprep.subr.bf16.mxu0 0
      %7758 = vmatpush1.bf16.msra.mxu0 0
      %7759 = vmatprep.subr.bf16.mxu0 0
      %7760 = vmatpush1.bf16.msra.mxu0 0
      %7761 = vmatprep.subr.bf16.mxu0 0
      %7762 = vmatpush1.bf16.msra.mxu0 0
      %7763 = vmatprep.subr.bf16.mxu0 0
      %7764 = vmatpush1.bf16.msra.mxu0 0
      %7765 = vmatprep.subr.bf16.mxu0 0
      %7766 = vmatpush1.bf16.msra.mxu0 0
      %7767 = vmatprep.subr.bf16.mxu0 0
      %7768 = vmatpush1.bf16.msra.mxu0 0
      %7769 = vmatprep.subr.bf16.mxu0 0
      %7770 = vmatpush1.bf16.msra.mxu0 0
      %7771 = vmatprep.mubr.bf16.mxu0 0
      %7772 = vmatmul.mubr.bf16.gmra.mrb[0].mxu0 %v7731
      %v7773 = vpop.f32.mrb[0].mxu0
      %v7774 = vadd.f32 0.0, %v7773
      %v7775 = vpop.f32.mrb[0].mxu0
      %v7776 = vpop.f32.mrb[0].mxu0
      %v7777 = vadd.f32 0.0, %v7776
      %v7778 = vpop.f32.mrb[0].mxu0
      %7779 = vmatprep.mubr.bf16.mxu0 0
      %7780 = vmatmul.mubr.bf16.gmra.mrb[0].mxu0 %v7734
      %v7781 = vpop.f32.mrb[0].mxu0
      %v7782 = vadd.f32 0.0, %v7781
      %v7783 = vpop.f32.mrb[0].mxu0
      %v7784 = vpop.f32.mrb[0].mxu0
      %v7785 = vadd.f32 0.0, %v7784
      %v7786 = vpop.f32.mrb[0].mxu0
      %7787 = vdwg.mxu0
      %v7788 = vadd.f32 %v7668, %v7774
      %v7789 = vadd.f32 %v7669, %v7777
      %v7790 = vadd.f32 %v7670, %v7782
      %v7791 = vadd.f32 %v7671, %v7785
      %v7792 = vpack.c.bf16 %v6863, %v6863
      %s7793 = scalar_lea.vmem %s5, 56
      %v7794 = vld [vmem:[%s7793] sm:$0xf]
      %v7795 = vld [vmem:[%s7793 + $0x4] sm:$0x1]
      %v7797 = vunpack.c.l.b16 %v7792
      %v7798 = vrot.slane %v6936, 7
      %v7799 = vsel %vm6951, %v7798, %v6935
      %v7800 = vrot.slane %v6937, 6
      %v7801 = vsel %vm1488, %v7800, %v7799
      %v7802 = vrot.slane %v6938, 5
      %v7803 = vsel %vm6956, %v7802, %v7801
      %v7804 = vrot.slane %v6939, 4
      %v7805 = vsel %vm1490, %v7804, %v7803
      %v7806 = vrot.slane %v6940, 3
      %v7807 = vsel %vm6961, %v7806, %v7805
      %v7808 = vrot.slane %v6941, 2
      %v7809 = vsel %vm1492, %v7808, %v7807
      %v7810 = vrot.slane %v6942, 1
      %v7811 = vsel %vm6966, %v7810, %v7809
      %v7812 = vrot.slane %v6944, 7
      %v7813 = vsel %vm6951, %v7812, %v6943
      %v7814 = vrot.slane %v6945, 6
      %v7815 = vsel %vm1488, %v7814, %v7813
      %v7816 = vrot.slane %v6946, 5
      %v7817 = vsel %vm6956, %v7816, %v7815
      %v7818 = vrot.slane %v6947, 4
      %v7819 = vsel %vm1490, %v7818, %v7817
      %v7820 = vrot.slane %v6948, 3
      %v7821 = vsel %vm6961, %v7820, %v7819
      %v7822 = vrot.slane %v6949, 2
      %v7823 = vsel %vm1492, %v7822, %v7821
      %v7824 = vrot.slane %v7323, 1
      %v7825 = vsel %vm6966, %v7824, %v7823
      %v7826 = vrot.slane %v7325, 7
      %v7827 = vsel %vm6951, %v7826, %v7324
      %v7828 = vrot.slane %v7326, 6
      %v7829 = vsel %vm1488, %v7828, %v7827
      %v7830 = vrot.slane %v7443, 5
      %v7831 = vsel %vm6956, %v7830, %v7829
      %v7832 = vrot.slane %v7686, 4
      %v7833 = vsel %vm1490, %v7832, %v7831
      %v7834 = vrot.slane %v7687, 3
      %v7835 = vsel %vm6961, %v7834, %v7833
      %v7836 = vrot.slane %v7688, 2
      %v7837 = vsel %vm1492, %v7836, %v7835
      %v7838 = vrot.slane %v7689, 1
      %v7839 = vsel %vm6966, %v7838, %v7837
      %v7840 = vpack.c.b16 %v7825, %v7811
      %v7841 = vpack.c.b16 %v7797, %v7839
      %v7844 = vunpack.c.l.b16 %v7794
      %v7845 = vunpack.c.l.b16 %v7795
      %v7846 = vpack.c.b16 %v7845, %v7844
      %v7848 = vsel %vm7003, %v7840, 0
      %v7851 = vsel %vm7003, %v7841, 0
      %v7854 = vsel %vm7010, %v7846, 0
      %7856 = vmatprep.subr.bf16.mxu0 0
      %7857 = vmatpush1.bf16.msra.mxu0 %v7854
      %7858 = vmatprep.subr.bf16.mxu0 0
      %7859 = vmatpush1.bf16.msra.mxu0 0
      %7860 = vmatprep.subr.bf16.mxu0 0
      %7861 = vmatpush1.bf16.msra.mxu0 0
      %7862 = vmatprep.subr.bf16.mxu0 0
      %7863 = vmatpush1.bf16.msra.mxu0 0
      %7864 = vmatprep.subr.bf16.mxu0 0
      %7865 = vmatpush1.bf16.msra.mxu0 0
      %7866 = vmatprep.subr.bf16.mxu0 0
      %7867 = vmatpush1.bf16.msra.mxu0 0
      %7868 = vmatprep.subr.bf16.mxu0 0
      %7869 = vmatpush1.bf16.msra.mxu0 0
      %7870 = vmatprep.subr.bf16.mxu0 0
      %7871 = vmatpush1.bf16.msra.mxu0 0
      %7872 = vmatprep.subr.bf16.mxu0 0
      %7873 = vmatpush1.bf16.msra.mxu0 0
      %7874 = vmatprep.subr.bf16.mxu0 0
      %7875 = vmatpush1.bf16.msra.mxu0 0
      %7876 = vmatprep.subr.bf16.mxu0 0
      %7877 = vmatpush1.bf16.msra.mxu0 0
      %7878 = vmatprep.subr.bf16.mxu0 0
      %7879 = vmatpush1.bf16.msra.mxu0 0
      %7880 = vmatprep.subr.bf16.mxu0 0
      %7881 = vmatpush1.bf16.msra.mxu0 0
      %7882 = vmatprep.subr.bf16.mxu0 0
      %7883 = vmatpush1.bf16.msra.mxu0 0
      %7884 = vmatprep.subr.bf16.mxu0 0
      %7885 = vmatpush1.bf16.msra.mxu0 0
      %7886 = vmatprep.subr.bf16.mxu0 0
      %7887 = vmatpush1.bf16.msra.mxu0 0
      %7888 = vmatprep.mubr.bf16.mxu0 0
      %7889 = vmatmul.mubr.bf16.gmra.mrb[0].mxu0 %v7848
      %v7890 = vpop.f32.mrb[0].mxu0
      %v7891 = vadd.f32 0.0, %v7890
      %v7892 = vpop.f32.mrb[0].mxu0
      %v7893 = vpop.f32.mrb[0].mxu0
      %v7894 = vadd.f32 0.0, %v7893
      %v7895 = vpop.f32.mrb[0].mxu0
      %7896 = vmatprep.mubr.bf16.mxu0 0
      %7897 = vmatmul.mubr.bf16.gmra.mrb[0].mxu0 %v7851
      %v7898 = vpop.f32.mrb[0].mxu0
      %v7899 = vadd.f32 0.0, %v7898
      %v7900 = vpop.f32.mrb[0].mxu0
      %v7901 = vpop.f32.mrb[0].mxu0
      %v7902 = vadd.f32 0.0, %v7901
      %v7903 = vpop.f32.mrb[0].mxu0
      %7904 = vdwg.mxu0
      %v7905 = vadd.f32 %v7788, %v7891
      %v7906 = vadd.f32 %v7789, %v7894
      %v7907 = vadd.f32 %v7790, %v7899
      %v7908 = vadd.f32 %v7791, %v7902
      %v7909 = vpack.c.bf16 %v6864, %v6864
      %s7910 = scalar_lea.vmem %s5, 64
      %v7911 = vld [vmem:[%s7910] sm:$0xf]
      %v7912 = vld [vmem:[%s7910 + $0x4] sm:$0x1]
      %v7914 = vunpack.c.l.b16 %v7909
      %v7915 = vrot.slane %v6937, 7
      %v7916 = vsel %vm6951, %v7915, %v6936
      %v7917 = vrot.slane %v6938, 6
      %v7918 = vsel %vm1488, %v7917, %v7916
      %v7919 = vrot.slane %v6939, 5
      %v7920 = vsel %vm6956, %v7919, %v7918
      %v7921 = vrot.slane %v7195, 4
      %v7922 = vsel %vm1490, %v7921, %v7920
      %v7923 = vrot.slane %v6941, 3
      %v7924 = vsel %vm6961, %v7923, %v7922
      %v7925 = vrot.slane %v6942, 2
      %v7926 = vsel %vm1492, %v7925, %v7924
      %v7927 = vrot.slane %v6943, 1
      %v7928 = vsel %vm6966, %v7927, %v7926
      %v7929 = vrot.slane %v7196, 7
      %v7930 = vsel %vm6951, %v7929, %v6944
      %v7931 = vrot.slane %v6946, 6
      %v7932 = vsel %vm1488, %v7931, %v7930
      %v7933 = vrot.slane %v6947, 5
      %v7934 = vsel %vm6956, %v7933, %v7932
      %v7935 = vrot.slane %v6948, 4
      %v7936 = vsel %vm1490, %v7935, %v7934
      %v7937 = vrot.slane %v6949, 3
      %v7938 = vsel %vm6961, %v7937, %v7936
      %v7939 = vrot.slane %v7197, 2
      %v7940 = vsel %vm1492, %v7939, %v7938
      %v7941 = vrot.slane %v7324, 1
      %v7942 = vsel %vm6966, %v7941, %v7940
      %v7943 = vrot.slane %v7326, 7
      %v7944 = vsel %vm6951, %v7943, %v7325
      %v7945 = vrot.slane %v7443, 6
      %v7946 = vsel %vm1488, %v7945, %v7944
      %v7947 = vrot.slane %v7560, 5
      %v7948 = vsel %vm6956, %v7947, %v7946
      %v7949 = vrot.slane %v7687, 4
      %v7950 = vsel %vm1490, %v7949, %v7948
      %v7951 = vrot.slane %v7688, 3
      %v7952 = vsel %vm6961, %v7951, %v7950
      %v7953 = vrot.slane %v7689, 2
      %v7954 = vsel %vm1492, %v7953, %v7952
      %v7955 = vrot.slane %v7797, 1
      %v7956 = vsel %vm6966, %v7955, %v7954
      %v7957 = vpack.c.b16 %v7942, %v7928
      %v7958 = vpack.c.b16 %v7914, %v7956
      %v7961 = vunpack.c.l.b16 %v7911
      %v7962 = vunpack.c.l.b16 %v7912
      %v7963 = vpack.c.b16 %v7962, %v7961
      %v7965 = vsel %vm7003, %v7957, 0
      %v7968 = vsel %vm7003, %v7958, 0
      %v7971 = vsel %vm7010, %v7963, 0
      %7973 = vmatprep.subr.bf16.mxu0 0
      %7974 = vmatpush1.bf16.msra.mxu0 %v7971
      %7975 = vmatprep.subr.bf16.mxu0 0
      %7976 = vmatpush1.bf16.msra.mxu0 0
      %7977 = vmatprep.subr.bf16.mxu0 0
      %7978 = vmatpush1.bf16.msra.mxu0 0
      %7979 = vmatprep.subr.bf16.mxu0 0
      %7980 = vmatpush1.bf16.msra.mxu0 0
      %7981 = vmatprep.subr.bf16.mxu0 0
      %7982 = vmatpush1.bf16.msra.mxu0 0
      %7983 = vmatprep.subr.bf16.mxu0 0
      %7984 = vmatpush1.bf16.msra.mxu0 0
      %7985 = vmatprep.subr.bf16.mxu0 0
      %7986 = vmatpush1.bf16.msra.mxu0 0
      %7987 = vmatprep.subr.bf16.mxu0 0
      %7988 = vmatpush1.bf16.msra.mxu0 0
      %7989 = vmatprep.subr.bf16.mxu0 0
      %7990 = vmatpush1.bf16.msra.mxu0 0
      %7991 = vmatprep.subr.bf16.mxu0 0
      %7992 = vmatpush1.bf16.msra.mxu0 0
      %7993 = vmatprep.subr.bf16.mxu0 0
      %7994 = vmatpush1.bf16.msra.mxu0 0
      %7995 = vmatprep.subr.bf16.mxu0 0
      %7996 = vmatpush1.bf16.msra.mxu0 0
      %7997 = vmatprep.subr.bf16.mxu0 0
      %7998 = vmatpush1.bf16.msra.mxu0 0
      %7999 = vmatprep.subr.bf16.mxu0 0
      %8000 = vmatpush1.bf16.msra.mxu0 0
      %8001 = vmatprep.subr.bf16.mxu0 0
      %8002 = vmatpush1.bf16.msra.mxu0 0
      %8003 = vmatprep.subr.bf16.mxu0 0
      %8004 = vmatpush1.bf16.msra.mxu0 0
      %8005 = vmatprep.mubr.bf16.mxu0 0
      %8006 = vmatmul.mubr.bf16.gmra.mrb[0].mxu0 %v7965
      %v8007 = vpop.f32.mrb[0].mxu0
      %v8008 = vadd.f32 0.0, %v8007
      %v8009 = vpop.f32.mrb[0].mxu0
      %v8010 = vpop.f32.mrb[0].mxu0
      %v8011 = vadd.f32 0.0, %v8010
      %v8012 = vpop.f32.mrb[0].mxu0
      %8013 = vmatprep.mubr.bf16.mxu0 0
      %8014 = vmatmul.mubr.bf16.gmra.mrb[0].mxu0 %v7968
      %v8015 = vpop.f32.mrb[0].mxu0
      %v8016 = vadd.f32 0.0, %v8015
      %v8017 = vpop.f32.mrb[0].mxu0
      %v8018 = vpop.f32.mrb[0].mxu0
      %v8019 = vadd.f32 0.0, %v8018
      %v8020 = vpop.f32.mrb[0].mxu0
      %8021 = vdwg.mxu0
      %v8022 = vadd.f32 %v7905, %v8008
      %v8023 = vadd.f32 %v7906, %v8011
      %v8024 = vadd.f32 %v7907, %v8016
      %v8025 = vadd.f32 %v7908, %v8019
      %v8026 = vld [vmem:[%s6] sm:$0x1]
      %v8028 = vlaneseq
      %v8029 = vshrl.u32 %v8028, 7
      %v8030 = vsub.s32 0, %v8029
      %v8031 = vrot.slane %v8026, %v8030
      %v8033 = vmul.f32 %v8022, %v8031
      %v8034 = vmul.f32 %v8023, %v8031
      %v8035 = vmul.f32 %v8024, %v8031
      %v8036 = vmul.f32 %v8025, %v8031
      %v8037 = vld [vmem:[%s7] sm:$0x1]
      %v8039 = vlaneseq
      %v8040 = vshrl.u32 %v8039, 7
      %v8041 = vsub.s32 0, %v8040
      %v8042 = vrot.slane %v8037, %v8041
      %v8044 = vadd.f32 %v8033, %v8042
      %v8045 = vadd.f32 %v8034, %v8042
      %v8046 = vadd.f32 %v8035, %v8042
      %v8047 = vadd.f32 %v8036, %v8042
      %vm8048 = vcmp.gt.f32.partialorder %v8044, 0.0
      %vm8049 = vcmp.gt.f32.partialorder %v8045, 0.0
      %vm8050 = vcmp.gt.f32.partialorder %v8046, 0.0
      %vm8051 = vcmp.gt.f32.partialorder %v8047, 0.0
      %v8052 = vld [vmem:[%s8] sm:$0x1]
      %v8054 = vlaneseq
      %v8055 = vshrl.u32 %v8054, 7
      %v8056 = vsub.s32 0, %v8055
      %v8057 = vrot.slane %v8052, %v8056
      %v8059 = vmul.f32 %v8057, %v8044
      %v8060 = vmul.f32 %v8057, %v8045
      %v8061 = vmul.f32 %v8057, %v8046
      %v8062 = vmul.f32 %v8057, %v8047
      %v8063 = vsel %vm8048, %v8044, %v8059
      %v8064 = vsel %vm8049, %v8045, %v8060
      %v8065 = vsel %vm8050, %v8046, %v8061
      %v8066 = vsel %vm8051, %v8047, %v8062
      %v8071 = vcombine.high %v8063, %v8063
      %v8073 = vunpack.c.l.s4 1966171168
      %v8074 = vunpack.c.0.s8 %v8073
      %v8075 = vlaneseq
      %v8076 = vshrl.u32 %v8075, 7
      %v8077 = vsub.s32 %v8074, %v8076
      %v8078 = vrot.slane %v8063, %v8077
      %v8080 = vunpack.c.l.s4 1966171168
      %v8081 = vunpack.c.0.s8 %v8080
      %v8082 = vlaneseq
      %v8083 = vshrl.u32 %v8082, 7
      %v8084 = vsub.s32 %v8081, %v8083
      %v8085 = vrot.slane %v8071, %v8084
      %v8086 = vcombine.high %v8078, %v8078
      %v8087 = vcombine.high %v8085, %v8085
      %v8089 = vunpack.c.l.s4 1966171168
      %v8090 = vunpack.c.0.s8 %v8089
      %v8091 = vlaneseq
      %v8092 = vshrl.u32 %v8091, 7
      %v8093 = vsub.s32 %v8090, %v8092
      %v8094 = vrot.slane %v8078, %v8093
      %v8096 = vunpack.c.l.s4 1966171168
      %v8097 = vunpack.c.0.s8 %v8096
      %v8098 = vlaneseq
      %v8099 = vshrl.u32 %v8098, 7
      %v8100 = vsub.s32 %v8097, %v8099
      %v8101 = vrot.slane %v8085, %v8100
      %v8103 = vunpack.c.l.s4 1966171168
      %v8104 = vunpack.c.0.s8 %v8103
      %v8105 = vlaneseq
      %v8106 = vshrl.u32 %v8105, 7
      %v8107 = vsub.s32 %v8104, %v8106
      %v8108 = vrot.slane %v8086, %v8107
      %v8110 = vunpack.c.l.s4 1966171168
      %v8111 = vunpack.c.0.s8 %v8110
      %v8112 = vlaneseq
      %v8113 = vshrl.u32 %v8112, 7
      %v8114 = vsub.s32 %v8111, %v8113
      %v8115 = vrot.slane %v8087, %v8114
      %v8116 = vcombine.high %v8094, %v8094
      %v8117 = vcombine.high %v8101, %v8101
      %v8118 = vcombine.high %v8108, %v8108
      %v8119 = vcombine.high %v8115, %v8115
      %v8120 = vcombine.high %v8064, %v8064
      %v8122 = vunpack.c.l.s4 1966171168
      %v8123 = vunpack.c.0.s8 %v8122
      %v8124 = vlaneseq
      %v8125 = vshrl.u32 %v8124, 7
      %v8126 = vsub.s32 %v8123, %v8125
      %v8127 = vrot.slane %v8064, %v8126
      %v8129 = vunpack.c.l.s4 1966171168
      %v8130 = vunpack.c.0.s8 %v8129
      %v8131 = vlaneseq
      %v8132 = vshrl.u32 %v8131, 7
      %v8133 = vsub.s32 %v8130, %v8132
      %v8134 = vrot.slane %v8120, %v8133
      %v8135 = vcombine.high %v8127, %v8127
      %v8136 = vcombine.high %v8134, %v8134
      %v8138 = vunpack.c.l.s4 1966171168
      %v8139 = vunpack.c.0.s8 %v8138
      %v8140 = vlaneseq
      %v8141 = vshrl.u32 %v8140, 7
      %v8142 = vsub.s32 %v8139, %v8141
      %v8143 = vrot.slane %v8127, %v8142
      %v8145 = vunpack.c.l.s4 1966171168
      %v8146 = vunpack.c.0.s8 %v8145
      %v8147 = vlaneseq
      %v8148 = vshrl.u32 %v8147, 7
      %v8149 = vsub.s32 %v8146, %v8148
      %v8150 = vrot.slane %v8134, %v8149
      %v8152 = vunpack.c.l.s4 1966171168
      %v8153 = vunpack.c.0.s8 %v8152
      %v8154 = vlaneseq
      %v8155 = vshrl.u32 %v8154, 7
      %v8156 = vsub.s32 %v8153, %v8155
      %v8157 = vrot.slane %v8135, %v8156
      %v8159 = vunpack.c.l.s4 1966171168
      %v8160 = vunpack.c.0.s8 %v8159
      %v8161 = vlaneseq
      %v8162 = vshrl.u32 %v8161, 7
      %v8163 = vsub.s32 %v8160, %v8162
      %v8164 = vrot.slane %v8136, %v8163
      %v8165 = vcombine.high %v8143, %v8143
      %v8166 = vcombine.high %v8150, %v8150
      %v8167 = vcombine.high %v8157, %v8157
      %v8168 = vcombine.high %v8164, %v8164
      %v8169 = vcombine.high %v8065, %v8065
      %v8171 = vunpack.c.l.s4 1966171168
      %v8172 = vunpack.c.0.s8 %v8171
      %v8173 = vlaneseq
      %v8174 = vshrl.u32 %v8173, 7
      %v8175 = vsub.s32 %v8172, %v8174
      %v8176 = vrot.slane %v8065, %v8175
      %v8178 = vunpack.c.l.s4 1966171168
      %v8179 = vunpack.c.0.s8 %v8178
      %v8180 = vlaneseq
      %v8181 = vshrl.u32 %v8180, 7
      %v8182 = vsub.s32 %v8179, %v8181
      %v8183 = vrot.slane %v8169, %v8182
      %v8184 = vcombine.high %v8176, %v8176
      %v8185 = vcombine.high %v8183, %v8183
      %v8187 = vunpack.c.l.s4 1966171168
      %v8188 = vunpack.c.0.s8 %v8187
      %v8189 = vlaneseq
      %v8190 = vshrl.u32 %v8189, 7
      %v8191 = vsub.s32 %v8188, %v8190
      %v8192 = vrot.slane %v8176, %v8191
      %v8194 = vunpack.c.l.s4 1966171168
      %v8195 = vunpack.c.0.s8 %v8194
      %v8196 = vlaneseq
      %v8197 = vshrl.u32 %v8196, 7
      %v8198 = vsub.s32 %v8195, %v8197
      %v8199 = vrot.slane %v8183, %v8198
      %v8201 = vunpack.c.l.s4 1966171168
      %v8202 = vunpack.c.0.s8 %v8201
      %v8203 = vlaneseq
      %v8204 = vshrl.u32 %v8203, 7
      %v8205 = vsub.s32 %v8202, %v8204
      %v8206 = vrot.slane %v8184, %v8205
      %v8208 = vunpack.c.l.s4 1966171168
      %v8209 = vunpack.c.0.s8 %v8208
      %v8210 = vlaneseq
      %v8211 = vshrl.u32 %v8210, 7
      %v8212 = vsub.s32 %v8209, %v8211
      %v8213 = vrot.slane %v8185, %v8212
      %v8214 = vcombine.high %v8192, %v8192
      %v8215 = vcombine.high %v8199, %v8199
      %v8216 = vcombine.high %v8206, %v8206
      %v8217 = vcombine.high %v8213, %v8213
      %v8219 = vunpack.c.l.s4 1966171168
      %v8220 = vunpack.c.0.s8 %v8219
      %v8221 = vlaneseq
      %v8222 = vshrl.u32 %v8221, 7
      %v8223 = vsub.s32 %v8220, %v8222
      %v8224 = vrot.slane %v8066, %v8223
      %v8226 = vunpack.c.l.s4 1966171168
      %v8227 = vunpack.c.0.s8 %v8226
      %v8228 = vlaneseq
      %v8229 = vshrl.u32 %v8228, 7
      %v8230 = vsub.s32 %v8227, %v8229
      %v8231 = vrot.slane %v8224, %v8230
      %v8232 = vcombine.low %v8094, %v8108
      %v8233 = vcombine.low %v8116, %v8115
      %v8234 = vcombine.low %v8117, %v8119
      %v8235 = vcombine.low %v8165, %v8167
      %v8237 = vunpack.c.l.s4 1966171168
      %v8238 = vunpack.c.0.s8 %v8237
      %v8239 = vlaneseq
      %v8240 = vshrl.u32 %v8239, 7
      %v8241 = vsub.s32 %v8238, %v8240
      %v8242 = vrot.slane %v8232, %v8241
      %v8244 = vunpack.c.l.s4 1966171168
      %v8245 = vunpack.c.0.s8 %v8244
      %v8246 = vlaneseq
      %v8247 = vshrl.u32 %v8246, 7
      %v8248 = vsub.s32 %v8245, %v8247
      %v8249 = vrot.slane %v8233, %v8248
      %v8251 = vunpack.c.l.s4 1966171168
      %v8252 = vunpack.c.0.s8 %v8251
      %v8253 = vlaneseq
      %v8254 = vshrl.u32 %v8253, 7
      %v8255 = vsub.s32 %v8252, %v8254
      %v8256 = vrot.slane %v8234, %v8255
      %v8258 = vunpack.c.l.s4 1966171168
      %v8259 = vunpack.c.0.s8 %v8258
      %v8260 = vlaneseq
      %v8261 = vshrl.u32 %v8260, 7
      %v8262 = vsub.s32 %v8259, %v8261
      %v8263 = vrot.slane %v8235, %v8262
      %v8264 = vcombine.low %v8242, %v8249
      %v8265 = vcombine.low %v8256, %v8263
      %v8267 = vunpack.c.l.s4 1966171168
      %v8268 = vunpack.c.0.s8 %v8267
      %v8269 = vlaneseq
      %v8270 = vshrl.u32 %v8269, 7
      %v8271 = vsub.s32 %v8268, %v8270
      %v8272 = vrot.slane %v8264, %v8271
      %v8274 = vunpack.c.l.s4 1966171168
      %v8275 = vunpack.c.0.s8 %v8274
      %v8276 = vlaneseq
      %v8277 = vshrl.u32 %v8276, 7
      %v8278 = vsub.s32 %v8275, %v8277
      %v8279 = vrot.slane %v8265, %v8278
      %v8280 = vcombine.low %v8272, %v8279
      %v8282 = vunpack.c.l.s4 1966171168
      %v8283 = vunpack.c.0.s8 %v8282
      %v8284 = vlaneseq
      %v8285 = vshrl.u32 %v8284, 7
      %v8286 = vsub.s32 %v8283, %v8285
      %v8287 = vrot.slane %v8150, %v8286
      %v8289 = vunpack.c.l.s4 1966171168
      %v8290 = vunpack.c.0.s8 %v8289
      %v8291 = vlaneseq
      %v8292 = vshrl.u32 %v8291, 7
      %v8293 = vsub.s32 %v8290, %v8292
      %v8294 = vrot.slane %v8287, %v8293
      %v8297 = vpack.c.bf16 %v8294, %v8280
      %v8298 = vld [vmem:[%s9] sm:$0xf]
      %v8299 = vld [vmem:[%s9 + $0x4] sm:$0xf]
      %v8300 = vcombine.low %v8108, %v8116
      %v8301 = vcombine.low %v8118, %v8117
      %v8302 = vcombine.low %v8119, %v8143
      %v8303 = vcombine.low %v8167, %v8150
      %v8305 = vunpack.c.l.s4 1966171168
      %v8306 = vunpack.c.0.s8 %v8305
      %v8307 = vlaneseq
      %v8308 = vshrl.u32 %v8307, 7
      %v8309 = vsub.s32 %v8306, %v8308
      %v8310 = vrot.slane %v8300, %v8309
      %v8312 = vunpack.c.l.s4 1966171168
      %v8313 = vunpack.c.0.s8 %v8312
      %v8314 = vlaneseq
      %v8315 = vshrl.u32 %v8314, 7
      %v8316 = vsub.s32 %v8313, %v8315
      %v8317 = vrot.slane %v8301, %v8316
      %v8319 = vunpack.c.l.s4 1966171168
      %v8320 = vunpack.c.0.s8 %v8319
      %v8321 = vlaneseq
      %v8322 = vshrl.u32 %v8321, 7
      %v8323 = vsub.s32 %v8320, %v8322
      %v8324 = vrot.slane %v8302, %v8323
      %v8326 = vunpack.c.l.s4 1966171168
      %v8327 = vunpack.c.0.s8 %v8326
      %v8328 = vlaneseq
      %v8329 = vshrl.u32 %v8328, 7
      %v8330 = vsub.s32 %v8327, %v8329
      %v8331 = vrot.slane %v8303, %v8330
      %v8332 = vcombine.low %v8310, %v8317
      %v8333 = vcombine.low %v8324, %v8331
      %v8335 = vunpack.c.l.s4 1966171168
      %v8336 = vunpack.c.0.s8 %v8335
      %v8337 = vlaneseq
      %v8338 = vshrl.u32 %v8337, 7
      %v8339 = vsub.s32 %v8336, %v8338
      %v8340 = vrot.slane %v8332, %v8339
      %v8342 = vunpack.c.l.s4 1966171168
      %v8343 = vunpack.c.0.s8 %v8342
      %v8344 = vlaneseq
      %v8345 = vshrl.u32 %v8344, 7
      %v8346 = vsub.s32 %v8343, %v8345
      %v8347 = vrot.slane %v8333, %v8346
      %v8348 = vcombine.low %v8340, %v8347
      %v8350 = vunpack.c.l.s4 1966171168
      %v8351 = vunpack.c.0.s8 %v8350
      %v8352 = vlaneseq
      %v8353 = vshrl.u32 %v8352, 7
      %v8354 = vsub.s32 %v8351, %v8353
      %v8355 = vrot.slane %v8164, %v8354
      %v8357 = vunpack.c.l.s4 1966171168
      %v8358 = vunpack.c.0.s8 %v8357
      %v8359 = vlaneseq
      %v8360 = vshrl.u32 %v8359, 7
      %v8361 = vsub.s32 %v8358, %v8360
      %v8362 = vrot.slane %v8355, %v8361
      %v8365 = vpack.c.bf16 %v8362, %v8348
      %s8366 = scalar_lea.vmem %s9, 8
      %v8367 = vld [vmem:[%s8366] sm:$0xf]
      %v8368 = vld [vmem:[%s8366 + $0x4] sm:$0xf]
      %v8371 = vunpack.c.l.b16 %v8367
      %v8372 = vunpack.c.l.b16 %v8368
      %v8373 = vpack.c.b16 %v8372, %v8371
      %vm8375 = vcmask 130048
      %v8377 = vsel %vm8375, %v8365, 0
      %8379 = vmatprep.subr.bf16.mxu0 0
      %8380 = vmatpush1.bf16.msra.mxu0 %v8373
      %8381 = vmatprep.subr.bf16.mxu0 0
      %8382 = vmatpush1.bf16.msra.mxu0 0
      %8383 = vmatprep.subr.bf16.mxu0 0
      %8384 = vmatpush1.bf16.msra.mxu0 0
      %8385 = vmatprep.subr.bf16.mxu0 0
      %8386 = vmatpush1.bf16.msra.mxu0 0
      %8387 = vmatprep.subr.bf16.mxu0 0
      %8388 = vmatpush1.bf16.msra.mxu0 0
      %8389 = vmatprep.subr.bf16.mxu0 0
      %8390 = vmatpush1.bf16.msra.mxu0 0
      %8391 = vmatprep.subr.bf16.mxu0 0
      %8392 = vmatpush1.bf16.msra.mxu0 0
      %8393 = vmatprep.subr.bf16.mxu0 0
      %8394 = vmatpush1.bf16.msra.mxu0 0
      %8395 = vmatprep.subr.bf16.mxu0 0
      %8396 = vmatpush1.bf16.msra.mxu0 0
      %8397 = vmatprep.subr.bf16.mxu0 0
      %8398 = vmatpush1.bf16.msra.mxu0 0
      %8399 = vmatprep.subr.bf16.mxu0 0
      %8400 = vmatpush1.bf16.msra.mxu0 0
      %8401 = vmatprep.subr.bf16.mxu0 0
      %8402 = vmatpush1.bf16.msra.mxu0 0
      %8403 = vmatprep.subr.bf16.mxu0 0
      %8404 = vmatpush1.bf16.msra.mxu0 0
      %8405 = vmatprep.subr.bf16.mxu0 0
      %8406 = vmatpush1.bf16.msra.mxu0 0
      %8407 = vmatprep.subr.bf16.mxu0 0
      %8408 = vmatpush1.bf16.msra.mxu0 0
      %8409 = vmatprep.subr.bf16.mxu0 0
      %8410 = vmatpush1.bf16.msra.mxu0 0
      %8411 = vmatprep.mubr.bf16.mxu0 0
      %8412 = vmatmul.mubr.bf16.gmra.mrb[0].mxu0 %v8377
      %v8413 = vpop.f32.mrb[0].mxu0
      %v8414 = vadd.f32 0.0, %v8413
      %v8415 = vpop.f32.mrb[0].mxu0
      %v8416 = vpop.f32.mrb[0].mxu0
      %v8417 = vadd.f32 0.0, %v8416
      %v8418 = vpop.f32.mrb[0].mxu0
      %8419 = vdwg.mxu0
      %v8422 = vunpack.c.l.b16 %v8298
      %v8423 = vunpack.c.l.b16 %v8299
      %v8424 = vpack.c.b16 %v8423, %v8422
      %v8427 = vsel %vm8375, %v8297, 0
      %8429 = vmatprep.subr.bf16.mxu0 0
      %8430 = vmatpush1.bf16.msra.mxu0 %v8424
      %8431 = vmatprep.subr.bf16.mxu0 0
      %8432 = vmatpush1.bf16.msra.mxu0 0
      %8433 = vmatprep.subr.bf16.mxu0 0
      %8434 = vmatpush1.bf16.msra.mxu0 0
      %8435 = vmatprep.subr.bf16.mxu0 0
      %8436 = vmatpush1.bf16.msra.mxu0 0
      %8437 = vmatprep.subr.bf16.mxu0 0
      %8438 = vmatpush1.bf16.msra.mxu0 0
      %8439 = vmatprep.subr.bf16.mxu0 0
      %8440 = vmatpush1.bf16.msra.mxu0 0
      %8441 = vmatprep.subr.bf16.mxu0 0
      %8442 = vmatpush1.bf16.msra.mxu0 0
      %8443 = vmatprep.subr.bf16.mxu0 0
      %8444 = vmatpush1.bf16.msra.mxu0 0
      %8445 = vmatprep.subr.bf16.mxu0 0
      %8446 = vmatpush1.bf16.msra.mxu0 0
      %8447 = vmatprep.subr.bf16.mxu0 0
      %8448 = vmatpush1.bf16.msra.mxu0 0
      %8449 = vmatprep.subr.bf16.mxu0 0
      %8450 = vmatpush1.bf16.msra.mxu0 0
      %8451 = vmatprep.subr.bf16.mxu0 0
      %8452 = vmatpush1.bf16.msra.mxu0 0
      %8453 = vmatprep.subr.bf16.mxu0 0
      %8454 = vmatpush1.bf16.msra.mxu0 0
      %8455 = vmatprep.subr.bf16.mxu0 0
      %8456 = vmatpush1.bf16.msra.mxu0 0
      %8457 = vmatprep.subr.bf16.mxu0 0
      %8458 = vmatpush1.bf16.msra.mxu0 0
      %8459 = vmatprep.subr.bf16.mxu0 0
      %8460 = vmatpush1.bf16.msra.mxu0 0
      %8461 = vmatprep.mubr.bf16.mxu0 0
      %8462 = vmatmul.mubr.bf16.gmra.mrb[0].mxu0 %v8427
      %v8463 = vpop.f32.mrb[0].mxu0
      %v8464 = vadd.f32 %v8414, %v8463
      %v8465 = vpop.f32.mrb[0].mxu0
      %v8466 = vpop.f32.mrb[0].mxu0
      %v8467 = vadd.f32 %v8417, %v8466
      %v8468 = vpop.f32.mrb[0].mxu0
      %8469 = vdwg.mxu0
      %v8470 = vcombine.low %v8116, %v8118
      %v8471 = vcombine.low %v8101, %v8119
      %v8472 = vcombine.low %v8143, %v8157
      %v8473 = vcombine.low %v8150, %v8164
      %v8475 = vunpack.c.l.s4 1966171168
      %v8476 = vunpack.c.0.s8 %v8475
      %v8477 = vlaneseq
      %v8478 = vshrl.u32 %v8477, 7
      %v8479 = vsub.s32 %v8476, %v8478
      %v8480 = vrot.slane %v8470, %v8479
      %v8482 = vunpack.c.l.s4 1966171168
      %v8483 = vunpack.c.0.s8 %v8482
      %v8484 = vlaneseq
      %v8485 = vshrl.u32 %v8484, 7
      %v8486 = vsub.s32 %v8483, %v8485
      %v8487 = vrot.slane %v8471, %v8486
      %v8489 = vunpack.c.l.s4 1966171168
      %v8490 = vunpack.c.0.s8 %v8489
      %v8491 = vlaneseq
      %v8492 = vshrl.u32 %v8491, 7
      %v8493 = vsub.s32 %v8490, %v8492
      %v8494 = vrot.slane %v8472, %v8493
      %v8496 = vunpack.c.l.s4 1966171168
      %v8497 = vunpack.c.0.s8 %v8496
      %v8498 = vlaneseq
      %v8499 = vshrl.u32 %v8498, 7
      %v8500 = vsub.s32 %v8497, %v8499
      %v8501 = vrot.slane %v8473, %v8500
      %v8502 = vcombine.low %v8480, %v8487
      %v8503 = vcombine.low %v8494, %v8501
      %v8505 = vunpack.c.l.s4 1966171168
      %v8506 = vunpack.c.0.s8 %v8505
      %v8507 = vlaneseq
      %v8508 = vshrl.u32 %v8507, 7
      %v8509 = vsub.s32 %v8506, %v8508
      %v8510 = vrot.slane %v8502, %v8509
      %v8512 = vunpack.c.l.s4 1966171168
      %v8513 = vunpack.c.0.s8 %v8512
      %v8514 = vlaneseq
      %v8515 = vshrl.u32 %v8514, 7
      %v8516 = vsub.s32 %v8513, %v8515
      %v8517 = vrot.slane %v8503, %v8516
      %v8518 = vcombine.low %v8510, %v8517
      %v8520 = vunpack.c.l.s4 1966171168
      %v8521 = vunpack.c.0.s8 %v8520
      %v8522 = vlaneseq
      %v8523 = vshrl.u32 %v8522, 7
      %v8524 = vsub.s32 %v8521, %v8523
      %v8525 = vrot.slane %v8166, %v8524
      %v8527 = vunpack.c.l.s4 1966171168
      %v8528 = vunpack.c.0.s8 %v8527
      %v8529 = vlaneseq
      %v8530 = vshrl.u32 %v8529, 7
      %v8531 = vsub.s32 %v8528, %v8530
      %v8532 = vrot.slane %v8525, %v8531
      %v8535 = vpack.c.bf16 %v8532, %v8518
      %s8536 = scalar_lea.vmem %s9, 16
      %v8537 = vld [vmem:[%s8536] sm:$0xf]
      %v8538 = vld [vmem:[%s8536 + $0x4] sm:$0xf]
      %v8541 = vunpack.c.l.b16 %v8537
      %v8542 = vunpack.c.l.b16 %v8538
      %v8543 = vpack.c.b16 %v8542, %v8541
      %v8546 = vsel %vm8375, %v8535, 0
      %8548 = vmatprep.subr.bf16.mxu0 0
      %8549 = vmatpush1.bf16.msra.mxu0 %v8543
      %8550 = vmatprep.subr.bf16.mxu0 0
      %8551 = vmatpush1.bf16.msra.mxu0 0
      %8552 = vmatprep.subr.bf16.mxu0 0
      %8553 = vmatpush1.bf16.msra.mxu0 0
      %8554 = vmatprep.subr.bf16.mxu0 0
      %8555 = vmatpush1.bf16.msra.mxu0 0
      %8556 = vmatprep.subr.bf16.mxu0 0
      %8557 = vmatpush1.bf16.msra.mxu0 0
      %8558 = vmatprep.subr.bf16.mxu0 0
      %8559 = vmatpush1.bf16.msra.mxu0 0
      %8560 = vmatprep.subr.bf16.mxu0 0
      %8561 = vmatpush1.bf16.msra.mxu0 0
      %8562 = vmatprep.subr.bf16.mxu0 0
      %8563 = vmatpush1.bf16.msra.mxu0 0
      %8564 = vmatprep.subr.bf16.mxu0 0
      %8565 = vmatpush1.bf16.msra.mxu0 0
      %8566 = vmatprep.subr.bf16.mxu0 0
      %8567 = vmatpush1.bf16.msra.mxu0 0
      %8568 = vmatprep.subr.bf16.mxu0 0
      %8569 = vmatpush1.bf16.msra.mxu0 0
      %8570 = vmatprep.subr.bf16.mxu0 0
      %8571 = vmatpush1.bf16.msra.mxu0 0
      %8572 = vmatprep.subr.bf16.mxu0 0
      %8573 = vmatpush1.bf16.msra.mxu0 0
      %8574 = vmatprep.subr.bf16.mxu0 0
      %8575 = vmatpush1.bf16.msra.mxu0 0
      %8576 = vmatprep.subr.bf16.mxu0 0
      %8577 = vmatpush1.bf16.msra.mxu0 0
      %8578 = vmatprep.subr.bf16.mxu0 0
      %8579 = vmatpush1.bf16.msra.mxu0 0
      %8580 = vmatprep.mubr.bf16.mxu0 0
      %8581 = vmatmul.mubr.bf16.gmra.mrb[0].mxu0 %v8546
      %v8582 = vpop.f32.mrb[0].mxu0
      %v8583 = vadd.f32 0.0, %v8582
      %v8584 = vpop.f32.mrb[0].mxu0
      %v8585 = vpop.f32.mrb[0].mxu0
      %v8586 = vadd.f32 0.0, %v8585
      %v8587 = vpop.f32.mrb[0].mxu0
      %8588 = vdwg.mxu0
      %v8589 = vadd.f32 %v8464, %v8583
      %v8590 = vadd.f32 %v8467, %v8586
      %v8591 = vcombine.low %v8115, %v8117
      %v8592 = vcombine.low %v8119, %v8165
      %v8593 = vcombine.low %v8168, %v8192
      %v8595 = vunpack.c.l.s4 1966171168
      %v8596 = vunpack.c.0.s8 %v8595
      %v8597 = vlaneseq
      %v8598 = vshrl.u32 %v8597, 7
      %v8599 = vsub.s32 %v8596, %v8598
      %v8600 = vrot.slane %v8591, %v8599
      %v8602 = vunpack.c.l.s4 1966171168
      %v8603 = vunpack.c.0.s8 %v8602
      %v8604 = vlaneseq
      %v8605 = vshrl.u32 %v8604, 7
      %v8606 = vsub.s32 %v8603, %v8605
      %v8607 = vrot.slane %v8592, %v8606
      %v8609 = vunpack.c.l.s4 1966171168
      %v8610 = vunpack.c.0.s8 %v8609
      %v8611 = vlaneseq
      %v8612 = vshrl.u32 %v8611, 7
      %v8613 = vsub.s32 %v8610, %v8612
      %v8614 = vrot.slane %v8593, %v8613
      %v8615 = vcombine.low %v8600, %v8607
      %v8616 = vcombine.low %v8331, %v8614
      %v8618 = vunpack.c.l.s4 1966171168
      %v8619 = vunpack.c.0.s8 %v8618
      %v8620 = vlaneseq
      %v8621 = vshrl.u32 %v8620, 7
      %v8622 = vsub.s32 %v8619, %v8621
      %v8623 = vrot.slane %v8615, %v8622
      %v8625 = vunpack.c.l.s4 1966171168
      %v8626 = vunpack.c.0.s8 %v8625
      %v8627 = vlaneseq
      %v8628 = vshrl.u32 %v8627, 7
      %v8629 = vsub.s32 %v8626, %v8628
      %v8630 = vrot.slane %v8616, %v8629
      %v8631 = vcombine.low %v8623, %v8630
      %v8633 = vunpack.c.l.s4 1966171168
      %v8634 = vunpack.c.0.s8 %v8633
      %v8635 = vlaneseq
      %v8636 = vshrl.u32 %v8635, 7
      %v8637 = vsub.s32 %v8634, %v8636
      %v8638 = vrot.slane %v8206, %v8637
      %v8640 = vunpack.c.l.s4 1966171168
      %v8641 = vunpack.c.0.s8 %v8640
      %v8642 = vlaneseq
      %v8643 = vshrl.u32 %v8642, 7
      %v8644 = vsub.s32 %v8641, %v8643
      %v8645 = vrot.slane %v8638, %v8644
      %v8648 = vpack.c.bf16 %v8645, %v8631
      %s8649 = scalar_lea.vmem %s9, 24
      %v8650 = vld [vmem:[%s8649] sm:$0xf]
      %v8651 = vld [vmem:[%s8649 + $0x4] sm:$0xf]
      %v8654 = vunpack.c.l.b16 %v8650
      %v8655 = vunpack.c.l.b16 %v8651
      %v8656 = vpack.c.b16 %v8655, %v8654
      %v8659 = vsel %vm8375, %v8648, 0
      %8661 = vmatprep.subr.bf16.mxu0 0
      %8662 = vmatpush1.bf16.msra.mxu0 %v8656
      %8663 = vmatprep.subr.bf16.mxu0 0
      %8664 = vmatpush1.bf16.msra.mxu0 0
      %8665 = vmatprep.subr.bf16.mxu0 0
      %8666 = vmatpush1.bf16.msra.mxu0 0
      %8667 = vmatprep.subr.bf16.mxu0 0
      %8668 = vmatpush1.bf16.msra.mxu0 0
      %8669 = vmatprep.subr.bf16.mxu0 0
      %8670 = vmatpush1.bf16.msra.mxu0 0
      %8671 = vmatprep.subr.bf16.mxu0 0
      %8672 = vmatpush1.bf16.msra.mxu0 0
      %8673 = vmatprep.subr.bf16.mxu0 0
      %8674 = vmatpush1.bf16.msra.mxu0 0
      %8675 = vmatprep.subr.bf16.mxu0 0
      %8676 = vmatpush1.bf16.msra.mxu0 0
      %8677 = vmatprep.subr.bf16.mxu0 0
      %8678 = vmatpush1.bf16.msra.mxu0 0
      %8679 = vmatprep.subr.bf16.mxu0 0
      %8680 = vmatpush1.bf16.msra.mxu0 0
      %8681 = vmatprep.subr.bf16.mxu0 0
      %8682 = vmatpush1.bf16.msra.mxu0 0
      %8683 = vmatprep.subr.bf16.mxu0 0
      %8684 = vmatpush1.bf16.msra.mxu0 0
      %8685 = vmatprep.subr.bf16.mxu0 0
      %8686 = vmatpush1.bf16.msra.mxu0 0
      %8687 = vmatprep.subr.bf16.mxu0 0
      %8688 = vmatpush1.bf16.msra.mxu0 0
      %8689 = vmatprep.subr.bf16.mxu0 0
      %8690 = vmatpush1.bf16.msra.mxu0 0
      %8691 = vmatprep.subr.bf16.mxu0 0
      %8692 = vmatpush1.bf16.msra.mxu0 0
      %8693 = vmatprep.mubr.bf16.mxu0 0
      %8694 = vmatmul.mubr.bf16.gmra.mrb[0].mxu0 %v8659
      %v8695 = vpop.f32.mrb[0].mxu0
      %v8696 = vadd.f32 0.0, %v8695
      %v8697 = vpop.f32.mrb[0].mxu0
      %v8698 = vpop.f32.mrb[0].mxu0
      %v8699 = vadd.f32 0.0, %v8698
      %v8700 = vpop.f32.mrb[0].mxu0
      %8701 = vdwg.mxu0
      %v8702 = vadd.f32 %v8589, %v8696
      %v8703 = vadd.f32 %v8590, %v8699
      %v8704 = vcombine.low %v8143, %v8167
      %v8705 = vcombine.low %v8192, %v8206
      %v8707 = vunpack.c.l.s4 1966171168
      %v8708 = vunpack.c.0.s8 %v8707
      %v8709 = vlaneseq
      %v8710 = vshrl.u32 %v8709, 7
      %v8711 = vsub.s32 %v8708, %v8710
      %v8712 = vrot.slane %v8704, %v8711
      %v8714 = vunpack.c.l.s4 1966171168
      %v8715 = vunpack.c.0.s8 %v8714
      %v8716 = vlaneseq
      %v8717 = vshrl.u32 %v8716, 7
      %v8718 = vsub.s32 %v8715, %v8717
      %v8719 = vrot.slane %v8705, %v8718
      %v8720 = vcombine.low %v8256, %v8712
      %v8721 = vcombine.low %v8501, %v8719
      %v8723 = vunpack.c.l.s4 1966171168
      %v8724 = vunpack.c.0.s8 %v8723
      %v8725 = vlaneseq
      %v8726 = vshrl.u32 %v8725, 7
      %v8727 = vsub.s32 %v8724, %v8726
      %v8728 = vrot.slane %v8720, %v8727
      %v8730 = vunpack.c.l.s4 1966171168
      %v8731 = vunpack.c.0.s8 %v8730
      %v8732 = vlaneseq
      %v8733 = vshrl.u32 %v8732, 7
      %v8734 = vsub.s32 %v8731, %v8733
      %v8735 = vrot.slane %v8721, %v8734
      %v8736 = vcombine.low %v8728, %v8735
      %v8738 = vunpack.c.l.s4 1966171168
      %v8739 = vunpack.c.0.s8 %v8738
      %v8740 = vlaneseq
      %v8741 = vshrl.u32 %v8740, 7
      %v8742 = vsub.s32 %v8739, %v8741
      %v8743 = vrot.slane %v8214, %v8742
      %v8745 = vunpack.c.l.s4 1966171168
      %v8746 = vunpack.c.0.s8 %v8745
      %v8747 = vlaneseq
      %v8748 = vshrl.u32 %v8747, 7
      %v8749 = vsub.s32 %v8746, %v8748
      %v8750 = vrot.slane %v8743, %v8749
      %v8753 = vpack.c.bf16 %v8750, %v8736
      %s8754 = scalar_lea.vmem %s9, 32
      %v8755 = vld [vmem:[%s8754] sm:$0xf]
      %v8756 = vld [vmem:[%s8754 + $0x4] sm:$0xf]
      %v8759 = vunpack.c.l.b16 %v8755
      %v8760 = vunpack.c.l.b16 %v8756
      %v8761 = vpack.c.b16 %v8760, %v8759
      %v8764 = vsel %vm8375, %v8753, 0
      %8766 = vmatprep.subr.bf16.mxu0 0
      %8767 = vmatpush1.bf16.msra.mxu0 %v8761
      %8768 = vmatprep.subr.bf16.mxu0 0
      %8769 = vmatpush1.bf16.msra.mxu0 0
      %8770 = vmatprep.subr.bf16.mxu0 0
      %8771 = vmatpush1.bf16.msra.mxu0 0
      %8772 = vmatprep.subr.bf16.mxu0 0
      %8773 = vmatpush1.bf16.msra.mxu0 0
      %8774 = vmatprep.subr.bf16.mxu0 0
      %8775 = vmatpush1.bf16.msra.mxu0 0
      %8776 = vmatprep.subr.bf16.mxu0 0
      %8777 = vmatpush1.bf16.msra.mxu0 0
      %8778 = vmatprep.subr.bf16.mxu0 0
      %8779 = vmatpush1.bf16.msra.mxu0 0
      %8780 = vmatprep.subr.bf16.mxu0 0
      %8781 = vmatpush1.bf16.msra.mxu0 0
      %8782 = vmatprep.subr.bf16.mxu0 0
      %8783 = vmatpush1.bf16.msra.mxu0 0
      %8784 = vmatprep.subr.bf16.mxu0 0
      %8785 = vmatpush1.bf16.msra.mxu0 0
      %8786 = vmatprep.subr.bf16.mxu0 0
      %8787 = vmatpush1.bf16.msra.mxu0 0
      %8788 = vmatprep.subr.bf16.mxu0 0
      %8789 = vmatpush1.bf16.msra.mxu0 0
      %8790 = vmatprep.subr.bf16.mxu0 0
      %8791 = vmatpush1.bf16.msra.mxu0 0
      %8792 = vmatprep.subr.bf16.mxu0 0
      %8793 = vmatpush1.bf16.msra.mxu0 0
      %8794 = vmatprep.subr.bf16.mxu0 0
      %8795 = vmatpush1.bf16.msra.mxu0 0
      %8796 = vmatprep.subr.bf16.mxu0 0
      %8797 = vmatpush1.bf16.msra.mxu0 0
      %8798 = vmatprep.mubr.bf16.mxu0 0
      %8799 = vmatmul.mubr.bf16.gmra.mrb[0].mxu0 %v8764
      %v8800 = vpop.f32.mrb[0].mxu0
      %v8801 = vadd.f32 0.0, %v8800
      %v8802 = vpop.f32.mrb[0].mxu0
      %v8803 = vpop.f32.mrb[0].mxu0
      %v8804 = vadd.f32 0.0, %v8803
      %v8805 = vpop.f32.mrb[0].mxu0
      %8806 = vdwg.mxu0
      %v8807 = vadd.f32 %v8702, %v8801
      %v8808 = vadd.f32 %v8703, %v8804
      %v8809 = vcombine.low %v8157, %v8150
      %v8810 = vcombine.low %v8164, %v8166
      %v8811 = vcombine.low %v8206, %v8214
      %v8813 = vunpack.c.l.s4 1966171168
      %v8814 = vunpack.c.0.s8 %v8813
      %v8815 = vlaneseq
      %v8816 = vshrl.u32 %v8815, 7
      %v8817 = vsub.s32 %v8814, %v8816
      %v8818 = vrot.slane %v8809, %v8817
      %v8820 = vunpack.c.l.s4 1966171168
      %v8821 = vunpack.c.0.s8 %v8820
      %v8822 = vlaneseq
      %v8823 = vshrl.u32 %v8822, 7
      %v8824 = vsub.s32 %v8821, %v8823
      %v8825 = vrot.slane %v8810, %v8824
      %v8827 = vunpack.c.l.s4 1966171168
      %v8828 = vunpack.c.0.s8 %v8827
      %v8829 = vlaneseq
      %v8830 = vshrl.u32 %v8829, 7
      %v8831 = vsub.s32 %v8828, %v8830
      %v8832 = vrot.slane %v8811, %v8831
      %v8833 = vcombine.low %v8324, %v8818
      %v8834 = vcombine.low %v8825, %v8832
      %v8836 = vunpack.c.l.s4 1966171168
      %v8837 = vunpack.c.0.s8 %v8836
      %v8838 = vlaneseq
      %v8839 = vshrl.u32 %v8838, 7
      %v8840 = vsub.s32 %v8837, %v8839
      %v8841 = vrot.slane %v8833, %v8840
      %v8843 = vunpack.c.l.s4 1966171168
      %v8844 = vunpack.c.0.s8 %v8843
      %v8845 = vlaneseq
      %v8846 = vshrl.u32 %v8845, 7
      %v8847 = vsub.s32 %v8844, %v8846
      %v8848 = vrot.slane %v8834, %v8847
      %v8849 = vcombine.low %v8841, %v8848
      %v8851 = vunpack.c.l.s4 1966171168
      %v8852 = vunpack.c.0.s8 %v8851
      %v8853 = vlaneseq
      %v8854 = vshrl.u32 %v8853, 7
      %v8855 = vsub.s32 %v8852, %v8854
      %v8856 = vrot.slane %v8216, %v8855
      %v8858 = vunpack.c.l.s4 1966171168
      %v8859 = vunpack.c.0.s8 %v8858
      %v8860 = vlaneseq
      %v8861 = vshrl.u32 %v8860, 7
      %v8862 = vsub.s32 %v8859, %v8861
      %v8863 = vrot.slane %v8856, %v8862
      %v8866 = vpack.c.bf16 %v8863, %v8849
      %s8867 = scalar_lea.vmem %s9, 40
      %v8868 = vld [vmem:[%s8867] sm:$0xf]
      %v8869 = vld [vmem:[%s8867 + $0x4] sm:$0xf]
      %v8872 = vunpack.c.l.b16 %v8868
      %v8873 = vunpack.c.l.b16 %v8869
      %v8874 = vpack.c.b16 %v8873, %v8872
      %v8877 = vsel %vm8375, %v8866, 0
      %8879 = vmatprep.subr.bf16.mxu0 0
      %8880 = vmatpush1.bf16.msra.mxu0 %v8874
      %8881 = vmatprep.subr.bf16.mxu0 0
      %8882 = vmatpush1.bf16.msra.mxu0 0
      %8883 = vmatprep.subr.bf16.mxu0 0
      %8884 = vmatpush1.bf16.msra.mxu0 0
      %8885 = vmatprep.subr.bf16.mxu0 0
      %8886 = vmatpush1.bf16.msra.mxu0 0
      %8887 = vmatprep.subr.bf16.mxu0 0
      %8888 = vmatpush1.bf16.msra.mxu0 0
      %8889 = vmatprep.subr.bf16.mxu0 0
      %8890 = vmatpush1.bf16.msra.mxu0 0
      %8891 = vmatprep.subr.bf16.mxu0 0
      %8892 = vmatpush1.bf16.msra.mxu0 0
      %8893 = vmatprep.subr.bf16.mxu0 0
      %8894 = vmatpush1.bf16.msra.mxu0 0
      %8895 = vmatprep.subr.bf16.mxu0 0
      %8896 = vmatpush1.bf16.msra.mxu0 0
      %8897 = vmatprep.subr.bf16.mxu0 0
      %8898 = vmatpush1.bf16.msra.mxu0 0
      %8899 = vmatprep.subr.bf16.mxu0 0
      %8900 = vmatpush1.bf16.msra.mxu0 0
      %8901 = vmatprep.subr.bf16.mxu0 0
      %8902 = vmatpush1.bf16.msra.mxu0 0
      %8903 = vmatprep.subr.bf16.mxu0 0
      %8904 = vmatpush1.bf16.msra.mxu0 0
      %8905 = vmatprep.subr.bf16.mxu0 0
      %8906 = vmatpush1.bf16.msra.mxu0 0
      %8907 = vmatprep.subr.bf16.mxu0 0
      %8908 = vmatpush1.bf16.msra.mxu0 0
      %8909 = vmatprep.subr.bf16.mxu0 0
      %8910 = vmatpush1.bf16.msra.mxu0 0
      %8911 = vmatprep.mubr.bf16.mxu0 0
      %8912 = vmatmul.mubr.bf16.gmra.mrb[0].mxu0 %v8877
      %v8913 = vpop.f32.mrb[0].mxu0
      %v8914 = vadd.f32 0.0, %v8913
      %v8915 = vpop.f32.mrb[0].mxu0
      %v8916 = vpop.f32.mrb[0].mxu0
      %v8917 = vadd.f32 0.0, %v8916
      %v8918 = vpop.f32.mrb[0].mxu0
      %8919 = vdwg.mxu0
      %v8920 = vadd.f32 %v8807, %v8914
      %v8921 = vadd.f32 %v8808, %v8917
      %v8922 = vcombine.low %v8150, %v8168
      %v8923 = vcombine.low %v8199, %v8213
      %v8925 = vunpack.c.l.s4 1966171168
      %v8926 = vunpack.c.0.s8 %v8925
      %v8927 = vlaneseq
      %v8928 = vshrl.u32 %v8927, 7
      %v8929 = vsub.s32 %v8926, %v8928
      %v8930 = vrot.slane %v8922, %v8929
      %v8932 = vunpack.c.l.s4 1966171168
      %v8933 = vunpack.c.0.s8 %v8932
      %v8934 = vlaneseq
      %v8935 = vshrl.u32 %v8934, 7
      %v8936 = vsub.s32 %v8933, %v8935
      %v8937 = vrot.slane %v8923, %v8936
      %v8938 = vcombine.low %v8263, %v8930
      %v8939 = vcombine.low %v8719, %v8937
      %v8941 = vunpack.c.l.s4 1966171168
      %v8942 = vunpack.c.0.s8 %v8941
      %v8943 = vlaneseq
      %v8944 = vshrl.u32 %v8943, 7
      %v8945 = vsub.s32 %v8942, %v8944
      %v8946 = vrot.slane %v8938, %v8945
      %v8948 = vunpack.c.l.s4 1966171168
      %v8949 = vunpack.c.0.s8 %v8948
      %v8950 = vlaneseq
      %v8951 = vshrl.u32 %v8950, 7
      %v8952 = vsub.s32 %v8949, %v8951
      %v8953 = vrot.slane %v8939, %v8952
      %v8954 = vcombine.low %v8946, %v8953
      %v8956 = vunpack.c.l.s4 1966171168
      %v8957 = vunpack.c.0.s8 %v8956
      %v8958 = vlaneseq
      %v8959 = vshrl.u32 %v8958, 7
      %v8960 = vsub.s32 %v8957, %v8959
      %v8961 = vrot.slane %v8215, %v8960
      %v8963 = vunpack.c.l.s4 1966171168
      %v8964 = vunpack.c.0.s8 %v8963
      %v8965 = vlaneseq
      %v8966 = vshrl.u32 %v8965, 7
      %v8967 = vsub.s32 %v8964, %v8966
      %v8968 = vrot.slane %v8961, %v8967
      %v8971 = vpack.c.bf16 %v8968, %v8954
      %s8972 = scalar_lea.vmem %s9, 48
      %v8973 = vld [vmem:[%s8972] sm:$0xf]
      %v8974 = vld [vmem:[%s8972 + $0x4] sm:$0xf]
      %v8977 = vunpack.c.l.b16 %v8973
      %v8978 = vunpack.c.l.b16 %v8974
      %v8979 = vpack.c.b16 %v8978, %v8977
      %v8982 = vsel %vm8375, %v8971, 0
      %8984 = vmatprep.subr.bf16.mxu0 0
      %8985 = vmatpush1.bf16.msra.mxu0 %v8979
      %8986 = vmatprep.subr.bf16.mxu0 0
      %8987 = vmatpush1.bf16.msra.mxu0 0
      %8988 = vmatprep.subr.bf16.mxu0 0
      %8989 = vmatpush1.bf16.msra.mxu0 0
      %8990 = vmatprep.subr.bf16.mxu0 0
      %8991 = vmatpush1.bf16.msra.mxu0 0
      %8992 = vmatprep.subr.bf16.mxu0 0
      %8993 = vmatpush1.bf16.msra.mxu0 0
      %8994 = vmatprep.subr.bf16.mxu0 0
      %8995 = vmatpush1.bf16.msra.mxu0 0
      %8996 = vmatprep.subr.bf16.mxu0 0
      %8997 = vmatpush1.bf16.msra.mxu0 0
      %8998 = vmatprep.subr.bf16.mxu0 0
      %8999 = vmatpush1.bf16.msra.mxu0 0
      %9000 = vmatprep.subr.bf16.mxu0 0
      %9001 = vmatpush1.bf16.msra.mxu0 0
      %9002 = vmatprep.subr.bf16.mxu0 0
      %9003 = vmatpush1.bf16.msra.mxu0 0
      %9004 = vmatprep.subr.bf16.mxu0 0
      %9005 = vmatpush1.bf16.msra.mxu0 0
      %9006 = vmatprep.subr.bf16.mxu0 0
      %9007 = vmatpush1.bf16.msra.mxu0 0
      %9008 = vmatprep.subr.bf16.mxu0 0
      %9009 = vmatpush1.bf16.msra.mxu0 0
      %9010 = vmatprep.subr.bf16.mxu0 0
      %9011 = vmatpush1.bf16.msra.mxu0 0
      %9012 = vmatprep.subr.bf16.mxu0 0
      %9013 = vmatpush1.bf16.msra.mxu0 0
      %9014 = vmatprep.subr.bf16.mxu0 0
      %9015 = vmatpush1.bf16.msra.mxu0 0
      %9016 = vmatprep.mubr.bf16.mxu0 0
      %9017 = vmatmul.mubr.bf16.gmra.mrb[0].mxu0 %v8982
      %v9018 = vpop.f32.mrb[0].mxu0
      %v9019 = vadd.f32 0.0, %v9018
      %v9020 = vpop.f32.mrb[0].mxu0
      %v9021 = vpop.f32.mrb[0].mxu0
      %v9022 = vadd.f32 0.0, %v9021
      %v9023 = vpop.f32.mrb[0].mxu0
      %9024 = vdwg.mxu0
      %v9025 = vadd.f32 %v8920, %v9019
      %v9026 = vadd.f32 %v8921, %v9022
      %v9027 = vcombine.low %v8164, %v8192
      %v9028 = vcombine.low %v8213, %v8215
      %v9030 = vunpack.c.l.s4 1966171168
      %v9031 = vunpack.c.0.s8 %v9030
      %v9032 = vlaneseq
      %v9033 = vshrl.u32 %v9032, 7
      %v9034 = vsub.s32 %v9031, %v9033
      %v9035 = vrot.slane %v9027, %v9034
      %v9037 = vunpack.c.l.s4 1966171168
      %v9038 = vunpack.c.0.s8 %v9037
      %v9039 = vlaneseq
      %v9040 = vshrl.u32 %v9039, 7
      %v9041 = vsub.s32 %v9038, %v9040
      %v9042 = vrot.slane %v9028, %v9041
      %v9043 = vcombine.low %v8331, %v9035
      %v9044 = vcombine.low %v8832, %v9042
      %v9046 = vunpack.c.l.s4 1966171168
      %v9047 = vunpack.c.0.s8 %v9046
      %v9048 = vlaneseq
      %v9049 = vshrl.u32 %v9048, 7
      %v9050 = vsub.s32 %v9047, %v9049
      %v9051 = vrot.slane %v9043, %v9050
      %v9053 = vunpack.c.l.s4 1966171168
      %v9054 = vunpack.c.0.s8 %v9053
      %v9055 = vlaneseq
      %v9056 = vshrl.u32 %v9055, 7
      %v9057 = vsub.s32 %v9054, %v9056
      %v9058 = vrot.slane %v9044, %v9057
      %v9059 = vcombine.low %v9051, %v9058
      %v9061 = vunpack.c.l.s4 1966171168
      %v9062 = vunpack.c.0.s8 %v9061
      %v9063 = vlaneseq
      %v9064 = vshrl.u32 %v9063, 7
      %v9065 = vsub.s32 %v9062, %v9064
      %v9066 = vrot.slane %v8217, %v9065
      %v9068 = vunpack.c.l.s4 1966171168
      %v9069 = vunpack.c.0.s8 %v9068
      %v9070 = vlaneseq
      %v9071 = vshrl.u32 %v9070, 7
      %v9072 = vsub.s32 %v9069, %v9071
      %v9073 = vrot.slane %v9066, %v9072
      %v9076 = vpack.c.bf16 %v9073, %v9059
      %s9077 = scalar_lea.vmem %s9, 56
      %v9078 = vld [vmem:[%s9077] sm:$0xf]
      %v9079 = vld [vmem:[%s9077 + $0x4] sm:$0xf]
      %v9082 = vunpack.c.l.b16 %v9078
      %v9083 = vunpack.c.l.b16 %v9079
      %v9084 = vpack.c.b16 %v9083, %v9082
      %v9087 = vsel %vm8375, %v9076, 0
      %9089 = vmatprep.subr.bf16.mxu0 0
      %9090 = vmatpush1.bf16.msra.mxu0 %v9084
      %9091 = vmatprep.subr.bf16.mxu0 0
      %9092 = vmatpush1.bf16.msra.mxu0 0
      %9093 = vmatprep.subr.bf16.mxu0 0
      %9094 = vmatpush1.bf16.msra.mxu0 0
      %9095 = vmatprep.subr.bf16.mxu0 0
      %9096 = vmatpush1.bf16.msra.mxu0 0
      %9097 = vmatprep.subr.bf16.mxu0 0
      %9098 = vmatpush1.bf16.msra.mxu0 0
      %9099 = vmatprep.subr.bf16.mxu0 0
      %9100 = vmatpush1.bf16.msra.mxu0 0
      %9101 = vmatprep.subr.bf16.mxu0 0
      %9102 = vmatpush1.bf16.msra.mxu0 0
      %9103 = vmatprep.subr.bf16.mxu0 0
      %9104 = vmatpush1.bf16.msra.mxu0 0
      %9105 = vmatprep.subr.bf16.mxu0 0
      %9106 = vmatpush1.bf16.msra.mxu0 0
      %9107 = vmatprep.subr.bf16.mxu0 0
      %9108 = vmatpush1.bf16.msra.mxu0 0
      %9109 = vmatprep.subr.bf16.mxu0 0
      %9110 = vmatpush1.bf16.msra.mxu0 0
      %9111 = vmatprep.subr.bf16.mxu0 0
      %9112 = vmatpush1.bf16.msra.mxu0 0
      %9113 = vmatprep.subr.bf16.mxu0 0
      %9114 = vmatpush1.bf16.msra.mxu0 0
      %9115 = vmatprep.subr.bf16.mxu0 0
      %9116 = vmatpush1.bf16.msra.mxu0 0
      %9117 = vmatprep.subr.bf16.mxu0 0
      %9118 = vmatpush1.bf16.msra.mxu0 0
      %9119 = vmatprep.subr.bf16.mxu0 0
      %9120 = vmatpush1.bf16.msra.mxu0 0
      %9121 = vmatprep.mubr.bf16.mxu0 0
      %9122 = vmatmul.mubr.bf16.gmra.mrb[0].mxu0 %v9087
      %v9123 = vpop.f32.mrb[0].mxu0
      %v9124 = vadd.f32 0.0, %v9123
      %v9125 = vpop.f32.mrb[0].mxu0
      %v9126 = vpop.f32.mrb[0].mxu0
      %v9127 = vadd.f32 0.0, %v9126
      %v9128 = vpop.f32.mrb[0].mxu0
      %9129 = vdwg.mxu0
      %v9130 = vadd.f32 %v9025, %v9124
      %v9131 = vadd.f32 %v9026, %v9127
      %v9132 = vcombine.low %v8166, %v8206
      %v9133 = vcombine.low %v8214, %v8216
      %v9134 = vcombine.low %v8215, %v8217
      %v9136 = vunpack.c.l.s4 1966171168
      %v9137 = vunpack.c.0.s8 %v9136
      %v9138 = vlaneseq
      %v9139 = vshrl.u32 %v9138, 7
      %v9140 = vsub.s32 %v9137, %v9139
      %v9141 = vrot.slane %v9132, %v9140
      %v9143 = vunpack.c.l.s4 1966171168
      %v9144 = vunpack.c.0.s8 %v9143
      %v9145 = vlaneseq
      %v9146 = vshrl.u32 %v9145, 7
      %v9147 = vsub.s32 %v9144, %v9146
      %v9148 = vrot.slane %v9133, %v9147
      %v9150 = vunpack.c.l.s4 1966171168
      %v9151 = vunpack.c.0.s8 %v9150
      %v9152 = vlaneseq
      %v9153 = vshrl.u32 %v9152, 7
      %v9154 = vsub.s32 %v9151, %v9153
      %v9155 = vrot.slane %v9134, %v9154
      %v9156 = vcombine.low %v8501, %v9141
      %v9157 = vcombine.low %v9148, %v9155
      %v9159 = vunpack.c.l.s4 1966171168
      %v9160 = vunpack.c.0.s8 %v9159
      %v9161 = vlaneseq
      %v9162 = vshrl.u32 %v9161, 7
      %v9163 = vsub.s32 %v9160, %v9162
      %v9164 = vrot.slane %v9156, %v9163
      %v9166 = vunpack.c.l.s4 1966171168
      %v9167 = vunpack.c.0.s8 %v9166
      %v9168 = vlaneseq
      %v9169 = vshrl.u32 %v9168, 7
      %v9170 = vsub.s32 %v9167, %v9169
      %v9171 = vrot.slane %v9157, %v9170
      %v9172 = vcombine.low %v9164, %v9171
      %v9174 = vunpack.c.l.s4 1966171168
      %v9175 = vunpack.c.0.s8 %v9174
      %v9176 = vlaneseq
      %v9177 = vshrl.u32 %v9176, 7
      %v9178 = vsub.s32 %v9175, %v9177
      %v9179 = vrot.slane %v8231, %v9178
      %v9181 = vunpack.c.l.s4 1966171168
      %v9182 = vunpack.c.0.s8 %v9181
      %v9183 = vlaneseq
      %v9184 = vshrl.u32 %v9183, 7
      %v9185 = vsub.s32 %v9182, %v9184
      %v9186 = vrot.slane %v9179, %v9185
      %v9189 = vpack.c.bf16 %v9186, %v9172
      %s9190 = scalar_lea.vmem %s9, 64
      %v9191 = vld [vmem:[%s9190] sm:$0xf]
      %v9192 = vld [vmem:[%s9190 + $0x4] sm:$0xf]
      %v9195 = vunpack.c.l.b16 %v9191
      %v9196 = vunpack.c.l.b16 %v9192
      %v9197 = vpack.c.b16 %v9196, %v9195
      %v9200 = vsel %vm8375, %v9189, 0
      %9202 = vmatprep.subr.bf16.mxu0 0
      %9203 = vmatpush1.bf16.msra.mxu0 %v9197
      %9204 = vmatprep.subr.bf16.mxu0 0
      %9205 = vmatpush1.bf16.msra.mxu0 0
      %9206 = vmatprep.subr.bf16.mxu0 0
      %9207 = vmatpush1.bf16.msra.mxu0 0
      %9208 = vmatprep.subr.bf16.mxu0 0
      %9209 = vmatpush1.bf16.msra.mxu0 0
      %9210 = vmatprep.subr.bf16.mxu0 0
      %9211 = vmatpush1.bf16.msra.mxu0 0
      %9212 = vmatprep.subr.bf16.mxu0 0
      %9213 = vmatpush1.bf16.msra.mxu0 0
      %9214 = vmatprep.subr.bf16.mxu0 0
      %9215 = vmatpush1.bf16.msra.mxu0 0
      %9216 = vmatprep.subr.bf16.mxu0 0
      %9217 = vmatpush1.bf16.msra.mxu0 0
      %9218 = vmatprep.subr.bf16.mxu0 0
      %9219 = vmatpush1.bf16.msra.mxu0 0
      %9220 = vmatprep.subr.bf16.mxu0 0
      %9221 = vmatpush1.bf16.msra.mxu0 0
      %9222 = vmatprep.subr.bf16.mxu0 0
      %9223 = vmatpush1.bf16.msra.mxu0 0
      %9224 = vmatprep.subr.bf16.mxu0 0
      %9225 = vmatpush1.bf16.msra.mxu0 0
      %9226 = vmatprep.subr.bf16.mxu0 0
      %9227 = vmatpush1.bf16.msra.mxu0 0
      %9228 = vmatprep.subr.bf16.mxu0 0
      %9229 = vmatpush1.bf16.msra.mxu0 0
      %9230 = vmatprep.subr.bf16.mxu0 0
      %9231 = vmatpush1.bf16.msra.mxu0 0
      %9232 = vmatprep.subr.bf16.mxu0 0
      %9233 = vmatpush1.bf16.msra.mxu0 0
      %9234 = vmatprep.mubr.bf16.mxu0 0
      %9235 = vmatmul.mubr.bf16.gmra.mrb[0].mxu0 %v9200
      %v9236 = vpop.f32.mrb[0].mxu0
      %v9237 = vadd.f32 0.0, %v9236
      %v9238 = vpop.f32.mrb[0].mxu0
      %v9239 = vpop.f32.mrb[0].mxu0
      %v9240 = vadd.f32 0.0, %v9239
      %v9241 = vpop.f32.mrb[0].mxu0
      %9242 = vdwg.mxu0
      %v9243 = vadd.f32 %v9130, %v9237
      %v9244 = vadd.f32 %v9131, %v9240
      %v9245 = vld [vmem:[%s10] sm:$0x1]
      %v9247 = vlaneseq
      %v9248 = vshrl.u32 %v9247, 7
      %v9249 = vsub.s32 0, %v9248
      %v9250 = vrot.slane %v9245, %v9249
      %v9252 = vmul.f32 %v9243, %v9250
      %v9253 = vmul.f32 %v9244, %v9250
      %v9254 = vld [vmem:[%s11] sm:$0x1]
      %v9256 = vlaneseq
      %v9257 = vshrl.u32 %v9256, 7
      %v9258 = vsub.s32 0, %v9257
      %v9259 = vrot.slane %v9254, %v9258
      %v9261 = vadd.f32 %v9252, %v9259
      %v9262 = vadd.f32 %v9253, %v9259
      %vm9263 = vcmp.gt.f32.partialorder %v9261, 0.0
      %vm9264 = vcmp.gt.f32.partialorder %v9262, 0.0
      %v9265 = vld [vmem:[%s12] sm:$0x1]
      %v9267 = vlaneseq
      %v9268 = vshrl.u32 %v9267, 7
      %v9269 = vsub.s32 0, %v9268
      %v9270 = vrot.slane %v9265, %v9269
      %v9272 = vmul.f32 %v9270, %v9261
      %v9273 = vmul.f32 %v9270, %v9262
      %v9274 = vsel %vm9263, %v9261, %v9272
      %v9275 = vsel %vm9264, %v9262, %v9273
      %v9276 = vpack.c.bf16 %v9275, %v9274
      %v9277 = vld [vmem:[%s13] sm:$0xf]
      %v9278 = vld [vmem:[%s13 + $0x4] sm:$0xf]
      %v9279 = vld [vmem:[%s13 + $0x8] sm:$0xf]
      %v9280 = vld [vmem:[%s13 + $0xc] sm:$0xf]
      %v9281 = vld [vmem:[%s14] sm:$0x1]
      %v9283 = vlaneseq
      %v9284 = vshrl.u32 %v9283, 7
      %v9285 = vsub.s32 0, %v9284
      %v9286 = vrot.slane %v9281, %v9285
      %v9292 = vunpack.c.l.b16 %v9277
      %v9293 = vunpack.c.l.b16 %v9278
      %v9294 = vunpack.c.l.b16 %v9279
      %v9295 = vunpack.c.l.b16 %v9280
      %v9296 = vpack.c.b16 %v9293, %v9292
      %v9297 = vpack.c.b16 %v9295, %v9294
      %vm9300 = vcmask 261120
      %v9302 = vsel %vm9300, %v9276, 0
      %9304 = vmatprep.subr.bf16.mxu0 0
      %9305 = vmatpush1.bf16.msra.mxu0 %v9296
      %9306 = vmatprep.subr.bf16.mxu0 0
      %9307 = vmatpush1.bf16.msra.mxu0 %v9297
      %9308 = vmatprep.subr.bf16.mxu0 0
      %9309 = vmatpush1.bf16.msra.mxu0 0
      %9310 = vmatprep.subr.bf16.mxu0 0
      %9311 = vmatpush1.bf16.msra.mxu0 0
      %9312 = vmatprep.subr.bf16.mxu0 0
      %9313 = vmatpush1.bf16.msra.mxu0 0
      %9314 = vmatprep.subr.bf16.mxu0 0
      %9315 = vmatpush1.bf16.msra.mxu0 0
      %9316 = vmatprep.subr.bf16.mxu0 0
      %9317 = vmatpush1.bf16.msra.mxu0 0
      %9318 = vmatprep.subr.bf16.mxu0 0
      %9319 = vmatpush1.bf16.msra.mxu0 0
      %9320 = vmatprep.subr.bf16.mxu0 0
      %9321 = vmatpush1.bf16.msra.mxu0 0
      %9322 = vmatprep.subr.bf16.mxu0 0
      %9323 = vmatpush1.bf16.msra.mxu0 0
      %9324 = vmatprep.subr.bf16.mxu0 0
      %9325 = vmatpush1.bf16.msra.mxu0 0
      %9326 = vmatprep.subr.bf16.mxu0 0
      %9327 = vmatpush1.bf16.msra.mxu0 0
      %9328 = vmatprep.subr.bf16.mxu0 0
      %9329 = vmatpush1.bf16.msra.mxu0 0
      %9330 = vmatprep.subr.bf16.mxu0 0
      %9331 = vmatpush1.bf16.msra.mxu0 0
      %9332 = vmatprep.subr.bf16.mxu0 0
      %9333 = vmatpush1.bf16.msra.mxu0 0
      %9334 = vmatprep.subr.bf16.mxu0 0
      %9335 = vmatpush1.bf16.msra.mxu0 0
      %9336 = vmatprep.mubr.bf16.mxu0 0
      %9337 = vmatmul.mubr.bf16.gmra.mrb[0].mxu0 %v9302
      %v9338 = vpop.f32.mrb[0].mxu0
      %v9339 = vadd.f32 %v9286, %v9338
      %v9340 = vpop.f32.mrb[0].mxu0
      %v9341 = vpop.f32.mrb[0].mxu0
      %v9342 = vadd.f32 %v9286, %v9341
      %v9343 = vpop.f32.mrb[0].mxu0
      %9344 = vdwg.mxu0
      %v9345 = vsub.f32 0.0, %v9339
      %v9346 = vsub.f32 0.0, %v9342
      %v9347 = vmul.f32 %v9345, 1.442695
      %v9348 = vpow.pop %v9347
      %v9349 = vmul.f32 %v9346, 1.442695
      %v9350 = vpow.pop %v9349
      %v9351 = vadd.f32 %v9348, 1.0
      %v9352 = vadd.f32 %v9350, 1.0
      %v9353 = vrcp.pop %v9351
      %v9354 = vrcp.pop %v9352
      %v9355 = vlaneseq
      %v9356 = vand.u32 %v9355, 127
      %vm9357 = vcmp.eq.s32.totalorder %v9356, 0
      %v9358 = vsel %vm9357, %v9353, %v9339
      %v9359 = vsel %vm9357, %v9354, %v9342
      %vm9360 = vcmask 39936
      %9361 = vst.msk [vmem:[%s494] sm:$0xff] %vm9360, %v9358
      %vm9362 = vcmask 32768
      %9363 = vst.msk [vmem:[%s494 + $0x8] sm:$0x1] %vm9362, %v9359
      %p9364 = scmp.lt.s32.totalorder %s26, 1
      %s9365 = scalar_select %p9364, %s26, 1
      %s9366 = smul.addr %s9365, 2
      %s9367 = smul.addr %s9366, 8
      %s9368 = scalar_lea.vmem %s15, %s9367
      // Predicated region
      $region81: #{pnet_forward.1} parent=79 // pred_check
        %p9369 = pneg %p364
      $region82: #{pnet_forward.1} parent=79 // pred_check_branch
        %9371 = sbr.rel (%p9369) target = $region84
      $region83: #{pnet_forward.1} parent=79 // pred_region
        _
      $region84: #{pnet_forward.1} parent=79 // pred_fallthru
        _
    $region80: #{pnet_forward.1} parent=5 // pred_fallthru
      _
    %p9372 = scmp.le.s32.totalorder 2, %s21
    // Predicated region
    $region85: #{pnet_forward.1} parent=5 // pred_check
      %p9373 = pneg %p9372
    $region86: #{pnet_forward.1} parent=5 // pred_check_branch
      %9375 = sbr.rel (%p9373) target = $region88
    $region87: #{pnet_forward.1} parent=5 // pred_region
      %s9376 = ssub.s32 %s21, 2
      // Predicated region
      $region89: #{pnet_forward.1} parent=87 // pred_check
        %p9377 = pneg %p370
      $region90: #{pnet_forward.1} parent=87 // pred_check_branch
        %9379 = sbr.rel (%p9377) target = $region92
      $region91: #{pnet_forward.1} parent=87 // pred_region
        %p9380 = scmp.lt.s32.totalorder %s27, 1
        %s9381 = scalar_select %p9380, %s27, 1
        %s9382 = smul.addr %s9381, 2
        %s9383 = smul.addr %s9382, 8
        %s9384 = scalar_lea.vmem %s15, %s9383
      $region92: #{pnet_forward.1} parent=87 // pred_fallthru
        _
    $region88: #{pnet_forward.1} parent=5 // pred_fallthru
      _
  $region6: #{pnet_forward.1} parent=0 // loop_footer
    %s25 = sadd.s32 1, %s21
  $region7: #{pnet_forward.1} parent=0 // loop_footer_branch
    %20 = sbr.rel target = $region3
  $region8: #{pnet_forward.1} parent=0 // loop_exit
    _

</llo_original>
